<compile_context>
chip_gen: v7x
topology: tpu7x:2x2x1
jax: 0.10.0
libtpu: 0.0.40
codegen_flags: <defaults>
</compile_context>

<pallas_src>
import functools

import numpy as np
import jax
import jax.numpy as jnp
from jax.experimental import pallas as pl
from jax.experimental.pallas import tpu as pltpu

_EPS = 1e-8                            # torch.nn.CosineSimilarity eps
_EPS2 = _EPS * _EPS                    # 1/max(||v||,eps) == rsqrt(max(||v||^2, eps^2))
_MIN_LANES = 128                       # below this output lane width, use fused XLA
_VMEM_LIMIT = 48 * 1024 * 1024         # scoped-VMEM ceiling (safe on v7x's 64 MiB)
_VMEM_BUDGET = 36 * 1024 * 1024        # target for the *estimated* live set


# ------------------------------ helpers ------------------------------------- #
def _pick_rows(total_rows, bytes_per_row, budget):
    """Largest multiple-of-8 divisor of total_rows whose estimated live bytes
    fit `budget`; the smallest such divisor if none fits; None if none exists."""
    divisors = [t for t in range(8, total_rows + 1, 8) if total_rows % t == 0]
    if not divisors:
        return None
    fitting = [t for t in divisors if t * bytes_per_row <= budget]
    return max(fitting) if fitting else min(divisors)


@functools.lru_cache(maxsize=None)
def _haar_col_butterfly(W):
    """(W, W) column butterfly: S @ M = [0.5*(S_even + S_odd) | 0.5*(S_odd - S_even)].
    Entries are {0, +-0.5}: exactly representable in bf16."""
    W2 = W // 2
    m = np.zeros((W, W), np.float32)
    j = np.arange(W2)
    m[2 * j, j] = 0.5
    m[2 * j + 1, j] = 0.5
    m[2 * j, W2 + j] = -0.5
    m[2 * j + 1, W2 + j] = 0.5
    return m


# ------------------------- fused-XLA small-shape path ------------------------ #
def _cos_loss_jax(x, y):
    xf = x.astype(jnp.float32)
    yf = y.astype(jnp.float32)
    num = jnp.sum(xf * yf, axis=1)
    nx = jnp.maximum(jnp.sqrt(jnp.sum(xf * xf, axis=1)), _EPS)
    ny = jnp.maximum(jnp.sqrt(jnp.sum(yf * yf, axis=1)), _EPS)
    return jnp.mean(jnp.abs(1.0 - num / (nx * ny)))


def _haar_bands_jax(t):
    a = t[:, :, 0::2, 0::2] * 0.5
    b = t[:, :, 1::2, 0::2] * 0.5
    c = t[:, :, 0::2, 1::2] * 0.5
    d = t[:, :, 1::2, 1::2] * 0.5
    return (a + b + c + d, -a - b + c + d, -a + b - c + d, a - b - c + d)


def _dwt_losses_jax(x, y, want_pre, want_llcos):
    """Fallback for small / awkward shapes. Same outputs as the Pallas path."""
    xf = x.astype(jnp.float32)
    yf = y.astype(jnp.float32)
    pre = _cos_loss_jax(xf, yf) if want_pre else jnp.float32(0.0)
    llx, hlx, lhx, hhx = _haar_bands_jax(xf)
    lly, hly, lhy, hhy = _haar_bands_jax(yf)
    mid = _cos_loss_jax(jnp.concatenate([hlx, lhx], axis=1),
                        jnp.concatenate([hly, lhy], axis=1))
    high = _cos_loss_jax(hhx, hhy)
    llc = _cos_loss_jax(llx, lly) if want_llcos else jnp.float32(0.0)
    return llx.astype(x.dtype), lly.astype(y.dtype), pre, mid, high, llc


# ---------------- fused Haar DWT + (level / mid / high / LL) losses ---------- #
def _dwt_loss_kernel(bfly_ref, x_ref, y_ref,
                     llx_ref, lly_ref, pre_ref, mid_ref, high_ref, llc_ref,
                     *, inv_pre, inv_det, want_pre, want_llcos):
    """One Haar DWT level for x and y over a (1, C, TH, 2W) block.

    Last input axis holds [even row | odd row] (free NCHW reshape).  Emits the
    LL bands and accumulates, per batch element:
      pre  : sum over full-res pixels of |1 - cos_C(x, y)|       (level-0 only)
      mid  : sum over half-res pixels of |1 - cos_{2C}(HL, LH)|
      high : sum over half-res pixels of |1 - cos_C(HH)|
      llc  : sum over half-res pixels of |1 - cos_C(LL)|         (last level only)
    Loss accumulators are lane-dense (1, 1, 8, 128) blocks, resident across the
    arbitrary row-tile grid axis (every lane carries the same running value).
    """
    i = pl.program_id(2)

    @pl.when(i == 0)
    def _init():
        pre_ref[...] = jnp.zeros_like(pre_ref)
        mid_ref[...] = jnp.zeros_like(mid_ref)
        high_ref[...] = jnp.zeros_like(high_ref)
        llc_ref[...] = jnp.zeros_like(llc_ref)

    _, C, TH, lanes = x_ref.shape
    W = lanes // 2
    W2 = W // 2
    M = C * TH

    # Merge channels into the matmul M dimension (free leading-dim reshape,
    # TH is a multiple of 8 by construction).
    x2 = x_ref[...].reshape(M, lanes).astype(jnp.float32)
    y2 = y_ref[...].reshape(M, lanes).astype(jnp.float32)
    bfly = bfly_ref[...]                      # (W, W) bf16, entries in {0, +-0.5}

    def csum(a):                              # channel reduce: (C*TH, k) -> (TH, k)
        return jnp.sum(a.reshape(C, TH, a.shape[-1]), axis=0)

    def loss_sum(num, nx2, ny2):              # sum over pixels of |1 - cos|
        cos = (num * jax.lax.rsqrt(jnp.maximum(nx2, _EPS2))
                   * jax.lax.rsqrt(jnp.maximum(ny2, _EPS2)))
        return jnp.sum(jnp.abs(1.0 - cos), keepdims=True)

    if want_pre:                              # fused level-0 cosine on full-res pixels
        pre_ref[...] += loss_sum(csum(x2 * y2), csum(x2 * x2), csum(y2 * y2))

    xe, xo = x2[:, :W], x2[:, W:]             # even / odd input rows
    ye, yo = y2[:, :W], y2[:, W:]
    sx, dx = xe + xo, xo - xe                 # row butterfly (VPU)
    sy, dy = ye + yo, yo - ye

    def bdot(a):                              # column butterfly: 2-pass hi/lo bf16 MXU
        hi = a.astype(jnp.bfloat16)
        lo = (a - hi.astype(jnp.float32)).astype(jnp.bfloat16)
        return (jnp.dot(hi, bfly, preferred_element_type=jnp.float32)
                + jnp.dot(lo, bfly, preferred_element_type=jnp.float32))

    llhl_x, lhhh_x = bdot(sx), bdot(dx)
    llhl_y, lhhh_y = bdot(sy), bdot(dy)
    ll_x, hl_x = llhl_x[:, :W2], llhl_x[:, W2:]
    lh_x, hh_x = lhhh_x[:, :W2], lhhh_x[:, W2:]
    ll_y, hl_y = llhl_y[:, :W2], llhl_y[:, W2:]
    lh_y, hh_y = lhhh_y[:, :W2], lhhh_y[:, W2:]

    # Only LL ever touches HBM; detail bands are consumed right here.
    llx_ref[...] = ll_x.reshape(1, C, TH, W2).astype(llx_ref.dtype)
    lly_ref[...] = ll_y.reshape(1, C, TH, W2).astype(lly_ref.dtype)

    # mid band == cosine over channel-concat(HL, LH): sum both.
    mid_ref[...] += loss_sum(csum(hl_x * hl_y + lh_x * lh_y),
                             csum(hl_x * hl_x + lh_x * lh_x),
                             csum(hl_y * hl_y + lh_y * lh_y))
    high_ref[...] += loss_sum(csum(hh_x * hh_y), csum(hh_x * hh_x), csum(hh_y * hh_y))
    if want_llcos:                            # fused final cosine on this level's LL
        llc_ref[...] += loss_sum(csum(ll_x * ll_y), csum(ll_x * ll_x), csum(ll_y * ll_y))

    @pl.when(i == pl.num_programs(2) - 1)
    def _finalize():
        pre_ref[...] = pre_ref[...] * inv_pre
        mid_ref[...] = mid_ref[...] * inv_det
        high_ref[...] = high_ref[...] * inv_det
        llc_ref[...] = llc_ref[...] * inv_det


def dwt_and_losses(x, y, *, want_pre=False, want_llcos=False):
    """One Haar DWT level on NCHW x, y.
    Returns (LLx, LLy, pre_loss, mid_loss, high_loss, ll_loss)."""
    N, C, H, W = x.shape
    fallback = functools.partial(_dwt_losses_jax, x, y, want_pre, want_llcos)
    if (H % 2) or (W % 2):
        return fallback()
    H2, W2 = H // 2, W // 2
    if W2 < _MIN_LANES or H2 < 8 or (H2 % 8):
        return fallback()

    isz = x.dtype.itemsize
    # Live-set estimate per tile row: 2 inputs x 2 bufs (C*2W) + 2 LL outputs x
    # 2 bufs (C*W2) + ~20 f32 (C, W)-sized kernel temporaries.
    live_per_row = C * W * (10 * isz + 80)
    fixed = 4 * W * W + (2 << 20)            # double-buffered bf16 butterfly + slack
    budget = _VMEM_BUDGET - fixed
    if budget < 8 * live_per_row:
        # TODO(synk): tile the lane (W) axis too for very wide images.
        return fallback()
    th = _pick_rows(H2, live_per_row, budget)
    if th is None:
        return fallback()

    steps = H2 // th
    if steps % 2 == 1 and th % 16 == 0:      # make the row axis splittable in two
        th //= 2
        steps *= 2
    P = 2 if steps % 2 == 0 else 1           # second parallel axis (v7x: 2 TCs/chip)
    spp = steps // P

    xr = x.reshape(N, C, H2, 2 * W)          # free: row i -> [row 2i | row 2i+1]
    yr = y.reshape(N, C, H2, 2 * W)
    bfly = jnp.asarray(_haar_col_butterfly(W), dtype=jnp.bfloat16)

    kernel = functools.partial(_dwt_loss_kernel,
                               inv_pre=1.0 / (H * W), inv_det=1.0 / (H2 * W2),
                               want_pre=want_pre, want_llcos=want_llcos)
    acc_shape = jax.ShapeDtypeStruct((N, P, 8, 128), jnp.float32)
    acc_spec = pl.BlockSpec((1, 1, 8, 128), lambda n, p, i: (n, p, 0, 0))
    io_map = lambda n, p, i: (n, 0, p * spp + i, 0)

    llx, lly, pre, mid, high, llc = pl.pallas_call(
        kernel,
        out_shape=(jax.ShapeDtypeStruct((N, C, H2, W2), x.dtype),
                   jax.ShapeDtypeStruct((N, C, H2, W2), y.dtype),
                   acc_shape, acc_shape, acc_shape, acc_shape),
        grid=(N, P, spp),
        in_specs=[pl.BlockSpec((W, W), lambda n, p, i: (0, 0)),   # resident butterfly
                  pl.BlockSpec((1, C, th, 2 * W), io_map),
                  pl.BlockSpec((1, C, th, 2 * W), io_map)],
        out_specs=(pl.BlockSpec((1, C, th, W2), io_map),
                   pl.BlockSpec((1, C, th, W2), io_map),
                   acc_spec, acc_spec, acc_spec, acc_spec),
        compiler_params=pltpu.CompilerParams(
            dimension_semantics=("parallel", "parallel", "arbitrary"),
            vmem_limit_bytes=_VMEM_LIMIT),
    )(bfly, xr, yr)

    inv_n = 1.0 / N
    pre_l = jnp.sum(pre[:, :, 0, 0]) * inv_n if want_pre else jnp.float32(0.0)
    mid_l = jnp.sum(mid[:, :, 0, 0]) * inv_n
    high_l = jnp.sum(high[:, :, 0, 0]) * inv_n
    llc_l = jnp.sum(llc[:, :, 0, 0]) * inv_n if want_llcos else jnp.float32(0.0)
    return llx, lly, pre_l, mid_l, high_l, llc_l


# ------------------------------ Wnormal forward ------------------------------ #
def wnormal_forward(x, y, r=0.7):
    loss = None
    l = 1.0
    for lvl in range(4):
        m = l * r * (1.0 - r)
        h = l * (1.0 - r) * (1.0 - r)
        l = l * r * r
        x, y, pre, mid, high, llc = dwt_and_losses(
            x, y, want_pre=(lvl == 0), want_llcos=(lvl == 3))
        if lvl == 0:
            loss = pre                      # |1 - cos(x, y)|.mean(), weight 1
        loss = loss + mid * 2.0 * m + high * h
        if lvl == 3:
            loss = loss + llc * l           # final cosine on LL4, weight r^8
    return loss


# ------------------------------ pure-JAX reference --------------------------- #
def _wnormal_ref(x, y, r=0.7):
    def cos_mean(a, b):
        num = jnp.sum(a * b, axis=1)
        na = jnp.maximum(jnp.sqrt(jnp.sum(a * a, axis=1)), _EPS)
        nb = jnp.maximum(jnp.sqrt(jnp.sum(b * b, axis=1)), _EPS)
        return jnp.mean(jnp.abs(1.0 - num / (na * nb)))

    def dwt(t):
        a = t[:, :, 0::2, 0::2] * 0.5
        b = t[:, :, 1::2, 0::2] * 0.5
        c = t[:, :, 0::2, 1::2] * 0.5
        d = t[:, :, 1::2, 1::2] * 0.5
        return (a + b + c + d,
                jnp.concatenate([-a - b + c + d, -a + b - c + d], axis=1),
                a - b - c + d)

    loss = cos_mean(x, y)
    l, m, h = 1.0, 1.0, 1.0
    x0, y0 = x, y
    for _ in range(4):
        l, m, h = l * r * r, l * r * (1 - r), l * (1 - r) * (1 - r)
        x0, x1, x2 = dwt(x)
        y0, y1, y2 = dwt(y)
        loss = loss + cos_mean(x1, y1) * 2 * m + cos_mean(x2, y2) * h
        x, y = x0, y0
    loss = loss + cos_mean(x0, y0) * l
    return loss


if __name__ == "__main__":
    key = jax.random.PRNGKey(0)
    kx, ky = jax.random.split(key)
    # 256x256 so the first DWT level (half-res lane width 128) exercises the
    # Pallas kernel; deeper (tiny) levels use the fused-XLA fallback by design.
    x = jax.random.normal(kx, (2, 4, 256, 256), dtype=jnp.float32)
    y = jax.random.normal(ky, (2, 4, 256, 256), dtype=jnp.float32)

    fwd = jax.jit(wnormal_forward)
    out = jax.block_until_ready(fwd(x, y))
    ref = jax.block_until_ready(jax.jit(_wnormal_ref)(x, y))
    assert jnp.allclose(out, ref, rtol=1e-4, atol=1e-5), (out, ref)

    # Directly exercise the fused want_pre / want_llcos kernel branches.
    dwt_fused = jax.jit(functools.partial(dwt_and_losses,
                                          want_pre=True, want_llcos=True))
    outs_p = jax.block_until_ready(dwt_fused(x, y))
    outs_r = _dwt_losses_jax(x, y, True, True)
    for a, b in zip(outs_p, outs_r):
        assert jnp.allclose(a, b, rtol=1e-4, atol=1e-4)

    print("KERNEL_OK")
</pallas_src>

<mosaic_0001>
module attributes {stable_mosaic.version = 11 : i64} {
  func.func @_dwt_loss_kernel(%arg0: i32, %arg1: i32, %arg2: i32, %arg3: memref<256x256xbf16, #tpu.memory_space<vmem>>, %arg4: memref<1x4x64x512xf32, #tpu.memory_space<vmem>>, %arg5: memref<1x4x64x512xf32, #tpu.memory_space<vmem>>, %arg6: memref<1x4x64x128xf32, #tpu.memory_space<vmem>>, %arg7: memref<1x4x64x128xf32, #tpu.memory_space<vmem>>, %arg8: memref<1x1x8x128xf32, #tpu.memory_space<vmem>>, %arg9: memref<1x1x8x128xf32, #tpu.memory_space<vmem>>, %arg10: memref<1x1x8x128xf32, #tpu.memory_space<vmem>>, %arg11: memref<1x1x8x128xf32, #tpu.memory_space<vmem>>) attributes {dimension_semantics = [#tpu.dimension_semantics<parallel>, #tpu.dimension_semantics<parallel>, #tpu.dimension_semantics<arbitrary>], iteration_bounds = array<i64: 2, 2, 1>, scalar_prefetch = 0 : i64, scratch_operands = 0 : i64, tpu.core_type = #tpu.core_type<tc>, window_params = [{pipeline_mode = #tpu.pipeline_mode<synchronous>, transform_indices = @transform_0, window_bounds = array<i64: 256, 256>}, {transform_indices = @transform_1, window_bounds = array<i64: 1, 4, 64, 512>}, {transform_indices = @transform_2, window_bounds = array<i64: 1, 4, 64, 512>}, {transform_indices = @transform_3, window_bounds = array<i64: 1, 4, 64, 128>}, {transform_indices = @transform_4, window_bounds = array<i64: 1, 4, 64, 128>}, {transform_indices = @transform_5, window_bounds = array<i64: 1, 1, 8, 128>}, {transform_indices = @transform_6, window_bounds = array<i64: 1, 1, 8, 128>}, {transform_indices = @transform_7, window_bounds = array<i64: 1, 1, 8, 128>}, {transform_indices = @transform_8, window_bounds = array<i64: 1, 1, 8, 128>}]} {
    %c0_i32 = arith.constant 0 : i32
    %0 = arith.cmpi eq, %arg2, %c0_i32 : i32
    %1 = arith.extui %0 : i1 to i32
    %c0_i32_0 = arith.constant 0 : i32
    %2 = arith.cmpi ne, %1, %c0_i32_0 : i32
    scf.if %2 {
      %cst_72 = arith.constant 0.000000e+00 : f32
      %155 = vector.broadcast %cst_72 : f32 to vector<1x1x8x128xf32>
      %c0_73 = arith.constant 0 : index
      %c0_74 = arith.constant 0 : index
      %c0_75 = arith.constant 0 : index
      %c0_76 = arith.constant 0 : index
      %156 = vector.load %arg8[%c0_73, %c0_74, %c0_75, %c0_76] : memref<1x1x8x128xf32, #tpu.memory_space<vmem>>, vector<1x1x8x128xf32>
      tpu.vector_store %arg8[%c0_73, %c0_74, %c0_75, %c0_76], %155 {strides = array<i32>} : memref<1x1x8x128xf32, #tpu.memory_space<vmem>>, vector<1x1x8x128xf32>,
      %cst_77 = arith.constant 0.000000e+00 : f32
      %157 = vector.broadcast %cst_77 : f32 to vector<1x1x8x128xf32>
      %c0_78 = arith.constant 0 : index
      %c0_79 = arith.constant 0 : index
      %c0_80 = arith.constant 0 : index
      %c0_81 = arith.constant 0 : index
      %158 = vector.load %arg9[%c0_78, %c0_79, %c0_80, %c0_81] : memref<1x1x8x128xf32, #tpu.memory_space<vmem>>, vector<1x1x8x128xf32>
      tpu.vector_store %arg9[%c0_78, %c0_79, %c0_80, %c0_81], %157 {strides = array<i32>} : memref<1x1x8x128xf32, #tpu.memory_space<vmem>>, vector<1x1x8x128xf32>,
      %cst_82 = arith.constant 0.000000e+00 : f32
      %159 = vector.broadcast %cst_82 : f32 to vector<1x1x8x128xf32>
      %c0_83 = arith.constant 0 : index
      %c0_84 = arith.constant 0 : index
      %c0_85 = arith.constant 0 : index
      %c0_86 = arith.constant 0 : index
      %160 = vector.load %arg10[%c0_83, %c0_84, %c0_85, %c0_86] : memref<1x1x8x128xf32, #tpu.memory_space<vmem>>, vector<1x1x8x128xf32>
      tpu.vector_store %arg10[%c0_83, %c0_84, %c0_85, %c0_86], %159 {strides = array<i32>} : memref<1x1x8x128xf32, #tpu.memory_space<vmem>>, vector<1x1x8x128xf32>,
      %cst_87 = arith.constant 0.000000e+00 : f32
      %161 = vector.broadcast %cst_87 : f32 to vector<1x1x8x128xf32>
      %c0_88 = arith.constant 0 : index
      %c0_89 = arith.constant 0 : index
      %c0_90 = arith.constant 0 : index
      %c0_91 = arith.constant 0 : index
      %162 = vector.load %arg11[%c0_88, %c0_89, %c0_90, %c0_91] : memref<1x1x8x128xf32, #tpu.memory_space<vmem>>, vector<1x1x8x128xf32>
      tpu.vector_store %arg11[%c0_88, %c0_89, %c0_90, %c0_91], %161 {strides = array<i32>} : memref<1x1x8x128xf32, #tpu.memory_space<vmem>>, vector<1x1x8x128xf32>,
    } else {
    }
    %c0 = arith.constant 0 : index
    %c0_1 = arith.constant 0 : index
    %c0_2 = arith.constant 0 : index
    %c0_3 = arith.constant 0 : index
    %3 = vector.load %arg4[%c0, %c0_1, %c0_2, %c0_3] : memref<1x4x64x512xf32, #tpu.memory_space<vmem>>, vector<1x4x64x512xf32>
    %4 = vector.shape_cast %3 : vector<1x4x64x512xf32> to vector<256x512xf32>
    %c0_4 = arith.constant 0 : index
    %c0_5 = arith.constant 0 : index
    %c0_6 = arith.constant 0 : index
    %c0_7 = arith.constant 0 : index
    %5 = vector.load %arg5[%c0_4, %c0_5, %c0_6, %c0_7] : memref<1x4x64x512xf32, #tpu.memory_space<vmem>>, vector<1x4x64x512xf32>
    %6 = vector.shape_cast %5 : vector<1x4x64x512xf32> to vector<256x512xf32>
    %c0_8 = arith.constant 0 : index
    %c0_9 = arith.constant 0 : index
    %7 = vector.load %arg3[%c0_8, %c0_9] : memref<256x256xbf16, #tpu.memory_space<vmem>>, vector<256x256xbf16>
    %c0_10 = arith.constant 0 : index
    %c0_11 = arith.constant 0 : index
    %c0_12 = arith.constant 0 : index
    %c0_13 = arith.constant 0 : index
    %8 = vector.load %arg8[%c0_10, %c0_11, %c0_12, %c0_13] : memref<1x1x8x128xf32, #tpu.memory_space<vmem>>, vector<1x1x8x128xf32>
    %9 = arith.mulf %4, %6 : vector<256x512xf32>
    %10 = vector.shape_cast %9 : vector<256x512xf32> to vector<4x64x512xf32>
    %cst = arith.constant dense<0.000000e+00> : vector<64x512xf32>
    %11 = vector.multi_reduction <add>, %10, %cst [0] : vector<4x64x512xf32> to vector<64x512xf32>
    %12 = arith.mulf %4, %4 : vector<256x512xf32>
    %13 = vector.shape_cast %12 : vector<256x512xf32> to vector<4x64x512xf32>
    %cst_14 = arith.constant dense<0.000000e+00> : vector<64x512xf32>
    %14 = vector.multi_reduction <add>, %13, %cst_14 [0] : vector<4x64x512xf32> to vector<64x512xf32>
    %15 = arith.mulf %6, %6 : vector<256x512xf32>
    %16 = vector.shape_cast %15 : vector<256x512xf32> to vector<4x64x512xf32>
    %cst_15 = arith.constant dense<0.000000e+00> : vector<64x512xf32>
    %17 = vector.multi_reduction <add>, %16, %cst_15 [0] : vector<4x64x512xf32> to vector<64x512xf32>
    %cst_16 = arith.constant 1.000000e-16 : f32
    %18 = vector.broadcast %cst_16 : f32 to vector<64x512xf32>
    %19 = arith.maximumf %14, %18 : vector<64x512xf32>
    %20 = math.rsqrt %19 : vector<64x512xf32>
    %21 = arith.mulf %11, %20 : vector<64x512xf32>
    %cst_17 = arith.constant 1.000000e-16 : f32
    %22 = vector.broadcast %cst_17 : f32 to vector<64x512xf32>
    %23 = arith.maximumf %17, %22 : vector<64x512xf32>
    %24 = math.rsqrt %23 : vector<64x512xf32>
    %25 = arith.mulf %21, %24 : vector<64x512xf32>
    %cst_18 = arith.constant 1.000000e+00 : f32
    %26 = vector.broadcast %cst_18 : f32 to vector<64x512xf32>
    %27 = arith.subf %26, %25 : vector<64x512xf32>
    %28 = math.absf %27 : vector<64x512xf32>
    %29 = vector.shape_cast %28 : vector<64x512xf32> to vector<1x64x512xf32>
    %cst_19 = arith.constant dense<0.000000e+00> : vector<1xf32>
    %30 = vector.multi_reduction <add>, %29, %cst_19 [1, 2] : vector<1x64x512xf32> to vector<1xf32>
    %31 = vector.shape_cast %30 : vector<1xf32> to vector<1x1x1xf32>
    %32 = vector.extract %31[0, 0, 0] : f32 from vector<1x1x1xf32>
    %33 = vector.broadcast %32 : f32 to vector<1x1xf32>
    %34 = vector.shape_cast %33 : vector<1x1xf32> to vector<1x1x1x1xf32>
    %35 = vector.broadcast %34 : vector<1x1x1x1xf32> to vector<1x1x8x128xf32>
    %36 = arith.addf %8, %35 : vector<1x1x8x128xf32>
    %c0_20 = arith.constant 0 : index
    %c0_21 = arith.constant 0 : index
    %c0_22 = arith.constant 0 : index
    %c0_23 = arith.constant 0 : index
    %37 = vector.load %arg8[%c0_20, %c0_21, %c0_22, %c0_23] : memref<1x1x8x128xf32, #tpu.memory_space<vmem>>, vector<1x1x8x128xf32>
    tpu.vector_store %arg8[%c0_20, %c0_21, %c0_22, %c0_23], %36 {strides = array<i32>} : memref<1x1x8x128xf32, #tpu.memory_space<vmem>>, vector<1x1x8x128xf32>,
    %38 = vector.extract_strided_slice %4 {offsets = [0, 0], sizes = [256, 256], strides = [1, 1]} : vector<256x512xf32> to vector<256x256xf32>
    %39 = vector.extract_strided_slice %4 {offsets = [0, 256], sizes = [256, 256], strides = [1, 1]} : vector<256x512xf32> to vector<256x256xf32>
    %40 = vector.extract_strided_slice %6 {offsets = [0, 0], sizes = [256, 256], strides = [1, 1]} : vector<256x512xf32> to vector<256x256xf32>
    %41 = vector.extract_strided_slice %6 {offsets = [0, 256], sizes = [256, 256], strides = [1, 1]} : vector<256x512xf32> to vector<256x256xf32>
    %42 = arith.addf %38, %39 : vector<256x256xf32>
    %43 = arith.subf %39, %38 : vector<256x256xf32>
    %44 = arith.addf %40, %41 : vector<256x256xf32>
    %45 = arith.subf %41, %40 : vector<256x256xf32>
    %46 = arith.truncf %42 : vector<256x256xf32> to vector<256x256xbf16>
    %47 = arith.extf %46 : vector<256x256xbf16> to vector<256x256xf32>
    %48 = arith.subf %42, %47 : vector<256x256xf32>
    %49 = arith.truncf %48 : vector<256x256xf32> to vector<256x256xbf16>
    %cst_24 = arith.constant dense<0.000000e+00> : vector<256x256xf32>
    %50 = tpu.matmul %46, %7, %cst_24 {dimension_numbers = #tpu.dot_dimension_numbers<[1], [0], [0], [1], [0, 0, 1, 1], [], []>} : vector<256x256xbf16>, vector<256x256xbf16>, vector<256x256xf32> -> vector<256x256xf32>
    %cst_25 = arith.constant dense<0.000000e+00> : vector<256x256xf32>
    %51 = tpu.matmul %49, %7, %cst_25 {dimension_numbers = #tpu.dot_dimension_numbers<[1], [0], [0], [1], [0, 0, 1, 1], [], []>} : vector<256x256xbf16>, vector<256x256xbf16>, vector<256x256xf32> -> vector<256x256xf32>
    %52 = arith.addf %50, %51 : vector<256x256xf32>
    %53 = arith.truncf %43 : vector<256x256xf32> to vector<256x256xbf16>
    %54 = arith.extf %53 : vector<256x256xbf16> to vector<256x256xf32>
    %55 = arith.subf %43, %54 : vector<256x256xf32>
    %56 = arith.truncf %55 : vector<256x256xf32> to vector<256x256xbf16>
    %cst_26 = arith.constant dense<0.000000e+00> : vector<256x256xf32>
    %57 = tpu.matmul %53, %7, %cst_26 {dimension_numbers = #tpu.dot_dimension_numbers<[1], [0], [0], [1], [0, 0, 1, 1], [], []>} : vector<256x256xbf16>, vector<256x256xbf16>, vector<256x256xf32> -> vector<256x256xf32>
    %cst_27 = arith.constant dense<0.000000e+00> : vector<256x256xf32>
    %58 = tpu.matmul %56, %7, %cst_27 {dimension_numbers = #tpu.dot_dimension_numbers<[1], [0], [0], [1], [0, 0, 1, 1], [], []>} : vector<256x256xbf16>, vector<256x256xbf16>, vector<256x256xf32> -> vector<256x256xf32>
    %59 = arith.addf %57, %58 : vector<256x256xf32>
    %60 = arith.truncf %44 : vector<256x256xf32> to vector<256x256xbf16>
    %61 = arith.extf %60 : vector<256x256xbf16> to vector<256x256xf32>
    %62 = arith.subf %44, %61 : vector<256x256xf32>
    %63 = arith.truncf %62 : vector<256x256xf32> to vector<256x256xbf16>
    %cst_28 = arith.constant dense<0.000000e+00> : vector<256x256xf32>
    %64 = tpu.matmul %60, %7, %cst_28 {dimension_numbers = #tpu.dot_dimension_numbers<[1], [0], [0], [1], [0, 0, 1, 1], [], []>} : vector<256x256xbf16>, vector<256x256xbf16>, vector<256x256xf32> -> vector<256x256xf32>
    %cst_29 = arith.constant dense<0.000000e+00> : vector<256x256xf32>
    %65 = tpu.matmul %63, %7, %cst_29 {dimension_numbers = #tpu.dot_dimension_numbers<[1], [0], [0], [1], [0, 0, 1, 1], [], []>} : vector<256x256xbf16>, vector<256x256xbf16>, vector<256x256xf32> -> vector<256x256xf32>
    %66 = arith.addf %64, %65 : vector<256x256xf32>
    %67 = arith.truncf %45 : vector<256x256xf32> to vector<256x256xbf16>
    %68 = arith.extf %67 : vector<256x256xbf16> to vector<256x256xf32>
    %69 = arith.subf %45, %68 : vector<256x256xf32>
    %70 = arith.truncf %69 : vector<256x256xf32> to vector<256x256xbf16>
    %cst_30 = arith.constant dense<0.000000e+00> : vector<256x256xf32>
    %71 = tpu.matmul %67, %7, %cst_30 {dimension_numbers = #tpu.dot_dimension_numbers<[1], [0], [0], [1], [0, 0, 1, 1], [], []>} : vector<256x256xbf16>, vector<256x256xbf16>, vector<256x256xf32> -> vector<256x256xf32>
    %cst_31 = arith.constant dense<0.000000e+00> : vector<256x256xf32>
    %72 = tpu.matmul %70, %7, %cst_31 {dimension_numbers = #tpu.dot_dimension_numbers<[1], [0], [0], [1], [0, 0, 1, 1], [], []>} : vector<256x256xbf16>, vector<256x256xbf16>, vector<256x256xf32> -> vector<256x256xf32>
    %73 = arith.addf %71, %72 : vector<256x256xf32>
    %74 = vector.extract_strided_slice %52 {offsets = [0, 0], sizes = [256, 128], strides = [1, 1]} : vector<256x256xf32> to vector<256x128xf32>
    %75 = vector.extract_strided_slice %52 {offsets = [0, 128], sizes = [256, 128], strides = [1, 1]} : vector<256x256xf32> to vector<256x128xf32>
    %76 = vector.extract_strided_slice %59 {offsets = [0, 0], sizes = [256, 128], strides = [1, 1]} : vector<256x256xf32> to vector<256x128xf32>
    %77 = vector.extract_strided_slice %59 {offsets = [0, 128], sizes = [256, 128], strides = [1, 1]} : vector<256x256xf32> to vector<256x128xf32>
    %78 = vector.extract_strided_slice %66 {offsets = [0, 0], sizes = [256, 128], strides = [1, 1]} : vector<256x256xf32> to vector<256x128xf32>
    %79 = vector.extract_strided_slice %66 {offsets = [0, 128], sizes = [256, 128], strides = [1, 1]} : vector<256x256xf32> to vector<256x128xf32>
    %80 = vector.extract_strided_slice %73 {offsets = [0, 0], sizes = [256, 128], strides = [1, 1]} : vector<256x256xf32> to vector<256x128xf32>
    %81 = vector.extract_strided_slice %73 {offsets = [0, 128], sizes = [256, 128], strides = [1, 1]} : vector<256x256xf32> to vector<256x128xf32>
    %82 = vector.shape_cast %74 : vector<256x128xf32> to vector<1x4x64x128xf32>
    %c0_32 = arith.constant 0 : index
    %c0_33 = arith.constant 0 : index
    %c0_34 = arith.constant 0 : index
    %c0_35 = arith.constant 0 : index
    %83 = vector.load %arg6[%c0_32, %c0_33, %c0_34, %c0_35] : memref<1x4x64x128xf32, #tpu.memory_space<vmem>>, vector<1x4x64x128xf32>
    tpu.vector_store %arg6[%c0_32, %c0_33, %c0_34, %c0_35], %82 {strides = array<i32>} : memref<1x4x64x128xf32, #tpu.memory_space<vmem>>, vector<1x4x64x128xf32>,
    %84 = vector.shape_cast %78 : vector<256x128xf32> to vector<1x4x64x128xf32>
    %c0_36 = arith.constant 0 : index
    %c0_37 = arith.constant 0 : index
    %c0_38 = arith.constant 0 : index
    %c0_39 = arith.constant 0 : index
    %85 = vector.load %arg7[%c0_36, %c0_37, %c0_38, %c0_39] : memref<1x4x64x128xf32, #tpu.memory_space<vmem>>, vector<1x4x64x128xf32>
    tpu.vector_store %arg7[%c0_36, %c0_37, %c0_38, %c0_39], %84 {strides = array<i32>} : memref<1x4x64x128xf32, #tpu.memory_space<vmem>>, vector<1x4x64x128xf32>,
    %c0_40 = arith.constant 0 : index
    %c0_41 = arith.constant 0 : index
    %c0_42 = arith.constant 0 : index
    %c0_43 = arith.constant 0 : index
    %86 = vector.load %arg9[%c0_40, %c0_41, %c0_42, %c0_43] : memref<1x1x8x128xf32, #tpu.memory_space<vmem>>, vector<1x1x8x128xf32>
    %87 = arith.mulf %75, %79 : vector<256x128xf32>
    %88 = arith.mulf %76, %80 : vector<256x128xf32>
    %89 = arith.addf %87, %88 : vector<256x128xf32>
    %90 = vector.shape_cast %89 : vector<256x128xf32> to vector<4x64x128xf32>
    %cst_44 = arith.constant dense<0.000000e+00> : vector<64x128xf32>
    %91 = vector.multi_reduction <add>, %90, %cst_44 [0] : vector<4x64x128xf32> to vector<64x128xf32>
    %92 = arith.mulf %75, %75 : vector<256x128xf32>
    %93 = arith.mulf %76, %76 : vector<256x128xf32>
    %94 = arith.addf %92, %93 : vector<256x128xf32>
    %95 = vector.shape_cast %94 : vector<256x128xf32> to vector<4x64x128xf32>
    %cst_45 = arith.constant dense<0.000000e+00> : vector<64x128xf32>
    %96 = vector.multi_reduction <add>, %95, %cst_45 [0] : vector<4x64x128xf32> to vector<64x128xf32>
    %97 = arith.mulf %79, %79 : vector<256x128xf32>
    %98 = arith.mulf %80, %80 : vector<256x128xf32>
    %99 = arith.addf %97, %98 : vector<256x128xf32>
    %100 = vector.shape_cast %99 : vector<256x128xf32> to vector<4x64x128xf32>
    %cst_46 = arith.constant dense<0.000000e+00> : vector<64x128xf32>
    %101 = vector.multi_reduction <add>, %100, %cst_46 [0] : vector<4x64x128xf32> to vector<64x128xf32>
    %cst_47 = arith.constant 1.000000e-16 : f32
    %102 = vector.broadcast %cst_47 : f32 to vector<64x128xf32>
    %103 = arith.maximumf %96, %102 : vector<64x128xf32>
    %104 = math.rsqrt %103 : vector<64x128xf32>
    %105 = arith.mulf %91, %104 : vector<64x128xf32>
    %cst_48 = arith.constant 1.000000e-16 : f32
    %106 = vector.broadcast %cst_48 : f32 to vector<64x128xf32>
    %107 = arith.maximumf %101, %106 : vector<64x128xf32>
    %108 = math.rsqrt %107 : vector<64x128xf32>
    %109 = arith.mulf %105, %108 : vector<64x128xf32>
    %cst_49 = arith.constant 1.000000e+00 : f32
    %110 = vector.broadcast %cst_49 : f32 to vector<64x128xf32>
    %111 = arith.subf %110, %109 : vector<64x128xf32>
    %112 = math.absf %111 : vector<64x128xf32>
    %113 = vector.shape_cast %112 : vector<64x128xf32> to vector<1x64x128xf32>
    %cst_50 = arith.constant dense<0.000000e+00> : vector<1xf32>
    %114 = vector.multi_reduction <add>, %113, %cst_50 [1, 2] : vector<1x64x128xf32> to vector<1xf32>
    %115 = vector.shape_cast %114 : vector<1xf32> to vector<1x1x1xf32>
    %116 = vector.extract %115[0, 0, 0] : f32 from vector<1x1x1xf32>
    %117 = vector.broadcast %116 : f32 to vector<1x1xf32>
    %118 = vector.shape_cast %117 : vector<1x1xf32> to vector<1x1x1x1xf32>
    %119 = vector.broadcast %118 : vector<1x1x1x1xf32> to vector<1x1x8x128xf32>
    %120 = arith.addf %86, %119 : vector<1x1x8x128xf32>
    %c0_51 = arith.constant 0 : index
    %c0_52 = arith.constant 0 : index
    %c0_53 = arith.constant 0 : index
    %c0_54 = arith.constant 0 : index
    %121 = vector.load %arg9[%c0_51, %c0_52, %c0_53, %c0_54] : memref<1x1x8x128xf32, #tpu.memory_space<vmem>>, vector<1x1x8x128xf32>
    tpu.vector_store %arg9[%c0_51, %c0_52, %c0_53, %c0_54], %120 {strides = array<i32>} : memref<1x1x8x128xf32, #tpu.memory_space<vmem>>, vector<1x1x8x128xf32>,
    %c0_55 = arith.constant 0 : index
    %c0_56 = arith.constant 0 : index
    %c0_57 = arith.constant 0 : index
    %c0_58 = arith.constant 0 : index
    %122 = vector.load %arg10[%c0_55, %c0_56, %c0_57, %c0_58] : memref<1x1x8x128xf32, #tpu.memory_space<vmem>>, vector<1x1x8x128xf32>
    %123 = arith.mulf %77, %81 : vector<256x128xf32>
    %124 = vector.shape_cast %123 : vector<256x128xf32> to vector<4x64x128xf32>
    %cst_59 = arith.constant dense<0.000000e+00> : vector<64x128xf32>
    %125 = vector.multi_reduction <add>, %124, %cst_59 [0] : vector<4x64x128xf32> to vector<64x128xf32>
    %126 = arith.mulf %77, %77 : vector<256x128xf32>
    %127 = vector.shape_cast %126 : vector<256x128xf32> to vector<4x64x128xf32>
    %cst_60 = arith.constant dense<0.000000e+00> : vector<64x128xf32>
    %128 = vector.multi_reduction <add>, %127, %cst_60 [0] : vector<4x64x128xf32> to vector<64x128xf32>
    %129 = arith.mulf %81, %81 : vector<256x128xf32>
    %130 = vector.shape_cast %129 : vector<256x128xf32> to vector<4x64x128xf32>
    %cst_61 = arith.constant dense<0.000000e+00> : vector<64x128xf32>
    %131 = vector.multi_reduction <add>, %130, %cst_61 [0] : vector<4x64x128xf32> to vector<64x128xf32>
    %cst_62 = arith.constant 1.000000e-16 : f32
    %132 = vector.broadcast %cst_62 : f32 to vector<64x128xf32>
    %133 = arith.maximumf %128, %132 : vector<64x128xf32>
    %134 = math.rsqrt %133 : vector<64x128xf32>
    %135 = arith.mulf %125, %134 : vector<64x128xf32>
    %cst_63 = arith.constant 1.000000e-16 : f32
    %136 = vector.broadcast %cst_63 : f32 to vector<64x128xf32>
    %137 = arith.maximumf %131, %136 : vector<64x128xf32>
    %138 = math.rsqrt %137 : vector<64x128xf32>
    %139 = arith.mulf %135, %138 : vector<64x128xf32>
    %cst_64 = arith.constant 1.000000e+00 : f32
    %140 = vector.broadcast %cst_64 : f32 to vector<64x128xf32>
    %141 = arith.subf %140, %139 : vector<64x128xf32>
    %142 = math.absf %141 : vector<64x128xf32>
    %143 = vector.shape_cast %142 : vector<64x128xf32> to vector<1x64x128xf32>
    %cst_65 = arith.constant dense<0.000000e+00> : vector<1xf32>
    %144 = vector.multi_reduction <add>, %143, %cst_65 [1, 2] : vector<1x64x128xf32> to vector<1xf32>
    %145 = vector.shape_cast %144 : vector<1xf32> to vector<1x1x1xf32>
    %146 = vector.extract %145[0, 0, 0] : f32 from vector<1x1x1xf32>
    %147 = vector.broadcast %146 : f32 to vector<1x1xf32>
    %148 = vector.shape_cast %147 : vector<1x1xf32> to vector<1x1x1x1xf32>
    %149 = vector.broadcast %148 : vector<1x1x1x1xf32> to vector<1x1x8x128xf32>
    %150 = arith.addf %122, %149 : vector<1x1x8x128xf32>
    %c0_66 = arith.constant 0 : index
    %c0_67 = arith.constant 0 : index
    %c0_68 = arith.constant 0 : index
    %c0_69 = arith.constant 0 : index
    %151 = vector.load %arg10[%c0_66, %c0_67, %c0_68, %c0_69] : memref<1x1x8x128xf32, #tpu.memory_space<vmem>>, vector<1x1x8x128xf32>
    tpu.vector_store %arg10[%c0_66, %c0_67, %c0_68, %c0_69], %150 {strides = array<i32>} : memref<1x1x8x128xf32, #tpu.memory_space<vmem>>, vector<1x1x8x128xf32>,
    %c0_i32_70 = arith.constant 0 : i32
    %152 = arith.cmpi eq, %arg2, %c0_i32_70 : i32
    %153 = arith.extui %152 : i1 to i32
    %c0_i32_71 = arith.constant 0 : i32
    %154 = arith.cmpi ne, %153, %c0_i32_71 : i32
    scf.if %154 {
      %c0_72 = arith.constant 0 : index
      %c0_73 = arith.constant 0 : index
      %c0_74 = arith.constant 0 : index
      %c0_75 = arith.constant 0 : index
      %155 = vector.load %arg8[%c0_72, %c0_73, %c0_74, %c0_75] : memref<1x1x8x128xf32, #tpu.memory_space<vmem>>, vector<1x1x8x128xf32>
      %cst_76 = arith.constant 1.52587891E-5 : f32
      %156 = vector.broadcast %cst_76 : f32 to vector<1x1x8x128xf32>
      %157 = arith.mulf %155, %156 : vector<1x1x8x128xf32>
      %c0_77 = arith.constant 0 : index
      %c0_78 = arith.constant 0 : index
      %c0_79 = arith.constant 0 : index
      %c0_80 = arith.constant 0 : index
      %158 = vector.load %arg8[%c0_77, %c0_78, %c0_79, %c0_80] : memref<1x1x8x128xf32, #tpu.memory_space<vmem>>, vector<1x1x8x128xf32>
      tpu.vector_store %arg8[%c0_77, %c0_78, %c0_79, %c0_80], %157 {strides = array<i32>} : memref<1x1x8x128xf32, #tpu.memory_space<vmem>>, vector<1x1x8x128xf32>,
      %c0_81 = arith.constant 0 : index
      %c0_82 = arith.constant 0 : index
      %c0_83 = arith.constant 0 : index
      %c0_84 = arith.constant 0 : index
      %159 = vector.load %arg9[%c0_81, %c0_82, %c0_83, %c0_84] : memref<1x1x8x128xf32, #tpu.memory_space<vmem>>, vector<1x1x8x128xf32>
      %cst_85 = arith.constant 6.10351563E-5 : f32
      %160 = vector.broadcast %cst_85 : f32 to vector<1x1x8x128xf32>
      %161 = arith.mulf %159, %160 : vector<1x1x8x128xf32>
      %c0_86 = arith.constant 0 : index
      %c0_87 = arith.constant 0 : index
      %c0_88 = arith.constant 0 : index
      %c0_89 = arith.constant 0 : index
      %162 = vector.load %arg9[%c0_86, %c0_87, %c0_88, %c0_89] : memref<1x1x8x128xf32, #tpu.memory_space<vmem>>, vector<1x1x8x128xf32>
      tpu.vector_store %arg9[%c0_86, %c0_87, %c0_88, %c0_89], %161 {strides = array<i32>} : memref<1x1x8x128xf32, #tpu.memory_space<vmem>>, vector<1x1x8x128xf32>,
      %c0_90 = arith.constant 0 : index
      %c0_91 = arith.constant 0 : index
      %c0_92 = arith.constant 0 : index
      %c0_93 = arith.constant 0 : index
      %163 = vector.load %arg10[%c0_90, %c0_91, %c0_92, %c0_93] : memref<1x1x8x128xf32, #tpu.memory_space<vmem>>, vector<1x1x8x128xf32>
      %cst_94 = arith.constant 6.10351563E-5 : f32
      %164 = vector.broadcast %cst_94 : f32 to vector<1x1x8x128xf32>
      %165 = arith.mulf %163, %164 : vector<1x1x8x128xf32>
      %c0_95 = arith.constant 0 : index
      %c0_96 = arith.constant 0 : index
      %c0_97 = arith.constant 0 : index
      %c0_98 = arith.constant 0 : index
      %166 = vector.load %arg10[%c0_95, %c0_96, %c0_97, %c0_98] : memref<1x1x8x128xf32, #tpu.memory_space<vmem>>, vector<1x1x8x128xf32>
      tpu.vector_store %arg10[%c0_95, %c0_96, %c0_97, %c0_98], %165 {strides = array<i32>} : memref<1x1x8x128xf32, #tpu.memory_space<vmem>>, vector<1x1x8x128xf32>,
      %c0_99 = arith.constant 0 : index
      %c0_100 = arith.constant 0 : index
      %c0_101 = arith.constant 0 : index
      %c0_102 = arith.constant 0 : index
      %167 = vector.load %arg11[%c0_99, %c0_100, %c0_101, %c0_102] : memref<1x1x8x128xf32, #tpu.memory_space<vmem>>, vector<1x1x8x128xf32>
      %cst_103 = arith.constant 6.10351563E-5 : f32
      %168 = vector.broadcast %cst_103 : f32 to vector<1x1x8x128xf32>
      %169 = arith.mulf %167, %168 : vector<1x1x8x128xf32>
      %c0_104 = arith.constant 0 : index
      %c0_105 = arith.constant 0 : index
      %c0_106 = arith.constant 0 : index
      %c0_107 = arith.constant 0 : index
      %170 = vector.load %arg11[%c0_104, %c0_105, %c0_106, %c0_107] : memref<1x1x8x128xf32, #tpu.memory_space<vmem>>, vector<1x1x8x128xf32>
      tpu.vector_store %arg11[%c0_104, %c0_105, %c0_106, %c0_107], %169 {strides = array<i32>} : memref<1x1x8x128xf32, #tpu.memory_space<vmem>>, vector<1x1x8x128xf32>,
    } else {
    }
    return
  }
  func.func @transform_0(%arg0: i32, %arg1: i32, %arg2: i32) -> (i32, i32) {
    %c0_i32 = arith.constant 0 : i32
    %c0_i32_0 = arith.constant 0 : i32
    %c0_i32_1 = arith.constant 0 : i32
    return %c0_i32, %c0_i32_0 : i32, i32
  }
  func.func @transform_1(%arg0: i32, %arg1: i32, %arg2: i32) -> (i32, i32, i32, i32) {
    %c1_i32 = arith.constant 1 : i32
    %0 = arith.muli %arg1, %c1_i32 : i32
    %1 = arith.addi %0, %arg2 : i32
    %c0_i32 = arith.constant 0 : i32
    %c0_i32_0 = arith.constant 0 : i32
    %c0_i32_1 = arith.constant 0 : i32
    return %arg0, %c0_i32, %1, %c0_i32_0 : i32, i32, i32, i32
  }
  func.func @transform_2(%arg0: i32, %arg1: i32, %arg2: i32) -> (i32, i32, i32, i32) {
    %c1_i32 = arith.constant 1 : i32
    %0 = arith.muli %arg1, %c1_i32 : i32
    %1 = arith.addi %0, %arg2 : i32
    %c0_i32 = arith.constant 0 : i32
    %c0_i32_0 = arith.constant 0 : i32
    %c0_i32_1 = arith.constant 0 : i32
    return %arg0, %c0_i32, %1, %c0_i32_0 : i32, i32, i32, i32
  }
  func.func @transform_3(%arg0: i32, %arg1: i32, %arg2: i32) -> (i32, i32, i32, i32) {
    %c1_i32 = arith.constant 1 : i32
    %0 = arith.muli %arg1, %c1_i32 : i32
    %1 = arith.addi %0, %arg2 : i32
    %c0_i32 = arith.constant 0 : i32
    %c0_i32_0 = arith.constant 0 : i32
    %c0_i32_1 = arith.constant 0 : i32
    return %arg0, %c0_i32, %1, %c0_i32_0 : i32, i32, i32, i32
  }
  func.func @transform_4(%arg0: i32, %arg1: i32, %arg2: i32) -> (i32, i32, i32, i32) {
    %c1_i32 = arith.constant 1 : i32
    %0 = arith.muli %arg1, %c1_i32 : i32
    %1 = arith.addi %0, %arg2 : i32
    %c0_i32 = arith.constant 0 : i32
    %c0_i32_0 = arith.constant 0 : i32
    %c0_i32_1 = arith.constant 0 : i32
    return %arg0, %c0_i32, %1, %c0_i32_0 : i32, i32, i32, i32
  }
  func.func @transform_5(%arg0: i32, %arg1: i32, %arg2: i32) -> (i32, i32, i32, i32) {
    %c0_i32 = arith.constant 0 : i32
    %c0_i32_0 = arith.constant 0 : i32
    %c0_i32_1 = arith.constant 0 : i32
    return %arg0, %arg1, %c0_i32, %c0_i32_0 : i32, i32, i32, i32
  }
  func.func @transform_6(%arg0: i32, %arg1: i32, %arg2: i32) -> (i32, i32, i32, i32) {
    %c0_i32 = arith.constant 0 : i32
    %c0_i32_0 = arith.constant 0 : i32
    %c0_i32_1 = arith.constant 0 : i32
    return %arg0, %arg1, %c0_i32, %c0_i32_0 : i32, i32, i32, i32
  }
  func.func @transform_7(%arg0: i32, %arg1: i32, %arg2: i32) -> (i32, i32, i32, i32) {
    %c0_i32 = arith.constant 0 : i32
    %c0_i32_0 = arith.constant 0 : i32
    %c0_i32_1 = arith.constant 0 : i32
    return %arg0, %arg1, %c0_i32, %c0_i32_0 : i32, i32, i32, i32
  }
  func.func @transform_8(%arg0: i32, %arg1: i32, %arg2: i32) -> (i32, i32, i32, i32) {
    %c0_i32 = arith.constant 0 : i32
    %c0_i32_0 = arith.constant 0 : i32
    %c0_i32_1 = arith.constant 0 : i32
    return %arg0, %arg1, %c0_i32, %c0_i32_0 : i32, i32, i32, i32
  }
}

</mosaic_0001>

<llo_original>
// kernel: wnormal_forward.1
$region0: #{wnormal_forward.1}
  #allocation0 [shape = 'u32[]', space=smem, size = 0x4, offset = 0x4, fixed_abs, tag = 'smem constant byte address 0x4 - core index']
  #allocation1 [shape = 'u32[144,128]{1,0:T(1,128)}', space=vmem, size = 0x12000, scoped, tag = 'internal scratch']
  %s0 = inlined_call_operand.vmem [shape: bf16[256,256], index: 0, kind: input, shape index: {}]
  %s1 = inlined_call_operand.vmem [shape: f32[2,4,128,512], index: 1, kind: input, shape index: {}]
  %s2 = inlined_call_operand.vmem [shape: f32[2,4,128,512], index: 2, kind: input, shape index: {}]
  %s3 = inlined_call_operand.vmem [shape: f32[2,4,128,128], index: 3, kind: output, shape index: {0}]
  %s4 = inlined_call_operand.vmem [shape: f32[2,4,128,128], index: 4, kind: output, shape index: {1}]
  %s5 = inlined_call_operand.vmem [shape: f32[2,2,8,128], index: 5, kind: output, shape index: {2}]
  %s6 = inlined_call_operand.vmem [shape: f32[2,2,8,128], index: 6, kind: output, shape index: {3}]
  %s7 = inlined_call_operand.vmem [shape: f32[2,2,8,128], index: 7, kind: output, shape index: {4}]
  %s8 = inlined_call_operand.hbm [shape: f32[2,2,8,128], index: 8, kind: output, shape index: {5}]
  %9 = xla_tuple %s3, %s4, %s5, %s6, %s7, %s8
  %s10 = sld [smem:[#allocation0]]
  $region207: #{wnormal_forward.1} parent=0
    _
  %s12 = ssub.s32 1, %s10
  %s13 = scalar_select 0, %s12, %s10
  $region1: #{wnormal_forward.1} parent=0
    #allocation2 [shape = 'u8[1048576]{0}', space=vmem, size = 0x100000, scoped, tag = 'input window, operand 1']
    #allocation3 [shape = 'u8[1048576]{0}', space=vmem, size = 0x100000, scoped, tag = 'input window, operand 2']
    #allocation4 [shape = 'u8[262144]{0}', space=vmem, size = 0x40000, scoped, tag = 'output window, operand 0']
    #allocation5 [shape = 'u8[262144]{0}', space=vmem, size = 0x40000, scoped, tag = 'output window, operand 1']
    #allocation6 [shape = 'u8[8192]{0}', space=vmem, size = 0x2000, scoped, tag = 'output window, operand 5']
    #allocation7 [shape = 's32[2]{0}', space=sflag, size = 0x8, scoped, tag = 'scoped memory for wnormal_forward.1']
    %14 = vsyncpa [#allocation7], 0
    %s15 = scalar_lea.sflag [#allocation7], 1
    %16 = vsyncpa %s15, 0
    loop: start=0, step=1, limit=6
    $region2: #{wnormal_forward.1} parent=1 // loop_pre_header
      _
    $region3: #{wnormal_forward.1} parent=1 // loop_header
      %s18 = sphi 0, %s22
      %p19 = scmp.ge.s32.totalorder %s18, 6
      %s25 = sphi 0, %s44
      %s26 = sphi 0, %s40
      %s27 = sphi 0, %s36
      %s28 = sphi 0, %s25
      %s29 = sphi 0, %s26
      %s30 = sphi 0, %s27
      %s31 = sphi 0, %s28
      %s32 = sphi 0, %s29
      %s33 = sphi 0, %s30
      %s45 = sphi 0, %s45
      %s47 = sphi 0, %s45
      %s48 = sphi 0, %s47
      %s62 = sphi 0, %s48
      %s72 = sphi 0, %s74
      %s75 = sphi 0, %s72
      %s76 = sphi 0, %s75
      %s92 = sphi 0, %s76
      %s102 = sphi 0, %s104
      %s105 = sphi 0, %s102
      %s106 = sphi 0, %s105
      %s122 = sphi 0, %s106
      %s132 = sphi 0, %s134
      %s135 = sphi 0, %s132
      %s136 = sphi 0, %s135
      %s152 = sphi 0, %s136
      %s162 = sphi 0, %s164
      %s165 = sphi 0, %s162
      %s166 = sphi 0, %s165
      %s182 = sphi 0, %s166
      %s190 = sphi 0, %s192
      %s193 = sphi 0, %s190
      %s194 = sphi 0, %s193
      %s210 = sphi 0, %s194
      %s218 = sphi 0, %s220
      %s221 = sphi 0, %s218
      %s222 = sphi 0, %s221
      %s238 = sphi 0, %s222
      %s246 = sphi 0, %s248
      %s249 = sphi 0, %s246
      %s250 = sphi 0, %s249
      %s266 = sphi 0, %s250
      %s274 = sphi 0, %s276
      %s277 = sphi 0, %s274
      %s278 = sphi 0, %s277
      %s294 = sphi 0, %s278
    $region4: #{wnormal_forward.1} parent=1 // loop_header_branch
      %21 = sbr.rel (%p19) target = $region8
    $region5: #{wnormal_forward.1} parent=1 // loop_body
      %s23 = ssub.s32 %s18, 1
      %s24 = ssub.s32 %s18, 2
      %s34 = sadd.s32 1, %s27
      %p35 = scmp.ge.s32.totalorder %s34, 1
      %s36 = scalar_select %p35, 0, %s34
      %s37 = sadd.s32 1, %s26
      %s38 = scalar_select %p35, %s37, %s26
      %p39 = scmp.ge.s32.totalorder %s38, 2
      %s40 = scalar_select %p39, 0, %s38
      %s41 = sadd.s32 1, %s25
      %s42 = scalar_select %p39, %s41, %s25
      %p43 = scmp.ge.s32.totalorder %s42, 2
      %s44 = scalar_select %p43, 0, %s42
      %s46 = sadd.s32 %s45, 1
      %p49 = scmp.eq.s32.totalorder %s18, 3
      %p50 = scmp.ne.s32.totalorder %s45, %s47
      %p51 = scmp.eq.s32.totalorder %s18, 0
      %p52 = por %p50, %p51
      %p53 = scmp.ne.s32.totalorder %s45, %s47
      %p54 = scmp.eq.s32.totalorder %s23, 3
      %p55 = por %p53, %p54
      %p56 = scmp.ne.s32.totalorder %s47, %s48
      %p57 = scmp.eq.s32.totalorder %s23, 0
      %p58 = por %p56, %p57
      %p59 = scmp.ne.s32.totalorder %s47, %s48
      %p60 = scmp.eq.s32.totalorder %s24, 3
      %p61 = por %p59, %p60
      %p63 = scmp.ne.s32.totalorder %s48, %s62
      %p64 = scmp.eq.s32.totalorder %s24, 0
      %p65 = por %p63, %p64
      %s66 = sadd.s32 %s26, %s27
      %s67 = sadd.s32 %s40, %s36
      %s68 = ssub.s32 %s25, %s44
      %s69 = ssub.s32 %s66, %s67
      %s70 = sor.u32 %s68, %s69
      %p71 = scmp.eq.s32.totalorder %s70, 0
      %s73 = sadd.s32 %s72, 1
      %s74 = scalar_select %p71, %s72, %s73
      %p77 = pneg %p71
      %p78 = scmp.eq.s32.totalorder %s18, 3
      %p79 = por %p77, %p78
      %p80 = scmp.ne.s32.totalorder %s72, %s75
      %p81 = scmp.eq.s32.totalorder %s18, 0
      %p82 = por %p80, %p81
      %p83 = scmp.ne.s32.totalorder %s72, %s75
      %p84 = scmp.eq.s32.totalorder %s23, 3
      %p85 = por %p83, %p84
      %p86 = scmp.ne.s32.totalorder %s75, %s76
      %p87 = scmp.eq.s32.totalorder %s23, 0
      %p88 = por %p86, %p87
      %p89 = scmp.ne.s32.totalorder %s75, %s76
      %p90 = scmp.eq.s32.totalorder %s24, 3
      %p91 = por %p89, %p90
      %p93 = scmp.ne.s32.totalorder %s76, %s92
      %p94 = scmp.eq.s32.totalorder %s24, 0
      %p95 = por %p93, %p94
      %s96 = sadd.s32 %s26, %s27
      %s97 = sadd.s32 %s40, %s36
      %s98 = ssub.s32 %s25, %s44
      %s99 = ssub.s32 %s96, %s97
      %s100 = sor.u32 %s98, %s99
      %p101 = scmp.eq.s32.totalorder %s100, 0
      %s103 = sadd.s32 %s102, 1
      %s104 = scalar_select %p101, %s102, %s103
      %p107 = pneg %p101
      %p108 = scmp.eq.s32.totalorder %s18, 3
      %p109 = por %p107, %p108
      %p110 = scmp.ne.s32.totalorder %s102, %s105
      %p111 = scmp.eq.s32.totalorder %s18, 0
      %p112 = por %p110, %p111
      %p113 = scmp.ne.s32.totalorder %s102, %s105
      %p114 = scmp.eq.s32.totalorder %s23, 3
      %p115 = por %p113, %p114
      %p116 = scmp.ne.s32.totalorder %s105, %s106
      %p117 = scmp.eq.s32.totalorder %s23, 0
      %p118 = por %p116, %p117
      %p119 = scmp.ne.s32.totalorder %s105, %s106
      %p120 = scmp.eq.s32.totalorder %s24, 3
      %p121 = por %p119, %p120
      %p123 = scmp.ne.s32.totalorder %s106, %s122
      %p124 = scmp.eq.s32.totalorder %s24, 0
      %p125 = por %p123, %p124
      %s126 = sadd.s32 %s26, %s27
      %s127 = sadd.s32 %s40, %s36
      %s128 = ssub.s32 %s25, %s44
      %s129 = ssub.s32 %s126, %s127
      %s130 = sor.u32 %s128, %s129
      %p131 = scmp.eq.s32.totalorder %s130, 0
      %s133 = sadd.s32 %s132, 1
      %s134 = scalar_select %p131, %s132, %s133
      %p137 = pneg %p131
      %p138 = scmp.eq.s32.totalorder %s18, 3
      %p139 = por %p137, %p138
      %p140 = scmp.ne.s32.totalorder %s132, %s135
      %p141 = scmp.eq.s32.totalorder %s18, 0
      %p142 = por %p140, %p141
      %p143 = scmp.ne.s32.totalorder %s132, %s135
      %p144 = scmp.eq.s32.totalorder %s23, 3
      %p145 = por %p143, %p144
      %p146 = scmp.ne.s32.totalorder %s135, %s136
      %p147 = scmp.eq.s32.totalorder %s23, 0
      %p148 = por %p146, %p147
      %p149 = scmp.ne.s32.totalorder %s135, %s136
      %p150 = scmp.eq.s32.totalorder %s24, 3
      %p151 = por %p149, %p150
      %p153 = scmp.ne.s32.totalorder %s136, %s152
      %p154 = scmp.eq.s32.totalorder %s24, 0
      %p155 = por %p153, %p154
      %s156 = sadd.s32 %s26, %s27
      %s157 = sadd.s32 %s40, %s36
      %s158 = ssub.s32 %s25, %s44
      %s159 = ssub.s32 %s156, %s157
      %s160 = sor.u32 %s158, %s159
      %p161 = scmp.eq.s32.totalorder %s160, 0
      %s163 = sadd.s32 %s162, 1
      %s164 = scalar_select %p161, %s162, %s163
      %p167 = pneg %p161
      %p168 = scmp.eq.s32.totalorder %s18, 3
      %p169 = por %p167, %p168
      %p170 = scmp.ne.s32.totalorder %s162, %s165
      %p171 = scmp.eq.s32.totalorder %s18, 0
      %p172 = por %p170, %p171
      %p173 = scmp.ne.s32.totalorder %s162, %s165
      %p174 = scmp.eq.s32.totalorder %s23, 3
      %p175 = por %p173, %p174
      %p176 = scmp.ne.s32.totalorder %s165, %s166
      %p177 = scmp.eq.s32.totalorder %s23, 0
      %p178 = por %p176, %p177
      %p179 = scmp.ne.s32.totalorder %s165, %s166
      %p180 = scmp.eq.s32.totalorder %s24, 3
      %p181 = por %p179, %p180
      %p183 = scmp.ne.s32.totalorder %s166, %s182
      %p184 = scmp.eq.s32.totalorder %s24, 0
      %p185 = por %p183, %p184
      %s186 = ssub.s32 %s25, %s44
      %s187 = ssub.s32 %s26, %s40
      %s188 = sor.u32 %s186, %s187
      %p189 = scmp.eq.s32.totalorder %s188, 0
      %s191 = sadd.s32 %s190, 1
      %s192 = scalar_select %p189, %s190, %s191
      %p195 = pneg %p189
      %p196 = scmp.eq.s32.totalorder %s18, 3
      %p197 = por %p195, %p196
      %p198 = scmp.ne.s32.totalorder %s190, %s193
      %p199 = scmp.eq.s32.totalorder %s18, 0
      %p200 = por %p198, %p199
      %p201 = scmp.ne.s32.totalorder %s190, %s193
      %p202 = scmp.eq.s32.totalorder %s23, 3
      %p203 = por %p201, %p202
      %p204 = scmp.ne.s32.totalorder %s193, %s194
      %p205 = scmp.eq.s32.totalorder %s23, 0
      %p206 = por %p204, %p205
      %p207 = scmp.ne.s32.totalorder %s193, %s194
      %p208 = scmp.eq.s32.totalorder %s24, 3
      %p209 = por %p207, %p208
      %p211 = scmp.ne.s32.totalorder %s194, %s210
      %p212 = scmp.eq.s32.totalorder %s24, 0
      %p213 = por %p211, %p212
      %s214 = ssub.s32 %s25, %s44
      %s215 = ssub.s32 %s26, %s40
      %s216 = sor.u32 %s214, %s215
      %p217 = scmp.eq.s32.totalorder %s216, 0
      %s219 = sadd.s32 %s218, 1
      %s220 = scalar_select %p217, %s218, %s219
      %p223 = pneg %p217
      %p224 = scmp.eq.s32.totalorder %s18, 3
      %p225 = por %p223, %p224
      %p226 = scmp.ne.s32.totalorder %s218, %s221
      %p227 = scmp.eq.s32.totalorder %s18, 0
      %p228 = por %p226, %p227
      %p229 = scmp.ne.s32.totalorder %s218, %s221
      %p230 = scmp.eq.s32.totalorder %s23, 3
      %p231 = por %p229, %p230
      %p232 = scmp.ne.s32.totalorder %s221, %s222
      %p233 = scmp.eq.s32.totalorder %s23, 0
      %p234 = por %p232, %p233
      %p235 = scmp.ne.s32.totalorder %s221, %s222
      %p236 = scmp.eq.s32.totalorder %s24, 3
      %p237 = por %p235, %p236
      %p239 = scmp.ne.s32.totalorder %s222, %s238
      %p240 = scmp.eq.s32.totalorder %s24, 0
      %p241 = por %p239, %p240
      %s242 = ssub.s32 %s25, %s44
      %s243 = ssub.s32 %s26, %s40
      %s244 = sor.u32 %s242, %s243
      %p245 = scmp.eq.s32.totalorder %s244, 0
      %s247 = sadd.s32 %s246, 1
      %s248 = scalar_select %p245, %s246, %s247
      %p251 = pneg %p245
      %p252 = scmp.eq.s32.totalorder %s18, 3
      %p253 = por %p251, %p252
      %p254 = scmp.ne.s32.totalorder %s246, %s249
      %p255 = scmp.eq.s32.totalorder %s18, 0
      %p256 = por %p254, %p255
      %p257 = scmp.ne.s32.totalorder %s246, %s249
      %p258 = scmp.eq.s32.totalorder %s23, 3
      %p259 = por %p257, %p258
      %p260 = scmp.ne.s32.totalorder %s249, %s250
      %p261 = scmp.eq.s32.totalorder %s23, 0
      %p262 = por %p260, %p261
      %p263 = scmp.ne.s32.totalorder %s249, %s250
      %p264 = scmp.eq.s32.totalorder %s24, 3
      %p265 = por %p263, %p264
      %p267 = scmp.ne.s32.totalorder %s250, %s266
      %p268 = scmp.eq.s32.totalorder %s24, 0
      %p269 = por %p267, %p268
      %s270 = ssub.s32 %s25, %s44
      %s271 = ssub.s32 %s26, %s40
      %s272 = sor.u32 %s270, %s271
      %p273 = scmp.eq.s32.totalorder %s272, 0
      %s275 = sadd.s32 %s274, 1
      %s276 = scalar_select %p273, %s274, %s275
      %p279 = pneg %p273
      %p280 = scmp.eq.s32.totalorder %s18, 3
      %p281 = por %p279, %p280
      %p282 = scmp.ne.s32.totalorder %s274, %s277
      %p283 = scmp.eq.s32.totalorder %s18, 0
      %p284 = por %p282, %p283
      %p285 = scmp.ne.s32.totalorder %s274, %s277
      %p286 = scmp.eq.s32.totalorder %s23, 3
      %p287 = por %p285, %p286
      %p288 = scmp.ne.s32.totalorder %s277, %s278
      %p289 = scmp.eq.s32.totalorder %s23, 0
      %p290 = por %p288, %p289
      %p291 = scmp.ne.s32.totalorder %s277, %s278
      %p292 = scmp.eq.s32.totalorder %s24, 3
      %p293 = por %p291, %p292
      %p295 = scmp.ne.s32.totalorder %s278, %s294
      %p296 = scmp.eq.s32.totalorder %s24, 0
      %p297 = por %p295, %p296
      %p298 = scmp.le.s32.totalorder 1, %s18
      %p299 = scmp.lt.s32.totalorder %s18, 5
      %p300 = pnand %p298, %p299
      %p301 = pneg %p300
      // Predicated region
      $region9: #{wnormal_forward.1} parent=5 // pred_check
        _
      $region10: #{wnormal_forward.1} parent=5 // pred_check_branch
        %303 = sbr.rel (%p300) target = $region12
      $region11: #{wnormal_forward.1} parent=5 // pred_region
        %s304 = ssub.s32 %s18, 1
        // Predicated region
        $region13: #{wnormal_forward.1} parent=11 // pred_check
          %p305 = pneg %p58
        $region14: #{wnormal_forward.1} parent=11 // pred_check_branch
          %307 = sbr.rel (%p305) target = $region16
        $region15: #{wnormal_forward.1} parent=11 // pred_region
          _
        $region16: #{wnormal_forward.1} parent=11 // pred_fallthru
          _
      $region12: #{wnormal_forward.1} parent=5 // pred_fallthru
        _
      %p308 = scmp.lt.s32.totalorder %s18, 4
      // Predicated region
      $region17: #{wnormal_forward.1} parent=5 // pred_check
        %p309 = pneg %p308
      $region18: #{wnormal_forward.1} parent=5 // pred_check_branch
        %311 = sbr.rel (%p309) target = $region20
      $region19: #{wnormal_forward.1} parent=5 // pred_region
        // Predicated region
        $region21: #{wnormal_forward.1} parent=19 // pred_check
          %p312 = pneg %p82
        $region22: #{wnormal_forward.1} parent=19 // pred_check_branch
          %314 = sbr.rel (%p312) target = $region24
        $region23: #{wnormal_forward.1} parent=19 // pred_region
          %s315 = sand.u32 %s72, 1
          %s316 = sand.u32 %s72, 1
          %s317 = smul.addr %s316, 1024
          %s318 = scalar_lea.vmem [#allocation2], %s317
          %s319 = sadd.s32 %s26, %s27
          %s320 = smul.u32 8, %s319
          %s321 = smul.addr %s320, 4
          %s322 = smul.addr %s25, 256
          %s323 = sadd.s32 %s321, %s322
          %s324 = smul.addr %s323, 8
          %s325 = scalar_lea.vmem %s1, %s324
          // Predicated region
          $region25: #{wnormal_forward.1} parent=23 // pred_check
            _
          $region26: #{wnormal_forward.1} parent=23 // pred_check_branch
            %327 = sbr.rel (0) target = $region28
          $region27: #{wnormal_forward.1} parent=23 // pred_region
            // Predicated region
            $region29: #{wnormal_forward.1} parent=27 // pred_check
              _
            $region30: #{wnormal_forward.1} parent=27 // pred_check_branch
              %329 = sbr.rel (0) target = $region32
            $region31: #{wnormal_forward.1} parent=27 // pred_region
              loop: start=0, step=1, limit=1
              $region33: #{wnormal_forward.1} parent=31 // loop_pre_header
                _
              $region34: #{wnormal_forward.1} parent=31 // loop_header
                %s331 = sphi 0, %s335
                %p332 = scmp.ge.s32.totalorder %s331, 1
                %s336 = sphi %s325, %s325
                %s337 = sphi %s318, %s318
              $region35: #{wnormal_forward.1} parent=31 // loop_header_branch
                %334 = sbr.rel (%p332) target = $region39
              $region36: #{wnormal_forward.1} parent=31 // loop_body
                %v338 = vld [vmem:[%s336] sm:$0xff]
                %339 = vst [vmem:[%s337] sm:$0xff] %v338
                %v340 = vld [vmem:[%s336 + $0x8] sm:$0xff]
                %341 = vst [vmem:[%s337 + $0x8] sm:$0xff] %v340
                %v342 = vld [vmem:[%s336 + $0x10] sm:$0xff]
                %343 = vst [vmem:[%s337 + $0x10] sm:$0xff] %v342
                %v344 = vld [vmem:[%s336 + $0x18] sm:$0xff]
                %345 = vst [vmem:[%s337 + $0x18] sm:$0xff] %v344
                %v346 = vld [vmem:[%s336 + $0x20] sm:$0xff]
                %347 = vst [vmem:[%s337 + $0x20] sm:$0xff] %v346
                %v348 = vld [vmem:[%s336 + $0x28] sm:$0xff]
                %349 = vst [vmem:[%s337 + $0x28] sm:$0xff] %v348
                %v350 = vld [vmem:[%s336 + $0x30] sm:$0xff]
                %351 = vst [vmem:[%s337 + $0x30] sm:$0xff] %v350
                %v352 = vld [vmem:[%s336 + $0x38] sm:$0xff]
                %353 = vst [vmem:[%s337 + $0x38] sm:$0xff] %v352
                %v354 = vld [vmem:[%s336 + $0x40] sm:$0xff]
                %355 = vst [vmem:[%s337 + $0x40] sm:$0xff] %v354
                %v356 = vld [vmem:[%s336 + $0x48] sm:$0xff]
                %357 = vst [vmem:[%s337 + $0x48] sm:$0xff] %v356
                %v358 = vld [vmem:[%s336 + $0x50] sm:$0xff]
                %359 = vst [vmem:[%s337 + $0x50] sm:$0xff] %v358
                %v360 = vld [vmem:[%s336 + $0x58] sm:$0xff]
                %361 = vst [vmem:[%s337 + $0x58] sm:$0xff] %v360
                %v362 = vld [vmem:[%s336 + $0x60] sm:$0xff]
                %363 = vst [vmem:[%s337 + $0x60] sm:$0xff] %v362
                %v364 = vld [vmem:[%s336 + $0x68] sm:$0xff]
                %365 = vst [vmem:[%s337 + $0x68] sm:$0xff] %v364
                %v366 = vld [vmem:[%s336 + $0x70] sm:$0xff]
                %367 = vst [vmem:[%s337 + $0x70] sm:$0xff] %v366
                %v368 = vld [vmem:[%s336 + $0x78] sm:$0xff]
                %369 = vst [vmem:[%s337 + $0x78] sm:$0xff] %v368
                %v370 = vld [vmem:[%s336 + $0x80] sm:$0xff]
                %371 = vst [vmem:[%s337 + $0x80] sm:$0xff] %v370
                %v372 = vld [vmem:[%s336 + $0x88] sm:$0xff]
                %373 = vst [vmem:[%s337 + $0x88] sm:$0xff] %v372
                %v374 = vld [vmem:[%s336 + $0x90] sm:$0xff]
                %375 = vst [vmem:[%s337 + $0x90] sm:$0xff] %v374
                %v376 = vld [vmem:[%s336 + $0x98] sm:$0xff]
                %377 = vst [vmem:[%s337 + $0x98] sm:$0xff] %v376
                %v378 = vld [vmem:[%s336 + $0xa0] sm:$0xff]
                %379 = vst [vmem:[%s337 + $0xa0] sm:$0xff] %v378
                %v380 = vld [vmem:[%s336 + $0xa8] sm:$0xff]
                %381 = vst [vmem:[%s337 + $0xa8] sm:$0xff] %v380
                %v382 = vld [vmem:[%s336 + $0xb0] sm:$0xff]
                %383 = vst [vmem:[%s337 + $0xb0] sm:$0xff] %v382
                %v384 = vld [vmem:[%s336 + $0xb8] sm:$0xff]
                %385 = vst [vmem:[%s337 + $0xb8] sm:$0xff] %v384
                %v386 = vld [vmem:[%s336 + $0xc0] sm:$0xff]
                %387 = vst [vmem:[%s337 + $0xc0] sm:$0xff] %v386
                %v388 = vld [vmem:[%s336 + $0xc8] sm:$0xff]
                %389 = vst [vmem:[%s337 + $0xc8] sm:$0xff] %v388
                %v390 = vld [vmem:[%s336 + $0xd0] sm:$0xff]
                %391 = vst [vmem:[%s337 + $0xd0] sm:$0xff] %v390
                %v392 = vld [vmem:[%s336 + $0xd8] sm:$0xff]
                %393 = vst [vmem:[%s337 + $0xd8] sm:$0xff] %v392
                %v394 = vld [vmem:[%s336 + $0xe0] sm:$0xff]
                %395 = vst [vmem:[%s337 + $0xe0] sm:$0xff] %v394
                %v396 = vld [vmem:[%s336 + $0xe8] sm:$0xff]
                %397 = vst [vmem:[%s337 + $0xe8] sm:$0xff] %v396
                %v398 = vld [vmem:[%s336 + $0xf0] sm:$0xff]
                %399 = vst [vmem:[%s337 + $0xf0] sm:$0xff] %v398
                %v400 = vld [vmem:[%s336 + $0xf8] sm:$0xff]
                %401 = vst [vmem:[%s337 + $0xf8] sm:$0xff] %v400
                %v402 = vld [vmem:[%s336 + $0x200] sm:$0xff]
                %403 = vst [vmem:[%s337 + $0x100] sm:$0xff] %v402
                %v404 = vld [vmem:[%s336 + $0x208] sm:$0xff]
                %405 = vst [vmem:[%s337 + $0x108] sm:$0xff] %v404
                %v406 = vld [vmem:[%s336 + $0x210] sm:$0xff]
                %407 = vst [vmem:[%s337 + $0x110] sm:$0xff] %v406
                %v408 = vld [vmem:[%s336 + $0x218] sm:$0xff]
                %409 = vst [vmem:[%s337 + $0x118] sm:$0xff] %v408
                %v410 = vld [vmem:[%s336 + $0x220] sm:$0xff]
                %411 = vst [vmem:[%s337 + $0x120] sm:$0xff] %v410
                %v412 = vld [vmem:[%s336 + $0x228] sm:$0xff]
                %413 = vst [vmem:[%s337 + $0x128] sm:$0xff] %v412
                %v414 = vld [vmem:[%s336 + $0x230] sm:$0xff]
                %415 = vst [vmem:[%s337 + $0x130] sm:$0xff] %v414
                %v416 = vld [vmem:[%s336 + $0x238] sm:$0xff]
                %417 = vst [vmem:[%s337 + $0x138] sm:$0xff] %v416
                %v418 = vld [vmem:[%s336 + $0x240] sm:$0xff]
                %419 = vst [vmem:[%s337 + $0x140] sm:$0xff] %v418
                %v420 = vld [vmem:[%s336 + $0x248] sm:$0xff]
                %421 = vst [vmem:[%s337 + $0x148] sm:$0xff] %v420
                %v422 = vld [vmem:[%s336 + $0x250] sm:$0xff]
                %423 = vst [vmem:[%s337 + $0x150] sm:$0xff] %v422
                %v424 = vld [vmem:[%s336 + $0x258] sm:$0xff]
                %425 = vst [vmem:[%s337 + $0x158] sm:$0xff] %v424
                %v426 = vld [vmem:[%s336 + $0x260] sm:$0xff]
                %427 = vst [vmem:[%s337 + $0x160] sm:$0xff] %v426
                %v428 = vld [vmem:[%s336 + $0x268] sm:$0xff]
                %429 = vst [vmem:[%s337 + $0x168] sm:$0xff] %v428
                %v430 = vld [vmem:[%s336 + $0x270] sm:$0xff]
                %431 = vst [vmem:[%s337 + $0x170] sm:$0xff] %v430
                %v432 = vld [vmem:[%s336 + $0x278] sm:$0xff]
                %433 = vst [vmem:[%s337 + $0x178] sm:$0xff] %v432
                %v434 = vld [vmem:[%s336 + $0x280] sm:$0xff]
                %435 = vst [vmem:[%s337 + $0x180] sm:$0xff] %v434
                %v436 = vld [vmem:[%s336 + $0x288] sm:$0xff]
                %437 = vst [vmem:[%s337 + $0x188] sm:$0xff] %v436
                %v438 = vld [vmem:[%s336 + $0x290] sm:$0xff]
                %439 = vst [vmem:[%s337 + $0x190] sm:$0xff] %v438
                %v440 = vld [vmem:[%s336 + $0x298] sm:$0xff]
                %441 = vst [vmem:[%s337 + $0x198] sm:$0xff] %v440
                %v442 = vld [vmem:[%s336 + $0x2a0] sm:$0xff]
                %443 = vst [vmem:[%s337 + $0x1a0] sm:$0xff] %v442
                %v444 = vld [vmem:[%s336 + $0x2a8] sm:$0xff]
                %445 = vst [vmem:[%s337 + $0x1a8] sm:$0xff] %v444
                %v446 = vld [vmem:[%s336 + $0x2b0] sm:$0xff]
                %447 = vst [vmem:[%s337 + $0x1b0] sm:$0xff] %v446
                %v448 = vld [vmem:[%s336 + $0x2b8] sm:$0xff]
                %449 = vst [vmem:[%s337 + $0x1b8] sm:$0xff] %v448
                %v450 = vld [vmem:[%s336 + $0x2c0] sm:$0xff]
                %451 = vst [vmem:[%s337 + $0x1c0] sm:$0xff] %v450
                %v452 = vld [vmem:[%s336 + $0x2c8] sm:$0xff]
                %453 = vst [vmem:[%s337 + $0x1c8] sm:$0xff] %v452
                %v454 = vld [vmem:[%s336 + $0x2d0] sm:$0xff]
                %455 = vst [vmem:[%s337 + $0x1d0] sm:$0xff] %v454
                %v456 = vld [vmem:[%s336 + $0x2d8] sm:$0xff]
                %457 = vst [vmem:[%s337 + $0x1d8] sm:$0xff] %v456
                %v458 = vld [vmem:[%s336 + $0x2e0] sm:$0xff]
                %459 = vst [vmem:[%s337 + $0x1e0] sm:$0xff] %v458
                %v460 = vld [vmem:[%s336 + $0x2e8] sm:$0xff]
                %461 = vst [vmem:[%s337 + $0x1e8] sm:$0xff] %v460
                %v462 = vld [vmem:[%s336 + $0x2f0] sm:$0xff]
                %463 = vst [vmem:[%s337 + $0x1f0] sm:$0xff] %v462
                %v464 = vld [vmem:[%s336 + $0x2f8] sm:$0xff]
                %465 = vst [vmem:[%s337 + $0x1f8] sm:$0xff] %v464
                %v466 = vld [vmem:[%s336 + $0x400] sm:$0xff]
                %467 = vst [vmem:[%s337 + $0x200] sm:$0xff] %v466
                %v468 = vld [vmem:[%s336 + $0x408] sm:$0xff]
                %469 = vst [vmem:[%s337 + $0x208] sm:$0xff] %v468
                %v470 = vld [vmem:[%s336 + $0x410] sm:$0xff]
                %471 = vst [vmem:[%s337 + $0x210] sm:$0xff] %v470
                %v472 = vld [vmem:[%s336 + $0x418] sm:$0xff]
                %473 = vst [vmem:[%s337 + $0x218] sm:$0xff] %v472
                %v474 = vld [vmem:[%s336 + $0x420] sm:$0xff]
                %475 = vst [vmem:[%s337 + $0x220] sm:$0xff] %v474
                %v476 = vld [vmem:[%s336 + $0x428] sm:$0xff]
                %477 = vst [vmem:[%s337 + $0x228] sm:$0xff] %v476
                %v478 = vld [vmem:[%s336 + $0x430] sm:$0xff]
                %479 = vst [vmem:[%s337 + $0x230] sm:$0xff] %v478
                %v480 = vld [vmem:[%s336 + $0x438] sm:$0xff]
                %481 = vst [vmem:[%s337 + $0x238] sm:$0xff] %v480
                %v482 = vld [vmem:[%s336 + $0x440] sm:$0xff]
                %483 = vst [vmem:[%s337 + $0x240] sm:$0xff] %v482
                %v484 = vld [vmem:[%s336 + $0x448] sm:$0xff]
                %485 = vst [vmem:[%s337 + $0x248] sm:$0xff] %v484
                %v486 = vld [vmem:[%s336 + $0x450] sm:$0xff]
                %487 = vst [vmem:[%s337 + $0x250] sm:$0xff] %v486
                %v488 = vld [vmem:[%s336 + $0x458] sm:$0xff]
                %489 = vst [vmem:[%s337 + $0x258] sm:$0xff] %v488
                %v490 = vld [vmem:[%s336 + $0x460] sm:$0xff]
                %491 = vst [vmem:[%s337 + $0x260] sm:$0xff] %v490
                %v492 = vld [vmem:[%s336 + $0x468] sm:$0xff]
                %493 = vst [vmem:[%s337 + $0x268] sm:$0xff] %v492
                %v494 = vld [vmem:[%s336 + $0x470] sm:$0xff]
                %495 = vst [vmem:[%s337 + $0x270] sm:$0xff] %v494
                %v496 = vld [vmem:[%s336 + $0x478] sm:$0xff]
                %497 = vst [vmem:[%s337 + $0x278] sm:$0xff] %v496
                %v498 = vld [vmem:[%s336 + $0x480] sm:$0xff]
                %499 = vst [vmem:[%s337 + $0x280] sm:$0xff] %v498
                %v500 = vld [vmem:[%s336 + $0x488] sm:$0xff]
                %501 = vst [vmem:[%s337 + $0x288] sm:$0xff] %v500
                %v502 = vld [vmem:[%s336 + $0x490] sm:$0xff]
                %503 = vst [vmem:[%s337 + $0x290] sm:$0xff] %v502
                %v504 = vld [vmem:[%s336 + $0x498] sm:$0xff]
                %505 = vst [vmem:[%s337 + $0x298] sm:$0xff] %v504
                %v506 = vld [vmem:[%s336 + $0x4a0] sm:$0xff]
                %507 = vst [vmem:[%s337 + $0x2a0] sm:$0xff] %v506
                %v508 = vld [vmem:[%s336 + $0x4a8] sm:$0xff]
                %509 = vst [vmem:[%s337 + $0x2a8] sm:$0xff] %v508
                %v510 = vld [vmem:[%s336 + $0x4b0] sm:$0xff]
                %511 = vst [vmem:[%s337 + $0x2b0] sm:$0xff] %v510
                %v512 = vld [vmem:[%s336 + $0x4b8] sm:$0xff]
                %513 = vst [vmem:[%s337 + $0x2b8] sm:$0xff] %v512
                %v514 = vld [vmem:[%s336 + $0x4c0] sm:$0xff]
                %515 = vst [vmem:[%s337 + $0x2c0] sm:$0xff] %v514
                %v516 = vld [vmem:[%s336 + $0x4c8] sm:$0xff]
                %517 = vst [vmem:[%s337 + $0x2c8] sm:$0xff] %v516
                %v518 = vld [vmem:[%s336 + $0x4d0] sm:$0xff]
                %519 = vst [vmem:[%s337 + $0x2d0] sm:$0xff] %v518
                %v520 = vld [vmem:[%s336 + $0x4d8] sm:$0xff]
                %521 = vst [vmem:[%s337 + $0x2d8] sm:$0xff] %v520
                %v522 = vld [vmem:[%s336 + $0x4e0] sm:$0xff]
                %523 = vst [vmem:[%s337 + $0x2e0] sm:$0xff] %v522
                %v524 = vld [vmem:[%s336 + $0x4e8] sm:$0xff]
                %525 = vst [vmem:[%s337 + $0x2e8] sm:$0xff] %v524
                %v526 = vld [vmem:[%s336 + $0x4f0] sm:$0xff]
                %527 = vst [vmem:[%s337 + $0x2f0] sm:$0xff] %v526
                %v528 = vld [vmem:[%s336 + $0x4f8] sm:$0xff]
                %529 = vst [vmem:[%s337 + $0x2f8] sm:$0xff] %v528
                %v530 = vld [vmem:[%s336 + $0x600] sm:$0xff]
                %531 = vst [vmem:[%s337 + $0x300] sm:$0xff] %v530
                %v532 = vld [vmem:[%s336 + $0x608] sm:$0xff]
                %533 = vst [vmem:[%s337 + $0x308] sm:$0xff] %v532
                %v534 = vld [vmem:[%s336 + $0x610] sm:$0xff]
                %535 = vst [vmem:[%s337 + $0x310] sm:$0xff] %v534
                %v536 = vld [vmem:[%s336 + $0x618] sm:$0xff]
                %537 = vst [vmem:[%s337 + $0x318] sm:$0xff] %v536
                %v538 = vld [vmem:[%s336 + $0x620] sm:$0xff]
                %539 = vst [vmem:[%s337 + $0x320] sm:$0xff] %v538
                %v540 = vld [vmem:[%s336 + $0x628] sm:$0xff]
                %541 = vst [vmem:[%s337 + $0x328] sm:$0xff] %v540
                %v542 = vld [vmem:[%s336 + $0x630] sm:$0xff]
                %543 = vst [vmem:[%s337 + $0x330] sm:$0xff] %v542
                %v544 = vld [vmem:[%s336 + $0x638] sm:$0xff]
                %545 = vst [vmem:[%s337 + $0x338] sm:$0xff] %v544
                %v546 = vld [vmem:[%s336 + $0x640] sm:$0xff]
                %547 = vst [vmem:[%s337 + $0x340] sm:$0xff] %v546
                %v548 = vld [vmem:[%s336 + $0x648] sm:$0xff]
                %549 = vst [vmem:[%s337 + $0x348] sm:$0xff] %v548
                %v550 = vld [vmem:[%s336 + $0x650] sm:$0xff]
                %551 = vst [vmem:[%s337 + $0x350] sm:$0xff] %v550
                %v552 = vld [vmem:[%s336 + $0x658] sm:$0xff]
                %553 = vst [vmem:[%s337 + $0x358] sm:$0xff] %v552
                %v554 = vld [vmem:[%s336 + $0x660] sm:$0xff]
                %555 = vst [vmem:[%s337 + $0x360] sm:$0xff] %v554
                %v556 = vld [vmem:[%s336 + $0x668] sm:$0xff]
                %557 = vst [vmem:[%s337 + $0x368] sm:$0xff] %v556
                %v558 = vld [vmem:[%s336 + $0x670] sm:$0xff]
                %559 = vst [vmem:[%s337 + $0x370] sm:$0xff] %v558
                %v560 = vld [vmem:[%s336 + $0x678] sm:$0xff]
                %561 = vst [vmem:[%s337 + $0x378] sm:$0xff] %v560
                %v562 = vld [vmem:[%s336 + $0x680] sm:$0xff]
                %563 = vst [vmem:[%s337 + $0x380] sm:$0xff] %v562
                %v564 = vld [vmem:[%s336 + $0x688] sm:$0xff]
                %565 = vst [vmem:[%s337 + $0x388] sm:$0xff] %v564
                %v566 = vld [vmem:[%s336 + $0x690] sm:$0xff]
                %567 = vst [vmem:[%s337 + $0x390] sm:$0xff] %v566
                %v568 = vld [vmem:[%s336 + $0x698] sm:$0xff]
                %569 = vst [vmem:[%s337 + $0x398] sm:$0xff] %v568
                %v570 = vld [vmem:[%s336 + $0x6a0] sm:$0xff]
                %571 = vst [vmem:[%s337 + $0x3a0] sm:$0xff] %v570
                %v572 = vld [vmem:[%s336 + $0x6a8] sm:$0xff]
                %573 = vst [vmem:[%s337 + $0x3a8] sm:$0xff] %v572
                %v574 = vld [vmem:[%s336 + $0x6b0] sm:$0xff]
                %575 = vst [vmem:[%s337 + $0x3b0] sm:$0xff] %v574
                %v576 = vld [vmem:[%s336 + $0x6b8] sm:$0xff]
                %577 = vst [vmem:[%s337 + $0x3b8] sm:$0xff] %v576
                %v578 = vld [vmem:[%s336 + $0x6c0] sm:$0xff]
                %579 = vst [vmem:[%s337 + $0x3c0] sm:$0xff] %v578
                %v580 = vld [vmem:[%s336 + $0x6c8] sm:$0xff]
                %581 = vst [vmem:[%s337 + $0x3c8] sm:$0xff] %v580
                %v582 = vld [vmem:[%s336 + $0x6d0] sm:$0xff]
                %583 = vst [vmem:[%s337 + $0x3d0] sm:$0xff] %v582
                %v584 = vld [vmem:[%s336 + $0x6d8] sm:$0xff]
                %585 = vst [vmem:[%s337 + $0x3d8] sm:$0xff] %v584
                %v586 = vld [vmem:[%s336 + $0x6e0] sm:$0xff]
                %587 = vst [vmem:[%s337 + $0x3e0] sm:$0xff] %v586
                %v588 = vld [vmem:[%s336 + $0x6e8] sm:$0xff]
                %589 = vst [vmem:[%s337 + $0x3e8] sm:$0xff] %v588
                %v590 = vld [vmem:[%s336 + $0x6f0] sm:$0xff]
                %591 = vst [vmem:[%s337 + $0x3f0] sm:$0xff] %v590
                %v592 = vld [vmem:[%s336 + $0x6f8] sm:$0xff]
                %593 = vst [vmem:[%s337 + $0x3f8] sm:$0xff] %v592
              $region37: #{wnormal_forward.1} parent=31 // loop_footer
                %s335 = sadd.s32 1, %s331
              $region38: #{wnormal_forward.1} parent=31 // loop_footer_branch
                %330 = sbr.rel target = $region34
              $region39: #{wnormal_forward.1} parent=31 // loop_exit
                _
            $region32: #{wnormal_forward.1} parent=27 // pred_fallthru
              _
            // Predicated region
            $region40: #{wnormal_forward.1} parent=27 // pred_check
              _
            $region41: #{wnormal_forward.1} parent=27 // pred_check_branch
              %595 = sbr.rel target = $region43
            $region42: #{wnormal_forward.1} parent=27 // pred_region
              _
            $region43: #{wnormal_forward.1} parent=27 // pred_fallthru
              _
          $region28: #{wnormal_forward.1} parent=23 // pred_fallthru
            _
          %596 = vnop
        $region24: #{wnormal_forward.1} parent=19 // pred_fallthru
          _
        // Predicated region
        $region44: #{wnormal_forward.1} parent=19 // pred_check
          %p597 = pneg %p112
        $region45: #{wnormal_forward.1} parent=19 // pred_check_branch
          %599 = sbr.rel (%p597) target = $region47
        $region46: #{wnormal_forward.1} parent=19 // pred_region
          %s600 = sand.u32 %s102, 1
          %s601 = sand.u32 %s102, 1
          %s602 = smul.addr %s601, 1024
          %s603 = scalar_lea.vmem [#allocation3], %s602
          %s604 = sadd.s32 %s26, %s27
          %s605 = smul.u32 8, %s604
          %s606 = smul.addr %s605, 4
          %s607 = smul.addr %s25, 256
          %s608 = sadd.s32 %s606, %s607
          %s609 = smul.addr %s608, 8
          %s610 = scalar_lea.vmem %s2, %s609
          // Predicated region
          $region48: #{wnormal_forward.1} parent=46 // pred_check
            _
          $region49: #{wnormal_forward.1} parent=46 // pred_check_branch
            %612 = sbr.rel (0) target = $region51
          $region50: #{wnormal_forward.1} parent=46 // pred_region
            // Predicated region
            $region52: #{wnormal_forward.1} parent=50 // pred_check
              _
            $region53: #{wnormal_forward.1} parent=50 // pred_check_branch
              %614 = sbr.rel (0) target = $region55
            $region54: #{wnormal_forward.1} parent=50 // pred_region
              loop: start=0, step=1, limit=1
              $region56: #{wnormal_forward.1} parent=54 // loop_pre_header
                _
              $region57: #{wnormal_forward.1} parent=54 // loop_header
                %s616 = sphi 0, %s620
                %p617 = scmp.ge.s32.totalorder %s616, 1
                %s621 = sphi %s610, %s610
                %s622 = sphi %s603, %s603
              $region58: #{wnormal_forward.1} parent=54 // loop_header_branch
                %619 = sbr.rel (%p617) target = $region62
              $region59: #{wnormal_forward.1} parent=54 // loop_body
                %v623 = vld [vmem:[%s621] sm:$0xff]
                %624 = vst [vmem:[%s622] sm:$0xff] %v623
                %v625 = vld [vmem:[%s621 + $0x8] sm:$0xff]
                %626 = vst [vmem:[%s622 + $0x8] sm:$0xff] %v625
                %v627 = vld [vmem:[%s621 + $0x10] sm:$0xff]
                %628 = vst [vmem:[%s622 + $0x10] sm:$0xff] %v627
                %v629 = vld [vmem:[%s621 + $0x18] sm:$0xff]
                %630 = vst [vmem:[%s622 + $0x18] sm:$0xff] %v629
                %v631 = vld [vmem:[%s621 + $0x20] sm:$0xff]
                %632 = vst [vmem:[%s622 + $0x20] sm:$0xff] %v631
                %v633 = vld [vmem:[%s621 + $0x28] sm:$0xff]
                %634 = vst [vmem:[%s622 + $0x28] sm:$0xff] %v633
                %v635 = vld [vmem:[%s621 + $0x30] sm:$0xff]
                %636 = vst [vmem:[%s622 + $0x30] sm:$0xff] %v635
                %v637 = vld [vmem:[%s621 + $0x38] sm:$0xff]
                %638 = vst [vmem:[%s622 + $0x38] sm:$0xff] %v637
                %v639 = vld [vmem:[%s621 + $0x40] sm:$0xff]
                %640 = vst [vmem:[%s622 + $0x40] sm:$0xff] %v639
                %v641 = vld [vmem:[%s621 + $0x48] sm:$0xff]
                %642 = vst [vmem:[%s622 + $0x48] sm:$0xff] %v641
                %v643 = vld [vmem:[%s621 + $0x50] sm:$0xff]
                %644 = vst [vmem:[%s622 + $0x50] sm:$0xff] %v643
                %v645 = vld [vmem:[%s621 + $0x58] sm:$0xff]
                %646 = vst [vmem:[%s622 + $0x58] sm:$0xff] %v645
                %v647 = vld [vmem:[%s621 + $0x60] sm:$0xff]
                %648 = vst [vmem:[%s622 + $0x60] sm:$0xff] %v647
                %v649 = vld [vmem:[%s621 + $0x68] sm:$0xff]
                %650 = vst [vmem:[%s622 + $0x68] sm:$0xff] %v649
                %v651 = vld [vmem:[%s621 + $0x70] sm:$0xff]
                %652 = vst [vmem:[%s622 + $0x70] sm:$0xff] %v651
                %v653 = vld [vmem:[%s621 + $0x78] sm:$0xff]
                %654 = vst [vmem:[%s622 + $0x78] sm:$0xff] %v653
                %v655 = vld [vmem:[%s621 + $0x80] sm:$0xff]
                %656 = vst [vmem:[%s622 + $0x80] sm:$0xff] %v655
                %v657 = vld [vmem:[%s621 + $0x88] sm:$0xff]
                %658 = vst [vmem:[%s622 + $0x88] sm:$0xff] %v657
                %v659 = vld [vmem:[%s621 + $0x90] sm:$0xff]
                %660 = vst [vmem:[%s622 + $0x90] sm:$0xff] %v659
                %v661 = vld [vmem:[%s621 + $0x98] sm:$0xff]
                %662 = vst [vmem:[%s622 + $0x98] sm:$0xff] %v661
                %v663 = vld [vmem:[%s621 + $0xa0] sm:$0xff]
                %664 = vst [vmem:[%s622 + $0xa0] sm:$0xff] %v663
                %v665 = vld [vmem:[%s621 + $0xa8] sm:$0xff]
                %666 = vst [vmem:[%s622 + $0xa8] sm:$0xff] %v665
                %v667 = vld [vmem:[%s621 + $0xb0] sm:$0xff]
                %668 = vst [vmem:[%s622 + $0xb0] sm:$0xff] %v667
                %v669 = vld [vmem:[%s621 + $0xb8] sm:$0xff]
                %670 = vst [vmem:[%s622 + $0xb8] sm:$0xff] %v669
                %v671 = vld [vmem:[%s621 + $0xc0] sm:$0xff]
                %672 = vst [vmem:[%s622 + $0xc0] sm:$0xff] %v671
                %v673 = vld [vmem:[%s621 + $0xc8] sm:$0xff]
                %674 = vst [vmem:[%s622 + $0xc8] sm:$0xff] %v673
                %v675 = vld [vmem:[%s621 + $0xd0] sm:$0xff]
                %676 = vst [vmem:[%s622 + $0xd0] sm:$0xff] %v675
                %v677 = vld [vmem:[%s621 + $0xd8] sm:$0xff]
                %678 = vst [vmem:[%s622 + $0xd8] sm:$0xff] %v677
                %v679 = vld [vmem:[%s621 + $0xe0] sm:$0xff]
                %680 = vst [vmem:[%s622 + $0xe0] sm:$0xff] %v679
                %v681 = vld [vmem:[%s621 + $0xe8] sm:$0xff]
                %682 = vst [vmem:[%s622 + $0xe8] sm:$0xff] %v681
                %v683 = vld [vmem:[%s621 + $0xf0] sm:$0xff]
                %684 = vst [vmem:[%s622 + $0xf0] sm:$0xff] %v683
                %v685 = vld [vmem:[%s621 + $0xf8] sm:$0xff]
                %686 = vst [vmem:[%s622 + $0xf8] sm:$0xff] %v685
                %v687 = vld [vmem:[%s621 + $0x200] sm:$0xff]
                %688 = vst [vmem:[%s622 + $0x100] sm:$0xff] %v687
                %v689 = vld [vmem:[%s621 + $0x208] sm:$0xff]
                %690 = vst [vmem:[%s622 + $0x108] sm:$0xff] %v689
                %v691 = vld [vmem:[%s621 + $0x210] sm:$0xff]
                %692 = vst [vmem:[%s622 + $0x110] sm:$0xff] %v691
                %v693 = vld [vmem:[%s621 + $0x218] sm:$0xff]
                %694 = vst [vmem:[%s622 + $0x118] sm:$0xff] %v693
                %v695 = vld [vmem:[%s621 + $0x220] sm:$0xff]
                %696 = vst [vmem:[%s622 + $0x120] sm:$0xff] %v695
                %v697 = vld [vmem:[%s621 + $0x228] sm:$0xff]
                %698 = vst [vmem:[%s622 + $0x128] sm:$0xff] %v697
                %v699 = vld [vmem:[%s621 + $0x230] sm:$0xff]
                %700 = vst [vmem:[%s622 + $0x130] sm:$0xff] %v699
                %v701 = vld [vmem:[%s621 + $0x238] sm:$0xff]
                %702 = vst [vmem:[%s622 + $0x138] sm:$0xff] %v701
                %v703 = vld [vmem:[%s621 + $0x240] sm:$0xff]
                %704 = vst [vmem:[%s622 + $0x140] sm:$0xff] %v703
                %v705 = vld [vmem:[%s621 + $0x248] sm:$0xff]
                %706 = vst [vmem:[%s622 + $0x148] sm:$0xff] %v705
                %v707 = vld [vmem:[%s621 + $0x250] sm:$0xff]
                %708 = vst [vmem:[%s622 + $0x150] sm:$0xff] %v707
                %v709 = vld [vmem:[%s621 + $0x258] sm:$0xff]
                %710 = vst [vmem:[%s622 + $0x158] sm:$0xff] %v709
                %v711 = vld [vmem:[%s621 + $0x260] sm:$0xff]
                %712 = vst [vmem:[%s622 + $0x160] sm:$0xff] %v711
                %v713 = vld [vmem:[%s621 + $0x268] sm:$0xff]
                %714 = vst [vmem:[%s622 + $0x168] sm:$0xff] %v713
                %v715 = vld [vmem:[%s621 + $0x270] sm:$0xff]
                %716 = vst [vmem:[%s622 + $0x170] sm:$0xff] %v715
                %v717 = vld [vmem:[%s621 + $0x278] sm:$0xff]
                %718 = vst [vmem:[%s622 + $0x178] sm:$0xff] %v717
                %v719 = vld [vmem:[%s621 + $0x280] sm:$0xff]
                %720 = vst [vmem:[%s622 + $0x180] sm:$0xff] %v719
                %v721 = vld [vmem:[%s621 + $0x288] sm:$0xff]
                %722 = vst [vmem:[%s622 + $0x188] sm:$0xff] %v721
                %v723 = vld [vmem:[%s621 + $0x290] sm:$0xff]
                %724 = vst [vmem:[%s622 + $0x190] sm:$0xff] %v723
                %v725 = vld [vmem:[%s621 + $0x298] sm:$0xff]
                %726 = vst [vmem:[%s622 + $0x198] sm:$0xff] %v725
                %v727 = vld [vmem:[%s621 + $0x2a0] sm:$0xff]
                %728 = vst [vmem:[%s622 + $0x1a0] sm:$0xff] %v727
                %v729 = vld [vmem:[%s621 + $0x2a8] sm:$0xff]
                %730 = vst [vmem:[%s622 + $0x1a8] sm:$0xff] %v729
                %v731 = vld [vmem:[%s621 + $0x2b0] sm:$0xff]
                %732 = vst [vmem:[%s622 + $0x1b0] sm:$0xff] %v731
                %v733 = vld [vmem:[%s621 + $0x2b8] sm:$0xff]
                %734 = vst [vmem:[%s622 + $0x1b8] sm:$0xff] %v733
                %v735 = vld [vmem:[%s621 + $0x2c0] sm:$0xff]
                %736 = vst [vmem:[%s622 + $0x1c0] sm:$0xff] %v735
                %v737 = vld [vmem:[%s621 + $0x2c8] sm:$0xff]
                %738 = vst [vmem:[%s622 + $0x1c8] sm:$0xff] %v737
                %v739 = vld [vmem:[%s621 + $0x2d0] sm:$0xff]
                %740 = vst [vmem:[%s622 + $0x1d0] sm:$0xff] %v739
                %v741 = vld [vmem:[%s621 + $0x2d8] sm:$0xff]
                %742 = vst [vmem:[%s622 + $0x1d8] sm:$0xff] %v741
                %v743 = vld [vmem:[%s621 + $0x2e0] sm:$0xff]
                %744 = vst [vmem:[%s622 + $0x1e0] sm:$0xff] %v743
                %v745 = vld [vmem:[%s621 + $0x2e8] sm:$0xff]
                %746 = vst [vmem:[%s622 + $0x1e8] sm:$0xff] %v745
                %v747 = vld [vmem:[%s621 + $0x2f0] sm:$0xff]
                %748 = vst [vmem:[%s622 + $0x1f0] sm:$0xff] %v747
                %v749 = vld [vmem:[%s621 + $0x2f8] sm:$0xff]
                %750 = vst [vmem:[%s622 + $0x1f8] sm:$0xff] %v749
                %v751 = vld [vmem:[%s621 + $0x400] sm:$0xff]
                %752 = vst [vmem:[%s622 + $0x200] sm:$0xff] %v751
                %v753 = vld [vmem:[%s621 + $0x408] sm:$0xff]
                %754 = vst [vmem:[%s622 + $0x208] sm:$0xff] %v753
                %v755 = vld [vmem:[%s621 + $0x410] sm:$0xff]
                %756 = vst [vmem:[%s622 + $0x210] sm:$0xff] %v755
                %v757 = vld [vmem:[%s621 + $0x418] sm:$0xff]
                %758 = vst [vmem:[%s622 + $0x218] sm:$0xff] %v757
                %v759 = vld [vmem:[%s621 + $0x420] sm:$0xff]
                %760 = vst [vmem:[%s622 + $0x220] sm:$0xff] %v759
                %v761 = vld [vmem:[%s621 + $0x428] sm:$0xff]
                %762 = vst [vmem:[%s622 + $0x228] sm:$0xff] %v761
                %v763 = vld [vmem:[%s621 + $0x430] sm:$0xff]
                %764 = vst [vmem:[%s622 + $0x230] sm:$0xff] %v763
                %v765 = vld [vmem:[%s621 + $0x438] sm:$0xff]
                %766 = vst [vmem:[%s622 + $0x238] sm:$0xff] %v765
                %v767 = vld [vmem:[%s621 + $0x440] sm:$0xff]
                %768 = vst [vmem:[%s622 + $0x240] sm:$0xff] %v767
                %v769 = vld [vmem:[%s621 + $0x448] sm:$0xff]
                %770 = vst [vmem:[%s622 + $0x248] sm:$0xff] %v769
                %v771 = vld [vmem:[%s621 + $0x450] sm:$0xff]
                %772 = vst [vmem:[%s622 + $0x250] sm:$0xff] %v771
                %v773 = vld [vmem:[%s621 + $0x458] sm:$0xff]
                %774 = vst [vmem:[%s622 + $0x258] sm:$0xff] %v773
                %v775 = vld [vmem:[%s621 + $0x460] sm:$0xff]
                %776 = vst [vmem:[%s622 + $0x260] sm:$0xff] %v775
                %v777 = vld [vmem:[%s621 + $0x468] sm:$0xff]
                %778 = vst [vmem:[%s622 + $0x268] sm:$0xff] %v777
                %v779 = vld [vmem:[%s621 + $0x470] sm:$0xff]
                %780 = vst [vmem:[%s622 + $0x270] sm:$0xff] %v779
                %v781 = vld [vmem:[%s621 + $0x478] sm:$0xff]
                %782 = vst [vmem:[%s622 + $0x278] sm:$0xff] %v781
                %v783 = vld [vmem:[%s621 + $0x480] sm:$0xff]
                %784 = vst [vmem:[%s622 + $0x280] sm:$0xff] %v783
                %v785 = vld [vmem:[%s621 + $0x488] sm:$0xff]
                %786 = vst [vmem:[%s622 + $0x288] sm:$0xff] %v785
                %v787 = vld [vmem:[%s621 + $0x490] sm:$0xff]
                %788 = vst [vmem:[%s622 + $0x290] sm:$0xff] %v787
                %v789 = vld [vmem:[%s621 + $0x498] sm:$0xff]
                %790 = vst [vmem:[%s622 + $0x298] sm:$0xff] %v789
                %v791 = vld [vmem:[%s621 + $0x4a0] sm:$0xff]
                %792 = vst [vmem:[%s622 + $0x2a0] sm:$0xff] %v791
                %v793 = vld [vmem:[%s621 + $0x4a8] sm:$0xff]
                %794 = vst [vmem:[%s622 + $0x2a8] sm:$0xff] %v793
                %v795 = vld [vmem:[%s621 + $0x4b0] sm:$0xff]
                %796 = vst [vmem:[%s622 + $0x2b0] sm:$0xff] %v795
                %v797 = vld [vmem:[%s621 + $0x4b8] sm:$0xff]
                %798 = vst [vmem:[%s622 + $0x2b8] sm:$0xff] %v797
                %v799 = vld [vmem:[%s621 + $0x4c0] sm:$0xff]
                %800 = vst [vmem:[%s622 + $0x2c0] sm:$0xff] %v799
                %v801 = vld [vmem:[%s621 + $0x4c8] sm:$0xff]
                %802 = vst [vmem:[%s622 + $0x2c8] sm:$0xff] %v801
                %v803 = vld [vmem:[%s621 + $0x4d0] sm:$0xff]
                %804 = vst [vmem:[%s622 + $0x2d0] sm:$0xff] %v803
                %v805 = vld [vmem:[%s621 + $0x4d8] sm:$0xff]
                %806 = vst [vmem:[%s622 + $0x2d8] sm:$0xff] %v805
                %v807 = vld [vmem:[%s621 + $0x4e0] sm:$0xff]
                %808 = vst [vmem:[%s622 + $0x2e0] sm:$0xff] %v807
                %v809 = vld [vmem:[%s621 + $0x4e8] sm:$0xff]
                %810 = vst [vmem:[%s622 + $0x2e8] sm:$0xff] %v809
                %v811 = vld [vmem:[%s621 + $0x4f0] sm:$0xff]
                %812 = vst [vmem:[%s622 + $0x2f0] sm:$0xff] %v811
                %v813 = vld [vmem:[%s621 + $0x4f8] sm:$0xff]
                %814 = vst [vmem:[%s622 + $0x2f8] sm:$0xff] %v813
                %v815 = vld [vmem:[%s621 + $0x600] sm:$0xff]
                %816 = vst [vmem:[%s622 + $0x300] sm:$0xff] %v815
                %v817 = vld [vmem:[%s621 + $0x608] sm:$0xff]
                %818 = vst [vmem:[%s622 + $0x308] sm:$0xff] %v817
                %v819 = vld [vmem:[%s621 + $0x610] sm:$0xff]
                %820 = vst [vmem:[%s622 + $0x310] sm:$0xff] %v819
                %v821 = vld [vmem:[%s621 + $0x618] sm:$0xff]
                %822 = vst [vmem:[%s622 + $0x318] sm:$0xff] %v821
                %v823 = vld [vmem:[%s621 + $0x620] sm:$0xff]
                %824 = vst [vmem:[%s622 + $0x320] sm:$0xff] %v823
                %v825 = vld [vmem:[%s621 + $0x628] sm:$0xff]
                %826 = vst [vmem:[%s622 + $0x328] sm:$0xff] %v825
                %v827 = vld [vmem:[%s621 + $0x630] sm:$0xff]
                %828 = vst [vmem:[%s622 + $0x330] sm:$0xff] %v827
                %v829 = vld [vmem:[%s621 + $0x638] sm:$0xff]
                %830 = vst [vmem:[%s622 + $0x338] sm:$0xff] %v829
                %v831 = vld [vmem:[%s621 + $0x640] sm:$0xff]
                %832 = vst [vmem:[%s622 + $0x340] sm:$0xff] %v831
                %v833 = vld [vmem:[%s621 + $0x648] sm:$0xff]
                %834 = vst [vmem:[%s622 + $0x348] sm:$0xff] %v833
                %v835 = vld [vmem:[%s621 + $0x650] sm:$0xff]
                %836 = vst [vmem:[%s622 + $0x350] sm:$0xff] %v835
                %v837 = vld [vmem:[%s621 + $0x658] sm:$0xff]
                %838 = vst [vmem:[%s622 + $0x358] sm:$0xff] %v837
                %v839 = vld [vmem:[%s621 + $0x660] sm:$0xff]
                %840 = vst [vmem:[%s622 + $0x360] sm:$0xff] %v839
                %v841 = vld [vmem:[%s621 + $0x668] sm:$0xff]
                %842 = vst [vmem:[%s622 + $0x368] sm:$0xff] %v841
                %v843 = vld [vmem:[%s621 + $0x670] sm:$0xff]
                %844 = vst [vmem:[%s622 + $0x370] sm:$0xff] %v843
                %v845 = vld [vmem:[%s621 + $0x678] sm:$0xff]
                %846 = vst [vmem:[%s622 + $0x378] sm:$0xff] %v845
                %v847 = vld [vmem:[%s621 + $0x680] sm:$0xff]
                %848 = vst [vmem:[%s622 + $0x380] sm:$0xff] %v847
                %v849 = vld [vmem:[%s621 + $0x688] sm:$0xff]
                %850 = vst [vmem:[%s622 + $0x388] sm:$0xff] %v849
                %v851 = vld [vmem:[%s621 + $0x690] sm:$0xff]
                %852 = vst [vmem:[%s622 + $0x390] sm:$0xff] %v851
                %v853 = vld [vmem:[%s621 + $0x698] sm:$0xff]
                %854 = vst [vmem:[%s622 + $0x398] sm:$0xff] %v853
                %v855 = vld [vmem:[%s621 + $0x6a0] sm:$0xff]
                %856 = vst [vmem:[%s622 + $0x3a0] sm:$0xff] %v855
                %v857 = vld [vmem:[%s621 + $0x6a8] sm:$0xff]
                %858 = vst [vmem:[%s622 + $0x3a8] sm:$0xff] %v857
                %v859 = vld [vmem:[%s621 + $0x6b0] sm:$0xff]
                %860 = vst [vmem:[%s622 + $0x3b0] sm:$0xff] %v859
                %v861 = vld [vmem:[%s621 + $0x6b8] sm:$0xff]
                %862 = vst [vmem:[%s622 + $0x3b8] sm:$0xff] %v861
                %v863 = vld [vmem:[%s621 + $0x6c0] sm:$0xff]
                %864 = vst [vmem:[%s622 + $0x3c0] sm:$0xff] %v863
                %v865 = vld [vmem:[%s621 + $0x6c8] sm:$0xff]
                %866 = vst [vmem:[%s622 + $0x3c8] sm:$0xff] %v865
                %v867 = vld [vmem:[%s621 + $0x6d0] sm:$0xff]
                %868 = vst [vmem:[%s622 + $0x3d0] sm:$0xff] %v867
                %v869 = vld [vmem:[%s621 + $0x6d8] sm:$0xff]
                %870 = vst [vmem:[%s622 + $0x3d8] sm:$0xff] %v869
                %v871 = vld [vmem:[%s621 + $0x6e0] sm:$0xff]
                %872 = vst [vmem:[%s622 + $0x3e0] sm:$0xff] %v871
                %v873 = vld [vmem:[%s621 + $0x6e8] sm:$0xff]
                %874 = vst [vmem:[%s622 + $0x3e8] sm:$0xff] %v873
                %v875 = vld [vmem:[%s621 + $0x6f0] sm:$0xff]
                %876 = vst [vmem:[%s622 + $0x3f0] sm:$0xff] %v875
                %v877 = vld [vmem:[%s621 + $0x6f8] sm:$0xff]
                %878 = vst [vmem:[%s622 + $0x3f8] sm:$0xff] %v877
              $region60: #{wnormal_forward.1} parent=54 // loop_footer
                %s620 = sadd.s32 1, %s616
              $region61: #{wnormal_forward.1} parent=54 // loop_footer_branch
                %615 = sbr.rel target = $region57
              $region62: #{wnormal_forward.1} parent=54 // loop_exit
                _
            $region55: #{wnormal_forward.1} parent=50 // pred_fallthru
              _
            // Predicated region
            $region63: #{wnormal_forward.1} parent=50 // pred_check
              _
            $region64: #{wnormal_forward.1} parent=50 // pred_check_branch
              %880 = sbr.rel target = $region66
            $region65: #{wnormal_forward.1} parent=50 // pred_region
              _
            $region66: #{wnormal_forward.1} parent=50 // pred_fallthru
              _
          $region51: #{wnormal_forward.1} parent=46 // pred_fallthru
            _
          %881 = vnop
        $region47: #{wnormal_forward.1} parent=19 // pred_fallthru
          _
      $region20: #{wnormal_forward.1} parent=5 // pred_fallthru
        _
      %p882 = scmp.le.s32.totalorder 1, %s18
      %p883 = scmp.lt.s32.totalorder %s18, 5
      %p884 = pnand %p882, %p883
      %p885 = pneg %p884
      // Predicated region
      $region67: #{wnormal_forward.1} parent=5 // pred_check
        _
      $region68: #{wnormal_forward.1} parent=5 // pred_check_branch
        %887 = sbr.rel (%p884) target = $region70
      $region69: #{wnormal_forward.1} parent=5 // pred_region
        %s888 = ssub.s32 %s18, 1
        %s889 = sand.u32 %s75, 1
        %s890 = sand.u32 %s75, 1
        %s891 = smul.addr %s890, 1024
        %s892 = scalar_lea.vmem [#allocation2], %s891
        // Predicated region
        $region71: #{wnormal_forward.1} parent=69 // pred_check
          %p893 = pneg %p88
        $region72: #{wnormal_forward.1} parent=69 // pred_check_branch
          %895 = sbr.rel (%p893) target = $region74
        $region73: #{wnormal_forward.1} parent=69 // pred_region
          _
        $region74: #{wnormal_forward.1} parent=69 // pred_fallthru
          _
        %s896 = sand.u32 %s105, 1
        %s897 = sand.u32 %s105, 1
        %s898 = smul.addr %s897, 1024
        %s899 = scalar_lea.vmem [#allocation3], %s898
        // Predicated region
        $region75: #{wnormal_forward.1} parent=69 // pred_check
          %p900 = pneg %p118
        $region76: #{wnormal_forward.1} parent=69 // pred_check_branch
          %902 = sbr.rel (%p900) target = $region78
        $region77: #{wnormal_forward.1} parent=69 // pred_region
          _
        $region78: #{wnormal_forward.1} parent=69 // pred_fallthru
          _
        %p903 = pneg %p58
        %p904 = pneg %p55
        %s905 = sand.u32 %s75, 1
        %s906 = sand.u32 %s75, 1
        %s907 = smul.addr %s906, 1024
        %s908 = scalar_lea.vmem [#allocation2], %s907
        %p909 = pneg %p88
        %p910 = pneg %p85
        %s911 = sand.u32 %s105, 1
        %s912 = sand.u32 %s105, 1
        %s913 = smul.addr %s912, 1024
        %s914 = scalar_lea.vmem [#allocation3], %s913
        %p915 = pneg %p118
        %p916 = pneg %p115
        %p917 = pneg %p148
        %p918 = pneg %p145
        %s919 = sand.u32 %s135, 1
        %s920 = sand.u32 %s135, 1
        %s921 = smul.addr %s920, 256
        %s922 = scalar_lea.vmem [#allocation4], %s921
        %p923 = pneg %p178
        %p924 = pneg %p175
        %s925 = sand.u32 %s165, 1
        %s926 = sand.u32 %s165, 1
        %s927 = smul.addr %s926, 256
        %s928 = scalar_lea.vmem [#allocation5], %s927
        %p929 = pneg %p206
        %p930 = pneg %p203
        %p931 = scmp.lt.s32.totalorder %s28, 1
        %s932 = scalar_select %p931, %s28, 1
        %p933 = scmp.lt.s32.totalorder %s29, 1
        %s934 = scalar_select %p933, %s29, 1
        %s935 = smul.addr %s932, 2
        %s936 = sadd.s32 %s934, %s935
        %s937 = smul.addr %s936, 8
        %s938 = scalar_lea.vmem %s5, %s937
        %p939 = pneg %p234
        %p940 = pneg %p231
        %p941 = scmp.lt.s32.totalorder %s28, 1
        %s942 = scalar_select %p941, %s28, 1
        %p943 = scmp.lt.s32.totalorder %s29, 1
        %s944 = scalar_select %p943, %s29, 1
        %s945 = smul.addr %s942, 2
        %s946 = sadd.s32 %s944, %s945
        %s947 = smul.addr %s946, 8
        %s948 = scalar_lea.vmem %s6, %s947
        %p949 = pneg %p262
        %p950 = pneg %p259
        %p951 = scmp.lt.s32.totalorder %s28, 1
        %s952 = scalar_select %p951, %s28, 1
        %p953 = scmp.lt.s32.totalorder %s29, 1
        %s954 = scalar_select %p953, %s29, 1
        %s955 = smul.addr %s952, 2
        %s956 = sadd.s32 %s954, %s955
        %s957 = smul.addr %s956, 8
        %s958 = scalar_lea.vmem %s7, %s957
        %p959 = pneg %p290
        %p960 = pneg %p287
        %s961 = sand.u32 %s277, 1
        %s962 = scalar_lea.sflag [#allocation7], %s961
        %s963 = sand.u32 %s277, 1
        %s964 = smul.addr %s963, 8
        %s965 = scalar_lea.vmem [#allocation6], %s964
        %s966 = sadd.s32 %s29, %s30
        %s967 = smul.u32 8, %s966
        %s968 = sadd.s32 %s29, %s30
        %s969 = smul.u32 8, %s968
        %s970 = sadd.s32 %s29, %s30
        %s971 = smul.u32 8, %s970
        %s972 = sadd.s32 %s29, %s30
        %s973 = smul.u32 8, %s972
        %p974 = scmp.lt.s32.totalorder %s28, 1
        %s975 = scalar_select %p974, %s28, 1
        %p976 = scmp.lt.s32.totalorder %s29, 1
        %s977 = scalar_select %p976, %s29, 1
        %s978 = smul.addr %s975, 2
        %s979 = sadd.s32 %s977, %s978
        %s980 = smul.addr %s979, 8
        %s981 = scalar_lea.vmem %s5, %s980
        %p982 = scmp.lt.s32.totalorder %s28, 1
        %s983 = scalar_select %p982, %s28, 1
        %p984 = scmp.lt.s32.totalorder %s29, 1
        %s985 = scalar_select %p984, %s29, 1
        %s986 = smul.addr %s983, 2
        %s987 = sadd.s32 %s985, %s986
        %s988 = smul.addr %s987, 8
        %s989 = scalar_lea.vmem %s6, %s988
        %p990 = scmp.lt.s32.totalorder %s28, 1
        %s991 = scalar_select %p990, %s28, 1
        %p992 = scmp.lt.s32.totalorder %s29, 1
        %s993 = scalar_select %p992, %s29, 1
        %s994 = smul.addr %s991, 2
        %s995 = sadd.s32 %s993, %s994
        %s996 = smul.addr %s995, 8
        %s997 = scalar_lea.vmem %s7, %s996
        %p998 = scmp.eq.s32.totalorder %s30, 0
        // Predicated region
        $region79: #{wnormal_forward.1} parent=69 // pred_check
          %p999 = pneg %p998
        $region80: #{wnormal_forward.1} parent=69 // pred_check_branch
          %1001 = sbr.rel (%p999) target = $region82
        $region81: #{wnormal_forward.1} parent=69 // pred_region
          %1002 = vst [vmem:[%s981] sm:$0xff] 0.0
          %1003 = vst [vmem:[%s989] sm:$0xff] 0.0
          %1004 = vst [vmem:[%s997] sm:$0xff] 0.0
          %1005 = vst [vmem:[%s965] sm:$0xff] 0.0
        $region82: #{wnormal_forward.1} parent=69 // pred_fallthru
          _
        %v1006 = vld [vmem:[%s892] sm:$0xff]
        %v1007 = vld [vmem:[%s892 + $0x8] sm:$0xff]
        %v1008 = vld [vmem:[%s892 + $0x10] sm:$0xff]
        %v1009 = vld [vmem:[%s892 + $0x18] sm:$0xff]
        %v1010 = vld [vmem:[%s892 + $0x20] sm:$0xff]
        %v1011 = vld [vmem:[%s892 + $0x28] sm:$0xff]
        %v1012 = vld [vmem:[%s892 + $0x30] sm:$0xff]
        %v1013 = vld [vmem:[%s892 + $0x38] sm:$0xff]
        %v1014 = vld [vmem:[%s892 + $0x40] sm:$0xff]
        %v1015 = vld [vmem:[%s892 + $0x48] sm:$0xff]
        %v1016 = vld [vmem:[%s892 + $0x50] sm:$0xff]
        %v1017 = vld [vmem:[%s892 + $0x58] sm:$0xff]
        %v1018 = vld [vmem:[%s892 + $0x60] sm:$0xff]
        %v1019 = vld [vmem:[%s892 + $0x68] sm:$0xff]
        %v1020 = vld [vmem:[%s892 + $0x70] sm:$0xff]
        %v1021 = vld [vmem:[%s892 + $0x78] sm:$0xff]
        %v1022 = vld [vmem:[%s892 + $0x80] sm:$0xff]
        %v1023 = vld [vmem:[%s892 + $0x88] sm:$0xff]
        %v1024 = vld [vmem:[%s892 + $0x90] sm:$0xff]
        %v1025 = vld [vmem:[%s892 + $0x98] sm:$0xff]
        %v1026 = vld [vmem:[%s892 + $0xa0] sm:$0xff]
        %v1027 = vld [vmem:[%s892 + $0xa8] sm:$0xff]
        %v1028 = vld [vmem:[%s892 + $0xb0] sm:$0xff]
        %v1029 = vld [vmem:[%s892 + $0xb8] sm:$0xff]
        %v1030 = vld [vmem:[%s892 + $0xc0] sm:$0xff]
        %v1031 = vld [vmem:[%s892 + $0xc8] sm:$0xff]
        %v1032 = vld [vmem:[%s892 + $0xd0] sm:$0xff]
        %v1033 = vld [vmem:[%s892 + $0xd8] sm:$0xff]
        %v1034 = vld [vmem:[%s892 + $0xe0] sm:$0xff]
        %v1035 = vld [vmem:[%s892 + $0xe8] sm:$0xff]
        %v1036 = vld [vmem:[%s892 + $0xf0] sm:$0xff]
        %v1037 = vld [vmem:[%s892 + $0xf8] sm:$0xff]
        %v1038 = vld [vmem:[%s892 + $0x100] sm:$0xff]
        %v1039 = vld [vmem:[%s892 + $0x108] sm:$0xff]
        %v1040 = vld [vmem:[%s892 + $0x110] sm:$0xff]
        %v1041 = vld [vmem:[%s892 + $0x118] sm:$0xff]
        %v1042 = vld [vmem:[%s892 + $0x120] sm:$0xff]
        %v1043 = vld [vmem:[%s892 + $0x128] sm:$0xff]
        %v1044 = vld [vmem:[%s892 + $0x130] sm:$0xff]
        %v1045 = vld [vmem:[%s892 + $0x138] sm:$0xff]
        %v1046 = vld [vmem:[%s892 + $0x140] sm:$0xff]
        %v1047 = vld [vmem:[%s892 + $0x148] sm:$0xff]
        %v1048 = vld [vmem:[%s892 + $0x150] sm:$0xff]
        %v1049 = vld [vmem:[%s892 + $0x158] sm:$0xff]
        %v1050 = vld [vmem:[%s892 + $0x160] sm:$0xff]
        %v1051 = vld [vmem:[%s892 + $0x168] sm:$0xff]
        %v1052 = vld [vmem:[%s892 + $0x170] sm:$0xff]
        %v1053 = vld [vmem:[%s892 + $0x178] sm:$0xff]
        %v1054 = vld [vmem:[%s892 + $0x180] sm:$0xff]
        %v1055 = vld [vmem:[%s892 + $0x188] sm:$0xff]
        %v1056 = vld [vmem:[%s892 + $0x190] sm:$0xff]
        %v1057 = vld [vmem:[%s892 + $0x198] sm:$0xff]
        %v1058 = vld [vmem:[%s892 + $0x1a0] sm:$0xff]
        %v1059 = vld [vmem:[%s892 + $0x1a8] sm:$0xff]
        %v1060 = vld [vmem:[%s892 + $0x1b0] sm:$0xff]
        %v1061 = vld [vmem:[%s892 + $0x1b8] sm:$0xff]
        %v1062 = vld [vmem:[%s892 + $0x1c0] sm:$0xff]
        %v1063 = vld [vmem:[%s892 + $0x1c8] sm:$0xff]
        %v1064 = vld [vmem:[%s892 + $0x1d0] sm:$0xff]
        %v1065 = vld [vmem:[%s892 + $0x1d8] sm:$0xff]
        %v1066 = vld [vmem:[%s892 + $0x1e0] sm:$0xff]
        %v1067 = vld [vmem:[%s892 + $0x1e8] sm:$0xff]
        %v1068 = vld [vmem:[%s892 + $0x1f0] sm:$0xff]
        %v1069 = vld [vmem:[%s892 + $0x1f8] sm:$0xff]
        %v1070 = vld [vmem:[%s892 + $0x200] sm:$0xff]
        %v1071 = vld [vmem:[%s892 + $0x208] sm:$0xff]
        %v1072 = vld [vmem:[%s892 + $0x210] sm:$0xff]
        %v1073 = vld [vmem:[%s892 + $0x218] sm:$0xff]
        %v1074 = vld [vmem:[%s892 + $0x220] sm:$0xff]
        %v1075 = vld [vmem:[%s892 + $0x228] sm:$0xff]
        %v1076 = vld [vmem:[%s892 + $0x230] sm:$0xff]
        %v1077 = vld [vmem:[%s892 + $0x238] sm:$0xff]
        %v1078 = vld [vmem:[%s892 + $0x240] sm:$0xff]
        %v1079 = vld [vmem:[%s892 + $0x248] sm:$0xff]
        %v1080 = vld [vmem:[%s892 + $0x250] sm:$0xff]
        %v1081 = vld [vmem:[%s892 + $0x258] sm:$0xff]
        %v1082 = vld [vmem:[%s892 + $0x260] sm:$0xff]
        %v1083 = vld [vmem:[%s892 + $0x268] sm:$0xff]
        %v1084 = vld [vmem:[%s892 + $0x270] sm:$0xff]
        %v1085 = vld [vmem:[%s892 + $0x278] sm:$0xff]
        %v1086 = vld [vmem:[%s892 + $0x280] sm:$0xff]
        %v1087 = vld [vmem:[%s892 + $0x288] sm:$0xff]
        %v1088 = vld [vmem:[%s892 + $0x290] sm:$0xff]
        %v1089 = vld [vmem:[%s892 + $0x298] sm:$0xff]
        %v1090 = vld [vmem:[%s892 + $0x2a0] sm:$0xff]
        %v1091 = vld [vmem:[%s892 + $0x2a8] sm:$0xff]
        %v1092 = vld [vmem:[%s892 + $0x2b0] sm:$0xff]
        %v1093 = vld [vmem:[%s892 + $0x2b8] sm:$0xff]
        %v1094 = vld [vmem:[%s892 + $0x2c0] sm:$0xff]
        %v1095 = vld [vmem:[%s892 + $0x2c8] sm:$0xff]
        %v1096 = vld [vmem:[%s892 + $0x2d0] sm:$0xff]
        %v1097 = vld [vmem:[%s892 + $0x2d8] sm:$0xff]
        %v1098 = vld [vmem:[%s892 + $0x2e0] sm:$0xff]
        %v1099 = vld [vmem:[%s892 + $0x2e8] sm:$0xff]
        %v1100 = vld [vmem:[%s892 + $0x2f0] sm:$0xff]
        %v1101 = vld [vmem:[%s892 + $0x2f8] sm:$0xff]
        %v1102 = vld [vmem:[%s892 + $0x300] sm:$0xff]
        %v1103 = vld [vmem:[%s892 + $0x308] sm:$0xff]
        %v1104 = vld [vmem:[%s892 + $0x310] sm:$0xff]
        %v1105 = vld [vmem:[%s892 + $0x318] sm:$0xff]
        %v1106 = vld [vmem:[%s892 + $0x320] sm:$0xff]
        %v1107 = vld [vmem:[%s892 + $0x328] sm:$0xff]
        %v1108 = vld [vmem:[%s892 + $0x330] sm:$0xff]
        %v1109 = vld [vmem:[%s892 + $0x338] sm:$0xff]
        %v1110 = vld [vmem:[%s892 + $0x340] sm:$0xff]
        %v1111 = vld [vmem:[%s892 + $0x348] sm:$0xff]
        %v1112 = vld [vmem:[%s892 + $0x350] sm:$0xff]
        %v1113 = vld [vmem:[%s892 + $0x358] sm:$0xff]
        %v1114 = vld [vmem:[%s892 + $0x360] sm:$0xff]
        %v1115 = vld [vmem:[%s892 + $0x368] sm:$0xff]
        %v1116 = vld [vmem:[%s892 + $0x370] sm:$0xff]
        %v1117 = vld [vmem:[%s892 + $0x378] sm:$0xff]
        %v1118 = vld [vmem:[%s892 + $0x380] sm:$0xff]
        %v1119 = vld [vmem:[%s892 + $0x388] sm:$0xff]
        %v1120 = vld [vmem:[%s892 + $0x390] sm:$0xff]
        %v1121 = vld [vmem:[%s892 + $0x398] sm:$0xff]
        %v1122 = vld [vmem:[%s892 + $0x3a0] sm:$0xff]
        %v1123 = vld [vmem:[%s892 + $0x3a8] sm:$0xff]
        %v1124 = vld [vmem:[%s892 + $0x3b0] sm:$0xff]
        %v1125 = vld [vmem:[%s892 + $0x3b8] sm:$0xff]
        %v1126 = vld [vmem:[%s892 + $0x3c0] sm:$0xff]
        %v1127 = vld [vmem:[%s892 + $0x3c8] sm:$0xff]
        %v1128 = vld [vmem:[%s892 + $0x3d0] sm:$0xff]
        %v1129 = vld [vmem:[%s892 + $0x3d8] sm:$0xff]
        %v1130 = vld [vmem:[%s892 + $0x3e0] sm:$0xff]
        %v1131 = vld [vmem:[%s892 + $0x3e8] sm:$0xff]
        %v1132 = vld [vmem:[%s892 + $0x3f0] sm:$0xff]
        %v1133 = vld [vmem:[%s892 + $0x3f8] sm:$0xff]
        %v1134 = vld [vmem:[%s899] sm:$0xff]
        %v1135 = vld [vmem:[%s899 + $0x8] sm:$0xff]
        %v1136 = vld [vmem:[%s899 + $0x10] sm:$0xff]
        %v1137 = vld [vmem:[%s899 + $0x18] sm:$0xff]
        %v1138 = vld [vmem:[%s899 + $0x20] sm:$0xff]
        %v1139 = vld [vmem:[%s899 + $0x28] sm:$0xff]
        %v1140 = vld [vmem:[%s899 + $0x30] sm:$0xff]
        %v1141 = vld [vmem:[%s899 + $0x38] sm:$0xff]
        %v1142 = vld [vmem:[%s899 + $0x40] sm:$0xff]
        %v1143 = vld [vmem:[%s899 + $0x48] sm:$0xff]
        %v1144 = vld [vmem:[%s899 + $0x50] sm:$0xff]
        %v1145 = vld [vmem:[%s899 + $0x58] sm:$0xff]
        %v1146 = vld [vmem:[%s899 + $0x60] sm:$0xff]
        %v1147 = vld [vmem:[%s899 + $0x68] sm:$0xff]
        %v1148 = vld [vmem:[%s899 + $0x70] sm:$0xff]
        %v1149 = vld [vmem:[%s899 + $0x78] sm:$0xff]
        %v1150 = vld [vmem:[%s899 + $0x80] sm:$0xff]
        %v1151 = vld [vmem:[%s899 + $0x88] sm:$0xff]
        %v1152 = vld [vmem:[%s899 + $0x90] sm:$0xff]
        %v1153 = vld [vmem:[%s899 + $0x98] sm:$0xff]
        %v1154 = vld [vmem:[%s899 + $0xa0] sm:$0xff]
        %v1155 = vld [vmem:[%s899 + $0xa8] sm:$0xff]
        %v1156 = vld [vmem:[%s899 + $0xb0] sm:$0xff]
        %v1157 = vld [vmem:[%s899 + $0xb8] sm:$0xff]
        %v1158 = vld [vmem:[%s899 + $0xc0] sm:$0xff]
        %v1159 = vld [vmem:[%s899 + $0xc8] sm:$0xff]
        %v1160 = vld [vmem:[%s899 + $0xd0] sm:$0xff]
        %v1161 = vld [vmem:[%s899 + $0xd8] sm:$0xff]
        %v1162 = vld [vmem:[%s899 + $0xe0] sm:$0xff]
        %v1163 = vld [vmem:[%s899 + $0xe8] sm:$0xff]
        %v1164 = vld [vmem:[%s899 + $0xf0] sm:$0xff]
        %v1165 = vld [vmem:[%s899 + $0xf8] sm:$0xff]
        %v1166 = vld [vmem:[%s899 + $0x100] sm:$0xff]
        %v1167 = vld [vmem:[%s899 + $0x108] sm:$0xff]
        %v1168 = vld [vmem:[%s899 + $0x110] sm:$0xff]
        %v1169 = vld [vmem:[%s899 + $0x118] sm:$0xff]
        %v1170 = vld [vmem:[%s899 + $0x120] sm:$0xff]
        %v1171 = vld [vmem:[%s899 + $0x128] sm:$0xff]
        %v1172 = vld [vmem:[%s899 + $0x130] sm:$0xff]
        %v1173 = vld [vmem:[%s899 + $0x138] sm:$0xff]
        %v1174 = vld [vmem:[%s899 + $0x140] sm:$0xff]
        %v1175 = vld [vmem:[%s899 + $0x148] sm:$0xff]
        %v1176 = vld [vmem:[%s899 + $0x150] sm:$0xff]
        %v1177 = vld [vmem:[%s899 + $0x158] sm:$0xff]
        %v1178 = vld [vmem:[%s899 + $0x160] sm:$0xff]
        %v1179 = vld [vmem:[%s899 + $0x168] sm:$0xff]
        %v1180 = vld [vmem:[%s899 + $0x170] sm:$0xff]
        %v1181 = vld [vmem:[%s899 + $0x178] sm:$0xff]
        %v1182 = vld [vmem:[%s899 + $0x180] sm:$0xff]
        %v1183 = vld [vmem:[%s899 + $0x188] sm:$0xff]
        %v1184 = vld [vmem:[%s899 + $0x190] sm:$0xff]
        %v1185 = vld [vmem:[%s899 + $0x198] sm:$0xff]
        %v1186 = vld [vmem:[%s899 + $0x1a0] sm:$0xff]
        %v1187 = vld [vmem:[%s899 + $0x1a8] sm:$0xff]
        %v1188 = vld [vmem:[%s899 + $0x1b0] sm:$0xff]
        %v1189 = vld [vmem:[%s899 + $0x1b8] sm:$0xff]
        %v1190 = vld [vmem:[%s899 + $0x1c0] sm:$0xff]
        %v1191 = vld [vmem:[%s899 + $0x1c8] sm:$0xff]
        %v1192 = vld [vmem:[%s899 + $0x1d0] sm:$0xff]
        %v1193 = vld [vmem:[%s899 + $0x1d8] sm:$0xff]
        %v1194 = vld [vmem:[%s899 + $0x1e0] sm:$0xff]
        %v1195 = vld [vmem:[%s899 + $0x1e8] sm:$0xff]
        %v1196 = vld [vmem:[%s899 + $0x1f0] sm:$0xff]
        %v1197 = vld [vmem:[%s899 + $0x1f8] sm:$0xff]
        %v1198 = vld [vmem:[%s899 + $0x200] sm:$0xff]
        %v1199 = vld [vmem:[%s899 + $0x208] sm:$0xff]
        %v1200 = vld [vmem:[%s899 + $0x210] sm:$0xff]
        %v1201 = vld [vmem:[%s899 + $0x218] sm:$0xff]
        %v1202 = vld [vmem:[%s899 + $0x220] sm:$0xff]
        %v1203 = vld [vmem:[%s899 + $0x228] sm:$0xff]
        %v1204 = vld [vmem:[%s899 + $0x230] sm:$0xff]
        %v1205 = vld [vmem:[%s899 + $0x238] sm:$0xff]
        %v1206 = vld [vmem:[%s899 + $0x240] sm:$0xff]
        %v1207 = vld [vmem:[%s899 + $0x248] sm:$0xff]
        %v1208 = vld [vmem:[%s899 + $0x250] sm:$0xff]
        %v1209 = vld [vmem:[%s899 + $0x258] sm:$0xff]
        %v1210 = vld [vmem:[%s899 + $0x260] sm:$0xff]
        %v1211 = vld [vmem:[%s899 + $0x268] sm:$0xff]
        %v1212 = vld [vmem:[%s899 + $0x270] sm:$0xff]
        %v1213 = vld [vmem:[%s899 + $0x278] sm:$0xff]
        %v1214 = vld [vmem:[%s899 + $0x280] sm:$0xff]
        %v1215 = vld [vmem:[%s899 + $0x288] sm:$0xff]
        %v1216 = vld [vmem:[%s899 + $0x290] sm:$0xff]
        %v1217 = vld [vmem:[%s899 + $0x298] sm:$0xff]
        %v1218 = vld [vmem:[%s899 + $0x2a0] sm:$0xff]
        %v1219 = vld [vmem:[%s899 + $0x2a8] sm:$0xff]
        %v1220 = vld [vmem:[%s899 + $0x2b0] sm:$0xff]
        %v1221 = vld [vmem:[%s899 + $0x2b8] sm:$0xff]
        %v1222 = vld [vmem:[%s899 + $0x2c0] sm:$0xff]
        %v1223 = vld [vmem:[%s899 + $0x2c8] sm:$0xff]
        %v1224 = vld [vmem:[%s899 + $0x2d0] sm:$0xff]
        %v1225 = vld [vmem:[%s899 + $0x2d8] sm:$0xff]
        %v1226 = vld [vmem:[%s899 + $0x2e0] sm:$0xff]
        %v1227 = vld [vmem:[%s899 + $0x2e8] sm:$0xff]
        %v1228 = vld [vmem:[%s899 + $0x2f0] sm:$0xff]
        %v1229 = vld [vmem:[%s899 + $0x2f8] sm:$0xff]
        %v1230 = vld [vmem:[%s899 + $0x300] sm:$0xff]
        %v1231 = vld [vmem:[%s899 + $0x308] sm:$0xff]
        %v1232 = vld [vmem:[%s899 + $0x310] sm:$0xff]
        %v1233 = vld [vmem:[%s899 + $0x318] sm:$0xff]
        %v1234 = vld [vmem:[%s899 + $0x320] sm:$0xff]
        %v1235 = vld [vmem:[%s899 + $0x328] sm:$0xff]
        %v1236 = vld [vmem:[%s899 + $0x330] sm:$0xff]
        %v1237 = vld [vmem:[%s899 + $0x338] sm:$0xff]
        %v1238 = vld [vmem:[%s899 + $0x340] sm:$0xff]
        %v1239 = vld [vmem:[%s899 + $0x348] sm:$0xff]
        %v1240 = vld [vmem:[%s899 + $0x350] sm:$0xff]
        %v1241 = vld [vmem:[%s899 + $0x358] sm:$0xff]
        %v1242 = vld [vmem:[%s899 + $0x360] sm:$0xff]
        %v1243 = vld [vmem:[%s899 + $0x368] sm:$0xff]
        %v1244 = vld [vmem:[%s899 + $0x370] sm:$0xff]
        %v1245 = vld [vmem:[%s899 + $0x378] sm:$0xff]
        %v1246 = vld [vmem:[%s899 + $0x380] sm:$0xff]
        %v1247 = vld [vmem:[%s899 + $0x388] sm:$0xff]
        %v1248 = vld [vmem:[%s899 + $0x390] sm:$0xff]
        %v1249 = vld [vmem:[%s899 + $0x398] sm:$0xff]
        %v1250 = vld [vmem:[%s899 + $0x3a0] sm:$0xff]
        %v1251 = vld [vmem:[%s899 + $0x3a8] sm:$0xff]
        %v1252 = vld [vmem:[%s899 + $0x3b0] sm:$0xff]
        %v1253 = vld [vmem:[%s899 + $0x3b8] sm:$0xff]
        %v1254 = vld [vmem:[%s899 + $0x3c0] sm:$0xff]
        %v1255 = vld [vmem:[%s899 + $0x3c8] sm:$0xff]
        %v1256 = vld [vmem:[%s899 + $0x3d0] sm:$0xff]
        %v1257 = vld [vmem:[%s899 + $0x3d8] sm:$0xff]
        %v1258 = vld [vmem:[%s899 + $0x3e0] sm:$0xff]
        %v1259 = vld [vmem:[%s899 + $0x3e8] sm:$0xff]
        %v1260 = vld [vmem:[%s899 + $0x3f0] sm:$0xff]
        %v1261 = vld [vmem:[%s899 + $0x3f8] sm:$0xff]
        %v1262 = vld [vmem:[%s0] sm:$0xff]
        %v1263 = vld [vmem:[%s0 + $0x8] sm:$0xff]
        %v1264 = vld [vmem:[%s0 + $0x10] sm:$0xff]
        %v1265 = vld [vmem:[%s0 + $0x18] sm:$0xff]
        %v1266 = vld [vmem:[%s0 + $0x20] sm:$0xff]
        %v1267 = vld [vmem:[%s0 + $0x28] sm:$0xff]
        %v1268 = vld [vmem:[%s0 + $0x30] sm:$0xff]
        %v1269 = vld [vmem:[%s0 + $0x38] sm:$0xff]
        %v1270 = vld [vmem:[%s0 + $0x40] sm:$0xff]
        %v1271 = vld [vmem:[%s0 + $0x48] sm:$0xff]
        %v1272 = vld [vmem:[%s0 + $0x50] sm:$0xff]
        %v1273 = vld [vmem:[%s0 + $0x58] sm:$0xff]
        %v1274 = vld [vmem:[%s0 + $0x60] sm:$0xff]
        %v1275 = vld [vmem:[%s0 + $0x68] sm:$0xff]
        %v1276 = vld [vmem:[%s0 + $0x70] sm:$0xff]
        %v1277 = vld [vmem:[%s0 + $0x78] sm:$0xff]
        %v1278 = vld [vmem:[%s0 + $0x80] sm:$0xff]
        %v1279 = vld [vmem:[%s0 + $0x88] sm:$0xff]
        %v1280 = vld [vmem:[%s0 + $0x90] sm:$0xff]
        %v1281 = vld [vmem:[%s0 + $0x98] sm:$0xff]
        %v1282 = vld [vmem:[%s0 + $0xa0] sm:$0xff]
        %v1283 = vld [vmem:[%s0 + $0xa8] sm:$0xff]
        %v1284 = vld [vmem:[%s0 + $0xb0] sm:$0xff]
        %v1285 = vld [vmem:[%s0 + $0xb8] sm:$0xff]
        %v1286 = vld [vmem:[%s0 + $0xc0] sm:$0xff]
        %v1287 = vld [vmem:[%s0 + $0xc8] sm:$0xff]
        %v1288 = vld [vmem:[%s0 + $0xd0] sm:$0xff]
        %v1289 = vld [vmem:[%s0 + $0xd8] sm:$0xff]
        %v1290 = vld [vmem:[%s0 + $0xe0] sm:$0xff]
        %v1291 = vld [vmem:[%s0 + $0xe8] sm:$0xff]
        %v1292 = vld [vmem:[%s0 + $0xf0] sm:$0xff]
        %v1293 = vld [vmem:[%s0 + $0xf8] sm:$0xff]
        %v1294 = vld [vmem:[%s981] sm:$0xff]
        %v1295 = vmul.f32 %v1006, %v1134
        %v1296 = vmul.f32 %v1007, %v1135
        %v1297 = vmul.f32 %v1008, %v1136
        %v1298 = vmul.f32 %v1009, %v1137
        %v1299 = vmul.f32 %v1010, %v1138
        %v1300 = vmul.f32 %v1011, %v1139
        %v1301 = vmul.f32 %v1012, %v1140
        %v1302 = vmul.f32 %v1013, %v1141
        %v1303 = vmul.f32 %v1014, %v1142
        %v1304 = vmul.f32 %v1015, %v1143
        %v1305 = vmul.f32 %v1016, %v1144
        %v1306 = vmul.f32 %v1017, %v1145
        %v1307 = vmul.f32 %v1018, %v1146
        %v1308 = vmul.f32 %v1019, %v1147
        %v1309 = vmul.f32 %v1020, %v1148
        %v1310 = vmul.f32 %v1021, %v1149
        %v1311 = vmul.f32 %v1022, %v1150
        %v1312 = vmul.f32 %v1023, %v1151
        %v1313 = vmul.f32 %v1024, %v1152
        %v1314 = vmul.f32 %v1025, %v1153
        %v1315 = vmul.f32 %v1026, %v1154
        %v1316 = vmul.f32 %v1027, %v1155
        %v1317 = vmul.f32 %v1028, %v1156
        %v1318 = vmul.f32 %v1029, %v1157
        %v1319 = vmul.f32 %v1030, %v1158
        %v1320 = vmul.f32 %v1031, %v1159
        %v1321 = vmul.f32 %v1032, %v1160
        %v1322 = vmul.f32 %v1033, %v1161
        %v1323 = vmul.f32 %v1034, %v1162
        %v1324 = vmul.f32 %v1035, %v1163
        %v1325 = vmul.f32 %v1036, %v1164
        %v1326 = vmul.f32 %v1037, %v1165
        %v1327 = vmul.f32 %v1038, %v1166
        %v1328 = vmul.f32 %v1039, %v1167
        %v1329 = vmul.f32 %v1040, %v1168
        %v1330 = vmul.f32 %v1041, %v1169
        %v1331 = vmul.f32 %v1042, %v1170
        %v1332 = vmul.f32 %v1043, %v1171
        %v1333 = vmul.f32 %v1044, %v1172
        %v1334 = vmul.f32 %v1045, %v1173
        %v1335 = vmul.f32 %v1046, %v1174
        %v1336 = vmul.f32 %v1047, %v1175
        %v1337 = vmul.f32 %v1048, %v1176
        %v1338 = vmul.f32 %v1049, %v1177
        %v1339 = vmul.f32 %v1050, %v1178
        %v1340 = vmul.f32 %v1051, %v1179
        %v1341 = vmul.f32 %v1052, %v1180
        %v1342 = vmul.f32 %v1053, %v1181
        %v1343 = vmul.f32 %v1054, %v1182
        %v1344 = vmul.f32 %v1055, %v1183
        %v1345 = vmul.f32 %v1056, %v1184
        %v1346 = vmul.f32 %v1057, %v1185
        %v1347 = vmul.f32 %v1058, %v1186
        %v1348 = vmul.f32 %v1059, %v1187
        %v1349 = vmul.f32 %v1060, %v1188
        %v1350 = vmul.f32 %v1061, %v1189
        %v1351 = vmul.f32 %v1062, %v1190
        %v1352 = vmul.f32 %v1063, %v1191
        %v1353 = vmul.f32 %v1064, %v1192
        %v1354 = vmul.f32 %v1065, %v1193
        %v1355 = vmul.f32 %v1066, %v1194
        %v1356 = vmul.f32 %v1067, %v1195
        %v1357 = vmul.f32 %v1068, %v1196
        %v1358 = vmul.f32 %v1069, %v1197
        %v1359 = vmul.f32 %v1070, %v1198
        %v1360 = vmul.f32 %v1071, %v1199
        %v1361 = vmul.f32 %v1072, %v1200
        %v1362 = vmul.f32 %v1073, %v1201
        %v1363 = vmul.f32 %v1074, %v1202
        %v1364 = vmul.f32 %v1075, %v1203
        %v1365 = vmul.f32 %v1076, %v1204
        %v1366 = vmul.f32 %v1077, %v1205
        %v1367 = vmul.f32 %v1078, %v1206
        %v1368 = vmul.f32 %v1079, %v1207
        %v1369 = vmul.f32 %v1080, %v1208
        %v1370 = vmul.f32 %v1081, %v1209
        %v1371 = vmul.f32 %v1082, %v1210
        %v1372 = vmul.f32 %v1083, %v1211
        %v1373 = vmul.f32 %v1084, %v1212
        %v1374 = vmul.f32 %v1085, %v1213
        %v1375 = vmul.f32 %v1086, %v1214
        %v1376 = vmul.f32 %v1087, %v1215
        %v1377 = vmul.f32 %v1088, %v1216
        %v1378 = vmul.f32 %v1089, %v1217
        %v1379 = vmul.f32 %v1090, %v1218
        %v1380 = vmul.f32 %v1091, %v1219
        %v1381 = vmul.f32 %v1092, %v1220
        %v1382 = vmul.f32 %v1093, %v1221
        %v1383 = vmul.f32 %v1094, %v1222
        %v1384 = vmul.f32 %v1095, %v1223
        %v1385 = vmul.f32 %v1096, %v1224
        %v1386 = vmul.f32 %v1097, %v1225
        %v1387 = vmul.f32 %v1098, %v1226
        %v1388 = vmul.f32 %v1099, %v1227
        %v1389 = vmul.f32 %v1100, %v1228
        %v1390 = vmul.f32 %v1101, %v1229
        %v1391 = vmul.f32 %v1102, %v1230
        %v1392 = vmul.f32 %v1103, %v1231
        %v1393 = vmul.f32 %v1104, %v1232
        %v1394 = vmul.f32 %v1105, %v1233
        %v1395 = vmul.f32 %v1106, %v1234
        %v1396 = vmul.f32 %v1107, %v1235
        %v1397 = vmul.f32 %v1108, %v1236
        %v1398 = vmul.f32 %v1109, %v1237
        %v1399 = vmul.f32 %v1110, %v1238
        %v1400 = vmul.f32 %v1111, %v1239
        %v1401 = vmul.f32 %v1112, %v1240
        %v1402 = vmul.f32 %v1113, %v1241
        %v1403 = vmul.f32 %v1114, %v1242
        %v1404 = vmul.f32 %v1115, %v1243
        %v1405 = vmul.f32 %v1116, %v1244
        %v1406 = vmul.f32 %v1117, %v1245
        %v1407 = vmul.f32 %v1118, %v1246
        %v1408 = vmul.f32 %v1119, %v1247
        %v1409 = vmul.f32 %v1120, %v1248
        %v1410 = vmul.f32 %v1121, %v1249
        %v1411 = vmul.f32 %v1122, %v1250
        %v1412 = vmul.f32 %v1123, %v1251
        %v1413 = vmul.f32 %v1124, %v1252
        %v1414 = vmul.f32 %v1125, %v1253
        %v1415 = vmul.f32 %v1126, %v1254
        %v1416 = vmul.f32 %v1127, %v1255
        %v1417 = vmul.f32 %v1128, %v1256
        %v1418 = vmul.f32 %v1129, %v1257
        %v1419 = vmul.f32 %v1130, %v1258
        %v1420 = vmul.f32 %v1131, %v1259
        %v1421 = vmul.f32 %v1132, %v1260
        %v1422 = vmul.f32 %v1133, %v1261
        %v1423 = vadd.f32 %v1295, %v1327
        %v1424 = vadd.f32 %v1423, %v1359
        %v1425 = vadd.f32 %v1424, %v1391
        %v1426 = vadd.f32 %v1296, %v1328
        %v1427 = vadd.f32 %v1426, %v1360
        %v1428 = vadd.f32 %v1427, %v1392
        %v1429 = vadd.f32 %v1297, %v1329
        %v1430 = vadd.f32 %v1429, %v1361
        %v1431 = vadd.f32 %v1430, %v1393
        %v1432 = vadd.f32 %v1298, %v1330
        %v1433 = vadd.f32 %v1432, %v1362
        %v1434 = vadd.f32 %v1433, %v1394
        %v1435 = vadd.f32 %v1299, %v1331
        %v1436 = vadd.f32 %v1435, %v1363
        %v1437 = vadd.f32 %v1436, %v1395
        %v1438 = vadd.f32 %v1300, %v1332
        %v1439 = vadd.f32 %v1438, %v1364
        %v1440 = vadd.f32 %v1439, %v1396
        %v1441 = vadd.f32 %v1301, %v1333
        %v1442 = vadd.f32 %v1441, %v1365
        %v1443 = vadd.f32 %v1442, %v1397
        %v1444 = vadd.f32 %v1302, %v1334
        %v1445 = vadd.f32 %v1444, %v1366
        %v1446 = vadd.f32 %v1445, %v1398
        %v1447 = vadd.f32 %v1303, %v1335
        %v1448 = vadd.f32 %v1447, %v1367
        %v1449 = vadd.f32 %v1448, %v1399
        %v1450 = vadd.f32 %v1304, %v1336
        %v1451 = vadd.f32 %v1450, %v1368
        %v1452 = vadd.f32 %v1451, %v1400
        %v1453 = vadd.f32 %v1305, %v1337
        %v1454 = vadd.f32 %v1453, %v1369
        %v1455 = vadd.f32 %v1454, %v1401
        %v1456 = vadd.f32 %v1306, %v1338
        %v1457 = vadd.f32 %v1456, %v1370
        %v1458 = vadd.f32 %v1457, %v1402
        %v1459 = vadd.f32 %v1307, %v1339
        %v1460 = vadd.f32 %v1459, %v1371
        %v1461 = vadd.f32 %v1460, %v1403
        %v1462 = vadd.f32 %v1308, %v1340
        %v1463 = vadd.f32 %v1462, %v1372
        %v1464 = vadd.f32 %v1463, %v1404
        %v1465 = vadd.f32 %v1309, %v1341
        %v1466 = vadd.f32 %v1465, %v1373
        %v1467 = vadd.f32 %v1466, %v1405
        %v1468 = vadd.f32 %v1310, %v1342
        %v1469 = vadd.f32 %v1468, %v1374
        %v1470 = vadd.f32 %v1469, %v1406
        %v1471 = vadd.f32 %v1311, %v1343
        %v1472 = vadd.f32 %v1471, %v1375
        %v1473 = vadd.f32 %v1472, %v1407
        %v1474 = vadd.f32 %v1312, %v1344
        %v1475 = vadd.f32 %v1474, %v1376
        %v1476 = vadd.f32 %v1475, %v1408
        %v1477 = vadd.f32 %v1313, %v1345
        %v1478 = vadd.f32 %v1477, %v1377
        %v1479 = vadd.f32 %v1478, %v1409
        %v1480 = vadd.f32 %v1314, %v1346
        %v1481 = vadd.f32 %v1480, %v1378
        %v1482 = vadd.f32 %v1481, %v1410
        %v1483 = vadd.f32 %v1315, %v1347
        %v1484 = vadd.f32 %v1483, %v1379
        %v1485 = vadd.f32 %v1484, %v1411
        %v1486 = vadd.f32 %v1316, %v1348
        %v1487 = vadd.f32 %v1486, %v1380
        %v1488 = vadd.f32 %v1487, %v1412
        %v1489 = vadd.f32 %v1317, %v1349
        %v1490 = vadd.f32 %v1489, %v1381
        %v1491 = vadd.f32 %v1490, %v1413
        %v1492 = vadd.f32 %v1318, %v1350
        %v1493 = vadd.f32 %v1492, %v1382
        %v1494 = vadd.f32 %v1493, %v1414
        %v1495 = vadd.f32 %v1319, %v1351
        %v1496 = vadd.f32 %v1495, %v1383
        %v1497 = vadd.f32 %v1496, %v1415
        %v1498 = vadd.f32 %v1320, %v1352
        %v1499 = vadd.f32 %v1498, %v1384
        %v1500 = vadd.f32 %v1499, %v1416
        %v1501 = vadd.f32 %v1321, %v1353
        %v1502 = vadd.f32 %v1501, %v1385
        %v1503 = vadd.f32 %v1502, %v1417
        %v1504 = vadd.f32 %v1322, %v1354
        %v1505 = vadd.f32 %v1504, %v1386
        %v1506 = vadd.f32 %v1505, %v1418
        %v1507 = vadd.f32 %v1323, %v1355
        %v1508 = vadd.f32 %v1507, %v1387
        %v1509 = vadd.f32 %v1508, %v1419
        %v1510 = vadd.f32 %v1324, %v1356
        %v1511 = vadd.f32 %v1510, %v1388
        %v1512 = vadd.f32 %v1511, %v1420
        %v1513 = vadd.f32 %v1325, %v1357
        %v1514 = vadd.f32 %v1513, %v1389
        %v1515 = vadd.f32 %v1514, %v1421
        %v1516 = vadd.f32 %v1326, %v1358
        %v1517 = vadd.f32 %v1516, %v1390
        %v1518 = vadd.f32 %v1517, %v1422
        %v1519 = vmul.f32 %v1006, %v1006
        %v1520 = vmul.f32 %v1007, %v1007
        %v1521 = vmul.f32 %v1008, %v1008
        %v1522 = vmul.f32 %v1009, %v1009
        %v1523 = vmul.f32 %v1010, %v1010
        %v1524 = vmul.f32 %v1011, %v1011
        %v1525 = vmul.f32 %v1012, %v1012
        %v1526 = vmul.f32 %v1013, %v1013
        %v1527 = vmul.f32 %v1014, %v1014
        %v1528 = vmul.f32 %v1015, %v1015
        %v1529 = vmul.f32 %v1016, %v1016
        %v1530 = vmul.f32 %v1017, %v1017
        %v1531 = vmul.f32 %v1018, %v1018
        %v1532 = vmul.f32 %v1019, %v1019
        %v1533 = vmul.f32 %v1020, %v1020
        %v1534 = vmul.f32 %v1021, %v1021
        %v1535 = vmul.f32 %v1022, %v1022
        %v1536 = vmul.f32 %v1023, %v1023
        %v1537 = vmul.f32 %v1024, %v1024
        %v1538 = vmul.f32 %v1025, %v1025
        %v1539 = vmul.f32 %v1026, %v1026
        %v1540 = vmul.f32 %v1027, %v1027
        %v1541 = vmul.f32 %v1028, %v1028
        %v1542 = vmul.f32 %v1029, %v1029
        %v1543 = vmul.f32 %v1030, %v1030
        %v1544 = vmul.f32 %v1031, %v1031
        %v1545 = vmul.f32 %v1032, %v1032
        %v1546 = vmul.f32 %v1033, %v1033
        %v1547 = vmul.f32 %v1034, %v1034
        %v1548 = vmul.f32 %v1035, %v1035
        %v1549 = vmul.f32 %v1036, %v1036
        %v1550 = vmul.f32 %v1037, %v1037
        %v1551 = vmul.f32 %v1038, %v1038
        %v1552 = vmul.f32 %v1039, %v1039
        %v1553 = vmul.f32 %v1040, %v1040
        %v1554 = vmul.f32 %v1041, %v1041
        %v1555 = vmul.f32 %v1042, %v1042
        %v1556 = vmul.f32 %v1043, %v1043
        %v1557 = vmul.f32 %v1044, %v1044
        %v1558 = vmul.f32 %v1045, %v1045
        %v1559 = vmul.f32 %v1046, %v1046
        %v1560 = vmul.f32 %v1047, %v1047
        %v1561 = vmul.f32 %v1048, %v1048
        %v1562 = vmul.f32 %v1049, %v1049
        %v1563 = vmul.f32 %v1050, %v1050
        %v1564 = vmul.f32 %v1051, %v1051
        %v1565 = vmul.f32 %v1052, %v1052
        %v1566 = vmul.f32 %v1053, %v1053
        %v1567 = vmul.f32 %v1054, %v1054
        %v1568 = vmul.f32 %v1055, %v1055
        %v1569 = vmul.f32 %v1056, %v1056
        %v1570 = vmul.f32 %v1057, %v1057
        %v1571 = vmul.f32 %v1058, %v1058
        %v1572 = vmul.f32 %v1059, %v1059
        %v1573 = vmul.f32 %v1060, %v1060
        %v1574 = vmul.f32 %v1061, %v1061
        %v1575 = vmul.f32 %v1062, %v1062
        %v1576 = vmul.f32 %v1063, %v1063
        %v1577 = vmul.f32 %v1064, %v1064
        %v1578 = vmul.f32 %v1065, %v1065
        %v1579 = vmul.f32 %v1066, %v1066
        %v1580 = vmul.f32 %v1067, %v1067
        %v1581 = vmul.f32 %v1068, %v1068
        %v1582 = vmul.f32 %v1069, %v1069
        %v1583 = vmul.f32 %v1070, %v1070
        %v1584 = vmul.f32 %v1071, %v1071
        %v1585 = vmul.f32 %v1072, %v1072
        %v1586 = vmul.f32 %v1073, %v1073
        %v1587 = vmul.f32 %v1074, %v1074
        %v1588 = vmul.f32 %v1075, %v1075
        %v1589 = vmul.f32 %v1076, %v1076
        %v1590 = vmul.f32 %v1077, %v1077
        %v1591 = vmul.f32 %v1078, %v1078
        %v1592 = vmul.f32 %v1079, %v1079
        %v1593 = vmul.f32 %v1080, %v1080
        %v1594 = vmul.f32 %v1081, %v1081
        %v1595 = vmul.f32 %v1082, %v1082
        %v1596 = vmul.f32 %v1083, %v1083
        %v1597 = vmul.f32 %v1084, %v1084
        %v1598 = vmul.f32 %v1085, %v1085
        %v1599 = vmul.f32 %v1086, %v1086
        %v1600 = vmul.f32 %v1087, %v1087
        %v1601 = vmul.f32 %v1088, %v1088
        %v1602 = vmul.f32 %v1089, %v1089
        %v1603 = vmul.f32 %v1090, %v1090
        %v1604 = vmul.f32 %v1091, %v1091
        %v1605 = vmul.f32 %v1092, %v1092
        %v1606 = vmul.f32 %v1093, %v1093
        %v1607 = vmul.f32 %v1094, %v1094
        %v1608 = vmul.f32 %v1095, %v1095
        %v1609 = vmul.f32 %v1096, %v1096
        %v1610 = vmul.f32 %v1097, %v1097
        %v1611 = vmul.f32 %v1098, %v1098
        %v1612 = vmul.f32 %v1099, %v1099
        %v1613 = vmul.f32 %v1100, %v1100
        %v1614 = vmul.f32 %v1101, %v1101
        %v1615 = vmul.f32 %v1102, %v1102
        %v1616 = vmul.f32 %v1103, %v1103
        %v1617 = vmul.f32 %v1104, %v1104
        %v1618 = vmul.f32 %v1105, %v1105
        %v1619 = vmul.f32 %v1106, %v1106
        %v1620 = vmul.f32 %v1107, %v1107
        %v1621 = vmul.f32 %v1108, %v1108
        %v1622 = vmul.f32 %v1109, %v1109
        %v1623 = vmul.f32 %v1110, %v1110
        %v1624 = vmul.f32 %v1111, %v1111
        %v1625 = vmul.f32 %v1112, %v1112
        %v1626 = vmul.f32 %v1113, %v1113
        %v1627 = vmul.f32 %v1114, %v1114
        %v1628 = vmul.f32 %v1115, %v1115
        %v1629 = vmul.f32 %v1116, %v1116
        %v1630 = vmul.f32 %v1117, %v1117
        %v1631 = vmul.f32 %v1118, %v1118
        %v1632 = vmul.f32 %v1119, %v1119
        %v1633 = vmul.f32 %v1120, %v1120
        %v1634 = vmul.f32 %v1121, %v1121
        %v1635 = vmul.f32 %v1122, %v1122
        %v1636 = vmul.f32 %v1123, %v1123
        %v1637 = vmul.f32 %v1124, %v1124
        %v1638 = vmul.f32 %v1125, %v1125
        %v1639 = vmul.f32 %v1126, %v1126
        %v1640 = vmul.f32 %v1127, %v1127
        %v1641 = vmul.f32 %v1128, %v1128
        %v1642 = vmul.f32 %v1129, %v1129
        %v1643 = vmul.f32 %v1130, %v1130
        %v1644 = vmul.f32 %v1131, %v1131
        %v1645 = vmul.f32 %v1132, %v1132
        %v1646 = vmul.f32 %v1133, %v1133
        %v1647 = vadd.f32 %v1519, %v1551
        %v1648 = vadd.f32 %v1647, %v1583
        %v1649 = vadd.f32 %v1648, %v1615
        %v1650 = vadd.f32 %v1520, %v1552
        %v1651 = vadd.f32 %v1650, %v1584
        %v1652 = vadd.f32 %v1651, %v1616
        %v1653 = vadd.f32 %v1521, %v1553
        %v1654 = vadd.f32 %v1653, %v1585
        %v1655 = vadd.f32 %v1654, %v1617
        %v1656 = vadd.f32 %v1522, %v1554
        %v1657 = vadd.f32 %v1656, %v1586
        %v1658 = vadd.f32 %v1657, %v1618
        %v1659 = vadd.f32 %v1523, %v1555
        %v1660 = vadd.f32 %v1659, %v1587
        %v1661 = vadd.f32 %v1660, %v1619
        %v1662 = vadd.f32 %v1524, %v1556
        %v1663 = vadd.f32 %v1662, %v1588
        %v1664 = vadd.f32 %v1663, %v1620
        %v1665 = vadd.f32 %v1525, %v1557
        %v1666 = vadd.f32 %v1665, %v1589
        %v1667 = vadd.f32 %v1666, %v1621
        %v1668 = vadd.f32 %v1526, %v1558
        %v1669 = vadd.f32 %v1668, %v1590
        %v1670 = vadd.f32 %v1669, %v1622
        %v1671 = vadd.f32 %v1527, %v1559
        %v1672 = vadd.f32 %v1671, %v1591
        %v1673 = vadd.f32 %v1672, %v1623
        %v1674 = vadd.f32 %v1528, %v1560
        %v1675 = vadd.f32 %v1674, %v1592
        %v1676 = vadd.f32 %v1675, %v1624
        %v1677 = vadd.f32 %v1529, %v1561
        %v1678 = vadd.f32 %v1677, %v1593
        %v1679 = vadd.f32 %v1678, %v1625
        %v1680 = vadd.f32 %v1530, %v1562
        %v1681 = vadd.f32 %v1680, %v1594
        %v1682 = vadd.f32 %v1681, %v1626
        %v1683 = vadd.f32 %v1531, %v1563
        %v1684 = vadd.f32 %v1683, %v1595
        %v1685 = vadd.f32 %v1684, %v1627
        %v1686 = vadd.f32 %v1532, %v1564
        %v1687 = vadd.f32 %v1686, %v1596
        %v1688 = vadd.f32 %v1687, %v1628
        %v1689 = vadd.f32 %v1533, %v1565
        %v1690 = vadd.f32 %v1689, %v1597
        %v1691 = vadd.f32 %v1690, %v1629
        %v1692 = vadd.f32 %v1534, %v1566
        %v1693 = vadd.f32 %v1692, %v1598
        %v1694 = vadd.f32 %v1693, %v1630
        %v1695 = vadd.f32 %v1535, %v1567
        %v1696 = vadd.f32 %v1695, %v1599
        %v1697 = vadd.f32 %v1696, %v1631
        %v1698 = vadd.f32 %v1536, %v1568
        %v1699 = vadd.f32 %v1698, %v1600
        %v1700 = vadd.f32 %v1699, %v1632
        %v1701 = vadd.f32 %v1537, %v1569
        %v1702 = vadd.f32 %v1701, %v1601
        %v1703 = vadd.f32 %v1702, %v1633
        %v1704 = vadd.f32 %v1538, %v1570
        %v1705 = vadd.f32 %v1704, %v1602
        %v1706 = vadd.f32 %v1705, %v1634
        %v1707 = vadd.f32 %v1539, %v1571
        %v1708 = vadd.f32 %v1707, %v1603
        %v1709 = vadd.f32 %v1708, %v1635
        %v1710 = vadd.f32 %v1540, %v1572
        %v1711 = vadd.f32 %v1710, %v1604
        %v1712 = vadd.f32 %v1711, %v1636
        %v1713 = vadd.f32 %v1541, %v1573
        %v1714 = vadd.f32 %v1713, %v1605
        %v1715 = vadd.f32 %v1714, %v1637
        %v1716 = vadd.f32 %v1542, %v1574
        %v1717 = vadd.f32 %v1716, %v1606
        %v1718 = vadd.f32 %v1717, %v1638
        %v1719 = vadd.f32 %v1543, %v1575
        %v1720 = vadd.f32 %v1719, %v1607
        %v1721 = vadd.f32 %v1720, %v1639
        %v1722 = vadd.f32 %v1544, %v1576
        %v1723 = vadd.f32 %v1722, %v1608
        %v1724 = vadd.f32 %v1723, %v1640
        %v1725 = vadd.f32 %v1545, %v1577
        %v1726 = vadd.f32 %v1725, %v1609
        %v1727 = vadd.f32 %v1726, %v1641
        %v1728 = vadd.f32 %v1546, %v1578
        %v1729 = vadd.f32 %v1728, %v1610
        %v1730 = vadd.f32 %v1729, %v1642
        %v1731 = vadd.f32 %v1547, %v1579
        %v1732 = vadd.f32 %v1731, %v1611
        %v1733 = vadd.f32 %v1732, %v1643
        %v1734 = vadd.f32 %v1548, %v1580
        %v1735 = vadd.f32 %v1734, %v1612
        %v1736 = vadd.f32 %v1735, %v1644
        %v1737 = vadd.f32 %v1549, %v1581
        %v1738 = vadd.f32 %v1737, %v1613
        %v1739 = vadd.f32 %v1738, %v1645
        %v1740 = vadd.f32 %v1550, %v1582
        %v1741 = vadd.f32 %v1740, %v1614
        %v1742 = vadd.f32 %v1741, %v1646
        %v1743 = vmul.f32 %v1134, %v1134
        %v1744 = vmul.f32 %v1135, %v1135
        %v1745 = vmul.f32 %v1136, %v1136
        %v1746 = vmul.f32 %v1137, %v1137
        %v1747 = vmul.f32 %v1138, %v1138
        %v1748 = vmul.f32 %v1139, %v1139
        %v1749 = vmul.f32 %v1140, %v1140
        %v1750 = vmul.f32 %v1141, %v1141
        %v1751 = vmul.f32 %v1142, %v1142
        %v1752 = vmul.f32 %v1143, %v1143
        %v1753 = vmul.f32 %v1144, %v1144
        %v1754 = vmul.f32 %v1145, %v1145
        %v1755 = vmul.f32 %v1146, %v1146
        %v1756 = vmul.f32 %v1147, %v1147
        %v1757 = vmul.f32 %v1148, %v1148
        %v1758 = vmul.f32 %v1149, %v1149
        %v1759 = vmul.f32 %v1150, %v1150
        %v1760 = vmul.f32 %v1151, %v1151
        %v1761 = vmul.f32 %v1152, %v1152
        %v1762 = vmul.f32 %v1153, %v1153
        %v1763 = vmul.f32 %v1154, %v1154
        %v1764 = vmul.f32 %v1155, %v1155
        %v1765 = vmul.f32 %v1156, %v1156
        %v1766 = vmul.f32 %v1157, %v1157
        %v1767 = vmul.f32 %v1158, %v1158
        %v1768 = vmul.f32 %v1159, %v1159
        %v1769 = vmul.f32 %v1160, %v1160
        %v1770 = vmul.f32 %v1161, %v1161
        %v1771 = vmul.f32 %v1162, %v1162
        %v1772 = vmul.f32 %v1163, %v1163
        %v1773 = vmul.f32 %v1164, %v1164
        %v1774 = vmul.f32 %v1165, %v1165
        %v1775 = vmul.f32 %v1166, %v1166
        %v1776 = vmul.f32 %v1167, %v1167
        %v1777 = vmul.f32 %v1168, %v1168
        %v1778 = vmul.f32 %v1169, %v1169
        %v1779 = vmul.f32 %v1170, %v1170
        %v1780 = vmul.f32 %v1171, %v1171
        %v1781 = vmul.f32 %v1172, %v1172
        %v1782 = vmul.f32 %v1173, %v1173
        %v1783 = vmul.f32 %v1174, %v1174
        %v1784 = vmul.f32 %v1175, %v1175
        %v1785 = vmul.f32 %v1176, %v1176
        %v1786 = vmul.f32 %v1177, %v1177
        %v1787 = vmul.f32 %v1178, %v1178
        %v1788 = vmul.f32 %v1179, %v1179
        %v1789 = vmul.f32 %v1180, %v1180
        %v1790 = vmul.f32 %v1181, %v1181
        %v1791 = vmul.f32 %v1182, %v1182
        %v1792 = vmul.f32 %v1183, %v1183
        %v1793 = vmul.f32 %v1184, %v1184
        %v1794 = vmul.f32 %v1185, %v1185
        %v1795 = vmul.f32 %v1186, %v1186
        %v1796 = vmul.f32 %v1187, %v1187
        %v1797 = vmul.f32 %v1188, %v1188
        %v1798 = vmul.f32 %v1189, %v1189
        %v1799 = vmul.f32 %v1190, %v1190
        %v1800 = vmul.f32 %v1191, %v1191
        %v1801 = vmul.f32 %v1192, %v1192
        %v1802 = vmul.f32 %v1193, %v1193
        %v1803 = vmul.f32 %v1194, %v1194
        %v1804 = vmul.f32 %v1195, %v1195
        %v1805 = vmul.f32 %v1196, %v1196
        %v1806 = vmul.f32 %v1197, %v1197
        %v1807 = vmul.f32 %v1198, %v1198
        %v1808 = vmul.f32 %v1199, %v1199
        %v1809 = vmul.f32 %v1200, %v1200
        %v1810 = vmul.f32 %v1201, %v1201
        %v1811 = vmul.f32 %v1202, %v1202
        %v1812 = vmul.f32 %v1203, %v1203
        %v1813 = vmul.f32 %v1204, %v1204
        %v1814 = vmul.f32 %v1205, %v1205
        %v1815 = vmul.f32 %v1206, %v1206
        %v1816 = vmul.f32 %v1207, %v1207
        %v1817 = vmul.f32 %v1208, %v1208
        %v1818 = vmul.f32 %v1209, %v1209
        %v1819 = vmul.f32 %v1210, %v1210
        %v1820 = vmul.f32 %v1211, %v1211
        %v1821 = vmul.f32 %v1212, %v1212
        %v1822 = vmul.f32 %v1213, %v1213
        %v1823 = vmul.f32 %v1214, %v1214
        %v1824 = vmul.f32 %v1215, %v1215
        %v1825 = vmul.f32 %v1216, %v1216
        %v1826 = vmul.f32 %v1217, %v1217
        %v1827 = vmul.f32 %v1218, %v1218
        %v1828 = vmul.f32 %v1219, %v1219
        %v1829 = vmul.f32 %v1220, %v1220
        %v1830 = vmul.f32 %v1221, %v1221
        %v1831 = vmul.f32 %v1222, %v1222
        %v1832 = vmul.f32 %v1223, %v1223
        %v1833 = vmul.f32 %v1224, %v1224
        %v1834 = vmul.f32 %v1225, %v1225
        %v1835 = vmul.f32 %v1226, %v1226
        %v1836 = vmul.f32 %v1227, %v1227
        %v1837 = vmul.f32 %v1228, %v1228
        %v1838 = vmul.f32 %v1229, %v1229
        %v1839 = vmul.f32 %v1230, %v1230
        %v1840 = vmul.f32 %v1231, %v1231
        %v1841 = vmul.f32 %v1232, %v1232
        %v1842 = vmul.f32 %v1233, %v1233
        %v1843 = vmul.f32 %v1234, %v1234
        %v1844 = vmul.f32 %v1235, %v1235
        %v1845 = vmul.f32 %v1236, %v1236
        %v1846 = vmul.f32 %v1237, %v1237
        %v1847 = vmul.f32 %v1238, %v1238
        %v1848 = vmul.f32 %v1239, %v1239
        %v1849 = vmul.f32 %v1240, %v1240
        %v1850 = vmul.f32 %v1241, %v1241
        %v1851 = vmul.f32 %v1242, %v1242
        %v1852 = vmul.f32 %v1243, %v1243
        %v1853 = vmul.f32 %v1244, %v1244
        %v1854 = vmul.f32 %v1245, %v1245
        %v1855 = vmul.f32 %v1246, %v1246
        %v1856 = vmul.f32 %v1247, %v1247
        %v1857 = vmul.f32 %v1248, %v1248
        %v1858 = vmul.f32 %v1249, %v1249
        %v1859 = vmul.f32 %v1250, %v1250
        %v1860 = vmul.f32 %v1251, %v1251
        %v1861 = vmul.f32 %v1252, %v1252
        %v1862 = vmul.f32 %v1253, %v1253
        %v1863 = vmul.f32 %v1254, %v1254
        %v1864 = vmul.f32 %v1255, %v1255
        %v1865 = vmul.f32 %v1256, %v1256
        %v1866 = vmul.f32 %v1257, %v1257
        %v1867 = vmul.f32 %v1258, %v1258
        %v1868 = vmul.f32 %v1259, %v1259
        %v1869 = vmul.f32 %v1260, %v1260
        %v1870 = vmul.f32 %v1261, %v1261
        %v1871 = vadd.f32 %v1743, %v1775
        %v1872 = vadd.f32 %v1871, %v1807
        %v1873 = vadd.f32 %v1872, %v1839
        %v1874 = vadd.f32 %v1744, %v1776
        %v1875 = vadd.f32 %v1874, %v1808
        %v1876 = vadd.f32 %v1875, %v1840
        %v1877 = vadd.f32 %v1745, %v1777
        %v1878 = vadd.f32 %v1877, %v1809
        %v1879 = vadd.f32 %v1878, %v1841
        %v1880 = vadd.f32 %v1746, %v1778
        %v1881 = vadd.f32 %v1880, %v1810
        %v1882 = vadd.f32 %v1881, %v1842
        %v1883 = vadd.f32 %v1747, %v1779
        %v1884 = vadd.f32 %v1883, %v1811
        %v1885 = vadd.f32 %v1884, %v1843
        %v1886 = vadd.f32 %v1748, %v1780
        %v1887 = vadd.f32 %v1886, %v1812
        %v1888 = vadd.f32 %v1887, %v1844
        %v1889 = vadd.f32 %v1749, %v1781
        %v1890 = vadd.f32 %v1889, %v1813
        %v1891 = vadd.f32 %v1890, %v1845
        %v1892 = vadd.f32 %v1750, %v1782
        %v1893 = vadd.f32 %v1892, %v1814
        %v1894 = vadd.f32 %v1893, %v1846
        %v1895 = vadd.f32 %v1751, %v1783
        %v1896 = vadd.f32 %v1895, %v1815
        %v1897 = vadd.f32 %v1896, %v1847
        %v1898 = vadd.f32 %v1752, %v1784
        %v1899 = vadd.f32 %v1898, %v1816
        %v1900 = vadd.f32 %v1899, %v1848
        %v1901 = vadd.f32 %v1753, %v1785
        %v1902 = vadd.f32 %v1901, %v1817
        %v1903 = vadd.f32 %v1902, %v1849
        %v1904 = vadd.f32 %v1754, %v1786
        %v1905 = vadd.f32 %v1904, %v1818
        %v1906 = vadd.f32 %v1905, %v1850
        %v1907 = vadd.f32 %v1755, %v1787
        %v1908 = vadd.f32 %v1907, %v1819
        %v1909 = vadd.f32 %v1908, %v1851
        %v1910 = vadd.f32 %v1756, %v1788
        %v1911 = vadd.f32 %v1910, %v1820
        %v1912 = vadd.f32 %v1911, %v1852
        %v1913 = vadd.f32 %v1757, %v1789
        %v1914 = vadd.f32 %v1913, %v1821
        %v1915 = vadd.f32 %v1914, %v1853
        %v1916 = vadd.f32 %v1758, %v1790
        %v1917 = vadd.f32 %v1916, %v1822
        %v1918 = vadd.f32 %v1917, %v1854
        %v1919 = vadd.f32 %v1759, %v1791
        %v1920 = vadd.f32 %v1919, %v1823
        %v1921 = vadd.f32 %v1920, %v1855
        %v1922 = vadd.f32 %v1760, %v1792
        %v1923 = vadd.f32 %v1922, %v1824
        %v1924 = vadd.f32 %v1923, %v1856
        %v1925 = vadd.f32 %v1761, %v1793
        %v1926 = vadd.f32 %v1925, %v1825
        %v1927 = vadd.f32 %v1926, %v1857
        %v1928 = vadd.f32 %v1762, %v1794
        %v1929 = vadd.f32 %v1928, %v1826
        %v1930 = vadd.f32 %v1929, %v1858
        %v1931 = vadd.f32 %v1763, %v1795
        %v1932 = vadd.f32 %v1931, %v1827
        %v1933 = vadd.f32 %v1932, %v1859
        %v1934 = vadd.f32 %v1764, %v1796
        %v1935 = vadd.f32 %v1934, %v1828
        %v1936 = vadd.f32 %v1935, %v1860
        %v1937 = vadd.f32 %v1765, %v1797
        %v1938 = vadd.f32 %v1937, %v1829
        %v1939 = vadd.f32 %v1938, %v1861
        %v1940 = vadd.f32 %v1766, %v1798
        %v1941 = vadd.f32 %v1940, %v1830
        %v1942 = vadd.f32 %v1941, %v1862
        %v1943 = vadd.f32 %v1767, %v1799
        %v1944 = vadd.f32 %v1943, %v1831
        %v1945 = vadd.f32 %v1944, %v1863
        %v1946 = vadd.f32 %v1768, %v1800
        %v1947 = vadd.f32 %v1946, %v1832
        %v1948 = vadd.f32 %v1947, %v1864
        %v1949 = vadd.f32 %v1769, %v1801
        %v1950 = vadd.f32 %v1949, %v1833
        %v1951 = vadd.f32 %v1950, %v1865
        %v1952 = vadd.f32 %v1770, %v1802
        %v1953 = vadd.f32 %v1952, %v1834
        %v1954 = vadd.f32 %v1953, %v1866
        %v1955 = vadd.f32 %v1771, %v1803
        %v1956 = vadd.f32 %v1955, %v1835
        %v1957 = vadd.f32 %v1956, %v1867
        %v1958 = vadd.f32 %v1772, %v1804
        %v1959 = vadd.f32 %v1958, %v1836
        %v1960 = vadd.f32 %v1959, %v1868
        %v1961 = vadd.f32 %v1773, %v1805
        %v1962 = vadd.f32 %v1961, %v1837
        %v1963 = vadd.f32 %v1962, %v1869
        %v1964 = vadd.f32 %v1774, %v1806
        %v1965 = vadd.f32 %v1964, %v1838
        %v1966 = vadd.f32 %v1965, %v1870
        %v1967 = vmax.f32 %v1649, 1e-16
        %v1968 = vmax.f32 %v1652, 1e-16
        %v1969 = vmax.f32 %v1655, 1e-16
        %v1970 = vmax.f32 %v1658, 1e-16
        %v1971 = vmax.f32 %v1661, 1e-16
        %v1972 = vmax.f32 %v1664, 1e-16
        %v1973 = vmax.f32 %v1667, 1e-16
        %v1974 = vmax.f32 %v1670, 1e-16
        %v1975 = vmax.f32 %v1673, 1e-16
        %v1976 = vmax.f32 %v1676, 1e-16
        %v1977 = vmax.f32 %v1679, 1e-16
        %v1978 = vmax.f32 %v1682, 1e-16
        %v1979 = vmax.f32 %v1685, 1e-16
        %v1980 = vmax.f32 %v1688, 1e-16
        %v1981 = vmax.f32 %v1691, 1e-16
        %v1982 = vmax.f32 %v1694, 1e-16
        %v1983 = vmax.f32 %v1697, 1e-16
        %v1984 = vmax.f32 %v1700, 1e-16
        %v1985 = vmax.f32 %v1703, 1e-16
        %v1986 = vmax.f32 %v1706, 1e-16
        %v1987 = vmax.f32 %v1709, 1e-16
        %v1988 = vmax.f32 %v1712, 1e-16
        %v1989 = vmax.f32 %v1715, 1e-16
        %v1990 = vmax.f32 %v1718, 1e-16
        %v1991 = vmax.f32 %v1721, 1e-16
        %v1992 = vmax.f32 %v1724, 1e-16
        %v1993 = vmax.f32 %v1727, 1e-16
        %v1994 = vmax.f32 %v1730, 1e-16
        %v1995 = vmax.f32 %v1733, 1e-16
        %v1996 = vmax.f32 %v1736, 1e-16
        %v1997 = vmax.f32 %v1739, 1e-16
        %v1998 = vmax.f32 %v1742, 1e-16
        %v1999 = vrsqrt.pop %v1967
        %v2000 = vrsqrt.pop %v1968
        %v2001 = vrsqrt.pop %v1969
        %v2002 = vrsqrt.pop %v1970
        %v2003 = vrsqrt.pop %v1971
        %v2004 = vrsqrt.pop %v1972
        %v2005 = vrsqrt.pop %v1973
        %v2006 = vrsqrt.pop %v1974
        %v2007 = vrsqrt.pop %v1975
        %v2008 = vrsqrt.pop %v1976
        %v2009 = vrsqrt.pop %v1977
        %v2010 = vrsqrt.pop %v1978
        %v2011 = vrsqrt.pop %v1979
        %v2012 = vrsqrt.pop %v1980
        %v2013 = vrsqrt.pop %v1981
        %v2014 = vrsqrt.pop %v1982
        %v2015 = vrsqrt.pop %v1983
        %v2016 = vrsqrt.pop %v1984
        %v2017 = vrsqrt.pop %v1985
        %v2018 = vrsqrt.pop %v1986
        %v2019 = vrsqrt.pop %v1987
        %v2020 = vrsqrt.pop %v1988
        %v2021 = vrsqrt.pop %v1989
        %v2022 = vrsqrt.pop %v1990
        %v2023 = vrsqrt.pop %v1991
        %v2024 = vrsqrt.pop %v1992
        %v2025 = vrsqrt.pop %v1993
        %v2026 = vrsqrt.pop %v1994
        %v2027 = vrsqrt.pop %v1995
        %v2028 = vrsqrt.pop %v1996
        %v2029 = vrsqrt.pop %v1997
        %v2030 = vrsqrt.pop %v1998
        %v2031 = vmul.f32 %v1425, %v1999
        %v2032 = vmul.f32 %v1428, %v2000
        %v2033 = vmul.f32 %v1431, %v2001
        %v2034 = vmul.f32 %v1434, %v2002
        %v2035 = vmul.f32 %v1437, %v2003
        %v2036 = vmul.f32 %v1440, %v2004
        %v2037 = vmul.f32 %v1443, %v2005
        %v2038 = vmul.f32 %v1446, %v2006
        %v2039 = vmul.f32 %v1449, %v2007
        %v2040 = vmul.f32 %v1452, %v2008
        %v2041 = vmul.f32 %v1455, %v2009
        %v2042 = vmul.f32 %v1458, %v2010
        %v2043 = vmul.f32 %v1461, %v2011
        %v2044 = vmul.f32 %v1464, %v2012
        %v2045 = vmul.f32 %v1467, %v2013
        %v2046 = vmul.f32 %v1470, %v2014
        %v2047 = vmul.f32 %v1473, %v2015
        %v2048 = vmul.f32 %v1476, %v2016
        %v2049 = vmul.f32 %v1479, %v2017
        %v2050 = vmul.f32 %v1482, %v2018
        %v2051 = vmul.f32 %v1485, %v2019
        %v2052 = vmul.f32 %v1488, %v2020
        %v2053 = vmul.f32 %v1491, %v2021
        %v2054 = vmul.f32 %v1494, %v2022
        %v2055 = vmul.f32 %v1497, %v2023
        %v2056 = vmul.f32 %v1500, %v2024
        %v2057 = vmul.f32 %v1503, %v2025
        %v2058 = vmul.f32 %v1506, %v2026
        %v2059 = vmul.f32 %v1509, %v2027
        %v2060 = vmul.f32 %v1512, %v2028
        %v2061 = vmul.f32 %v1515, %v2029
        %v2062 = vmul.f32 %v1518, %v2030
        %v2063 = vmax.f32 %v1873, 1e-16
        %v2064 = vmax.f32 %v1876, 1e-16
        %v2065 = vmax.f32 %v1879, 1e-16
        %v2066 = vmax.f32 %v1882, 1e-16
        %v2067 = vmax.f32 %v1885, 1e-16
        %v2068 = vmax.f32 %v1888, 1e-16
        %v2069 = vmax.f32 %v1891, 1e-16
        %v2070 = vmax.f32 %v1894, 1e-16
        %v2071 = vmax.f32 %v1897, 1e-16
        %v2072 = vmax.f32 %v1900, 1e-16
        %v2073 = vmax.f32 %v1903, 1e-16
        %v2074 = vmax.f32 %v1906, 1e-16
        %v2075 = vmax.f32 %v1909, 1e-16
        %v2076 = vmax.f32 %v1912, 1e-16
        %v2077 = vmax.f32 %v1915, 1e-16
        %v2078 = vmax.f32 %v1918, 1e-16
        %v2079 = vmax.f32 %v1921, 1e-16
        %v2080 = vmax.f32 %v1924, 1e-16
        %v2081 = vmax.f32 %v1927, 1e-16
        %v2082 = vmax.f32 %v1930, 1e-16
        %v2083 = vmax.f32 %v1933, 1e-16
        %v2084 = vmax.f32 %v1936, 1e-16
        %v2085 = vmax.f32 %v1939, 1e-16
        %v2086 = vmax.f32 %v1942, 1e-16
        %v2087 = vmax.f32 %v1945, 1e-16
        %v2088 = vmax.f32 %v1948, 1e-16
        %v2089 = vmax.f32 %v1951, 1e-16
        %v2090 = vmax.f32 %v1954, 1e-16
        %v2091 = vmax.f32 %v1957, 1e-16
        %v2092 = vmax.f32 %v1960, 1e-16
        %v2093 = vmax.f32 %v1963, 1e-16
        %v2094 = vmax.f32 %v1966, 1e-16
        %v2095 = vrsqrt.pop %v2063
        %v2096 = vrsqrt.pop %v2064
        %v2097 = vrsqrt.pop %v2065
        %v2098 = vrsqrt.pop %v2066
        %v2099 = vrsqrt.pop %v2067
        %v2100 = vrsqrt.pop %v2068
        %v2101 = vrsqrt.pop %v2069
        %v2102 = vrsqrt.pop %v2070
        %v2103 = vrsqrt.pop %v2071
        %v2104 = vrsqrt.pop %v2072
        %v2105 = vrsqrt.pop %v2073
        %v2106 = vrsqrt.pop %v2074
        %v2107 = vrsqrt.pop %v2075
        %v2108 = vrsqrt.pop %v2076
        %v2109 = vrsqrt.pop %v2077
        %v2110 = vrsqrt.pop %v2078
        %v2111 = vrsqrt.pop %v2079
        %v2112 = vrsqrt.pop %v2080
        %v2113 = vrsqrt.pop %v2081
        %v2114 = vrsqrt.pop %v2082
        %v2115 = vrsqrt.pop %v2083
        %v2116 = vrsqrt.pop %v2084
        %v2117 = vrsqrt.pop %v2085
        %v2118 = vrsqrt.pop %v2086
        %v2119 = vrsqrt.pop %v2087
        %v2120 = vrsqrt.pop %v2088
        %v2121 = vrsqrt.pop %v2089
        %v2122 = vrsqrt.pop %v2090
        %v2123 = vrsqrt.pop %v2091
        %v2124 = vrsqrt.pop %v2092
        %v2125 = vrsqrt.pop %v2093
        %v2126 = vrsqrt.pop %v2094
        %v2127 = vmul.f32 %v2031, %v2095
        %v2128 = vmul.f32 %v2032, %v2096
        %v2129 = vmul.f32 %v2033, %v2097
        %v2130 = vmul.f32 %v2034, %v2098
        %v2131 = vmul.f32 %v2035, %v2099
        %v2132 = vmul.f32 %v2036, %v2100
        %v2133 = vmul.f32 %v2037, %v2101
        %v2134 = vmul.f32 %v2038, %v2102
        %v2135 = vmul.f32 %v2039, %v2103
        %v2136 = vmul.f32 %v2040, %v2104
        %v2137 = vmul.f32 %v2041, %v2105
        %v2138 = vmul.f32 %v2042, %v2106
        %v2139 = vmul.f32 %v2043, %v2107
        %v2140 = vmul.f32 %v2044, %v2108
        %v2141 = vmul.f32 %v2045, %v2109
        %v2142 = vmul.f32 %v2046, %v2110
        %v2143 = vmul.f32 %v2047, %v2111
        %v2144 = vmul.f32 %v2048, %v2112
        %v2145 = vmul.f32 %v2049, %v2113
        %v2146 = vmul.f32 %v2050, %v2114
        %v2147 = vmul.f32 %v2051, %v2115
        %v2148 = vmul.f32 %v2052, %v2116
        %v2149 = vmul.f32 %v2053, %v2117
        %v2150 = vmul.f32 %v2054, %v2118
        %v2151 = vmul.f32 %v2055, %v2119
        %v2152 = vmul.f32 %v2056, %v2120
        %v2153 = vmul.f32 %v2057, %v2121
        %v2154 = vmul.f32 %v2058, %v2122
        %v2155 = vmul.f32 %v2059, %v2123
        %v2156 = vmul.f32 %v2060, %v2124
        %v2157 = vmul.f32 %v2061, %v2125
        %v2158 = vmul.f32 %v2062, %v2126
        %v2159 = vsub.f32 1.0, %v2127
        %v2160 = vsub.f32 1.0, %v2128
        %v2161 = vsub.f32 1.0, %v2129
        %v2162 = vsub.f32 1.0, %v2130
        %v2163 = vsub.f32 1.0, %v2131
        %v2164 = vsub.f32 1.0, %v2132
        %v2165 = vsub.f32 1.0, %v2133
        %v2166 = vsub.f32 1.0, %v2134
        %v2167 = vsub.f32 1.0, %v2135
        %v2168 = vsub.f32 1.0, %v2136
        %v2169 = vsub.f32 1.0, %v2137
        %v2170 = vsub.f32 1.0, %v2138
        %v2171 = vsub.f32 1.0, %v2139
        %v2172 = vsub.f32 1.0, %v2140
        %v2173 = vsub.f32 1.0, %v2141
        %v2174 = vsub.f32 1.0, %v2142
        %v2175 = vsub.f32 1.0, %v2143
        %v2176 = vsub.f32 1.0, %v2144
        %v2177 = vsub.f32 1.0, %v2145
        %v2178 = vsub.f32 1.0, %v2146
        %v2179 = vsub.f32 1.0, %v2147
        %v2180 = vsub.f32 1.0, %v2148
        %v2181 = vsub.f32 1.0, %v2149
        %v2182 = vsub.f32 1.0, %v2150
        %v2183 = vsub.f32 1.0, %v2151
        %v2184 = vsub.f32 1.0, %v2152
        %v2185 = vsub.f32 1.0, %v2153
        %v2186 = vsub.f32 1.0, %v2154
        %v2187 = vsub.f32 1.0, %v2155
        %v2188 = vsub.f32 1.0, %v2156
        %v2189 = vsub.f32 1.0, %v2157
        %v2190 = vsub.f32 1.0, %v2158
        %v2191 = vand.u32 2147483647, %v2159
        %v2192 = vand.u32 2147483647, %v2160
        %v2193 = vand.u32 2147483647, %v2161
        %v2194 = vand.u32 2147483647, %v2162
        %v2195 = vand.u32 2147483647, %v2163
        %v2196 = vand.u32 2147483647, %v2164
        %v2197 = vand.u32 2147483647, %v2165
        %v2198 = vand.u32 2147483647, %v2166
        %v2199 = vand.u32 2147483647, %v2167
        %v2200 = vand.u32 2147483647, %v2168
        %v2201 = vand.u32 2147483647, %v2169
        %v2202 = vand.u32 2147483647, %v2170
        %v2203 = vand.u32 2147483647, %v2171
        %v2204 = vand.u32 2147483647, %v2172
        %v2205 = vand.u32 2147483647, %v2173
        %v2206 = vand.u32 2147483647, %v2174
        %v2207 = vand.u32 2147483647, %v2175
        %v2208 = vand.u32 2147483647, %v2176
        %v2209 = vand.u32 2147483647, %v2177
        %v2210 = vand.u32 2147483647, %v2178
        %v2211 = vand.u32 2147483647, %v2179
        %v2212 = vand.u32 2147483647, %v2180
        %v2213 = vand.u32 2147483647, %v2181
        %v2214 = vand.u32 2147483647, %v2182
        %v2215 = vand.u32 2147483647, %v2183
        %v2216 = vand.u32 2147483647, %v2184
        %v2217 = vand.u32 2147483647, %v2185
        %v2218 = vand.u32 2147483647, %v2186
        %v2219 = vand.u32 2147483647, %v2187
        %v2220 = vand.u32 2147483647, %v2188
        %v2221 = vand.u32 2147483647, %v2189
        %v2222 = vand.u32 2147483647, %v2190
        %v2223 = vadd.f32 %v2191, %v2192
        %v2224 = vadd.f32 %v2223, %v2193
        %v2225 = vadd.f32 %v2224, %v2194
        %v2226 = vadd.f32 %v2225, %v2195
        %v2227 = vadd.f32 %v2226, %v2196
        %v2228 = vadd.f32 %v2227, %v2197
        %v2229 = vadd.f32 %v2228, %v2198
        %v2230 = vadd.f32 %v2229, %v2199
        %v2231 = vadd.f32 %v2230, %v2200
        %v2232 = vadd.f32 %v2231, %v2201
        %v2233 = vadd.f32 %v2232, %v2202
        %v2234 = vadd.f32 %v2233, %v2203
        %v2235 = vadd.f32 %v2234, %v2204
        %v2236 = vadd.f32 %v2235, %v2205
        %v2237 = vadd.f32 %v2236, %v2206
        %v2238 = vadd.f32 %v2237, %v2207
        %v2239 = vadd.f32 %v2238, %v2208
        %v2240 = vadd.f32 %v2239, %v2209
        %v2241 = vadd.f32 %v2240, %v2210
        %v2242 = vadd.f32 %v2241, %v2211
        %v2243 = vadd.f32 %v2242, %v2212
        %v2244 = vadd.f32 %v2243, %v2213
        %v2245 = vadd.f32 %v2244, %v2214
        %v2246 = vadd.f32 %v2245, %v2215
        %v2247 = vadd.f32 %v2246, %v2216
        %v2248 = vadd.f32 %v2247, %v2217
        %v2249 = vadd.f32 %v2248, %v2218
        %v2250 = vadd.f32 %v2249, %v2219
        %v2251 = vadd.f32 %v2250, %v2220
        %v2252 = vadd.f32 %v2251, %v2221
        %v2253 = vadd.f32 %v2252, %v2222
        %2254 = vadd.xlane.f32.xlu0 %v2253
        %v2255 = vpop.xlane.xlu0 %2254
        %v2256 = vrot.slane %v2255, 4
        %v2257 = vadd.f32 %v2255, %v2256
        %v2258 = vrot.slane %v2257, 2
        %v2259 = vadd.f32 %v2257, %v2258
        %v2260 = vrot.slane %v2259, 1
        %v2261 = vadd.f32 %v2259, %v2260
        %s2262 = vtos %v2261
        %v2263 = vstv %s2262
        %v2264 = vadd.f32 %v1294, %v2263
        %2265 = vst [vmem:[%s981] sm:$0xff] %v2264
        %v2266 = vadd.f32 %v1006, %v1008
        %v2267 = vadd.f32 %v1007, %v1009
        %v2268 = vadd.f32 %v1010, %v1012
        %v2269 = vadd.f32 %v1011, %v1013
        %v2270 = vadd.f32 %v1014, %v1016
        %v2271 = vadd.f32 %v1015, %v1017
        %v2272 = vadd.f32 %v1018, %v1020
        %v2273 = vadd.f32 %v1019, %v1021
        %v2274 = vadd.f32 %v1022, %v1024
        %v2275 = vadd.f32 %v1023, %v1025
        %v2276 = vadd.f32 %v1026, %v1028
        %v2277 = vadd.f32 %v1027, %v1029
        %v2278 = vadd.f32 %v1030, %v1032
        %v2279 = vadd.f32 %v1031, %v1033
        %v2280 = vadd.f32 %v1034, %v1036
        %v2281 = vadd.f32 %v1035, %v1037
        %v2282 = vadd.f32 %v1038, %v1040
        %v2283 = vadd.f32 %v1039, %v1041
        %v2284 = vadd.f32 %v1042, %v1044
        %v2285 = vadd.f32 %v1043, %v1045
        %v2286 = vadd.f32 %v1046, %v1048
        %v2287 = vadd.f32 %v1047, %v1049
        %v2288 = vadd.f32 %v1050, %v1052
        %v2289 = vadd.f32 %v1051, %v1053
        %v2290 = vadd.f32 %v1054, %v1056
        %v2291 = vadd.f32 %v1055, %v1057
        %v2292 = vadd.f32 %v1058, %v1060
        %v2293 = vadd.f32 %v1059, %v1061
        %v2294 = vadd.f32 %v1062, %v1064
        %v2295 = vadd.f32 %v1063, %v1065
        %v2296 = vadd.f32 %v1066, %v1068
        %v2297 = vadd.f32 %v1067, %v1069
        %v2298 = vadd.f32 %v1070, %v1072
        %v2299 = vadd.f32 %v1071, %v1073
        %v2300 = vadd.f32 %v1074, %v1076
        %v2301 = vadd.f32 %v1075, %v1077
        %v2302 = vadd.f32 %v1078, %v1080
        %v2303 = vadd.f32 %v1079, %v1081
        %v2304 = vadd.f32 %v1082, %v1084
        %v2305 = vadd.f32 %v1083, %v1085
        %v2306 = vadd.f32 %v1086, %v1088
        %v2307 = vadd.f32 %v1087, %v1089
        %v2308 = vadd.f32 %v1090, %v1092
        %v2309 = vadd.f32 %v1091, %v1093
        %v2310 = vadd.f32 %v1094, %v1096
        %v2311 = vadd.f32 %v1095, %v1097
        %v2312 = vadd.f32 %v1098, %v1100
        %v2313 = vadd.f32 %v1099, %v1101
        %v2314 = vadd.f32 %v1102, %v1104
        %v2315 = vadd.f32 %v1103, %v1105
        %v2316 = vadd.f32 %v1106, %v1108
        %v2317 = vadd.f32 %v1107, %v1109
        %v2318 = vadd.f32 %v1110, %v1112
        %v2319 = vadd.f32 %v1111, %v1113
        %v2320 = vadd.f32 %v1114, %v1116
        %v2321 = vadd.f32 %v1115, %v1117
        %v2322 = vadd.f32 %v1118, %v1120
        %v2323 = vadd.f32 %v1119, %v1121
        %v2324 = vadd.f32 %v1122, %v1124
        %v2325 = vadd.f32 %v1123, %v1125
        %v2326 = vadd.f32 %v1126, %v1128
        %v2327 = vadd.f32 %v1127, %v1129
        %v2328 = vadd.f32 %v1130, %v1132
        %v2329 = vadd.f32 %v1131, %v1133
        %v2330 = vsub.f32 %v1008, %v1006
        %v2331 = vsub.f32 %v1009, %v1007
        %v2332 = vsub.f32 %v1012, %v1010
        %v2333 = vsub.f32 %v1013, %v1011
        %v2334 = vsub.f32 %v1016, %v1014
        %v2335 = vsub.f32 %v1017, %v1015
        %v2336 = vsub.f32 %v1020, %v1018
        %v2337 = vsub.f32 %v1021, %v1019
        %v2338 = vsub.f32 %v1024, %v1022
        %v2339 = vsub.f32 %v1025, %v1023
        %v2340 = vsub.f32 %v1028, %v1026
        %v2341 = vsub.f32 %v1029, %v1027
        %v2342 = vsub.f32 %v1032, %v1030
        %v2343 = vsub.f32 %v1033, %v1031
        %v2344 = vsub.f32 %v1036, %v1034
        %v2345 = vsub.f32 %v1037, %v1035
        %v2346 = vsub.f32 %v1040, %v1038
        %v2347 = vsub.f32 %v1041, %v1039
        %v2348 = vsub.f32 %v1044, %v1042
        %v2349 = vsub.f32 %v1045, %v1043
        %v2350 = vsub.f32 %v1048, %v1046
        %v2351 = vsub.f32 %v1049, %v1047
        %v2352 = vsub.f32 %v1052, %v1050
        %v2353 = vsub.f32 %v1053, %v1051
        %v2354 = vsub.f32 %v1056, %v1054
        %v2355 = vsub.f32 %v1057, %v1055
        %v2356 = vsub.f32 %v1060, %v1058
        %v2357 = vsub.f32 %v1061, %v1059
        %v2358 = vsub.f32 %v1064, %v1062
        %v2359 = vsub.f32 %v1065, %v1063
        %v2360 = vsub.f32 %v1068, %v1066
        %v2361 = vsub.f32 %v1069, %v1067
        %v2362 = vsub.f32 %v1072, %v1070
        %v2363 = vsub.f32 %v1073, %v1071
        %v2364 = vsub.f32 %v1076, %v1074
        %v2365 = vsub.f32 %v1077, %v1075
        %v2366 = vsub.f32 %v1080, %v1078
        %v2367 = vsub.f32 %v1081, %v1079
        %v2368 = vsub.f32 %v1084, %v1082
        %v2369 = vsub.f32 %v1085, %v1083
        %v2370 = vsub.f32 %v1088, %v1086
        %v2371 = vsub.f32 %v1089, %v1087
        %v2372 = vsub.f32 %v1092, %v1090
        %v2373 = vsub.f32 %v1093, %v1091
        %v2374 = vsub.f32 %v1096, %v1094
        %v2375 = vsub.f32 %v1097, %v1095
        %v2376 = vsub.f32 %v1100, %v1098
        %v2377 = vsub.f32 %v1101, %v1099
        %v2378 = vsub.f32 %v1104, %v1102
        %v2379 = vsub.f32 %v1105, %v1103
        %v2380 = vsub.f32 %v1108, %v1106
        %v2381 = vsub.f32 %v1109, %v1107
        %v2382 = vsub.f32 %v1112, %v1110
        %v2383 = vsub.f32 %v1113, %v1111
        %v2384 = vsub.f32 %v1116, %v1114
        %v2385 = vsub.f32 %v1117, %v1115
        %v2386 = vsub.f32 %v1120, %v1118
        %v2387 = vsub.f32 %v1121, %v1119
        %v2388 = vsub.f32 %v1124, %v1122
        %v2389 = vsub.f32 %v1125, %v1123
        %v2390 = vsub.f32 %v1128, %v1126
        %v2391 = vsub.f32 %v1129, %v1127
        %v2392 = vsub.f32 %v1132, %v1130
        %v2393 = vsub.f32 %v1133, %v1131
        %v2394 = vadd.f32 %v1134, %v1136
        %v2395 = vadd.f32 %v1135, %v1137
        %v2396 = vadd.f32 %v1138, %v1140
        %v2397 = vadd.f32 %v1139, %v1141
        %v2398 = vadd.f32 %v1142, %v1144
        %v2399 = vadd.f32 %v1143, %v1145
        %v2400 = vadd.f32 %v1146, %v1148
        %v2401 = vadd.f32 %v1147, %v1149
        %v2402 = vadd.f32 %v1150, %v1152
        %v2403 = vadd.f32 %v1151, %v1153
        %v2404 = vadd.f32 %v1154, %v1156
        %v2405 = vadd.f32 %v1155, %v1157
        %v2406 = vadd.f32 %v1158, %v1160
        %v2407 = vadd.f32 %v1159, %v1161
        %v2408 = vadd.f32 %v1162, %v1164
        %v2409 = vadd.f32 %v1163, %v1165
        %v2410 = vadd.f32 %v1166, %v1168
        %v2411 = vadd.f32 %v1167, %v1169
        %v2412 = vadd.f32 %v1170, %v1172
        %v2413 = vadd.f32 %v1171, %v1173
        %v2414 = vadd.f32 %v1174, %v1176
        %v2415 = vadd.f32 %v1175, %v1177
        %v2416 = vadd.f32 %v1178, %v1180
        %v2417 = vadd.f32 %v1179, %v1181
        %v2418 = vadd.f32 %v1182, %v1184
        %v2419 = vadd.f32 %v1183, %v1185
        %v2420 = vadd.f32 %v1186, %v1188
        %v2421 = vadd.f32 %v1187, %v1189
        %v2422 = vadd.f32 %v1190, %v1192
        %v2423 = vadd.f32 %v1191, %v1193
        %v2424 = vadd.f32 %v1194, %v1196
        %v2425 = vadd.f32 %v1195, %v1197
        %v2426 = vadd.f32 %v1198, %v1200
        %v2427 = vadd.f32 %v1199, %v1201
        %v2428 = vadd.f32 %v1202, %v1204
        %v2429 = vadd.f32 %v1203, %v1205
        %v2430 = vadd.f32 %v1206, %v1208
        %v2431 = vadd.f32 %v1207, %v1209
        %v2432 = vadd.f32 %v1210, %v1212
        %v2433 = vadd.f32 %v1211, %v1213
        %v2434 = vadd.f32 %v1214, %v1216
        %v2435 = vadd.f32 %v1215, %v1217
        %v2436 = vadd.f32 %v1218, %v1220
        %v2437 = vadd.f32 %v1219, %v1221
        %v2438 = vadd.f32 %v1222, %v1224
        %v2439 = vadd.f32 %v1223, %v1225
        %v2440 = vadd.f32 %v1226, %v1228
        %v2441 = vadd.f32 %v1227, %v1229
        %v2442 = vadd.f32 %v1230, %v1232
        %v2443 = vadd.f32 %v1231, %v1233
        %v2444 = vadd.f32 %v1234, %v1236
        %v2445 = vadd.f32 %v1235, %v1237
        %v2446 = vadd.f32 %v1238, %v1240
        %v2447 = vadd.f32 %v1239, %v1241
        %v2448 = vadd.f32 %v1242, %v1244
        %v2449 = vadd.f32 %v1243, %v1245
        %v2450 = vadd.f32 %v1246, %v1248
        %v2451 = vadd.f32 %v1247, %v1249
        %v2452 = vadd.f32 %v1250, %v1252
        %v2453 = vadd.f32 %v1251, %v1253
        %v2454 = vadd.f32 %v1254, %v1256
        %v2455 = vadd.f32 %v1255, %v1257
        %v2456 = vadd.f32 %v1258, %v1260
        %v2457 = vadd.f32 %v1259, %v1261
        %v2458 = vsub.f32 %v1136, %v1134
        %v2459 = vsub.f32 %v1137, %v1135
        %v2460 = vsub.f32 %v1140, %v1138
        %v2461 = vsub.f32 %v1141, %v1139
        %v2462 = vsub.f32 %v1144, %v1142
        %v2463 = vsub.f32 %v1145, %v1143
        %v2464 = vsub.f32 %v1148, %v1146
        %v2465 = vsub.f32 %v1149, %v1147
        %v2466 = vsub.f32 %v1152, %v1150
        %v2467 = vsub.f32 %v1153, %v1151
        %v2468 = vsub.f32 %v1156, %v1154
        %v2469 = vsub.f32 %v1157, %v1155
        %v2470 = vsub.f32 %v1160, %v1158
        %v2471 = vsub.f32 %v1161, %v1159
        %v2472 = vsub.f32 %v1164, %v1162
        %v2473 = vsub.f32 %v1165, %v1163
        %v2474 = vsub.f32 %v1168, %v1166
        %v2475 = vsub.f32 %v1169, %v1167
        %v2476 = vsub.f32 %v1172, %v1170
        %v2477 = vsub.f32 %v1173, %v1171
        %v2478 = vsub.f32 %v1176, %v1174
        %v2479 = vsub.f32 %v1177, %v1175
        %v2480 = vsub.f32 %v1180, %v1178
        %v2481 = vsub.f32 %v1181, %v1179
        %v2482 = vsub.f32 %v1184, %v1182
        %v2483 = vsub.f32 %v1185, %v1183
        %v2484 = vsub.f32 %v1188, %v1186
        %v2485 = vsub.f32 %v1189, %v1187
        %v2486 = vsub.f32 %v1192, %v1190
        %v2487 = vsub.f32 %v1193, %v1191
        %v2488 = vsub.f32 %v1196, %v1194
        %v2489 = vsub.f32 %v1197, %v1195
        %v2490 = vsub.f32 %v1200, %v1198
        %v2491 = vsub.f32 %v1201, %v1199
        %v2492 = vsub.f32 %v1204, %v1202
        %v2493 = vsub.f32 %v1205, %v1203
        %v2494 = vsub.f32 %v1208, %v1206
        %v2495 = vsub.f32 %v1209, %v1207
        %v2496 = vsub.f32 %v1212, %v1210
        %v2497 = vsub.f32 %v1213, %v1211
        %v2498 = vsub.f32 %v1216, %v1214
        %v2499 = vsub.f32 %v1217, %v1215
        %v2500 = vsub.f32 %v1220, %v1218
        %v2501 = vsub.f32 %v1221, %v1219
        %v2502 = vsub.f32 %v1224, %v1222
        %v2503 = vsub.f32 %v1225, %v1223
        %v2504 = vsub.f32 %v1228, %v1226
        %v2505 = vsub.f32 %v1229, %v1227
        %v2506 = vsub.f32 %v1232, %v1230
        %v2507 = vsub.f32 %v1233, %v1231
        %v2508 = vsub.f32 %v1236, %v1234
        %v2509 = vsub.f32 %v1237, %v1235
        %v2510 = vsub.f32 %v1240, %v1238
        %v2511 = vsub.f32 %v1241, %v1239
        %v2512 = vsub.f32 %v1244, %v1242
        %v2513 = vsub.f32 %v1245, %v1243
        %v2514 = vsub.f32 %v1248, %v1246
        %v2515 = vsub.f32 %v1249, %v1247
        %v2516 = vsub.f32 %v1252, %v1250
        %v2517 = vsub.f32 %v1253, %v1251
        %v2518 = vsub.f32 %v1256, %v1254
        %v2519 = vsub.f32 %v1257, %v1255
        %v2520 = vsub.f32 %v1260, %v1258
        %v2521 = vsub.f32 %v1261, %v1259
        %v2522 = vpack.c.bf16 %v2268, %v2266
        %v2523 = vpack.c.bf16 %v2269, %v2267
        %v2524 = vpack.c.bf16 %v2272, %v2270
        %v2525 = vpack.c.bf16 %v2273, %v2271
        %v2526 = vpack.c.bf16 %v2276, %v2274
        %v2527 = vpack.c.bf16 %v2277, %v2275
        %v2528 = vpack.c.bf16 %v2280, %v2278
        %v2529 = vpack.c.bf16 %v2281, %v2279
        %v2530 = vpack.c.bf16 %v2284, %v2282
        %v2531 = vpack.c.bf16 %v2285, %v2283
        %v2532 = vpack.c.bf16 %v2288, %v2286
        %v2533 = vpack.c.bf16 %v2289, %v2287
        %v2534 = vpack.c.bf16 %v2292, %v2290
        %v2535 = vpack.c.bf16 %v2293, %v2291
        %v2536 = vpack.c.bf16 %v2296, %v2294
        %v2537 = vpack.c.bf16 %v2297, %v2295
        %v2538 = vpack.c.bf16 %v2300, %v2298
        %v2539 = vpack.c.bf16 %v2301, %v2299
        %v2540 = vpack.c.bf16 %v2304, %v2302
        %v2541 = vpack.c.bf16 %v2305, %v2303
        %v2542 = vpack.c.bf16 %v2308, %v2306
        %v2543 = vpack.c.bf16 %v2309, %v2307
        %v2544 = vpack.c.bf16 %v2312, %v2310
        %v2545 = vpack.c.bf16 %v2313, %v2311
        %v2546 = vpack.c.bf16 %v2316, %v2314
        %v2547 = vpack.c.bf16 %v2317, %v2315
        %v2548 = vpack.c.bf16 %v2320, %v2318
        %v2549 = vpack.c.bf16 %v2321, %v2319
        %v2550 = vpack.c.bf16 %v2324, %v2322
        %v2551 = vpack.c.bf16 %v2325, %v2323
        %v2552 = vpack.c.bf16 %v2328, %v2326
        %v2553 = vpack.c.bf16 %v2329, %v2327
        %v2554 = vunpack.c.l.bf16 %v2522
        %v2555 = vunpack.c.l.bf16 %v2523
        %v2556 = vunpack.c.h.bf16 %v2522
        %v2557 = vunpack.c.h.bf16 %v2523
        %v2558 = vunpack.c.l.bf16 %v2524
        %v2559 = vunpack.c.l.bf16 %v2525
        %v2560 = vunpack.c.h.bf16 %v2524
        %v2561 = vunpack.c.h.bf16 %v2525
        %v2562 = vunpack.c.l.bf16 %v2526
        %v2563 = vunpack.c.l.bf16 %v2527
        %v2564 = vunpack.c.h.bf16 %v2526
        %v2565 = vunpack.c.h.bf16 %v2527
        %v2566 = vunpack.c.l.bf16 %v2528
        %v2567 = vunpack.c.l.bf16 %v2529
        %v2568 = vunpack.c.h.bf16 %v2528
        %v2569 = vunpack.c.h.bf16 %v2529
        %v2570 = vunpack.c.l.bf16 %v2530
        %v2571 = vunpack.c.l.bf16 %v2531
        %v2572 = vunpack.c.h.bf16 %v2530
        %v2573 = vunpack.c.h.bf16 %v2531
        %v2574 = vunpack.c.l.bf16 %v2532
        %v2575 = vunpack.c.l.bf16 %v2533
        %v2576 = vunpack.c.h.bf16 %v2532
        %v2577 = vunpack.c.h.bf16 %v2533
        %v2578 = vunpack.c.l.bf16 %v2534
        %v2579 = vunpack.c.l.bf16 %v2535
        %v2580 = vunpack.c.h.bf16 %v2534
        %v2581 = vunpack.c.h.bf16 %v2535
        %v2582 = vunpack.c.l.bf16 %v2536
        %v2583 = vunpack.c.l.bf16 %v2537
        %v2584 = vunpack.c.h.bf16 %v2536
        %v2585 = vunpack.c.h.bf16 %v2537
        %v2586 = vunpack.c.l.bf16 %v2538
        %v2587 = vunpack.c.l.bf16 %v2539
        %v2588 = vunpack.c.h.bf16 %v2538
        %v2589 = vunpack.c.h.bf16 %v2539
        %v2590 = vunpack.c.l.bf16 %v2540
        %v2591 = vunpack.c.l.bf16 %v2541
        %v2592 = vunpack.c.h.bf16 %v2540
        %v2593 = vunpack.c.h.bf16 %v2541
        %v2594 = vunpack.c.l.bf16 %v2542
        %v2595 = vunpack.c.l.bf16 %v2543
        %v2596 = vunpack.c.h.bf16 %v2542
        %v2597 = vunpack.c.h.bf16 %v2543
        %v2598 = vunpack.c.l.bf16 %v2544
        %v2599 = vunpack.c.l.bf16 %v2545
        %v2600 = vunpack.c.h.bf16 %v2544
        %v2601 = vunpack.c.h.bf16 %v2545
        %v2602 = vunpack.c.l.bf16 %v2546
        %v2603 = vunpack.c.l.bf16 %v2547
        %v2604 = vunpack.c.h.bf16 %v2546
        %v2605 = vunpack.c.h.bf16 %v2547
        %v2606 = vunpack.c.l.bf16 %v2548
        %v2607 = vunpack.c.l.bf16 %v2549
        %v2608 = vunpack.c.h.bf16 %v2548
        %v2609 = vunpack.c.h.bf16 %v2549
        %v2610 = vunpack.c.l.bf16 %v2550
        %v2611 = vunpack.c.l.bf16 %v2551
        %v2612 = vunpack.c.h.bf16 %v2550
        %v2613 = vunpack.c.h.bf16 %v2551
        %v2614 = vunpack.c.l.bf16 %v2552
        %v2615 = vunpack.c.l.bf16 %v2553
        %v2616 = vunpack.c.h.bf16 %v2552
        %v2617 = vunpack.c.h.bf16 %v2553
        %v2618 = vsub.f32 %v2266, %v2554
        %v2619 = vsub.f32 %v2267, %v2555
        %v2620 = vsub.f32 %v2268, %v2556
        %v2621 = vsub.f32 %v2269, %v2557
        %v2622 = vsub.f32 %v2270, %v2558
        %v2623 = vsub.f32 %v2271, %v2559
        %v2624 = vsub.f32 %v2272, %v2560
        %v2625 = vsub.f32 %v2273, %v2561
        %v2626 = vsub.f32 %v2274, %v2562
        %v2627 = vsub.f32 %v2275, %v2563
        %v2628 = vsub.f32 %v2276, %v2564
        %v2629 = vsub.f32 %v2277, %v2565
        %v2630 = vsub.f32 %v2278, %v2566
        %v2631 = vsub.f32 %v2279, %v2567
        %v2632 = vsub.f32 %v2280, %v2568
        %v2633 = vsub.f32 %v2281, %v2569
        %v2634 = vsub.f32 %v2282, %v2570
        %v2635 = vsub.f32 %v2283, %v2571
        %v2636 = vsub.f32 %v2284, %v2572
        %v2637 = vsub.f32 %v2285, %v2573
        %v2638 = vsub.f32 %v2286, %v2574
        %v2639 = vsub.f32 %v2287, %v2575
        %v2640 = vsub.f32 %v2288, %v2576
        %v2641 = vsub.f32 %v2289, %v2577
        %v2642 = vsub.f32 %v2290, %v2578
        %v2643 = vsub.f32 %v2291, %v2579
        %v2644 = vsub.f32 %v2292, %v2580
        %v2645 = vsub.f32 %v2293, %v2581
        %v2646 = vsub.f32 %v2294, %v2582
        %v2647 = vsub.f32 %v2295, %v2583
        %v2648 = vsub.f32 %v2296, %v2584
        %v2649 = vsub.f32 %v2297, %v2585
        %v2650 = vsub.f32 %v2298, %v2586
        %v2651 = vsub.f32 %v2299, %v2587
        %v2652 = vsub.f32 %v2300, %v2588
        %v2653 = vsub.f32 %v2301, %v2589
        %v2654 = vsub.f32 %v2302, %v2590
        %v2655 = vsub.f32 %v2303, %v2591
        %v2656 = vsub.f32 %v2304, %v2592
        %v2657 = vsub.f32 %v2305, %v2593
        %v2658 = vsub.f32 %v2306, %v2594
        %v2659 = vsub.f32 %v2307, %v2595
        %v2660 = vsub.f32 %v2308, %v2596
        %v2661 = vsub.f32 %v2309, %v2597
        %v2662 = vsub.f32 %v2310, %v2598
        %v2663 = vsub.f32 %v2311, %v2599
        %v2664 = vsub.f32 %v2312, %v2600
        %v2665 = vsub.f32 %v2313, %v2601
        %v2666 = vsub.f32 %v2314, %v2602
        %v2667 = vsub.f32 %v2315, %v2603
        %v2668 = vsub.f32 %v2316, %v2604
        %v2669 = vsub.f32 %v2317, %v2605
        %v2670 = vsub.f32 %v2318, %v2606
        %v2671 = vsub.f32 %v2319, %v2607
        %v2672 = vsub.f32 %v2320, %v2608
        %v2673 = vsub.f32 %v2321, %v2609
        %v2674 = vsub.f32 %v2322, %v2610
        %v2675 = vsub.f32 %v2323, %v2611
        %v2676 = vsub.f32 %v2324, %v2612
        %v2677 = vsub.f32 %v2325, %v2613
        %v2678 = vsub.f32 %v2326, %v2614
        %v2679 = vsub.f32 %v2327, %v2615
        %v2680 = vsub.f32 %v2328, %v2616
        %v2681 = vsub.f32 %v2329, %v2617
        %v2682 = vpack.c.bf16 %v2620, %v2618
        %v2683 = vpack.c.bf16 %v2621, %v2619
        %v2684 = vpack.c.bf16 %v2624, %v2622
        %v2685 = vpack.c.bf16 %v2625, %v2623
        %v2686 = vpack.c.bf16 %v2628, %v2626
        %v2687 = vpack.c.bf16 %v2629, %v2627
        %v2688 = vpack.c.bf16 %v2632, %v2630
        %v2689 = vpack.c.bf16 %v2633, %v2631
        %v2690 = vpack.c.bf16 %v2636, %v2634
        %v2691 = vpack.c.bf16 %v2637, %v2635
        %v2692 = vpack.c.bf16 %v2640, %v2638
        %v2693 = vpack.c.bf16 %v2641, %v2639
        %v2694 = vpack.c.bf16 %v2644, %v2642
        %v2695 = vpack.c.bf16 %v2645, %v2643
        %v2696 = vpack.c.bf16 %v2648, %v2646
        %v2697 = vpack.c.bf16 %v2649, %v2647
        %v2698 = vpack.c.bf16 %v2652, %v2650
        %v2699 = vpack.c.bf16 %v2653, %v2651
        %v2700 = vpack.c.bf16 %v2656, %v2654
        %v2701 = vpack.c.bf16 %v2657, %v2655
        %v2702 = vpack.c.bf16 %v2660, %v2658
        %v2703 = vpack.c.bf16 %v2661, %v2659
        %v2704 = vpack.c.bf16 %v2664, %v2662
        %v2705 = vpack.c.bf16 %v2665, %v2663
        %v2706 = vpack.c.bf16 %v2668, %v2666
        %v2707 = vpack.c.bf16 %v2669, %v2667
        %v2708 = vpack.c.bf16 %v2672, %v2670
        %v2709 = vpack.c.bf16 %v2673, %v2671
        %v2710 = vpack.c.bf16 %v2676, %v2674
        %v2711 = vpack.c.bf16 %v2677, %v2675
        %v2712 = vpack.c.bf16 %v2680, %v2678
        %v2713 = vpack.c.bf16 %v2681, %v2679
        %v2746 = vunpack.c.l.b16 %v1262
        %v2747 = vunpack.c.h.b16 %v1262
        %v2748 = vunpack.c.l.b16 %v1263
        %v2749 = vunpack.c.h.b16 %v1263
        %v2750 = vunpack.c.l.b16 %v1264
        %v2751 = vunpack.c.h.b16 %v1264
        %v2752 = vunpack.c.l.b16 %v1265
        %v2753 = vunpack.c.h.b16 %v1265
        %v2754 = vunpack.c.l.b16 %v1266
        %v2755 = vunpack.c.h.b16 %v1266
        %v2756 = vunpack.c.l.b16 %v1267
        %v2757 = vunpack.c.h.b16 %v1267
        %v2758 = vunpack.c.l.b16 %v1268
        %v2759 = vunpack.c.h.b16 %v1268
        %v2760 = vunpack.c.l.b16 %v1269
        %v2761 = vunpack.c.h.b16 %v1269
        %v2762 = vunpack.c.l.b16 %v1270
        %v2763 = vunpack.c.h.b16 %v1270
        %v2764 = vunpack.c.l.b16 %v1271
        %v2765 = vunpack.c.h.b16 %v1271
        %v2766 = vunpack.c.l.b16 %v1272
        %v2767 = vunpack.c.h.b16 %v1272
        %v2768 = vunpack.c.l.b16 %v1273
        %v2769 = vunpack.c.h.b16 %v1273
        %v2770 = vunpack.c.l.b16 %v1274
        %v2771 = vunpack.c.h.b16 %v1274
        %v2772 = vunpack.c.l.b16 %v1275
        %v2773 = vunpack.c.h.b16 %v1275
        %v2774 = vunpack.c.l.b16 %v1276
        %v2775 = vunpack.c.h.b16 %v1276
        %v2776 = vunpack.c.l.b16 %v1277
        %v2777 = vunpack.c.h.b16 %v1277
        %v2778 = vunpack.c.l.b16 %v1278
        %v2779 = vunpack.c.h.b16 %v1278
        %v2780 = vunpack.c.l.b16 %v1279
        %v2781 = vunpack.c.h.b16 %v1279
        %v2782 = vunpack.c.l.b16 %v1280
        %v2783 = vunpack.c.h.b16 %v1280
        %v2784 = vunpack.c.l.b16 %v1281
        %v2785 = vunpack.c.h.b16 %v1281
        %v2786 = vunpack.c.l.b16 %v1282
        %v2787 = vunpack.c.h.b16 %v1282
        %v2788 = vunpack.c.l.b16 %v1283
        %v2789 = vunpack.c.h.b16 %v1283
        %v2790 = vunpack.c.l.b16 %v1284
        %v2791 = vunpack.c.h.b16 %v1284
        %v2792 = vunpack.c.l.b16 %v1285
        %v2793 = vunpack.c.h.b16 %v1285
        %v2794 = vunpack.c.l.b16 %v1286
        %v2795 = vunpack.c.h.b16 %v1286
        %v2796 = vunpack.c.l.b16 %v1287
        %v2797 = vunpack.c.h.b16 %v1287
        %v2798 = vunpack.c.l.b16 %v1288
        %v2799 = vunpack.c.h.b16 %v1288
        %v2800 = vunpack.c.l.b16 %v1289
        %v2801 = vunpack.c.h.b16 %v1289
        %v2802 = vunpack.c.l.b16 %v1290
        %v2803 = vunpack.c.h.b16 %v1290
        %v2804 = vunpack.c.l.b16 %v1291
        %v2805 = vunpack.c.h.b16 %v1291
        %v2806 = vunpack.c.l.b16 %v1292
        %v2807 = vunpack.c.h.b16 %v1292
        %v2808 = vunpack.c.l.b16 %v1293
        %v2809 = vunpack.c.h.b16 %v1293
        %v2810 = vpack.c.b16 %v2748, %v2746
        %v2811 = vpack.c.b16 %v2749, %v2747
        %v2812 = vpack.c.b16 %v2752, %v2750
        %v2813 = vpack.c.b16 %v2753, %v2751
        %v2814 = vpack.c.b16 %v2756, %v2754
        %v2815 = vpack.c.b16 %v2757, %v2755
        %v2816 = vpack.c.b16 %v2760, %v2758
        %v2817 = vpack.c.b16 %v2761, %v2759
        %v2818 = vpack.c.b16 %v2764, %v2762
        %v2819 = vpack.c.b16 %v2765, %v2763
        %v2820 = vpack.c.b16 %v2768, %v2766
        %v2821 = vpack.c.b16 %v2769, %v2767
        %v2822 = vpack.c.b16 %v2772, %v2770
        %v2823 = vpack.c.b16 %v2773, %v2771
        %v2824 = vpack.c.b16 %v2776, %v2774
        %v2825 = vpack.c.b16 %v2777, %v2775
        %v2826 = vpack.c.b16 %v2780, %v2778
        %v2827 = vpack.c.b16 %v2781, %v2779
        %v2828 = vpack.c.b16 %v2784, %v2782
        %v2829 = vpack.c.b16 %v2785, %v2783
        %v2830 = vpack.c.b16 %v2788, %v2786
        %v2831 = vpack.c.b16 %v2789, %v2787
        %v2832 = vpack.c.b16 %v2792, %v2790
        %v2833 = vpack.c.b16 %v2793, %v2791
        %v2834 = vpack.c.b16 %v2796, %v2794
        %v2835 = vpack.c.b16 %v2797, %v2795
        %v2836 = vpack.c.b16 %v2800, %v2798
        %v2837 = vpack.c.b16 %v2801, %v2799
        %v2838 = vpack.c.b16 %v2804, %v2802
        %v2839 = vpack.c.b16 %v2805, %v2803
        %v2840 = vpack.c.b16 %v2808, %v2806
        %v2841 = vpack.c.b16 %v2809, %v2807
        %2874 = vmatprep.subr.bf16.mxu0 %v2811
        %2875 = vmatpush1.bf16.msra.mxu0 %v2810
        %2876 = vmatprep.subr.bf16.mxu0 %v2813
        %2877 = vmatpush1.bf16.msra.mxu0 %v2812
        %2878 = vmatprep.subr.bf16.mxu0 %v2815
        %2879 = vmatpush1.bf16.msra.mxu0 %v2814
        %2880 = vmatprep.subr.bf16.mxu0 %v2817
        %2881 = vmatpush1.bf16.msra.mxu0 %v2816
        %2882 = vmatprep.subr.bf16.mxu0 %v2819
        %2883 = vmatpush1.bf16.msra.mxu0 %v2818
        %2884 = vmatprep.subr.bf16.mxu0 %v2821
        %2885 = vmatpush1.bf16.msra.mxu0 %v2820
        %2886 = vmatprep.subr.bf16.mxu0 %v2823
        %2887 = vmatpush1.bf16.msra.mxu0 %v2822
        %2888 = vmatprep.subr.bf16.mxu0 %v2825
        %2889 = vmatpush1.bf16.msra.mxu0 %v2824
        %2890 = vmatprep.subr.bf16.mxu0 %v2827
        %2891 = vmatpush1.bf16.msra.mxu0 %v2826
        %2892 = vmatprep.subr.bf16.mxu0 %v2829
        %2893 = vmatpush1.bf16.msra.mxu0 %v2828
        %2894 = vmatprep.subr.bf16.mxu0 %v2831
        %2895 = vmatpush1.bf16.msra.mxu0 %v2830
        %2896 = vmatprep.subr.bf16.mxu0 %v2833
        %2897 = vmatpush1.bf16.msra.mxu0 %v2832
        %2898 = vmatprep.subr.bf16.mxu0 %v2835
        %2899 = vmatpush1.bf16.msra.mxu0 %v2834
        %2900 = vmatprep.subr.bf16.mxu0 %v2837
        %2901 = vmatpush1.bf16.msra.mxu0 %v2836
        %2902 = vmatprep.subr.bf16.mxu0 %v2839
        %2903 = vmatpush1.bf16.msra.mxu0 %v2838
        %2904 = vmatprep.subr.bf16.mxu0 %v2841
        %2905 = vmatpush1.bf16.msra.mxu0 %v2840
        %2906 = vmatprep.mubr.bf16.mxu0 %v2683
        %2907 = vmatmul.mubr.bf16.gmra.mrb[0].mxu0 %v2682
        %v2908 = vpop.f32.mrb[0].mxu0
        %v2909 = vadd.f32 0.0, %v2908
        %v2910 = vpop.f32.mrb[0].mxu0
        %v2911 = vadd.f32 0.0, %v2910
        %v2912 = vpop.f32.mrb[0].mxu0
        %v2913 = vadd.f32 0.0, %v2912
        %v2914 = vpop.f32.mrb[0].mxu0
        %v2915 = vadd.f32 0.0, %v2914
        %2916 = vmatprep.mubr.bf16.mxu0 %v2685
        %2917 = vmatmul.mubr.bf16.gmra.mrb[0].mxu0 %v2684
        %v2918 = vpop.f32.mrb[0].mxu0
        %v2919 = vadd.f32 0.0, %v2918
        %v2920 = vpop.f32.mrb[0].mxu0
        %v2921 = vadd.f32 0.0, %v2920
        %v2922 = vpop.f32.mrb[0].mxu0
        %v2923 = vadd.f32 0.0, %v2922
        %v2924 = vpop.f32.mrb[0].mxu0
        %v2925 = vadd.f32 0.0, %v2924
        %2926 = vmatprep.mubr.bf16.mxu0 %v2687
        %2927 = vmatmul.mubr.bf16.gmra.mrb[0].mxu0 %v2686
        %v2928 = vpop.f32.mrb[0].mxu0
        %v2929 = vadd.f32 0.0, %v2928
        %v2930 = vpop.f32.mrb[0].mxu0
        %v2931 = vadd.f32 0.0, %v2930
        %v2932 = vpop.f32.mrb[0].mxu0
        %v2933 = vadd.f32 0.0, %v2932
        %v2934 = vpop.f32.mrb[0].mxu0
        %v2935 = vadd.f32 0.0, %v2934
        %2936 = vmatprep.mubr.bf16.mxu0 %v2689
        %2937 = vmatmul.mubr.bf16.gmra.mrb[0].mxu0 %v2688
        %v2938 = vpop.f32.mrb[0].mxu0
        %v2939 = vadd.f32 0.0, %v2938
        %v2940 = vpop.f32.mrb[0].mxu0
        %v2941 = vadd.f32 0.0, %v2940
        %v2942 = vpop.f32.mrb[0].mxu0
        %v2943 = vadd.f32 0.0, %v2942
        %v2944 = vpop.f32.mrb[0].mxu0
        %v2945 = vadd.f32 0.0, %v2944
        %2946 = vmatprep.mubr.bf16.mxu0 %v2691
        %2947 = vmatmul.mubr.bf16.gmra.mrb[0].mxu0 %v2690
        %v2948 = vpop.f32.mrb[0].mxu0
        %v2949 = vadd.f32 0.0, %v2948
        %v2950 = vpop.f32.mrb[0].mxu0
        %v2951 = vadd.f32 0.0, %v2950
        %v2952 = vpop.f32.mrb[0].mxu0
        %v2953 = vadd.f32 0.0, %v2952
        %v2954 = vpop.f32.mrb[0].mxu0
        %v2955 = vadd.f32 0.0, %v2954
        %2956 = vmatprep.mubr.bf16.mxu0 %v2693
        %2957 = vmatmul.mubr.bf16.gmra.mrb[0].mxu0 %v2692
        %v2958 = vpop.f32.mrb[0].mxu0
        %v2959 = vadd.f32 0.0, %v2958
        %v2960 = vpop.f32.mrb[0].mxu0
        %v2961 = vadd.f32 0.0, %v2960
        %v2962 = vpop.f32.mrb[0].mxu0
        %v2963 = vadd.f32 0.0, %v2962
        %v2964 = vpop.f32.mrb[0].mxu0
        %v2965 = vadd.f32 0.0, %v2964
        %2966 = vmatprep.mubr.bf16.mxu0 %v2695
        %2967 = vmatmul.mubr.bf16.gmra.mrb[0].mxu0 %v2694
        %v2968 = vpop.f32.mrb[0].mxu0
        %v2969 = vadd.f32 0.0, %v2968
        %v2970 = vpop.f32.mrb[0].mxu0
        %v2971 = vadd.f32 0.0, %v2970
        %v2972 = vpop.f32.mrb[0].mxu0
        %v2973 = vadd.f32 0.0, %v2972
        %v2974 = vpop.f32.mrb[0].mxu0
        %v2975 = vadd.f32 0.0, %v2974
        %2976 = vmatprep.mubr.bf16.mxu0 %v2697
        %2977 = vmatmul.mubr.bf16.gmra.mrb[0].mxu0 %v2696
        %v2978 = vpop.f32.mrb[0].mxu0
        %v2979 = vadd.f32 0.0, %v2978
        %v2980 = vpop.f32.mrb[0].mxu0
        %v2981 = vadd.f32 0.0, %v2980
        %v2982 = vpop.f32.mrb[0].mxu0
        %v2983 = vadd.f32 0.0, %v2982
        %v2984 = vpop.f32.mrb[0].mxu0
        %v2985 = vadd.f32 0.0, %v2984
        %2986 = vmatprep.mubr.bf16.mxu0 %v2699
        %2987 = vmatmul.mubr.bf16.gmra.mrb[0].mxu0 %v2698
        %v2988 = vpop.f32.mrb[0].mxu0
        %v2989 = vadd.f32 0.0, %v2988
        %v2990 = vpop.f32.mrb[0].mxu0
        %v2991 = vadd.f32 0.0, %v2990
        %v2992 = vpop.f32.mrb[0].mxu0
        %v2993 = vadd.f32 0.0, %v2992
        %v2994 = vpop.f32.mrb[0].mxu0
        %v2995 = vadd.f32 0.0, %v2994
        %2996 = vmatprep.mubr.bf16.mxu0 %v2701
        %2997 = vmatmul.mubr.bf16.gmra.mrb[0].mxu0 %v2700
        %v2998 = vpop.f32.mrb[0].mxu0
        %v2999 = vadd.f32 0.0, %v2998
        %v3000 = vpop.f32.mrb[0].mxu0
        %v3001 = vadd.f32 0.0, %v3000
        %v3002 = vpop.f32.mrb[0].mxu0
        %v3003 = vadd.f32 0.0, %v3002
        %v3004 = vpop.f32.mrb[0].mxu0
        %v3005 = vadd.f32 0.0, %v3004
        %3006 = vmatprep.mubr.bf16.mxu0 %v2703
        %3007 = vmatmul.mubr.bf16.gmra.mrb[0].mxu0 %v2702
        %v3008 = vpop.f32.mrb[0].mxu0
        %v3009 = vadd.f32 0.0, %v3008
        %v3010 = vpop.f32.mrb[0].mxu0
        %v3011 = vadd.f32 0.0, %v3010
        %v3012 = vpop.f32.mrb[0].mxu0
        %v3013 = vadd.f32 0.0, %v3012
        %v3014 = vpop.f32.mrb[0].mxu0
        %v3015 = vadd.f32 0.0, %v3014
        %3016 = vmatprep.mubr.bf16.mxu0 %v2705
        %3017 = vmatmul.mubr.bf16.gmra.mrb[0].mxu0 %v2704
        %v3018 = vpop.f32.mrb[0].mxu0
        %v3019 = vadd.f32 0.0, %v3018
        %v3020 = vpop.f32.mrb[0].mxu0
        %v3021 = vadd.f32 0.0, %v3020
        %v3022 = vpop.f32.mrb[0].mxu0
        %v3023 = vadd.f32 0.0, %v3022
        %v3024 = vpop.f32.mrb[0].mxu0
        %v3025 = vadd.f32 0.0, %v3024
        %3026 = vmatprep.mubr.bf16.mxu0 %v2707
        %3027 = vmatmul.mubr.bf16.gmra.mrb[0].mxu0 %v2706
        %v3028 = vpop.f32.mrb[0].mxu0
        %v3029 = vadd.f32 0.0, %v3028
        %v3030 = vpop.f32.mrb[0].mxu0
        %v3031 = vadd.f32 0.0, %v3030
        %v3032 = vpop.f32.mrb[0].mxu0
        %v3033 = vadd.f32 0.0, %v3032
        %v3034 = vpop.f32.mrb[0].mxu0
        %v3035 = vadd.f32 0.0, %v3034
        %3036 = vmatprep.mubr.bf16.mxu0 %v2709
        %3037 = vmatmul.mubr.bf16.gmra.mrb[0].mxu0 %v2708
        %v3038 = vpop.f32.mrb[0].mxu0
        %v3039 = vadd.f32 0.0, %v3038
        %v3040 = vpop.f32.mrb[0].mxu0
        %v3041 = vadd.f32 0.0, %v3040
        %v3042 = vpop.f32.mrb[0].mxu0
        %v3043 = vadd.f32 0.0, %v3042
        %v3044 = vpop.f32.mrb[0].mxu0
        %v3045 = vadd.f32 0.0, %v3044
        %3046 = vmatprep.mubr.bf16.mxu0 %v2711
        %3047 = vmatmul.mubr.bf16.gmra.mrb[0].mxu0 %v2710
        %v3048 = vpop.f32.mrb[0].mxu0
        %v3049 = vadd.f32 0.0, %v3048
        %v3050 = vpop.f32.mrb[0].mxu0
        %v3051 = vadd.f32 0.0, %v3050
        %v3052 = vpop.f32.mrb[0].mxu0
        %v3053 = vadd.f32 0.0, %v3052
        %v3054 = vpop.f32.mrb[0].mxu0
        %v3055 = vadd.f32 0.0, %v3054
        %3056 = vmatprep.mubr.bf16.mxu0 %v2713
        %3057 = vmatmul.mubr.bf16.gmra.mrb[0].mxu0 %v2712
        %v3058 = vpop.f32.mrb[0].mxu0
        %v3059 = vadd.f32 0.0, %v3058
        %v3060 = vpop.f32.mrb[0].mxu0
        %v3061 = vadd.f32 0.0, %v3060
        %v3062 = vpop.f32.mrb[0].mxu0
        %v3063 = vadd.f32 0.0, %v3062
        %v3064 = vpop.f32.mrb[0].mxu0
        %v3065 = vadd.f32 0.0, %v3064
        %3066 = vdwg.mxu0
        %3067 = vmatprep.subr.bf16.mxu0 %v2811
        %3068 = vmatpush1.bf16.msra.mxu0 %v2810
        %3069 = vmatprep.subr.bf16.mxu0 %v2813
        %3070 = vmatpush1.bf16.msra.mxu0 %v2812
        %3071 = vmatprep.subr.bf16.mxu0 %v2815
        %3072 = vmatpush1.bf16.msra.mxu0 %v2814
        %3073 = vmatprep.subr.bf16.mxu0 %v2817
        %3074 = vmatpush1.bf16.msra.mxu0 %v2816
        %3075 = vmatprep.subr.bf16.mxu0 %v2819
        %3076 = vmatpush1.bf16.msra.mxu0 %v2818
        %3077 = vmatprep.subr.bf16.mxu0 %v2821
        %3078 = vmatpush1.bf16.msra.mxu0 %v2820
        %3079 = vmatprep.subr.bf16.mxu0 %v2823
        %3080 = vmatpush1.bf16.msra.mxu0 %v2822
        %3081 = vmatprep.subr.bf16.mxu0 %v2825
        %3082 = vmatpush1.bf16.msra.mxu0 %v2824
        %3083 = vmatprep.subr.bf16.mxu0 %v2827
        %3084 = vmatpush1.bf16.msra.mxu0 %v2826
        %3085 = vmatprep.subr.bf16.mxu0 %v2829
        %3086 = vmatpush1.bf16.msra.mxu0 %v2828
        %3087 = vmatprep.subr.bf16.mxu0 %v2831
        %3088 = vmatpush1.bf16.msra.mxu0 %v2830
        %3089 = vmatprep.subr.bf16.mxu0 %v2833
        %3090 = vmatpush1.bf16.msra.mxu0 %v2832
        %3091 = vmatprep.subr.bf16.mxu0 %v2835
        %3092 = vmatpush1.bf16.msra.mxu0 %v2834
        %3093 = vmatprep.subr.bf16.mxu0 %v2837
        %3094 = vmatpush1.bf16.msra.mxu0 %v2836
        %3095 = vmatprep.subr.bf16.mxu0 %v2839
        %3096 = vmatpush1.bf16.msra.mxu0 %v2838
        %3097 = vmatprep.subr.bf16.mxu0 %v2841
        %3098 = vmatpush1.bf16.msra.mxu0 %v2840
        %3099 = vmatprep.mubr.bf16.mxu0 %v2523
        %3100 = vmatmul.mubr.bf16.gmra.mrb[0].mxu0 %v2522
        %v3101 = vpop.f32.mrb[0].mxu0
        %v3102 = vadd.f32 %v2909, %v3101
        %v3103 = vpop.f32.mrb[0].mxu0
        %v3104 = vadd.f32 %v2911, %v3103
        %v3105 = vpop.f32.mrb[0].mxu0
        %v3106 = vadd.f32 %v2913, %v3105
        %v3107 = vpop.f32.mrb[0].mxu0
        %v3108 = vadd.f32 %v2915, %v3107
        %3109 = vmatprep.mubr.bf16.mxu0 %v2525
        %3110 = vmatmul.mubr.bf16.gmra.mrb[0].mxu0 %v2524
        %v3111 = vpop.f32.mrb[0].mxu0
        %v3112 = vadd.f32 %v2919, %v3111
        %v3113 = vpop.f32.mrb[0].mxu0
        %v3114 = vadd.f32 %v2921, %v3113
        %v3115 = vpop.f32.mrb[0].mxu0
        %v3116 = vadd.f32 %v2923, %v3115
        %v3117 = vpop.f32.mrb[0].mxu0
        %v3118 = vadd.f32 %v2925, %v3117
        %3119 = vmatprep.mubr.bf16.mxu0 %v2527
        %3120 = vmatmul.mubr.bf16.gmra.mrb[0].mxu0 %v2526
        %v3121 = vpop.f32.mrb[0].mxu0
        %v3122 = vadd.f32 %v2929, %v3121
        %v3123 = vpop.f32.mrb[0].mxu0
        %v3124 = vadd.f32 %v2931, %v3123
        %v3125 = vpop.f32.mrb[0].mxu0
        %v3126 = vadd.f32 %v2933, %v3125
        %v3127 = vpop.f32.mrb[0].mxu0
        %v3128 = vadd.f32 %v2935, %v3127
        %3129 = vmatprep.mubr.bf16.mxu0 %v2529
        %3130 = vmatmul.mubr.bf16.gmra.mrb[0].mxu0 %v2528
        %v3131 = vpop.f32.mrb[0].mxu0
        %v3132 = vadd.f32 %v2939, %v3131
        %v3133 = vpop.f32.mrb[0].mxu0
        %v3134 = vadd.f32 %v2941, %v3133
        %v3135 = vpop.f32.mrb[0].mxu0
        %v3136 = vadd.f32 %v2943, %v3135
        %v3137 = vpop.f32.mrb[0].mxu0
        %v3138 = vadd.f32 %v2945, %v3137
        %3139 = vmatprep.mubr.bf16.mxu0 %v2531
        %3140 = vmatmul.mubr.bf16.gmra.mrb[0].mxu0 %v2530
        %v3141 = vpop.f32.mrb[0].mxu0
        %v3142 = vadd.f32 %v2949, %v3141
        %v3143 = vpop.f32.mrb[0].mxu0
        %v3144 = vadd.f32 %v2951, %v3143
        %v3145 = vpop.f32.mrb[0].mxu0
        %v3146 = vadd.f32 %v2953, %v3145
        %v3147 = vpop.f32.mrb[0].mxu0
        %v3148 = vadd.f32 %v2955, %v3147
        %3149 = vmatprep.mubr.bf16.mxu0 %v2533
        %3150 = vmatmul.mubr.bf16.gmra.mrb[0].mxu0 %v2532
        %v3151 = vpop.f32.mrb[0].mxu0
        %v3152 = vadd.f32 %v2959, %v3151
        %v3153 = vpop.f32.mrb[0].mxu0
        %v3154 = vadd.f32 %v2961, %v3153
        %v3155 = vpop.f32.mrb[0].mxu0
        %v3156 = vadd.f32 %v2963, %v3155
        %v3157 = vpop.f32.mrb[0].mxu0
        %v3158 = vadd.f32 %v2965, %v3157
        %3159 = vmatprep.mubr.bf16.mxu0 %v2535
        %3160 = vmatmul.mubr.bf16.gmra.mrb[0].mxu0 %v2534
        %v3161 = vpop.f32.mrb[0].mxu0
        %v3162 = vadd.f32 %v2969, %v3161
        %v3163 = vpop.f32.mrb[0].mxu0
        %v3164 = vadd.f32 %v2971, %v3163
        %v3165 = vpop.f32.mrb[0].mxu0
        %v3166 = vadd.f32 %v2973, %v3165
        %v3167 = vpop.f32.mrb[0].mxu0
        %v3168 = vadd.f32 %v2975, %v3167
        %3169 = vmatprep.mubr.bf16.mxu0 %v2537
        %3170 = vmatmul.mubr.bf16.gmra.mrb[0].mxu0 %v2536
        %v3171 = vpop.f32.mrb[0].mxu0
        %v3172 = vadd.f32 %v2979, %v3171
        %v3173 = vpop.f32.mrb[0].mxu0
        %v3174 = vadd.f32 %v2981, %v3173
        %v3175 = vpop.f32.mrb[0].mxu0
        %v3176 = vadd.f32 %v2983, %v3175
        %v3177 = vpop.f32.mrb[0].mxu0
        %v3178 = vadd.f32 %v2985, %v3177
        %3179 = vmatprep.mubr.bf16.mxu0 %v2539
        %3180 = vmatmul.mubr.bf16.gmra.mrb[0].mxu0 %v2538
        %v3181 = vpop.f32.mrb[0].mxu0
        %v3182 = vadd.f32 %v2989, %v3181
        %v3183 = vpop.f32.mrb[0].mxu0
        %v3184 = vadd.f32 %v2991, %v3183
        %v3185 = vpop.f32.mrb[0].mxu0
        %v3186 = vadd.f32 %v2993, %v3185
        %v3187 = vpop.f32.mrb[0].mxu0
        %v3188 = vadd.f32 %v2995, %v3187
        %3189 = vmatprep.mubr.bf16.mxu0 %v2541
        %3190 = vmatmul.mubr.bf16.gmra.mrb[0].mxu0 %v2540
        %v3191 = vpop.f32.mrb[0].mxu0
        %v3192 = vadd.f32 %v2999, %v3191
        %v3193 = vpop.f32.mrb[0].mxu0
        %v3194 = vadd.f32 %v3001, %v3193
        %v3195 = vpop.f32.mrb[0].mxu0
        %v3196 = vadd.f32 %v3003, %v3195
        %v3197 = vpop.f32.mrb[0].mxu0
        %v3198 = vadd.f32 %v3005, %v3197
        %3199 = vmatprep.mubr.bf16.mxu0 %v2543
        %3200 = vmatmul.mubr.bf16.gmra.mrb[0].mxu0 %v2542
        %v3201 = vpop.f32.mrb[0].mxu0
        %v3202 = vadd.f32 %v3009, %v3201
        %v3203 = vpop.f32.mrb[0].mxu0
        %v3204 = vadd.f32 %v3011, %v3203
        %v3205 = vpop.f32.mrb[0].mxu0
        %v3206 = vadd.f32 %v3013, %v3205
        %v3207 = vpop.f32.mrb[0].mxu0
        %v3208 = vadd.f32 %v3015, %v3207
        %3209 = vmatprep.mubr.bf16.mxu0 %v2545
        %3210 = vmatmul.mubr.bf16.gmra.mrb[0].mxu0 %v2544
        %v3211 = vpop.f32.mrb[0].mxu0
        %v3212 = vadd.f32 %v3019, %v3211
        %v3213 = vpop.f32.mrb[0].mxu0
        %v3214 = vadd.f32 %v3021, %v3213
        %v3215 = vpop.f32.mrb[0].mxu0
        %v3216 = vadd.f32 %v3023, %v3215
        %v3217 = vpop.f32.mrb[0].mxu0
        %v3218 = vadd.f32 %v3025, %v3217
        %3219 = vmatprep.mubr.bf16.mxu0 %v2547
        %3220 = vmatmul.mubr.bf16.gmra.mrb[0].mxu0 %v2546
        %v3221 = vpop.f32.mrb[0].mxu0
        %v3222 = vadd.f32 %v3029, %v3221
        %v3223 = vpop.f32.mrb[0].mxu0
        %v3224 = vadd.f32 %v3031, %v3223
        %v3225 = vpop.f32.mrb[0].mxu0
        %v3226 = vadd.f32 %v3033, %v3225
        %v3227 = vpop.f32.mrb[0].mxu0
        %v3228 = vadd.f32 %v3035, %v3227
        %3229 = vmatprep.mubr.bf16.mxu0 %v2549
        %3230 = vmatmul.mubr.bf16.gmra.mrb[0].mxu0 %v2548
        %v3231 = vpop.f32.mrb[0].mxu0
        %v3232 = vadd.f32 %v3039, %v3231
        %v3233 = vpop.f32.mrb[0].mxu0
        %v3234 = vadd.f32 %v3041, %v3233
        %v3235 = vpop.f32.mrb[0].mxu0
        %v3236 = vadd.f32 %v3043, %v3235
        %v3237 = vpop.f32.mrb[0].mxu0
        %v3238 = vadd.f32 %v3045, %v3237
        %3239 = vmatprep.mubr.bf16.mxu0 %v2551
        %3240 = vmatmul.mubr.bf16.gmra.mrb[0].mxu0 %v2550
        %v3241 = vpop.f32.mrb[0].mxu0
        %v3242 = vadd.f32 %v3049, %v3241
        %v3243 = vpop.f32.mrb[0].mxu0
        %v3244 = vadd.f32 %v3051, %v3243
        %v3245 = vpop.f32.mrb[0].mxu0
        %v3246 = vadd.f32 %v3053, %v3245
        %v3247 = vpop.f32.mrb[0].mxu0
        %v3248 = vadd.f32 %v3055, %v3247
        %3249 = vmatprep.mubr.bf16.mxu0 %v2553
        %3250 = vmatmul.mubr.bf16.gmra.mrb[0].mxu0 %v2552
        %v3251 = vpop.f32.mrb[0].mxu0
        %v3252 = vadd.f32 %v3059, %v3251
        %v3253 = vpop.f32.mrb[0].mxu0
        %v3254 = vadd.f32 %v3061, %v3253
        %v3255 = vpop.f32.mrb[0].mxu0
        %v3256 = vadd.f32 %v3063, %v3255
        %v3257 = vpop.f32.mrb[0].mxu0
        %v3258 = vadd.f32 %v3065, %v3257
        %3259 = vdwg.mxu0
        %v3260 = vpack.c.bf16 %v2332, %v2330
        %v3261 = vpack.c.bf16 %v2333, %v2331
        %v3262 = vpack.c.bf16 %v2336, %v2334
        %v3263 = vpack.c.bf16 %v2337, %v2335
        %v3264 = vpack.c.bf16 %v2340, %v2338
        %v3265 = vpack.c.bf16 %v2341, %v2339
        %v3266 = vpack.c.bf16 %v2344, %v2342
        %v3267 = vpack.c.bf16 %v2345, %v2343
        %v3268 = vpack.c.bf16 %v2348, %v2346
        %v3269 = vpack.c.bf16 %v2349, %v2347
        %v3270 = vpack.c.bf16 %v2352, %v2350
        %v3271 = vpack.c.bf16 %v2353, %v2351
        %v3272 = vpack.c.bf16 %v2356, %v2354
        %v3273 = vpack.c.bf16 %v2357, %v2355
        %v3274 = vpack.c.bf16 %v2360, %v2358
        %v3275 = vpack.c.bf16 %v2361, %v2359
        %v3276 = vpack.c.bf16 %v2364, %v2362
        %v3277 = vpack.c.bf16 %v2365, %v2363
        %v3278 = vpack.c.bf16 %v2368, %v2366
        %v3279 = vpack.c.bf16 %v2369, %v2367
        %v3280 = vpack.c.bf16 %v2372, %v2370
        %v3281 = vpack.c.bf16 %v2373, %v2371
        %v3282 = vpack.c.bf16 %v2376, %v2374
        %v3283 = vpack.c.bf16 %v2377, %v2375
        %v3284 = vpack.c.bf16 %v2380, %v2378
        %v3285 = vpack.c.bf16 %v2381, %v2379
        %v3286 = vpack.c.bf16 %v2384, %v2382
        %v3287 = vpack.c.bf16 %v2385, %v2383
        %v3288 = vpack.c.bf16 %v2388, %v2386
        %v3289 = vpack.c.bf16 %v2389, %v2387
        %v3290 = vpack.c.bf16 %v2392, %v2390
        %v3291 = vpack.c.bf16 %v2393, %v2391
        %v3292 = vunpack.c.l.bf16 %v3260
        %v3293 = vunpack.c.l.bf16 %v3261
        %v3294 = vunpack.c.h.bf16 %v3260
        %v3295 = vunpack.c.h.bf16 %v3261
        %v3296 = vunpack.c.l.bf16 %v3262
        %v3297 = vunpack.c.l.bf16 %v3263
        %v3298 = vunpack.c.h.bf16 %v3262
        %v3299 = vunpack.c.h.bf16 %v3263
        %v3300 = vunpack.c.l.bf16 %v3264
        %v3301 = vunpack.c.l.bf16 %v3265
        %v3302 = vunpack.c.h.bf16 %v3264
        %v3303 = vunpack.c.h.bf16 %v3265
        %v3304 = vunpack.c.l.bf16 %v3266
        %v3305 = vunpack.c.l.bf16 %v3267
        %v3306 = vunpack.c.h.bf16 %v3266
        %v3307 = vunpack.c.h.bf16 %v3267
        %v3308 = vunpack.c.l.bf16 %v3268
        %v3309 = vunpack.c.l.bf16 %v3269
        %v3310 = vunpack.c.h.bf16 %v3268
        %v3311 = vunpack.c.h.bf16 %v3269
        %v3312 = vunpack.c.l.bf16 %v3270
        %v3313 = vunpack.c.l.bf16 %v3271
        %v3314 = vunpack.c.h.bf16 %v3270
        %v3315 = vunpack.c.h.bf16 %v3271
        %v3316 = vunpack.c.l.bf16 %v3272
        %v3317 = vunpack.c.l.bf16 %v3273
        %v3318 = vunpack.c.h.bf16 %v3272
        %v3319 = vunpack.c.h.bf16 %v3273
        %v3320 = vunpack.c.l.bf16 %v3274
        %v3321 = vunpack.c.l.bf16 %v3275
        %v3322 = vunpack.c.h.bf16 %v3274
        %v3323 = vunpack.c.h.bf16 %v3275
        %v3324 = vunpack.c.l.bf16 %v3276
        %v3325 = vunpack.c.l.bf16 %v3277
        %v3326 = vunpack.c.h.bf16 %v3276
        %v3327 = vunpack.c.h.bf16 %v3277
        %v3328 = vunpack.c.l.bf16 %v3278
        %v3329 = vunpack.c.l.bf16 %v3279
        %v3330 = vunpack.c.h.bf16 %v3278
        %v3331 = vunpack.c.h.bf16 %v3279
        %v3332 = vunpack.c.l.bf16 %v3280
        %v3333 = vunpack.c.l.bf16 %v3281
        %v3334 = vunpack.c.h.bf16 %v3280
        %v3335 = vunpack.c.h.bf16 %v3281
        %v3336 = vunpack.c.l.bf16 %v3282
        %v3337 = vunpack.c.l.bf16 %v3283
        %v3338 = vunpack.c.h.bf16 %v3282
        %v3339 = vunpack.c.h.bf16 %v3283
        %v3340 = vunpack.c.l.bf16 %v3284
        %v3341 = vunpack.c.l.bf16 %v3285
        %v3342 = vunpack.c.h.bf16 %v3284
        %v3343 = vunpack.c.h.bf16 %v3285
        %v3344 = vunpack.c.l.bf16 %v3286
        %v3345 = vunpack.c.l.bf16 %v3287
        %v3346 = vunpack.c.h.bf16 %v3286
        %v3347 = vunpack.c.h.bf16 %v3287
        %v3348 = vunpack.c.l.bf16 %v3288
        %v3349 = vunpack.c.l.bf16 %v3289
        %v3350 = vunpack.c.h.bf16 %v3288
        %v3351 = vunpack.c.h.bf16 %v3289
        %v3352 = vunpack.c.l.bf16 %v3290
        %v3353 = vunpack.c.l.bf16 %v3291
        %v3354 = vunpack.c.h.bf16 %v3290
        %v3355 = vunpack.c.h.bf16 %v3291
        %v3356 = vsub.f32 %v2330, %v3292
        %v3357 = vsub.f32 %v2331, %v3293
        %v3358 = vsub.f32 %v2332, %v3294
        %v3359 = vsub.f32 %v2333, %v3295
        %v3360 = vsub.f32 %v2334, %v3296
        %v3361 = vsub.f32 %v2335, %v3297
        %v3362 = vsub.f32 %v2336, %v3298
        %v3363 = vsub.f32 %v2337, %v3299
        %v3364 = vsub.f32 %v2338, %v3300
        %v3365 = vsub.f32 %v2339, %v3301
        %v3366 = vsub.f32 %v2340, %v3302
        %v3367 = vsub.f32 %v2341, %v3303
        %v3368 = vsub.f32 %v2342, %v3304
        %v3369 = vsub.f32 %v2343, %v3305
        %v3370 = vsub.f32 %v2344, %v3306
        %v3371 = vsub.f32 %v2345, %v3307
        %v3372 = vsub.f32 %v2346, %v3308
        %v3373 = vsub.f32 %v2347, %v3309
        %v3374 = vsub.f32 %v2348, %v3310
        %v3375 = vsub.f32 %v2349, %v3311
        %v3376 = vsub.f32 %v2350, %v3312
        %v3377 = vsub.f32 %v2351, %v3313
        %v3378 = vsub.f32 %v2352, %v3314
        %v3379 = vsub.f32 %v2353, %v3315
        %v3380 = vsub.f32 %v2354, %v3316
        %v3381 = vsub.f32 %v2355, %v3317
        %v3382 = vsub.f32 %v2356, %v3318
        %v3383 = vsub.f32 %v2357, %v3319
        %v3384 = vsub.f32 %v2358, %v3320
        %v3385 = vsub.f32 %v2359, %v3321
        %v3386 = vsub.f32 %v2360, %v3322
        %v3387 = vsub.f32 %v2361, %v3323
        %v3388 = vsub.f32 %v2362, %v3324
        %v3389 = vsub.f32 %v2363, %v3325
        %v3390 = vsub.f32 %v2364, %v3326
        %v3391 = vsub.f32 %v2365, %v3327
        %v3392 = vsub.f32 %v2366, %v3328
        %v3393 = vsub.f32 %v2367, %v3329
        %v3394 = vsub.f32 %v2368, %v3330
        %v3395 = vsub.f32 %v2369, %v3331
        %v3396 = vsub.f32 %v2370, %v3332
        %v3397 = vsub.f32 %v2371, %v3333
        %v3398 = vsub.f32 %v2372, %v3334
        %v3399 = vsub.f32 %v2373, %v3335
        %v3400 = vsub.f32 %v2374, %v3336
        %v3401 = vsub.f32 %v2375, %v3337
        %v3402 = vsub.f32 %v2376, %v3338
        %v3403 = vsub.f32 %v2377, %v3339
        %v3404 = vsub.f32 %v2378, %v3340
        %v3405 = vsub.f32 %v2379, %v3341
        %v3406 = vsub.f32 %v2380, %v3342
        %v3407 = vsub.f32 %v2381, %v3343
        %v3408 = vsub.f32 %v2382, %v3344
        %v3409 = vsub.f32 %v2383, %v3345
        %v3410 = vsub.f32 %v2384, %v3346
        %v3411 = vsub.f32 %v2385, %v3347
        %v3412 = vsub.f32 %v2386, %v3348
        %v3413 = vsub.f32 %v2387, %v3349
        %v3414 = vsub.f32 %v2388, %v3350
        %v3415 = vsub.f32 %v2389, %v3351
        %v3416 = vsub.f32 %v2390, %v3352
        %v3417 = vsub.f32 %v2391, %v3353
        %v3418 = vsub.f32 %v2392, %v3354
        %v3419 = vsub.f32 %v2393, %v3355
        %v3420 = vpack.c.bf16 %v3358, %v3356
        %v3421 = vpack.c.bf16 %v3359, %v3357
        %v3422 = vpack.c.bf16 %v3362, %v3360
        %v3423 = vpack.c.bf16 %v3363, %v3361
        %v3424 = vpack.c.bf16 %v3366, %v3364
        %v3425 = vpack.c.bf16 %v3367, %v3365
        %v3426 = vpack.c.bf16 %v3370, %v3368
        %v3427 = vpack.c.bf16 %v3371, %v3369
        %v3428 = vpack.c.bf16 %v3374, %v3372
        %v3429 = vpack.c.bf16 %v3375, %v3373
        %v3430 = vpack.c.bf16 %v3378, %v3376
        %v3431 = vpack.c.bf16 %v3379, %v3377
        %v3432 = vpack.c.bf16 %v3382, %v3380
        %v3433 = vpack.c.bf16 %v3383, %v3381
        %v3434 = vpack.c.bf16 %v3386, %v3384
        %v3435 = vpack.c.bf16 %v3387, %v3385
        %v3436 = vpack.c.bf16 %v3390, %v3388
        %v3437 = vpack.c.bf16 %v3391, %v3389
        %v3438 = vpack.c.bf16 %v3394, %v3392
        %v3439 = vpack.c.bf16 %v3395, %v3393
        %v3440 = vpack.c.bf16 %v3398, %v3396
        %v3441 = vpack.c.bf16 %v3399, %v3397
        %v3442 = vpack.c.bf16 %v3402, %v3400
        %v3443 = vpack.c.bf16 %v3403, %v3401
        %v3444 = vpack.c.bf16 %v3406, %v3404
        %v3445 = vpack.c.bf16 %v3407, %v3405
        %v3446 = vpack.c.bf16 %v3410, %v3408
        %v3447 = vpack.c.bf16 %v3411, %v3409
        %v3448 = vpack.c.bf16 %v3414, %v3412
        %v3449 = vpack.c.bf16 %v3415, %v3413
        %v3450 = vpack.c.bf16 %v3418, %v3416
        %v3451 = vpack.c.bf16 %v3419, %v3417
        %3452 = vmatprep.subr.bf16.mxu0 %v2811
        %3453 = vmatpush1.bf16.msra.mxu0 %v2810
        %3454 = vmatprep.subr.bf16.mxu0 %v2813
        %3455 = vmatpush1.bf16.msra.mxu0 %v2812
        %3456 = vmatprep.subr.bf16.mxu0 %v2815
        %3457 = vmatpush1.bf16.msra.mxu0 %v2814
        %3458 = vmatprep.subr.bf16.mxu0 %v2817
        %3459 = vmatpush1.bf16.msra.mxu0 %v2816
        %3460 = vmatprep.subr.bf16.mxu0 %v2819
        %3461 = vmatpush1.bf16.msra.mxu0 %v2818
        %3462 = vmatprep.subr.bf16.mxu0 %v2821
        %3463 = vmatpush1.bf16.msra.mxu0 %v2820
        %3464 = vmatprep.subr.bf16.mxu0 %v2823
        %3465 = vmatpush1.bf16.msra.mxu0 %v2822
        %3466 = vmatprep.subr.bf16.mxu0 %v2825
        %3467 = vmatpush1.bf16.msra.mxu0 %v2824
        %3468 = vmatprep.subr.bf16.mxu0 %v2827
        %3469 = vmatpush1.bf16.msra.mxu0 %v2826
        %3470 = vmatprep.subr.bf16.mxu0 %v2829
        %3471 = vmatpush1.bf16.msra.mxu0 %v2828
        %3472 = vmatprep.subr.bf16.mxu0 %v2831
        %3473 = vmatpush1.bf16.msra.mxu0 %v2830
        %3474 = vmatprep.subr.bf16.mxu0 %v2833
        %3475 = vmatpush1.bf16.msra.mxu0 %v2832
        %3476 = vmatprep.subr.bf16.mxu0 %v2835
        %3477 = vmatpush1.bf16.msra.mxu0 %v2834
        %3478 = vmatprep.subr.bf16.mxu0 %v2837
        %3479 = vmatpush1.bf16.msra.mxu0 %v2836
        %3480 = vmatprep.subr.bf16.mxu0 %v2839
        %3481 = vmatpush1.bf16.msra.mxu0 %v2838
        %3482 = vmatprep.subr.bf16.mxu0 %v2841
        %3483 = vmatpush1.bf16.msra.mxu0 %v2840
        %3484 = vmatprep.mubr.bf16.mxu0 %v3421
        %3485 = vmatmul.mubr.bf16.gmra.mrb[0].mxu0 %v3420
        %v3486 = vpop.f32.mrb[0].mxu0
        %v3487 = vadd.f32 0.0, %v3486
        %v3488 = vpop.f32.mrb[0].mxu0
        %v3489 = vadd.f32 0.0, %v3488
        %v3490 = vpop.f32.mrb[0].mxu0
        %v3491 = vadd.f32 0.0, %v3490
        %v3492 = vpop.f32.mrb[0].mxu0
        %v3493 = vadd.f32 0.0, %v3492
        %3494 = vmatprep.mubr.bf16.mxu0 %v3423
        %3495 = vmatmul.mubr.bf16.gmra.mrb[0].mxu0 %v3422
        %v3496 = vpop.f32.mrb[0].mxu0
        %v3497 = vadd.f32 0.0, %v3496
        %v3498 = vpop.f32.mrb[0].mxu0
        %v3499 = vadd.f32 0.0, %v3498
        %v3500 = vpop.f32.mrb[0].mxu0
        %v3501 = vadd.f32 0.0, %v3500
        %v3502 = vpop.f32.mrb[0].mxu0
        %v3503 = vadd.f32 0.0, %v3502
        %3504 = vmatprep.mubr.bf16.mxu0 %v3425
        %3505 = vmatmul.mubr.bf16.gmra.mrb[0].mxu0 %v3424
        %v3506 = vpop.f32.mrb[0].mxu0
        %v3507 = vadd.f32 0.0, %v3506
        %v3508 = vpop.f32.mrb[0].mxu0
        %v3509 = vadd.f32 0.0, %v3508
        %v3510 = vpop.f32.mrb[0].mxu0
        %v3511 = vadd.f32 0.0, %v3510
        %v3512 = vpop.f32.mrb[0].mxu0
        %v3513 = vadd.f32 0.0, %v3512
        %3514 = vmatprep.mubr.bf16.mxu0 %v3427
        %3515 = vmatmul.mubr.bf16.gmra.mrb[0].mxu0 %v3426
        %v3516 = vpop.f32.mrb[0].mxu0
        %v3517 = vadd.f32 0.0, %v3516
        %v3518 = vpop.f32.mrb[0].mxu0
        %v3519 = vadd.f32 0.0, %v3518
        %v3520 = vpop.f32.mrb[0].mxu0
        %v3521 = vadd.f32 0.0, %v3520
        %v3522 = vpop.f32.mrb[0].mxu0
        %v3523 = vadd.f32 0.0, %v3522
        %3524 = vmatprep.mubr.bf16.mxu0 %v3429
        %3525 = vmatmul.mubr.bf16.gmra.mrb[0].mxu0 %v3428
        %v3526 = vpop.f32.mrb[0].mxu0
        %v3527 = vadd.f32 0.0, %v3526
        %v3528 = vpop.f32.mrb[0].mxu0
        %v3529 = vadd.f32 0.0, %v3528
        %v3530 = vpop.f32.mrb[0].mxu0
        %v3531 = vadd.f32 0.0, %v3530
        %v3532 = vpop.f32.mrb[0].mxu0
        %v3533 = vadd.f32 0.0, %v3532
        %3534 = vmatprep.mubr.bf16.mxu0 %v3431
        %3535 = vmatmul.mubr.bf16.gmra.mrb[0].mxu0 %v3430
        %v3536 = vpop.f32.mrb[0].mxu0
        %v3537 = vadd.f32 0.0, %v3536
        %v3538 = vpop.f32.mrb[0].mxu0
        %v3539 = vadd.f32 0.0, %v3538
        %v3540 = vpop.f32.mrb[0].mxu0
        %v3541 = vadd.f32 0.0, %v3540
        %v3542 = vpop.f32.mrb[0].mxu0
        %v3543 = vadd.f32 0.0, %v3542
        %3544 = vmatprep.mubr.bf16.mxu0 %v3433
        %3545 = vmatmul.mubr.bf16.gmra.mrb[0].mxu0 %v3432
        %v3546 = vpop.f32.mrb[0].mxu0
        %v3547 = vadd.f32 0.0, %v3546
        %v3548 = vpop.f32.mrb[0].mxu0
        %v3549 = vadd.f32 0.0, %v3548
        %v3550 = vpop.f32.mrb[0].mxu0
        %v3551 = vadd.f32 0.0, %v3550
        %v3552 = vpop.f32.mrb[0].mxu0
        %v3553 = vadd.f32 0.0, %v3552
        %3554 = vmatprep.mubr.bf16.mxu0 %v3435
        %3555 = vmatmul.mubr.bf16.gmra.mrb[0].mxu0 %v3434
        %v3556 = vpop.f32.mrb[0].mxu0
        %v3557 = vadd.f32 0.0, %v3556
        %v3558 = vpop.f32.mrb[0].mxu0
        %v3559 = vadd.f32 0.0, %v3558
        %v3560 = vpop.f32.mrb[0].mxu0
        %v3561 = vadd.f32 0.0, %v3560
        %v3562 = vpop.f32.mrb[0].mxu0
        %v3563 = vadd.f32 0.0, %v3562
        %3564 = vmatprep.mubr.bf16.mxu0 %v3437
        %3565 = vmatmul.mubr.bf16.gmra.mrb[0].mxu0 %v3436
        %v3566 = vpop.f32.mrb[0].mxu0
        %v3567 = vadd.f32 0.0, %v3566
        %v3568 = vpop.f32.mrb[0].mxu0
        %v3569 = vadd.f32 0.0, %v3568
        %v3570 = vpop.f32.mrb[0].mxu0
        %v3571 = vadd.f32 0.0, %v3570
        %v3572 = vpop.f32.mrb[0].mxu0
        %v3573 = vadd.f32 0.0, %v3572
        %3574 = vmatprep.mubr.bf16.mxu0 %v3439
        %3575 = vmatmul.mubr.bf16.gmra.mrb[0].mxu0 %v3438
        %v3576 = vpop.f32.mrb[0].mxu0
        %v3577 = vadd.f32 0.0, %v3576
        %v3578 = vpop.f32.mrb[0].mxu0
        %v3579 = vadd.f32 0.0, %v3578
        %v3580 = vpop.f32.mrb[0].mxu0
        %v3581 = vadd.f32 0.0, %v3580
        %v3582 = vpop.f32.mrb[0].mxu0
        %v3583 = vadd.f32 0.0, %v3582
        %3584 = vmatprep.mubr.bf16.mxu0 %v3441
        %3585 = vmatmul.mubr.bf16.gmra.mrb[0].mxu0 %v3440
        %v3586 = vpop.f32.mrb[0].mxu0
        %v3587 = vadd.f32 0.0, %v3586
        %v3588 = vpop.f32.mrb[0].mxu0
        %v3589 = vadd.f32 0.0, %v3588
        %v3590 = vpop.f32.mrb[0].mxu0
        %v3591 = vadd.f32 0.0, %v3590
        %v3592 = vpop.f32.mrb[0].mxu0
        %v3593 = vadd.f32 0.0, %v3592
        %3594 = vmatprep.mubr.bf16.mxu0 %v3443
        %3595 = vmatmul.mubr.bf16.gmra.mrb[0].mxu0 %v3442
        %v3596 = vpop.f32.mrb[0].mxu0
        %v3597 = vadd.f32 0.0, %v3596
        %v3598 = vpop.f32.mrb[0].mxu0
        %v3599 = vadd.f32 0.0, %v3598
        %v3600 = vpop.f32.mrb[0].mxu0
        %v3601 = vadd.f32 0.0, %v3600
        %v3602 = vpop.f32.mrb[0].mxu0
        %v3603 = vadd.f32 0.0, %v3602
        %3604 = vmatprep.mubr.bf16.mxu0 %v3445
        %3605 = vmatmul.mubr.bf16.gmra.mrb[0].mxu0 %v3444
        %v3606 = vpop.f32.mrb[0].mxu0
        %v3607 = vadd.f32 0.0, %v3606
        %v3608 = vpop.f32.mrb[0].mxu0
        %v3609 = vadd.f32 0.0, %v3608
        %v3610 = vpop.f32.mrb[0].mxu0
        %v3611 = vadd.f32 0.0, %v3610
        %v3612 = vpop.f32.mrb[0].mxu0
        %v3613 = vadd.f32 0.0, %v3612
        %3614 = vmatprep.mubr.bf16.mxu0 %v3447
        %3615 = vmatmul.mubr.bf16.gmra.mrb[0].mxu0 %v3446
        %v3616 = vpop.f32.mrb[0].mxu0
        %v3617 = vadd.f32 0.0, %v3616
        %v3618 = vpop.f32.mrb[0].mxu0
        %v3619 = vadd.f32 0.0, %v3618
        %v3620 = vpop.f32.mrb[0].mxu0
        %v3621 = vadd.f32 0.0, %v3620
        %v3622 = vpop.f32.mrb[0].mxu0
        %v3623 = vadd.f32 0.0, %v3622
        %3624 = vmatprep.mubr.bf16.mxu0 %v3449
        %3625 = vmatmul.mubr.bf16.gmra.mrb[0].mxu0 %v3448
        %v3626 = vpop.f32.mrb[0].mxu0
        %v3627 = vadd.f32 0.0, %v3626
        %v3628 = vpop.f32.mrb[0].mxu0
        %v3629 = vadd.f32 0.0, %v3628
        %v3630 = vpop.f32.mrb[0].mxu0
        %v3631 = vadd.f32 0.0, %v3630
        %v3632 = vpop.f32.mrb[0].mxu0
        %v3633 = vadd.f32 0.0, %v3632
        %3634 = vmatprep.mubr.bf16.mxu0 %v3451
        %3635 = vmatmul.mubr.bf16.gmra.mrb[0].mxu0 %v3450
        %v3636 = vpop.f32.mrb[0].mxu0
        %v3637 = vadd.f32 0.0, %v3636
        %v3638 = vpop.f32.mrb[0].mxu0
        %v3639 = vadd.f32 0.0, %v3638
        %v3640 = vpop.f32.mrb[0].mxu0
        %v3641 = vadd.f32 0.0, %v3640
        %v3642 = vpop.f32.mrb[0].mxu0
        %v3643 = vadd.f32 0.0, %v3642
        %3644 = vdwg.mxu0
        %3645 = vmatprep.subr.bf16.mxu0 %v2811
        %3646 = vmatpush1.bf16.msra.mxu0 %v2810
        %3647 = vmatprep.subr.bf16.mxu0 %v2813
        %3648 = vmatpush1.bf16.msra.mxu0 %v2812
        %3649 = vmatprep.subr.bf16.mxu0 %v2815
        %3650 = vmatpush1.bf16.msra.mxu0 %v2814
        %3651 = vmatprep.subr.bf16.mxu0 %v2817
        %3652 = vmatpush1.bf16.msra.mxu0 %v2816
        %3653 = vmatprep.subr.bf16.mxu0 %v2819
        %3654 = vmatpush1.bf16.msra.mxu0 %v2818
        %3655 = vmatprep.subr.bf16.mxu0 %v2821
        %3656 = vmatpush1.bf16.msra.mxu0 %v2820
        %3657 = vmatprep.subr.bf16.mxu0 %v2823
        %3658 = vmatpush1.bf16.msra.mxu0 %v2822
        %3659 = vmatprep.subr.bf16.mxu0 %v2825
        %3660 = vmatpush1.bf16.msra.mxu0 %v2824
        %3661 = vmatprep.subr.bf16.mxu0 %v2827
        %3662 = vmatpush1.bf16.msra.mxu0 %v2826
        %3663 = vmatprep.subr.bf16.mxu0 %v2829
        %3664 = vmatpush1.bf16.msra.mxu0 %v2828
        %3665 = vmatprep.subr.bf16.mxu0 %v2831
        %3666 = vmatpush1.bf16.msra.mxu0 %v2830
        %3667 = vmatprep.subr.bf16.mxu0 %v2833
        %3668 = vmatpush1.bf16.msra.mxu0 %v2832
        %3669 = vmatprep.subr.bf16.mxu0 %v2835
        %3670 = vmatpush1.bf16.msra.mxu0 %v2834
        %3671 = vmatprep.subr.bf16.mxu0 %v2837
        %3672 = vmatpush1.bf16.msra.mxu0 %v2836
        %3673 = vmatprep.subr.bf16.mxu0 %v2839
        %3674 = vmatpush1.bf16.msra.mxu0 %v2838
        %3675 = vmatprep.subr.bf16.mxu0 %v2841
        %3676 = vmatpush1.bf16.msra.mxu0 %v2840
        %3677 = vmatprep.mubr.bf16.mxu0 %v3261
        %3678 = vmatmul.mubr.bf16.gmra.mrb[0].mxu0 %v3260
        %v3679 = vpop.f32.mrb[0].mxu0
        %v3680 = vadd.f32 %v3487, %v3679
        %v3681 = vpop.f32.mrb[0].mxu0
        %v3682 = vadd.f32 %v3489, %v3681
        %v3683 = vpop.f32.mrb[0].mxu0
        %v3684 = vadd.f32 %v3491, %v3683
        %v3685 = vpop.f32.mrb[0].mxu0
        %v3686 = vadd.f32 %v3493, %v3685
        %3687 = vmatprep.mubr.bf16.mxu0 %v3263
        %3688 = vmatmul.mubr.bf16.gmra.mrb[0].mxu0 %v3262
        %v3689 = vpop.f32.mrb[0].mxu0
        %v3690 = vadd.f32 %v3497, %v3689
        %v3691 = vpop.f32.mrb[0].mxu0
        %v3692 = vadd.f32 %v3499, %v3691
        %v3693 = vpop.f32.mrb[0].mxu0
        %v3694 = vadd.f32 %v3501, %v3693
        %v3695 = vpop.f32.mrb[0].mxu0
        %v3696 = vadd.f32 %v3503, %v3695
        %3697 = vmatprep.mubr.bf16.mxu0 %v3265
        %3698 = vmatmul.mubr.bf16.gmra.mrb[0].mxu0 %v3264
        %v3699 = vpop.f32.mrb[0].mxu0
        %v3700 = vadd.f32 %v3507, %v3699
        %v3701 = vpop.f32.mrb[0].mxu0
        %v3702 = vadd.f32 %v3509, %v3701
        %v3703 = vpop.f32.mrb[0].mxu0
        %v3704 = vadd.f32 %v3511, %v3703
        %v3705 = vpop.f32.mrb[0].mxu0
        %v3706 = vadd.f32 %v3513, %v3705
        %3707 = vmatprep.mubr.bf16.mxu0 %v3267
        %3708 = vmatmul.mubr.bf16.gmra.mrb[0].mxu0 %v3266
        %v3709 = vpop.f32.mrb[0].mxu0
        %v3710 = vadd.f32 %v3517, %v3709
        %v3711 = vpop.f32.mrb[0].mxu0
        %v3712 = vadd.f32 %v3519, %v3711
        %v3713 = vpop.f32.mrb[0].mxu0
        %v3714 = vadd.f32 %v3521, %v3713
        %v3715 = vpop.f32.mrb[0].mxu0
        %v3716 = vadd.f32 %v3523, %v3715
        %3717 = vmatprep.mubr.bf16.mxu0 %v3269
        %3718 = vmatmul.mubr.bf16.gmra.mrb[0].mxu0 %v3268
        %v3719 = vpop.f32.mrb[0].mxu0
        %v3720 = vadd.f32 %v3527, %v3719
        %v3721 = vpop.f32.mrb[0].mxu0
        %v3722 = vadd.f32 %v3529, %v3721
        %v3723 = vpop.f32.mrb[0].mxu0
        %v3724 = vadd.f32 %v3531, %v3723
        %v3725 = vpop.f32.mrb[0].mxu0
        %v3726 = vadd.f32 %v3533, %v3725
        %3727 = vmatprep.mubr.bf16.mxu0 %v3271
        %3728 = vmatmul.mubr.bf16.gmra.mrb[0].mxu0 %v3270
        %v3729 = vpop.f32.mrb[0].mxu0
        %v3730 = vadd.f32 %v3537, %v3729
        %v3731 = vpop.f32.mrb[0].mxu0
        %v3732 = vadd.f32 %v3539, %v3731
        %v3733 = vpop.f32.mrb[0].mxu0
        %v3734 = vadd.f32 %v3541, %v3733
        %v3735 = vpop.f32.mrb[0].mxu0
        %v3736 = vadd.f32 %v3543, %v3735
        %3737 = vmatprep.mubr.bf16.mxu0 %v3273
        %3738 = vmatmul.mubr.bf16.gmra.mrb[0].mxu0 %v3272
        %v3739 = vpop.f32.mrb[0].mxu0
        %v3740 = vadd.f32 %v3547, %v3739
        %v3741 = vpop.f32.mrb[0].mxu0
        %v3742 = vadd.f32 %v3549, %v3741
        %v3743 = vpop.f32.mrb[0].mxu0
        %v3744 = vadd.f32 %v3551, %v3743
        %v3745 = vpop.f32.mrb[0].mxu0
        %v3746 = vadd.f32 %v3553, %v3745
        %3747 = vmatprep.mubr.bf16.mxu0 %v3275
        %3748 = vmatmul.mubr.bf16.gmra.mrb[0].mxu0 %v3274
        %v3749 = vpop.f32.mrb[0].mxu0
        %v3750 = vadd.f32 %v3557, %v3749
        %v3751 = vpop.f32.mrb[0].mxu0
        %v3752 = vadd.f32 %v3559, %v3751
        %v3753 = vpop.f32.mrb[0].mxu0
        %v3754 = vadd.f32 %v3561, %v3753
        %v3755 = vpop.f32.mrb[0].mxu0
        %v3756 = vadd.f32 %v3563, %v3755
        %3757 = vmatprep.mubr.bf16.mxu0 %v3277
        %3758 = vmatmul.mubr.bf16.gmra.mrb[0].mxu0 %v3276
        %v3759 = vpop.f32.mrb[0].mxu0
        %v3760 = vadd.f32 %v3567, %v3759
        %v3761 = vpop.f32.mrb[0].mxu0
        %v3762 = vadd.f32 %v3569, %v3761
        %v3763 = vpop.f32.mrb[0].mxu0
        %v3764 = vadd.f32 %v3571, %v3763
        %v3765 = vpop.f32.mrb[0].mxu0
        %v3766 = vadd.f32 %v3573, %v3765
        %3767 = vmatprep.mubr.bf16.mxu0 %v3279
        %3768 = vmatmul.mubr.bf16.gmra.mrb[0].mxu0 %v3278
        %v3769 = vpop.f32.mrb[0].mxu0
        %v3770 = vadd.f32 %v3577, %v3769
        %v3771 = vpop.f32.mrb[0].mxu0
        %v3772 = vadd.f32 %v3579, %v3771
        %v3773 = vpop.f32.mrb[0].mxu0
        %v3774 = vadd.f32 %v3581, %v3773
        %v3775 = vpop.f32.mrb[0].mxu0
        %v3776 = vadd.f32 %v3583, %v3775
        %3777 = vmatprep.mubr.bf16.mxu0 %v3281
        %3778 = vmatmul.mubr.bf16.gmra.mrb[0].mxu0 %v3280
        %v3779 = vpop.f32.mrb[0].mxu0
        %v3780 = vadd.f32 %v3587, %v3779
        %v3781 = vpop.f32.mrb[0].mxu0
        %v3782 = vadd.f32 %v3589, %v3781
        %v3783 = vpop.f32.mrb[0].mxu0
        %v3784 = vadd.f32 %v3591, %v3783
        %v3785 = vpop.f32.mrb[0].mxu0
        %v3786 = vadd.f32 %v3593, %v3785
        %3787 = vmatprep.mubr.bf16.mxu0 %v3283
        %3788 = vmatmul.mubr.bf16.gmra.mrb[0].mxu0 %v3282
        %v3789 = vpop.f32.mrb[0].mxu0
        %v3790 = vadd.f32 %v3597, %v3789
        %v3791 = vpop.f32.mrb[0].mxu0
        %v3792 = vadd.f32 %v3599, %v3791
        %v3793 = vpop.f32.mrb[0].mxu0
        %v3794 = vadd.f32 %v3601, %v3793
        %v3795 = vpop.f32.mrb[0].mxu0
        %v3796 = vadd.f32 %v3603, %v3795
        %3797 = vmatprep.mubr.bf16.mxu0 %v3285
        %3798 = vmatmul.mubr.bf16.gmra.mrb[0].mxu0 %v3284
        %v3799 = vpop.f32.mrb[0].mxu0
        %v3800 = vadd.f32 %v3607, %v3799
        %v3801 = vpop.f32.mrb[0].mxu0
        %v3802 = vadd.f32 %v3609, %v3801
        %v3803 = vpop.f32.mrb[0].mxu0
        %v3804 = vadd.f32 %v3611, %v3803
        %v3805 = vpop.f32.mrb[0].mxu0
        %v3806 = vadd.f32 %v3613, %v3805
        %3807 = vmatprep.mubr.bf16.mxu0 %v3287
        %3808 = vmatmul.mubr.bf16.gmra.mrb[0].mxu0 %v3286
        %v3809 = vpop.f32.mrb[0].mxu0
        %v3810 = vadd.f32 %v3617, %v3809
        %v3811 = vpop.f32.mrb[0].mxu0
        %v3812 = vadd.f32 %v3619, %v3811
        %v3813 = vpop.f32.mrb[0].mxu0
        %v3814 = vadd.f32 %v3621, %v3813
        %v3815 = vpop.f32.mrb[0].mxu0
        %v3816 = vadd.f32 %v3623, %v3815
        %3817 = vmatprep.mubr.bf16.mxu0 %v3289
        %3818 = vmatmul.mubr.bf16.gmra.mrb[0].mxu0 %v3288
        %v3819 = vpop.f32.mrb[0].mxu0
        %v3820 = vadd.f32 %v3627, %v3819
        %v3821 = vpop.f32.mrb[0].mxu0
        %v3822 = vadd.f32 %v3629, %v3821
        %v3823 = vpop.f32.mrb[0].mxu0
        %v3824 = vadd.f32 %v3631, %v3823
        %v3825 = vpop.f32.mrb[0].mxu0
        %v3826 = vadd.f32 %v3633, %v3825
        %3827 = vmatprep.mubr.bf16.mxu0 %v3291
        %3828 = vmatmul.mubr.bf16.gmra.mrb[0].mxu0 %v3290
        %v3829 = vpop.f32.mrb[0].mxu0
        %v3830 = vadd.f32 %v3637, %v3829
        %v3831 = vpop.f32.mrb[0].mxu0
        %v3832 = vadd.f32 %v3639, %v3831
        %v3833 = vpop.f32.mrb[0].mxu0
        %v3834 = vadd.f32 %v3641, %v3833
        %v3835 = vpop.f32.mrb[0].mxu0
        %v3836 = vadd.f32 %v3643, %v3835
        %3837 = vdwg.mxu0
        %v3838 = vpack.c.bf16 %v2396, %v2394
        %v3839 = vpack.c.bf16 %v2397, %v2395
        %v3840 = vpack.c.bf16 %v2400, %v2398
        %v3841 = vpack.c.bf16 %v2401, %v2399
        %v3842 = vpack.c.bf16 %v2404, %v2402
        %v3843 = vpack.c.bf16 %v2405, %v2403
        %v3844 = vpack.c.bf16 %v2408, %v2406
        %v3845 = vpack.c.bf16 %v2409, %v2407
        %v3846 = vpack.c.bf16 %v2412, %v2410
        %v3847 = vpack.c.bf16 %v2413, %v2411
        %v3848 = vpack.c.bf16 %v2416, %v2414
        %v3849 = vpack.c.bf16 %v2417, %v2415
        %v3850 = vpack.c.bf16 %v2420, %v2418
        %v3851 = vpack.c.bf16 %v2421, %v2419
        %v3852 = vpack.c.bf16 %v2424, %v2422
        %v3853 = vpack.c.bf16 %v2425, %v2423
        %v3854 = vpack.c.bf16 %v2428, %v2426
        %v3855 = vpack.c.bf16 %v2429, %v2427
        %v3856 = vpack.c.bf16 %v2432, %v2430
        %v3857 = vpack.c.bf16 %v2433, %v2431
        %v3858 = vpack.c.bf16 %v2436, %v2434
        %v3859 = vpack.c.bf16 %v2437, %v2435
        %v3860 = vpack.c.bf16 %v2440, %v2438
        %v3861 = vpack.c.bf16 %v2441, %v2439
        %v3862 = vpack.c.bf16 %v2444, %v2442
        %v3863 = vpack.c.bf16 %v2445, %v2443
        %v3864 = vpack.c.bf16 %v2448, %v2446
        %v3865 = vpack.c.bf16 %v2449, %v2447
        %v3866 = vpack.c.bf16 %v2452, %v2450
        %v3867 = vpack.c.bf16 %v2453, %v2451
        %v3868 = vpack.c.bf16 %v2456, %v2454
        %v3869 = vpack.c.bf16 %v2457, %v2455
        %v3870 = vunpack.c.l.bf16 %v3838
        %v3871 = vunpack.c.l.bf16 %v3839
        %v3872 = vunpack.c.h.bf16 %v3838
        %v3873 = vunpack.c.h.bf16 %v3839
        %v3874 = vunpack.c.l.bf16 %v3840
        %v3875 = vunpack.c.l.bf16 %v3841
        %v3876 = vunpack.c.h.bf16 %v3840
        %v3877 = vunpack.c.h.bf16 %v3841
        %v3878 = vunpack.c.l.bf16 %v3842
        %v3879 = vunpack.c.l.bf16 %v3843
        %v3880 = vunpack.c.h.bf16 %v3842
        %v3881 = vunpack.c.h.bf16 %v3843
        %v3882 = vunpack.c.l.bf16 %v3844
        %v3883 = vunpack.c.l.bf16 %v3845
        %v3884 = vunpack.c.h.bf16 %v3844
        %v3885 = vunpack.c.h.bf16 %v3845
        %v3886 = vunpack.c.l.bf16 %v3846
        %v3887 = vunpack.c.l.bf16 %v3847
        %v3888 = vunpack.c.h.bf16 %v3846
        %v3889 = vunpack.c.h.bf16 %v3847
        %v3890 = vunpack.c.l.bf16 %v3848
        %v3891 = vunpack.c.l.bf16 %v3849
        %v3892 = vunpack.c.h.bf16 %v3848
        %v3893 = vunpack.c.h.bf16 %v3849
        %v3894 = vunpack.c.l.bf16 %v3850
        %v3895 = vunpack.c.l.bf16 %v3851
        %v3896 = vunpack.c.h.bf16 %v3850
        %v3897 = vunpack.c.h.bf16 %v3851
        %v3898 = vunpack.c.l.bf16 %v3852
        %v3899 = vunpack.c.l.bf16 %v3853
        %v3900 = vunpack.c.h.bf16 %v3852
        %v3901 = vunpack.c.h.bf16 %v3853
        %v3902 = vunpack.c.l.bf16 %v3854
        %v3903 = vunpack.c.l.bf16 %v3855
        %v3904 = vunpack.c.h.bf16 %v3854
        %v3905 = vunpack.c.h.bf16 %v3855
        %v3906 = vunpack.c.l.bf16 %v3856
        %v3907 = vunpack.c.l.bf16 %v3857
        %v3908 = vunpack.c.h.bf16 %v3856
        %v3909 = vunpack.c.h.bf16 %v3857
        %v3910 = vunpack.c.l.bf16 %v3858
        %v3911 = vunpack.c.l.bf16 %v3859
        %v3912 = vunpack.c.h.bf16 %v3858
        %v3913 = vunpack.c.h.bf16 %v3859
        %v3914 = vunpack.c.l.bf16 %v3860
        %v3915 = vunpack.c.l.bf16 %v3861
        %v3916 = vunpack.c.h.bf16 %v3860
        %v3917 = vunpack.c.h.bf16 %v3861
        %v3918 = vunpack.c.l.bf16 %v3862
        %v3919 = vunpack.c.l.bf16 %v3863
        %v3920 = vunpack.c.h.bf16 %v3862
        %v3921 = vunpack.c.h.bf16 %v3863
        %v3922 = vunpack.c.l.bf16 %v3864
        %v3923 = vunpack.c.l.bf16 %v3865
        %v3924 = vunpack.c.h.bf16 %v3864
        %v3925 = vunpack.c.h.bf16 %v3865
        %v3926 = vunpack.c.l.bf16 %v3866
        %v3927 = vunpack.c.l.bf16 %v3867
        %v3928 = vunpack.c.h.bf16 %v3866
        %v3929 = vunpack.c.h.bf16 %v3867
        %v3930 = vunpack.c.l.bf16 %v3868
        %v3931 = vunpack.c.l.bf16 %v3869
        %v3932 = vunpack.c.h.bf16 %v3868
        %v3933 = vunpack.c.h.bf16 %v3869
        %v3934 = vsub.f32 %v2394, %v3870
        %v3935 = vsub.f32 %v2395, %v3871
        %v3936 = vsub.f32 %v2396, %v3872
        %v3937 = vsub.f32 %v2397, %v3873
        %v3938 = vsub.f32 %v2398, %v3874
        %v3939 = vsub.f32 %v2399, %v3875
        %v3940 = vsub.f32 %v2400, %v3876
        %v3941 = vsub.f32 %v2401, %v3877
        %v3942 = vsub.f32 %v2402, %v3878
        %v3943 = vsub.f32 %v2403, %v3879
        %v3944 = vsub.f32 %v2404, %v3880
        %v3945 = vsub.f32 %v2405, %v3881
        %v3946 = vsub.f32 %v2406, %v3882
        %v3947 = vsub.f32 %v2407, %v3883
        %v3948 = vsub.f32 %v2408, %v3884
        %v3949 = vsub.f32 %v2409, %v3885
        %v3950 = vsub.f32 %v2410, %v3886
        %v3951 = vsub.f32 %v2411, %v3887
        %v3952 = vsub.f32 %v2412, %v3888
        %v3953 = vsub.f32 %v2413, %v3889
        %v3954 = vsub.f32 %v2414, %v3890
        %v3955 = vsub.f32 %v2415, %v3891
        %v3956 = vsub.f32 %v2416, %v3892
        %v3957 = vsub.f32 %v2417, %v3893
        %v3958 = vsub.f32 %v2418, %v3894
        %v3959 = vsub.f32 %v2419, %v3895
        %v3960 = vsub.f32 %v2420, %v3896
        %v3961 = vsub.f32 %v2421, %v3897
        %v3962 = vsub.f32 %v2422, %v3898
        %v3963 = vsub.f32 %v2423, %v3899
        %v3964 = vsub.f32 %v2424, %v3900
        %v3965 = vsub.f32 %v2425, %v3901
        %v3966 = vsub.f32 %v2426, %v3902
        %v3967 = vsub.f32 %v2427, %v3903
        %v3968 = vsub.f32 %v2428, %v3904
        %v3969 = vsub.f32 %v2429, %v3905
        %v3970 = vsub.f32 %v2430, %v3906
        %v3971 = vsub.f32 %v2431, %v3907
        %v3972 = vsub.f32 %v2432, %v3908
        %v3973 = vsub.f32 %v2433, %v3909
        %v3974 = vsub.f32 %v2434, %v3910
        %v3975 = vsub.f32 %v2435, %v3911
        %v3976 = vsub.f32 %v2436, %v3912
        %v3977 = vsub.f32 %v2437, %v3913
        %v3978 = vsub.f32 %v2438, %v3914
        %v3979 = vsub.f32 %v2439, %v3915
        %v3980 = vsub.f32 %v2440, %v3916
        %v3981 = vsub.f32 %v2441, %v3917
        %v3982 = vsub.f32 %v2442, %v3918
        %v3983 = vsub.f32 %v2443, %v3919
        %v3984 = vsub.f32 %v2444, %v3920
        %v3985 = vsub.f32 %v2445, %v3921
        %v3986 = vsub.f32 %v2446, %v3922
        %v3987 = vsub.f32 %v2447, %v3923
        %v3988 = vsub.f32 %v2448, %v3924
        %v3989 = vsub.f32 %v2449, %v3925
        %v3990 = vsub.f32 %v2450, %v3926
        %v3991 = vsub.f32 %v2451, %v3927
        %v3992 = vsub.f32 %v2452, %v3928
        %v3993 = vsub.f32 %v2453, %v3929
        %v3994 = vsub.f32 %v2454, %v3930
        %v3995 = vsub.f32 %v2455, %v3931
        %v3996 = vsub.f32 %v2456, %v3932
        %v3997 = vsub.f32 %v2457, %v3933
        %v3998 = vpack.c.bf16 %v3936, %v3934
        %v3999 = vpack.c.bf16 %v3937, %v3935
        %v4000 = vpack.c.bf16 %v3940, %v3938
        %v4001 = vpack.c.bf16 %v3941, %v3939
        %v4002 = vpack.c.bf16 %v3944, %v3942
        %v4003 = vpack.c.bf16 %v3945, %v3943
        %v4004 = vpack.c.bf16 %v3948, %v3946
        %v4005 = vpack.c.bf16 %v3949, %v3947
        %v4006 = vpack.c.bf16 %v3952, %v3950
        %v4007 = vpack.c.bf16 %v3953, %v3951
        %v4008 = vpack.c.bf16 %v3956, %v3954
        %v4009 = vpack.c.bf16 %v3957, %v3955
        %v4010 = vpack.c.bf16 %v3960, %v3958
        %v4011 = vpack.c.bf16 %v3961, %v3959
        %v4012 = vpack.c.bf16 %v3964, %v3962
        %v4013 = vpack.c.bf16 %v3965, %v3963
        %v4014 = vpack.c.bf16 %v3968, %v3966
        %v4015 = vpack.c.bf16 %v3969, %v3967
        %v4016 = vpack.c.bf16 %v3972, %v3970
        %v4017 = vpack.c.bf16 %v3973, %v3971
        %v4018 = vpack.c.bf16 %v3976, %v3974
        %v4019 = vpack.c.bf16 %v3977, %v3975
        %v4020 = vpack.c.bf16 %v3980, %v3978
        %v4021 = vpack.c.bf16 %v3981, %v3979
        %v4022 = vpack.c.bf16 %v3984, %v3982
        %v4023 = vpack.c.bf16 %v3985, %v3983
        %v4024 = vpack.c.bf16 %v3988, %v3986
        %v4025 = vpack.c.bf16 %v3989, %v3987
        %v4026 = vpack.c.bf16 %v3992, %v3990
        %v4027 = vpack.c.bf16 %v3993, %v3991
        %v4028 = vpack.c.bf16 %v3996, %v3994
        %v4029 = vpack.c.bf16 %v3997, %v3995
        %4030 = vmatprep.subr.bf16.mxu0 %v2811
        %4031 = vmatpush1.bf16.msra.mxu0 %v2810
        %4032 = vmatprep.subr.bf16.mxu0 %v2813
        %4033 = vmatpush1.bf16.msra.mxu0 %v2812
        %4034 = vmatprep.subr.bf16.mxu0 %v2815
        %4035 = vmatpush1.bf16.msra.mxu0 %v2814
        %4036 = vmatprep.subr.bf16.mxu0 %v2817
        %4037 = vmatpush1.bf16.msra.mxu0 %v2816
        %4038 = vmatprep.subr.bf16.mxu0 %v2819
        %4039 = vmatpush1.bf16.msra.mxu0 %v2818
        %4040 = vmatprep.subr.bf16.mxu0 %v2821
        %4041 = vmatpush1.bf16.msra.mxu0 %v2820
        %4042 = vmatprep.subr.bf16.mxu0 %v2823
        %4043 = vmatpush1.bf16.msra.mxu0 %v2822
        %4044 = vmatprep.subr.bf16.mxu0 %v2825
        %4045 = vmatpush1.bf16.msra.mxu0 %v2824
        %4046 = vmatprep.subr.bf16.mxu0 %v2827
        %4047 = vmatpush1.bf16.msra.mxu0 %v2826
        %4048 = vmatprep.subr.bf16.mxu0 %v2829
        %4049 = vmatpush1.bf16.msra.mxu0 %v2828
        %4050 = vmatprep.subr.bf16.mxu0 %v2831
        %4051 = vmatpush1.bf16.msra.mxu0 %v2830
        %4052 = vmatprep.subr.bf16.mxu0 %v2833
        %4053 = vmatpush1.bf16.msra.mxu0 %v2832
        %4054 = vmatprep.subr.bf16.mxu0 %v2835
        %4055 = vmatpush1.bf16.msra.mxu0 %v2834
        %4056 = vmatprep.subr.bf16.mxu0 %v2837
        %4057 = vmatpush1.bf16.msra.mxu0 %v2836
        %4058 = vmatprep.subr.bf16.mxu0 %v2839
        %4059 = vmatpush1.bf16.msra.mxu0 %v2838
        %4060 = vmatprep.subr.bf16.mxu0 %v2841
        %4061 = vmatpush1.bf16.msra.mxu0 %v2840
        %4062 = vmatprep.mubr.bf16.mxu0 %v3999
        %4063 = vmatmul.mubr.bf16.gmra.mrb[0].mxu0 %v3998
        %v4064 = vpop.f32.mrb[0].mxu0
        %v4065 = vadd.f32 0.0, %v4064
        %v4066 = vpop.f32.mrb[0].mxu0
        %v4067 = vadd.f32 0.0, %v4066
        %v4068 = vpop.f32.mrb[0].mxu0
        %v4069 = vadd.f32 0.0, %v4068
        %v4070 = vpop.f32.mrb[0].mxu0
        %v4071 = vadd.f32 0.0, %v4070
        %4072 = vmatprep.mubr.bf16.mxu0 %v4001
        %4073 = vmatmul.mubr.bf16.gmra.mrb[0].mxu0 %v4000
        %v4074 = vpop.f32.mrb[0].mxu0
        %v4075 = vadd.f32 0.0, %v4074
        %v4076 = vpop.f32.mrb[0].mxu0
        %v4077 = vadd.f32 0.0, %v4076
        %v4078 = vpop.f32.mrb[0].mxu0
        %v4079 = vadd.f32 0.0, %v4078
        %v4080 = vpop.f32.mrb[0].mxu0
        %v4081 = vadd.f32 0.0, %v4080
        %4082 = vmatprep.mubr.bf16.mxu0 %v4003
        %4083 = vmatmul.mubr.bf16.gmra.mrb[0].mxu0 %v4002
        %v4084 = vpop.f32.mrb[0].mxu0
        %v4085 = vadd.f32 0.0, %v4084
        %v4086 = vpop.f32.mrb[0].mxu0
        %v4087 = vadd.f32 0.0, %v4086
        %v4088 = vpop.f32.mrb[0].mxu0
        %v4089 = vadd.f32 0.0, %v4088
        %v4090 = vpop.f32.mrb[0].mxu0
        %v4091 = vadd.f32 0.0, %v4090
        %4092 = vmatprep.mubr.bf16.mxu0 %v4005
        %4093 = vmatmul.mubr.bf16.gmra.mrb[0].mxu0 %v4004
        %v4094 = vpop.f32.mrb[0].mxu0
        %v4095 = vadd.f32 0.0, %v4094
        %v4096 = vpop.f32.mrb[0].mxu0
        %v4097 = vadd.f32 0.0, %v4096
        %v4098 = vpop.f32.mrb[0].mxu0
        %v4099 = vadd.f32 0.0, %v4098
        %v4100 = vpop.f32.mrb[0].mxu0
        %v4101 = vadd.f32 0.0, %v4100
        %4102 = vmatprep.mubr.bf16.mxu0 %v4007
        %4103 = vmatmul.mubr.bf16.gmra.mrb[0].mxu0 %v4006
        %v4104 = vpop.f32.mrb[0].mxu0
        %v4105 = vadd.f32 0.0, %v4104
        %v4106 = vpop.f32.mrb[0].mxu0
        %v4107 = vadd.f32 0.0, %v4106
        %v4108 = vpop.f32.mrb[0].mxu0
        %v4109 = vadd.f32 0.0, %v4108
        %v4110 = vpop.f32.mrb[0].mxu0
        %v4111 = vadd.f32 0.0, %v4110
        %4112 = vmatprep.mubr.bf16.mxu0 %v4009
        %4113 = vmatmul.mubr.bf16.gmra.mrb[0].mxu0 %v4008
        %v4114 = vpop.f32.mrb[0].mxu0
        %v4115 = vadd.f32 0.0, %v4114
        %v4116 = vpop.f32.mrb[0].mxu0
        %v4117 = vadd.f32 0.0, %v4116
        %v4118 = vpop.f32.mrb[0].mxu0
        %v4119 = vadd.f32 0.0, %v4118
        %v4120 = vpop.f32.mrb[0].mxu0
        %v4121 = vadd.f32 0.0, %v4120
        %4122 = vmatprep.mubr.bf16.mxu0 %v4011
        %4123 = vmatmul.mubr.bf16.gmra.mrb[0].mxu0 %v4010
        %v4124 = vpop.f32.mrb[0].mxu0
        %v4125 = vadd.f32 0.0, %v4124
        %v4126 = vpop.f32.mrb[0].mxu0
        %v4127 = vadd.f32 0.0, %v4126
        %v4128 = vpop.f32.mrb[0].mxu0
        %v4129 = vadd.f32 0.0, %v4128
        %v4130 = vpop.f32.mrb[0].mxu0
        %v4131 = vadd.f32 0.0, %v4130
        %4132 = vmatprep.mubr.bf16.mxu0 %v4013
        %4133 = vmatmul.mubr.bf16.gmra.mrb[0].mxu0 %v4012
        %v4134 = vpop.f32.mrb[0].mxu0
        %v4135 = vadd.f32 0.0, %v4134
        %v4136 = vpop.f32.mrb[0].mxu0
        %v4137 = vadd.f32 0.0, %v4136
        %v4138 = vpop.f32.mrb[0].mxu0
        %v4139 = vadd.f32 0.0, %v4138
        %v4140 = vpop.f32.mrb[0].mxu0
        %v4141 = vadd.f32 0.0, %v4140
        %4142 = vmatprep.mubr.bf16.mxu0 %v4015
        %4143 = vmatmul.mubr.bf16.gmra.mrb[0].mxu0 %v4014
        %v4144 = vpop.f32.mrb[0].mxu0
        %v4145 = vadd.f32 0.0, %v4144
        %v4146 = vpop.f32.mrb[0].mxu0
        %v4147 = vadd.f32 0.0, %v4146
        %v4148 = vpop.f32.mrb[0].mxu0
        %v4149 = vadd.f32 0.0, %v4148
        %v4150 = vpop.f32.mrb[0].mxu0
        %v4151 = vadd.f32 0.0, %v4150
        %4152 = vmatprep.mubr.bf16.mxu0 %v4017
        %4153 = vmatmul.mubr.bf16.gmra.mrb[0].mxu0 %v4016
        %v4154 = vpop.f32.mrb[0].mxu0
        %v4155 = vadd.f32 0.0, %v4154
        %v4156 = vpop.f32.mrb[0].mxu0
        %v4157 = vadd.f32 0.0, %v4156
        %v4158 = vpop.f32.mrb[0].mxu0
        %v4159 = vadd.f32 0.0, %v4158
        %v4160 = vpop.f32.mrb[0].mxu0
        %v4161 = vadd.f32 0.0, %v4160
        %4162 = vmatprep.mubr.bf16.mxu0 %v4019
        %4163 = vmatmul.mubr.bf16.gmra.mrb[0].mxu0 %v4018
        %v4164 = vpop.f32.mrb[0].mxu0
        %v4165 = vadd.f32 0.0, %v4164
        %v4166 = vpop.f32.mrb[0].mxu0
        %v4167 = vadd.f32 0.0, %v4166
        %v4168 = vpop.f32.mrb[0].mxu0
        %v4169 = vadd.f32 0.0, %v4168
        %v4170 = vpop.f32.mrb[0].mxu0
        %v4171 = vadd.f32 0.0, %v4170
        %4172 = vmatprep.mubr.bf16.mxu0 %v4021
        %4173 = vmatmul.mubr.bf16.gmra.mrb[0].mxu0 %v4020
        %v4174 = vpop.f32.mrb[0].mxu0
        %v4175 = vadd.f32 0.0, %v4174
        %v4176 = vpop.f32.mrb[0].mxu0
        %v4177 = vadd.f32 0.0, %v4176
        %v4178 = vpop.f32.mrb[0].mxu0
        %v4179 = vadd.f32 0.0, %v4178
        %v4180 = vpop.f32.mrb[0].mxu0
        %v4181 = vadd.f32 0.0, %v4180
        %4182 = vmatprep.mubr.bf16.mxu0 %v4023
        %4183 = vmatmul.mubr.bf16.gmra.mrb[0].mxu0 %v4022
        %v4184 = vpop.f32.mrb[0].mxu0
        %v4185 = vadd.f32 0.0, %v4184
        %v4186 = vpop.f32.mrb[0].mxu0
        %v4187 = vadd.f32 0.0, %v4186
        %v4188 = vpop.f32.mrb[0].mxu0
        %v4189 = vadd.f32 0.0, %v4188
        %v4190 = vpop.f32.mrb[0].mxu0
        %v4191 = vadd.f32 0.0, %v4190
        %4192 = vmatprep.mubr.bf16.mxu0 %v4025
        %4193 = vmatmul.mubr.bf16.gmra.mrb[0].mxu0 %v4024
        %v4194 = vpop.f32.mrb[0].mxu0
        %v4195 = vadd.f32 0.0, %v4194
        %v4196 = vpop.f32.mrb[0].mxu0
        %v4197 = vadd.f32 0.0, %v4196
        %v4198 = vpop.f32.mrb[0].mxu0
        %v4199 = vadd.f32 0.0, %v4198
        %v4200 = vpop.f32.mrb[0].mxu0
        %v4201 = vadd.f32 0.0, %v4200
        %4202 = vmatprep.mubr.bf16.mxu0 %v4027
        %4203 = vmatmul.mubr.bf16.gmra.mrb[0].mxu0 %v4026
        %v4204 = vpop.f32.mrb[0].mxu0
        %v4205 = vadd.f32 0.0, %v4204
        %v4206 = vpop.f32.mrb[0].mxu0
        %v4207 = vadd.f32 0.0, %v4206
        %v4208 = vpop.f32.mrb[0].mxu0
        %v4209 = vadd.f32 0.0, %v4208
        %v4210 = vpop.f32.mrb[0].mxu0
        %v4211 = vadd.f32 0.0, %v4210
        %4212 = vmatprep.mubr.bf16.mxu0 %v4029
        %4213 = vmatmul.mubr.bf16.gmra.mrb[0].mxu0 %v4028
        %v4214 = vpop.f32.mrb[0].mxu0
        %v4215 = vadd.f32 0.0, %v4214
        %v4216 = vpop.f32.mrb[0].mxu0
        %v4217 = vadd.f32 0.0, %v4216
        %v4218 = vpop.f32.mrb[0].mxu0
        %v4219 = vadd.f32 0.0, %v4218
        %v4220 = vpop.f32.mrb[0].mxu0
        %v4221 = vadd.f32 0.0, %v4220
        %4222 = vdwg.mxu0
        %4223 = vmatprep.subr.bf16.mxu0 %v2811
        %4224 = vmatpush1.bf16.msra.mxu0 %v2810
        %4225 = vmatprep.subr.bf16.mxu0 %v2813
        %4226 = vmatpush1.bf16.msra.mxu0 %v2812
        %4227 = vmatprep.subr.bf16.mxu0 %v2815
        %4228 = vmatpush1.bf16.msra.mxu0 %v2814
        %4229 = vmatprep.subr.bf16.mxu0 %v2817
        %4230 = vmatpush1.bf16.msra.mxu0 %v2816
        %4231 = vmatprep.subr.bf16.mxu0 %v2819
        %4232 = vmatpush1.bf16.msra.mxu0 %v2818
        %4233 = vmatprep.subr.bf16.mxu0 %v2821
        %4234 = vmatpush1.bf16.msra.mxu0 %v2820
        %4235 = vmatprep.subr.bf16.mxu0 %v2823
        %4236 = vmatpush1.bf16.msra.mxu0 %v2822
        %4237 = vmatprep.subr.bf16.mxu0 %v2825
        %4238 = vmatpush1.bf16.msra.mxu0 %v2824
        %4239 = vmatprep.subr.bf16.mxu0 %v2827
        %4240 = vmatpush1.bf16.msra.mxu0 %v2826
        %4241 = vmatprep.subr.bf16.mxu0 %v2829
        %4242 = vmatpush1.bf16.msra.mxu0 %v2828
        %4243 = vmatprep.subr.bf16.mxu0 %v2831
        %4244 = vmatpush1.bf16.msra.mxu0 %v2830
        %4245 = vmatprep.subr.bf16.mxu0 %v2833
        %4246 = vmatpush1.bf16.msra.mxu0 %v2832
        %4247 = vmatprep.subr.bf16.mxu0 %v2835
        %4248 = vmatpush1.bf16.msra.mxu0 %v2834
        %4249 = vmatprep.subr.bf16.mxu0 %v2837
        %4250 = vmatpush1.bf16.msra.mxu0 %v2836
        %4251 = vmatprep.subr.bf16.mxu0 %v2839
        %4252 = vmatpush1.bf16.msra.mxu0 %v2838
        %4253 = vmatprep.subr.bf16.mxu0 %v2841
        %4254 = vmatpush1.bf16.msra.mxu0 %v2840
        %4255 = vmatprep.mubr.bf16.mxu0 %v3839
        %4256 = vmatmul.mubr.bf16.gmra.mrb[0].mxu0 %v3838
        %v4257 = vpop.f32.mrb[0].mxu0
        %v4258 = vadd.f32 %v4065, %v4257
        %v4259 = vpop.f32.mrb[0].mxu0
        %v4260 = vadd.f32 %v4067, %v4259
        %v4261 = vpop.f32.mrb[0].mxu0
        %v4262 = vadd.f32 %v4069, %v4261
        %v4263 = vpop.f32.mrb[0].mxu0
        %v4264 = vadd.f32 %v4071, %v4263
        %4265 = vmatprep.mubr.bf16.mxu0 %v3841
        %4266 = vmatmul.mubr.bf16.gmra.mrb[0].mxu0 %v3840
        %v4267 = vpop.f32.mrb[0].mxu0
        %v4268 = vadd.f32 %v4075, %v4267
        %v4269 = vpop.f32.mrb[0].mxu0
        %v4270 = vadd.f32 %v4077, %v4269
        %v4271 = vpop.f32.mrb[0].mxu0
        %v4272 = vadd.f32 %v4079, %v4271
        %v4273 = vpop.f32.mrb[0].mxu0
        %v4274 = vadd.f32 %v4081, %v4273
        %4275 = vmatprep.mubr.bf16.mxu0 %v3843
        %4276 = vmatmul.mubr.bf16.gmra.mrb[0].mxu0 %v3842
        %v4277 = vpop.f32.mrb[0].mxu0
        %v4278 = vadd.f32 %v4085, %v4277
        %v4279 = vpop.f32.mrb[0].mxu0
        %v4280 = vadd.f32 %v4087, %v4279
        %v4281 = vpop.f32.mrb[0].mxu0
        %v4282 = vadd.f32 %v4089, %v4281
        %v4283 = vpop.f32.mrb[0].mxu0
        %v4284 = vadd.f32 %v4091, %v4283
        %4285 = vmatprep.mubr.bf16.mxu0 %v3845
        %4286 = vmatmul.mubr.bf16.gmra.mrb[0].mxu0 %v3844
        %v4287 = vpop.f32.mrb[0].mxu0
        %v4288 = vadd.f32 %v4095, %v4287
        %v4289 = vpop.f32.mrb[0].mxu0
        %v4290 = vadd.f32 %v4097, %v4289
        %v4291 = vpop.f32.mrb[0].mxu0
        %v4292 = vadd.f32 %v4099, %v4291
        %v4293 = vpop.f32.mrb[0].mxu0
        %v4294 = vadd.f32 %v4101, %v4293
        %4295 = vmatprep.mubr.bf16.mxu0 %v3847
        %4296 = vmatmul.mubr.bf16.gmra.mrb[0].mxu0 %v3846
        %v4297 = vpop.f32.mrb[0].mxu0
        %v4298 = vadd.f32 %v4105, %v4297
        %v4299 = vpop.f32.mrb[0].mxu0
        %v4300 = vadd.f32 %v4107, %v4299
        %v4301 = vpop.f32.mrb[0].mxu0
        %v4302 = vadd.f32 %v4109, %v4301
        %v4303 = vpop.f32.mrb[0].mxu0
        %v4304 = vadd.f32 %v4111, %v4303
        %4305 = vmatprep.mubr.bf16.mxu0 %v3849
        %4306 = vmatmul.mubr.bf16.gmra.mrb[0].mxu0 %v3848
        %v4307 = vpop.f32.mrb[0].mxu0
        %v4308 = vadd.f32 %v4115, %v4307
        %v4309 = vpop.f32.mrb[0].mxu0
        %v4310 = vadd.f32 %v4117, %v4309
        %v4311 = vpop.f32.mrb[0].mxu0
        %v4312 = vadd.f32 %v4119, %v4311
        %v4313 = vpop.f32.mrb[0].mxu0
        %v4314 = vadd.f32 %v4121, %v4313
        %4315 = vmatprep.mubr.bf16.mxu0 %v3851
        %4316 = vmatmul.mubr.bf16.gmra.mrb[0].mxu0 %v3850
        %v4317 = vpop.f32.mrb[0].mxu0
        %v4318 = vadd.f32 %v4125, %v4317
        %v4319 = vpop.f32.mrb[0].mxu0
        %v4320 = vadd.f32 %v4127, %v4319
        %v4321 = vpop.f32.mrb[0].mxu0
        %v4322 = vadd.f32 %v4129, %v4321
        %v4323 = vpop.f32.mrb[0].mxu0
        %v4324 = vadd.f32 %v4131, %v4323
        %4325 = vmatprep.mubr.bf16.mxu0 %v3853
        %4326 = vmatmul.mubr.bf16.gmra.mrb[0].mxu0 %v3852
        %v4327 = vpop.f32.mrb[0].mxu0
        %v4328 = vadd.f32 %v4135, %v4327
        %v4329 = vpop.f32.mrb[0].mxu0
        %v4330 = vadd.f32 %v4137, %v4329
        %v4331 = vpop.f32.mrb[0].mxu0
        %v4332 = vadd.f32 %v4139, %v4331
        %v4333 = vpop.f32.mrb[0].mxu0
        %v4334 = vadd.f32 %v4141, %v4333
        %4335 = vmatprep.mubr.bf16.mxu0 %v3855
        %4336 = vmatmul.mubr.bf16.gmra.mrb[0].mxu0 %v3854
        %v4337 = vpop.f32.mrb[0].mxu0
        %v4338 = vadd.f32 %v4145, %v4337
        %v4339 = vpop.f32.mrb[0].mxu0
        %v4340 = vadd.f32 %v4147, %v4339
        %v4341 = vpop.f32.mrb[0].mxu0
        %v4342 = vadd.f32 %v4149, %v4341
        %v4343 = vpop.f32.mrb[0].mxu0
        %v4344 = vadd.f32 %v4151, %v4343
        %4345 = vmatprep.mubr.bf16.mxu0 %v3857
        %4346 = vmatmul.mubr.bf16.gmra.mrb[0].mxu0 %v3856
        %v4347 = vpop.f32.mrb[0].mxu0
        %v4348 = vadd.f32 %v4155, %v4347
        %v4349 = vpop.f32.mrb[0].mxu0
        %v4350 = vadd.f32 %v4157, %v4349
        %v4351 = vpop.f32.mrb[0].mxu0
        %v4352 = vadd.f32 %v4159, %v4351
        %v4353 = vpop.f32.mrb[0].mxu0
        %v4354 = vadd.f32 %v4161, %v4353
        %4355 = vmatprep.mubr.bf16.mxu0 %v3859
        %4356 = vmatmul.mubr.bf16.gmra.mrb[0].mxu0 %v3858
        %v4357 = vpop.f32.mrb[0].mxu0
        %v4358 = vadd.f32 %v4165, %v4357
        %v4359 = vpop.f32.mrb[0].mxu0
        %v4360 = vadd.f32 %v4167, %v4359
        %v4361 = vpop.f32.mrb[0].mxu0
        %v4362 = vadd.f32 %v4169, %v4361
        %v4363 = vpop.f32.mrb[0].mxu0
        %v4364 = vadd.f32 %v4171, %v4363
        %4365 = vmatprep.mubr.bf16.mxu0 %v3861
        %4366 = vmatmul.mubr.bf16.gmra.mrb[0].mxu0 %v3860
        %v4367 = vpop.f32.mrb[0].mxu0
        %v4368 = vadd.f32 %v4175, %v4367
        %v4369 = vpop.f32.mrb[0].mxu0
        %v4370 = vadd.f32 %v4177, %v4369
        %v4371 = vpop.f32.mrb[0].mxu0
        %v4372 = vadd.f32 %v4179, %v4371
        %v4373 = vpop.f32.mrb[0].mxu0
        %v4374 = vadd.f32 %v4181, %v4373
        %4375 = vmatprep.mubr.bf16.mxu0 %v3863
        %4376 = vmatmul.mubr.bf16.gmra.mrb[0].mxu0 %v3862
        %v4377 = vpop.f32.mrb[0].mxu0
        %v4378 = vadd.f32 %v4185, %v4377
        %v4379 = vpop.f32.mrb[0].mxu0
        %v4380 = vadd.f32 %v4187, %v4379
        %v4381 = vpop.f32.mrb[0].mxu0
        %v4382 = vadd.f32 %v4189, %v4381
        %v4383 = vpop.f32.mrb[0].mxu0
        %v4384 = vadd.f32 %v4191, %v4383
        %4385 = vmatprep.mubr.bf16.mxu0 %v3865
        %4386 = vmatmul.mubr.bf16.gmra.mrb[0].mxu0 %v3864
        %v4387 = vpop.f32.mrb[0].mxu0
        %v4388 = vadd.f32 %v4195, %v4387
        %v4389 = vpop.f32.mrb[0].mxu0
        %v4390 = vadd.f32 %v4197, %v4389
        %v4391 = vpop.f32.mrb[0].mxu0
        %v4392 = vadd.f32 %v4199, %v4391
        %v4393 = vpop.f32.mrb[0].mxu0
        %v4394 = vadd.f32 %v4201, %v4393
        %4395 = vmatprep.mubr.bf16.mxu0 %v3867
        %4396 = vmatmul.mubr.bf16.gmra.mrb[0].mxu0 %v3866
        %v4397 = vpop.f32.mrb[0].mxu0
        %v4398 = vadd.f32 %v4205, %v4397
        %v4399 = vpop.f32.mrb[0].mxu0
        %v4400 = vadd.f32 %v4207, %v4399
        %v4401 = vpop.f32.mrb[0].mxu0
        %v4402 = vadd.f32 %v4209, %v4401
        %v4403 = vpop.f32.mrb[0].mxu0
        %v4404 = vadd.f32 %v4211, %v4403
        %4405 = vmatprep.mubr.bf16.mxu0 %v3869
        %4406 = vmatmul.mubr.bf16.gmra.mrb[0].mxu0 %v3868
        %v4407 = vpop.f32.mrb[0].mxu0
        %v4408 = vadd.f32 %v4215, %v4407
        %v4409 = vpop.f32.mrb[0].mxu0
        %v4410 = vadd.f32 %v4217, %v4409
        %v4411 = vpop.f32.mrb[0].mxu0
        %v4412 = vadd.f32 %v4219, %v4411
        %v4413 = vpop.f32.mrb[0].mxu0
        %v4414 = vadd.f32 %v4221, %v4413
        %4415 = vdwg.mxu0
        %v4416 = vpack.c.bf16 %v2460, %v2458
        %v4417 = vpack.c.bf16 %v2461, %v2459
        %v4418 = vpack.c.bf16 %v2464, %v2462
        %v4419 = vpack.c.bf16 %v2465, %v2463
        %v4420 = vpack.c.bf16 %v2468, %v2466
        %v4421 = vpack.c.bf16 %v2469, %v2467
        %v4422 = vpack.c.bf16 %v2472, %v2470
        %v4423 = vpack.c.bf16 %v2473, %v2471
        %v4424 = vpack.c.bf16 %v2476, %v2474
        %v4425 = vpack.c.bf16 %v2477, %v2475
        %v4426 = vpack.c.bf16 %v2480, %v2478
        %v4427 = vpack.c.bf16 %v2481, %v2479
        %v4428 = vpack.c.bf16 %v2484, %v2482
        %v4429 = vpack.c.bf16 %v2485, %v2483
        %v4430 = vpack.c.bf16 %v2488, %v2486
        %v4431 = vpack.c.bf16 %v2489, %v2487
        %v4432 = vpack.c.bf16 %v2492, %v2490
        %v4433 = vpack.c.bf16 %v2493, %v2491
        %v4434 = vpack.c.bf16 %v2496, %v2494
        %v4435 = vpack.c.bf16 %v2497, %v2495
        %v4436 = vpack.c.bf16 %v2500, %v2498
        %v4437 = vpack.c.bf16 %v2501, %v2499
        %v4438 = vpack.c.bf16 %v2504, %v2502
        %v4439 = vpack.c.bf16 %v2505, %v2503
        %v4440 = vpack.c.bf16 %v2508, %v2506
        %v4441 = vpack.c.bf16 %v2509, %v2507
        %v4442 = vpack.c.bf16 %v2512, %v2510
        %v4443 = vpack.c.bf16 %v2513, %v2511
        %v4444 = vpack.c.bf16 %v2516, %v2514
        %v4445 = vpack.c.bf16 %v2517, %v2515
        %v4446 = vpack.c.bf16 %v2520, %v2518
        %v4447 = vpack.c.bf16 %v2521, %v2519
        %v4448 = vunpack.c.l.bf16 %v4416
        %v4449 = vunpack.c.l.bf16 %v4417
        %v4450 = vunpack.c.h.bf16 %v4416
        %v4451 = vunpack.c.h.bf16 %v4417
        %v4452 = vunpack.c.l.bf16 %v4418
        %v4453 = vunpack.c.l.bf16 %v4419
        %v4454 = vunpack.c.h.bf16 %v4418
        %v4455 = vunpack.c.h.bf16 %v4419
        %v4456 = vunpack.c.l.bf16 %v4420
        %v4457 = vunpack.c.l.bf16 %v4421
        %v4458 = vunpack.c.h.bf16 %v4420
        %v4459 = vunpack.c.h.bf16 %v4421
        %v4460 = vunpack.c.l.bf16 %v4422
        %v4461 = vunpack.c.l.bf16 %v4423
        %v4462 = vunpack.c.h.bf16 %v4422
        %v4463 = vunpack.c.h.bf16 %v4423
        %v4464 = vunpack.c.l.bf16 %v4424
        %v4465 = vunpack.c.l.bf16 %v4425
        %v4466 = vunpack.c.h.bf16 %v4424
        %v4467 = vunpack.c.h.bf16 %v4425
        %v4468 = vunpack.c.l.bf16 %v4426
        %v4469 = vunpack.c.l.bf16 %v4427
        %v4470 = vunpack.c.h.bf16 %v4426
        %v4471 = vunpack.c.h.bf16 %v4427
        %v4472 = vunpack.c.l.bf16 %v4428
        %v4473 = vunpack.c.l.bf16 %v4429
        %v4474 = vunpack.c.h.bf16 %v4428
        %v4475 = vunpack.c.h.bf16 %v4429
        %v4476 = vunpack.c.l.bf16 %v4430
        %v4477 = vunpack.c.l.bf16 %v4431
        %v4478 = vunpack.c.h.bf16 %v4430
        %v4479 = vunpack.c.h.bf16 %v4431
        %v4480 = vunpack.c.l.bf16 %v4432
        %v4481 = vunpack.c.l.bf16 %v4433
        %v4482 = vunpack.c.h.bf16 %v4432
        %v4483 = vunpack.c.h.bf16 %v4433
        %v4484 = vunpack.c.l.bf16 %v4434
        %v4485 = vunpack.c.l.bf16 %v4435
        %v4486 = vunpack.c.h.bf16 %v4434
        %v4487 = vunpack.c.h.bf16 %v4435
        %v4488 = vunpack.c.l.bf16 %v4436
        %v4489 = vunpack.c.l.bf16 %v4437
        %v4490 = vunpack.c.h.bf16 %v4436
        %v4491 = vunpack.c.h.bf16 %v4437
        %v4492 = vunpack.c.l.bf16 %v4438
        %v4493 = vunpack.c.l.bf16 %v4439
        %v4494 = vunpack.c.h.bf16 %v4438
        %v4495 = vunpack.c.h.bf16 %v4439
        %v4496 = vunpack.c.l.bf16 %v4440
        %v4497 = vunpack.c.l.bf16 %v4441
        %v4498 = vunpack.c.h.bf16 %v4440
        %v4499 = vunpack.c.h.bf16 %v4441
        %v4500 = vunpack.c.l.bf16 %v4442
        %v4501 = vunpack.c.l.bf16 %v4443
        %v4502 = vunpack.c.h.bf16 %v4442
        %v4503 = vunpack.c.h.bf16 %v4443
        %v4504 = vunpack.c.l.bf16 %v4444
        %v4505 = vunpack.c.l.bf16 %v4445
        %v4506 = vunpack.c.h.bf16 %v4444
        %v4507 = vunpack.c.h.bf16 %v4445
        %v4508 = vunpack.c.l.bf16 %v4446
        %v4509 = vunpack.c.l.bf16 %v4447
        %v4510 = vunpack.c.h.bf16 %v4446
        %v4511 = vunpack.c.h.bf16 %v4447
        %v4512 = vsub.f32 %v2458, %v4448
        %v4513 = vsub.f32 %v2459, %v4449
        %v4514 = vsub.f32 %v2460, %v4450
        %v4515 = vsub.f32 %v2461, %v4451
        %v4516 = vsub.f32 %v2462, %v4452
        %v4517 = vsub.f32 %v2463, %v4453
        %v4518 = vsub.f32 %v2464, %v4454
        %v4519 = vsub.f32 %v2465, %v4455
        %v4520 = vsub.f32 %v2466, %v4456
        %v4521 = vsub.f32 %v2467, %v4457
        %v4522 = vsub.f32 %v2468, %v4458
        %v4523 = vsub.f32 %v2469, %v4459
        %v4524 = vsub.f32 %v2470, %v4460
        %v4525 = vsub.f32 %v2471, %v4461
        %v4526 = vsub.f32 %v2472, %v4462
        %v4527 = vsub.f32 %v2473, %v4463
        %v4528 = vsub.f32 %v2474, %v4464
        %v4529 = vsub.f32 %v2475, %v4465
        %v4530 = vsub.f32 %v2476, %v4466
        %v4531 = vsub.f32 %v2477, %v4467
        %v4532 = vsub.f32 %v2478, %v4468
        %v4533 = vsub.f32 %v2479, %v4469
        %v4534 = vsub.f32 %v2480, %v4470
        %v4535 = vsub.f32 %v2481, %v4471
        %v4536 = vsub.f32 %v2482, %v4472
        %v4537 = vsub.f32 %v2483, %v4473
        %v4538 = vsub.f32 %v2484, %v4474
        %v4539 = vsub.f32 %v2485, %v4475
        %v4540 = vsub.f32 %v2486, %v4476
        %v4541 = vsub.f32 %v2487, %v4477
        %v4542 = vsub.f32 %v2488, %v4478
        %v4543 = vsub.f32 %v2489, %v4479
        %v4544 = vsub.f32 %v2490, %v4480
        %v4545 = vsub.f32 %v2491, %v4481
        %v4546 = vsub.f32 %v2492, %v4482
        %v4547 = vsub.f32 %v2493, %v4483
        %v4548 = vsub.f32 %v2494, %v4484
        %v4549 = vsub.f32 %v2495, %v4485
        %v4550 = vsub.f32 %v2496, %v4486
        %v4551 = vsub.f32 %v2497, %v4487
        %v4552 = vsub.f32 %v2498, %v4488
        %v4553 = vsub.f32 %v2499, %v4489
        %v4554 = vsub.f32 %v2500, %v4490
        %v4555 = vsub.f32 %v2501, %v4491
        %v4556 = vsub.f32 %v2502, %v4492
        %v4557 = vsub.f32 %v2503, %v4493
        %v4558 = vsub.f32 %v2504, %v4494
        %v4559 = vsub.f32 %v2505, %v4495
        %v4560 = vsub.f32 %v2506, %v4496
        %v4561 = vsub.f32 %v2507, %v4497
        %v4562 = vsub.f32 %v2508, %v4498
        %v4563 = vsub.f32 %v2509, %v4499
        %v4564 = vsub.f32 %v2510, %v4500
        %v4565 = vsub.f32 %v2511, %v4501
        %v4566 = vsub.f32 %v2512, %v4502
        %v4567 = vsub.f32 %v2513, %v4503
        %v4568 = vsub.f32 %v2514, %v4504
        %v4569 = vsub.f32 %v2515, %v4505
        %v4570 = vsub.f32 %v2516, %v4506
        %v4571 = vsub.f32 %v2517, %v4507
        %v4572 = vsub.f32 %v2518, %v4508
        %v4573 = vsub.f32 %v2519, %v4509
        %v4574 = vsub.f32 %v2520, %v4510
        %v4575 = vsub.f32 %v2521, %v4511
        %v4576 = vpack.c.bf16 %v4514, %v4512
        %v4577 = vpack.c.bf16 %v4515, %v4513
        %v4578 = vpack.c.bf16 %v4518, %v4516
        %v4579 = vpack.c.bf16 %v4519, %v4517
        %v4580 = vpack.c.bf16 %v4522, %v4520
        %v4581 = vpack.c.bf16 %v4523, %v4521
        %v4582 = vpack.c.bf16 %v4526, %v4524
        %v4583 = vpack.c.bf16 %v4527, %v4525
        %v4584 = vpack.c.bf16 %v4530, %v4528
        %v4585 = vpack.c.bf16 %v4531, %v4529
        %v4586 = vpack.c.bf16 %v4534, %v4532
        %v4587 = vpack.c.bf16 %v4535, %v4533
        %v4588 = vpack.c.bf16 %v4538, %v4536
        %v4589 = vpack.c.bf16 %v4539, %v4537
        %v4590 = vpack.c.bf16 %v4542, %v4540
        %v4591 = vpack.c.bf16 %v4543, %v4541
        %v4592 = vpack.c.bf16 %v4546, %v4544
        %v4593 = vpack.c.bf16 %v4547, %v4545
        %v4594 = vpack.c.bf16 %v4550, %v4548
        %v4595 = vpack.c.bf16 %v4551, %v4549
        %v4596 = vpack.c.bf16 %v4554, %v4552
        %v4597 = vpack.c.bf16 %v4555, %v4553
        %v4598 = vpack.c.bf16 %v4558, %v4556
        %v4599 = vpack.c.bf16 %v4559, %v4557
        %v4600 = vpack.c.bf16 %v4562, %v4560
        %v4601 = vpack.c.bf16 %v4563, %v4561
        %v4602 = vpack.c.bf16 %v4566, %v4564
        %v4603 = vpack.c.bf16 %v4567, %v4565
        %v4604 = vpack.c.bf16 %v4570, %v4568
        %v4605 = vpack.c.bf16 %v4571, %v4569
        %v4606 = vpack.c.bf16 %v4574, %v4572
        %v4607 = vpack.c.bf16 %v4575, %v4573
        %4608 = vmatprep.subr.bf16.mxu0 %v2811
        %4609 = vmatpush1.bf16.msra.mxu0 %v2810
        %4610 = vmatprep.subr.bf16.mxu0 %v2813
        %4611 = vmatpush1.bf16.msra.mxu0 %v2812
        %4612 = vmatprep.subr.bf16.mxu0 %v2815
        %4613 = vmatpush1.bf16.msra.mxu0 %v2814
        %4614 = vmatprep.subr.bf16.mxu0 %v2817
        %4615 = vmatpush1.bf16.msra.mxu0 %v2816
        %4616 = vmatprep.subr.bf16.mxu0 %v2819
        %4617 = vmatpush1.bf16.msra.mxu0 %v2818
        %4618 = vmatprep.subr.bf16.mxu0 %v2821
        %4619 = vmatpush1.bf16.msra.mxu0 %v2820
        %4620 = vmatprep.subr.bf16.mxu0 %v2823
        %4621 = vmatpush1.bf16.msra.mxu0 %v2822
        %4622 = vmatprep.subr.bf16.mxu0 %v2825
        %4623 = vmatpush1.bf16.msra.mxu0 %v2824
        %4624 = vmatprep.subr.bf16.mxu0 %v2827
        %4625 = vmatpush1.bf16.msra.mxu0 %v2826
        %4626 = vmatprep.subr.bf16.mxu0 %v2829
        %4627 = vmatpush1.bf16.msra.mxu0 %v2828
        %4628 = vmatprep.subr.bf16.mxu0 %v2831
        %4629 = vmatpush1.bf16.msra.mxu0 %v2830
        %4630 = vmatprep.subr.bf16.mxu0 %v2833
        %4631 = vmatpush1.bf16.msra.mxu0 %v2832
        %4632 = vmatprep.subr.bf16.mxu0 %v2835
        %4633 = vmatpush1.bf16.msra.mxu0 %v2834
        %4634 = vmatprep.subr.bf16.mxu0 %v2837
        %4635 = vmatpush1.bf16.msra.mxu0 %v2836
        %4636 = vmatprep.subr.bf16.mxu0 %v2839
        %4637 = vmatpush1.bf16.msra.mxu0 %v2838
        %4638 = vmatprep.subr.bf16.mxu0 %v2841
        %4639 = vmatpush1.bf16.msra.mxu0 %v2840
        %4640 = vmatprep.mubr.bf16.mxu0 %v4577
        %4641 = vmatmul.mubr.bf16.gmra.mrb[0].mxu0 %v4576
        %v4642 = vpop.f32.mrb[0].mxu0
        %v4643 = vadd.f32 0.0, %v4642
        %v4644 = vpop.f32.mrb[0].mxu0
        %v4645 = vadd.f32 0.0, %v4644
        %v4646 = vpop.f32.mrb[0].mxu0
        %v4647 = vadd.f32 0.0, %v4646
        %v4648 = vpop.f32.mrb[0].mxu0
        %v4649 = vadd.f32 0.0, %v4648
        %4650 = vmatprep.mubr.bf16.mxu0 %v4579
        %4651 = vmatmul.mubr.bf16.gmra.mrb[0].mxu0 %v4578
        %v4652 = vpop.f32.mrb[0].mxu0
        %v4653 = vadd.f32 0.0, %v4652
        %v4654 = vpop.f32.mrb[0].mxu0
        %v4655 = vadd.f32 0.0, %v4654
        %v4656 = vpop.f32.mrb[0].mxu0
        %v4657 = vadd.f32 0.0, %v4656
        %v4658 = vpop.f32.mrb[0].mxu0
        %v4659 = vadd.f32 0.0, %v4658
        %4660 = vmatprep.mubr.bf16.mxu0 %v4581
        %4661 = vmatmul.mubr.bf16.gmra.mrb[0].mxu0 %v4580
        %v4662 = vpop.f32.mrb[0].mxu0
        %v4663 = vadd.f32 0.0, %v4662
        %v4664 = vpop.f32.mrb[0].mxu0
        %v4665 = vadd.f32 0.0, %v4664
        %v4666 = vpop.f32.mrb[0].mxu0
        %v4667 = vadd.f32 0.0, %v4666
        %v4668 = vpop.f32.mrb[0].mxu0
        %v4669 = vadd.f32 0.0, %v4668
        %4670 = vmatprep.mubr.bf16.mxu0 %v4583
        %4671 = vmatmul.mubr.bf16.gmra.mrb[0].mxu0 %v4582
        %v4672 = vpop.f32.mrb[0].mxu0
        %v4673 = vadd.f32 0.0, %v4672
        %v4674 = vpop.f32.mrb[0].mxu0
        %v4675 = vadd.f32 0.0, %v4674
        %v4676 = vpop.f32.mrb[0].mxu0
        %v4677 = vadd.f32 0.0, %v4676
        %v4678 = vpop.f32.mrb[0].mxu0
        %v4679 = vadd.f32 0.0, %v4678
        %4680 = vmatprep.mubr.bf16.mxu0 %v4585
        %4681 = vmatmul.mubr.bf16.gmra.mrb[0].mxu0 %v4584
        %v4682 = vpop.f32.mrb[0].mxu0
        %v4683 = vadd.f32 0.0, %v4682
        %v4684 = vpop.f32.mrb[0].mxu0
        %v4685 = vadd.f32 0.0, %v4684
        %v4686 = vpop.f32.mrb[0].mxu0
        %v4687 = vadd.f32 0.0, %v4686
        %v4688 = vpop.f32.mrb[0].mxu0
        %v4689 = vadd.f32 0.0, %v4688
        %4690 = vmatprep.mubr.bf16.mxu0 %v4587
        %4691 = vmatmul.mubr.bf16.gmra.mrb[0].mxu0 %v4586
        %v4692 = vpop.f32.mrb[0].mxu0
        %v4693 = vadd.f32 0.0, %v4692
        %v4694 = vpop.f32.mrb[0].mxu0
        %v4695 = vadd.f32 0.0, %v4694
        %v4696 = vpop.f32.mrb[0].mxu0
        %v4697 = vadd.f32 0.0, %v4696
        %v4698 = vpop.f32.mrb[0].mxu0
        %v4699 = vadd.f32 0.0, %v4698
        %4700 = vmatprep.mubr.bf16.mxu0 %v4589
        %4701 = vmatmul.mubr.bf16.gmra.mrb[0].mxu0 %v4588
        %v4702 = vpop.f32.mrb[0].mxu0
        %v4703 = vadd.f32 0.0, %v4702
        %v4704 = vpop.f32.mrb[0].mxu0
        %v4705 = vadd.f32 0.0, %v4704
        %v4706 = vpop.f32.mrb[0].mxu0
        %v4707 = vadd.f32 0.0, %v4706
        %v4708 = vpop.f32.mrb[0].mxu0
        %v4709 = vadd.f32 0.0, %v4708
        %4710 = vmatprep.mubr.bf16.mxu0 %v4591
        %4711 = vmatmul.mubr.bf16.gmra.mrb[0].mxu0 %v4590
        %v4712 = vpop.f32.mrb[0].mxu0
        %v4713 = vadd.f32 0.0, %v4712
        %v4714 = vpop.f32.mrb[0].mxu0
        %v4715 = vadd.f32 0.0, %v4714
        %v4716 = vpop.f32.mrb[0].mxu0
        %v4717 = vadd.f32 0.0, %v4716
        %v4718 = vpop.f32.mrb[0].mxu0
        %v4719 = vadd.f32 0.0, %v4718
        %4720 = vmatprep.mubr.bf16.mxu0 %v4593
        %4721 = vmatmul.mubr.bf16.gmra.mrb[0].mxu0 %v4592
        %v4722 = vpop.f32.mrb[0].mxu0
        %v4723 = vadd.f32 0.0, %v4722
        %v4724 = vpop.f32.mrb[0].mxu0
        %v4725 = vadd.f32 0.0, %v4724
        %v4726 = vpop.f32.mrb[0].mxu0
        %v4727 = vadd.f32 0.0, %v4726
        %v4728 = vpop.f32.mrb[0].mxu0
        %v4729 = vadd.f32 0.0, %v4728
        %4730 = vmatprep.mubr.bf16.mxu0 %v4595
        %4731 = vmatmul.mubr.bf16.gmra.mrb[0].mxu0 %v4594
        %v4732 = vpop.f32.mrb[0].mxu0
        %v4733 = vadd.f32 0.0, %v4732
        %v4734 = vpop.f32.mrb[0].mxu0
        %v4735 = vadd.f32 0.0, %v4734
        %v4736 = vpop.f32.mrb[0].mxu0
        %v4737 = vadd.f32 0.0, %v4736
        %v4738 = vpop.f32.mrb[0].mxu0
        %v4739 = vadd.f32 0.0, %v4738
        %4740 = vmatprep.mubr.bf16.mxu0 %v4597
        %4741 = vmatmul.mubr.bf16.gmra.mrb[0].mxu0 %v4596
        %v4742 = vpop.f32.mrb[0].mxu0
        %v4743 = vadd.f32 0.0, %v4742
        %v4744 = vpop.f32.mrb[0].mxu0
        %v4745 = vadd.f32 0.0, %v4744
        %v4746 = vpop.f32.mrb[0].mxu0
        %v4747 = vadd.f32 0.0, %v4746
        %v4748 = vpop.f32.mrb[0].mxu0
        %v4749 = vadd.f32 0.0, %v4748
        %4750 = vmatprep.mubr.bf16.mxu0 %v4599
        %4751 = vmatmul.mubr.bf16.gmra.mrb[0].mxu0 %v4598
        %v4752 = vpop.f32.mrb[0].mxu0
        %v4753 = vadd.f32 0.0, %v4752
        %v4754 = vpop.f32.mrb[0].mxu0
        %v4755 = vadd.f32 0.0, %v4754
        %v4756 = vpop.f32.mrb[0].mxu0
        %v4757 = vadd.f32 0.0, %v4756
        %v4758 = vpop.f32.mrb[0].mxu0
        %v4759 = vadd.f32 0.0, %v4758
        %4760 = vmatprep.mubr.bf16.mxu0 %v4601
        %4761 = vmatmul.mubr.bf16.gmra.mrb[0].mxu0 %v4600
        %v4762 = vpop.f32.mrb[0].mxu0
        %v4763 = vadd.f32 0.0, %v4762
        %v4764 = vpop.f32.mrb[0].mxu0
        %v4765 = vadd.f32 0.0, %v4764
        %v4766 = vpop.f32.mrb[0].mxu0
        %v4767 = vadd.f32 0.0, %v4766
        %v4768 = vpop.f32.mrb[0].mxu0
        %v4769 = vadd.f32 0.0, %v4768
        %4770 = vmatprep.mubr.bf16.mxu0 %v4603
        %4771 = vmatmul.mubr.bf16.gmra.mrb[0].mxu0 %v4602
        %v4772 = vpop.f32.mrb[0].mxu0
        %v4773 = vadd.f32 0.0, %v4772
        %v4774 = vpop.f32.mrb[0].mxu0
        %v4775 = vadd.f32 0.0, %v4774
        %v4776 = vpop.f32.mrb[0].mxu0
        %v4777 = vadd.f32 0.0, %v4776
        %v4778 = vpop.f32.mrb[0].mxu0
        %v4779 = vadd.f32 0.0, %v4778
        %4780 = vmatprep.mubr.bf16.mxu0 %v4605
        %4781 = vmatmul.mubr.bf16.gmra.mrb[0].mxu0 %v4604
        %v4782 = vpop.f32.mrb[0].mxu0
        %v4783 = vadd.f32 0.0, %v4782
        %v4784 = vpop.f32.mrb[0].mxu0
        %v4785 = vadd.f32 0.0, %v4784
        %v4786 = vpop.f32.mrb[0].mxu0
        %v4787 = vadd.f32 0.0, %v4786
        %v4788 = vpop.f32.mrb[0].mxu0
        %v4789 = vadd.f32 0.0, %v4788
        %4790 = vmatprep.mubr.bf16.mxu0 %v4607
        %4791 = vmatmul.mubr.bf16.gmra.mrb[0].mxu0 %v4606
        %v4792 = vpop.f32.mrb[0].mxu0
        %v4793 = vadd.f32 0.0, %v4792
        %v4794 = vpop.f32.mrb[0].mxu0
        %v4795 = vadd.f32 0.0, %v4794
        %v4796 = vpop.f32.mrb[0].mxu0
        %v4797 = vadd.f32 0.0, %v4796
        %v4798 = vpop.f32.mrb[0].mxu0
        %v4799 = vadd.f32 0.0, %v4798
        %4800 = vdwg.mxu0
        %4801 = vmatprep.subr.bf16.mxu0 %v2811
        %4802 = vmatpush1.bf16.msra.mxu0 %v2810
        %4803 = vmatprep.subr.bf16.mxu0 %v2813
        %4804 = vmatpush1.bf16.msra.mxu0 %v2812
        %4805 = vmatprep.subr.bf16.mxu0 %v2815
        %4806 = vmatpush1.bf16.msra.mxu0 %v2814
        %4807 = vmatprep.subr.bf16.mxu0 %v2817
        %4808 = vmatpush1.bf16.msra.mxu0 %v2816
        %4809 = vmatprep.subr.bf16.mxu0 %v2819
        %4810 = vmatpush1.bf16.msra.mxu0 %v2818
        %4811 = vmatprep.subr.bf16.mxu0 %v2821
        %4812 = vmatpush1.bf16.msra.mxu0 %v2820
        %4813 = vmatprep.subr.bf16.mxu0 %v2823
        %4814 = vmatpush1.bf16.msra.mxu0 %v2822
        %4815 = vmatprep.subr.bf16.mxu0 %v2825
        %4816 = vmatpush1.bf16.msra.mxu0 %v2824
        %4817 = vmatprep.subr.bf16.mxu0 %v2827
        %4818 = vmatpush1.bf16.msra.mxu0 %v2826
        %4819 = vmatprep.subr.bf16.mxu0 %v2829
        %4820 = vmatpush1.bf16.msra.mxu0 %v2828
        %4821 = vmatprep.subr.bf16.mxu0 %v2831
        %4822 = vmatpush1.bf16.msra.mxu0 %v2830
        %4823 = vmatprep.subr.bf16.mxu0 %v2833
        %4824 = vmatpush1.bf16.msra.mxu0 %v2832
        %4825 = vmatprep.subr.bf16.mxu0 %v2835
        %4826 = vmatpush1.bf16.msra.mxu0 %v2834
        %4827 = vmatprep.subr.bf16.mxu0 %v2837
        %4828 = vmatpush1.bf16.msra.mxu0 %v2836
        %4829 = vmatprep.subr.bf16.mxu0 %v2839
        %4830 = vmatpush1.bf16.msra.mxu0 %v2838
        %4831 = vmatprep.subr.bf16.mxu0 %v2841
        %4832 = vmatpush1.bf16.msra.mxu0 %v2840
        %4833 = vmatprep.mubr.bf16.mxu0 %v4417
        %4834 = vmatmul.mubr.bf16.gmra.mrb[0].mxu0 %v4416
        %v4835 = vpop.f32.mrb[0].mxu0
        %v4836 = vadd.f32 %v4643, %v4835
        %v4837 = vpop.f32.mrb[0].mxu0
        %v4838 = vadd.f32 %v4645, %v4837
        %v4839 = vpop.f32.mrb[0].mxu0
        %v4840 = vadd.f32 %v4647, %v4839
        %v4841 = vpop.f32.mrb[0].mxu0
        %v4842 = vadd.f32 %v4649, %v4841
        %4843 = vmatprep.mubr.bf16.mxu0 %v4419
        %4844 = vmatmul.mubr.bf16.gmra.mrb[0].mxu0 %v4418
        %v4845 = vpop.f32.mrb[0].mxu0
        %v4846 = vadd.f32 %v4653, %v4845
        %v4847 = vpop.f32.mrb[0].mxu0
        %v4848 = vadd.f32 %v4655, %v4847
        %v4849 = vpop.f32.mrb[0].mxu0
        %v4850 = vadd.f32 %v4657, %v4849
        %v4851 = vpop.f32.mrb[0].mxu0
        %v4852 = vadd.f32 %v4659, %v4851
        %4853 = vmatprep.mubr.bf16.mxu0 %v4421
        %4854 = vmatmul.mubr.bf16.gmra.mrb[0].mxu0 %v4420
        %v4855 = vpop.f32.mrb[0].mxu0
        %v4856 = vadd.f32 %v4663, %v4855
        %v4857 = vpop.f32.mrb[0].mxu0
        %v4858 = vadd.f32 %v4665, %v4857
        %v4859 = vpop.f32.mrb[0].mxu0
        %v4860 = vadd.f32 %v4667, %v4859
        %v4861 = vpop.f32.mrb[0].mxu0
        %v4862 = vadd.f32 %v4669, %v4861
        %4863 = vmatprep.mubr.bf16.mxu0 %v4423
        %4864 = vmatmul.mubr.bf16.gmra.mrb[0].mxu0 %v4422
        %v4865 = vpop.f32.mrb[0].mxu0
        %v4866 = vadd.f32 %v4673, %v4865
        %v4867 = vpop.f32.mrb[0].mxu0
        %v4868 = vadd.f32 %v4675, %v4867
        %v4869 = vpop.f32.mrb[0].mxu0
        %v4870 = vadd.f32 %v4677, %v4869
        %v4871 = vpop.f32.mrb[0].mxu0
        %v4872 = vadd.f32 %v4679, %v4871
        %4873 = vmatprep.mubr.bf16.mxu0 %v4425
        %4874 = vmatmul.mubr.bf16.gmra.mrb[0].mxu0 %v4424
        %v4875 = vpop.f32.mrb[0].mxu0
        %v4876 = vadd.f32 %v4683, %v4875
        %v4877 = vpop.f32.mrb[0].mxu0
        %v4878 = vadd.f32 %v4685, %v4877
        %v4879 = vpop.f32.mrb[0].mxu0
        %v4880 = vadd.f32 %v4687, %v4879
        %v4881 = vpop.f32.mrb[0].mxu0
        %v4882 = vadd.f32 %v4689, %v4881
        %4883 = vmatprep.mubr.bf16.mxu0 %v4427
        %4884 = vmatmul.mubr.bf16.gmra.mrb[0].mxu0 %v4426
        %v4885 = vpop.f32.mrb[0].mxu0
        %v4886 = vadd.f32 %v4693, %v4885
        %v4887 = vpop.f32.mrb[0].mxu0
        %v4888 = vadd.f32 %v4695, %v4887
        %v4889 = vpop.f32.mrb[0].mxu0
        %v4890 = vadd.f32 %v4697, %v4889
        %v4891 = vpop.f32.mrb[0].mxu0
        %v4892 = vadd.f32 %v4699, %v4891
        %4893 = vmatprep.mubr.bf16.mxu0 %v4429
        %4894 = vmatmul.mubr.bf16.gmra.mrb[0].mxu0 %v4428
        %v4895 = vpop.f32.mrb[0].mxu0
        %v4896 = vadd.f32 %v4703, %v4895
        %v4897 = vpop.f32.mrb[0].mxu0
        %v4898 = vadd.f32 %v4705, %v4897
        %v4899 = vpop.f32.mrb[0].mxu0
        %v4900 = vadd.f32 %v4707, %v4899
        %v4901 = vpop.f32.mrb[0].mxu0
        %v4902 = vadd.f32 %v4709, %v4901
        %4903 = vmatprep.mubr.bf16.mxu0 %v4431
        %4904 = vmatmul.mubr.bf16.gmra.mrb[0].mxu0 %v4430
        %v4905 = vpop.f32.mrb[0].mxu0
        %v4906 = vadd.f32 %v4713, %v4905
        %v4907 = vpop.f32.mrb[0].mxu0
        %v4908 = vadd.f32 %v4715, %v4907
        %v4909 = vpop.f32.mrb[0].mxu0
        %v4910 = vadd.f32 %v4717, %v4909
        %v4911 = vpop.f32.mrb[0].mxu0
        %v4912 = vadd.f32 %v4719, %v4911
        %4913 = vmatprep.mubr.bf16.mxu0 %v4433
        %4914 = vmatmul.mubr.bf16.gmra.mrb[0].mxu0 %v4432
        %v4915 = vpop.f32.mrb[0].mxu0
        %v4916 = vadd.f32 %v4723, %v4915
        %v4917 = vpop.f32.mrb[0].mxu0
        %v4918 = vadd.f32 %v4725, %v4917
        %v4919 = vpop.f32.mrb[0].mxu0
        %v4920 = vadd.f32 %v4727, %v4919
        %v4921 = vpop.f32.mrb[0].mxu0
        %v4922 = vadd.f32 %v4729, %v4921
        %4923 = vmatprep.mubr.bf16.mxu0 %v4435
        %4924 = vmatmul.mubr.bf16.gmra.mrb[0].mxu0 %v4434
        %v4925 = vpop.f32.mrb[0].mxu0
        %v4926 = vadd.f32 %v4733, %v4925
        %v4927 = vpop.f32.mrb[0].mxu0
        %v4928 = vadd.f32 %v4735, %v4927
        %v4929 = vpop.f32.mrb[0].mxu0
        %v4930 = vadd.f32 %v4737, %v4929
        %v4931 = vpop.f32.mrb[0].mxu0
        %v4932 = vadd.f32 %v4739, %v4931
        %4933 = vmatprep.mubr.bf16.mxu0 %v4437
        %4934 = vmatmul.mubr.bf16.gmra.mrb[0].mxu0 %v4436
        %v4935 = vpop.f32.mrb[0].mxu0
        %v4936 = vadd.f32 %v4743, %v4935
        %v4937 = vpop.f32.mrb[0].mxu0
        %v4938 = vadd.f32 %v4745, %v4937
        %v4939 = vpop.f32.mrb[0].mxu0
        %v4940 = vadd.f32 %v4747, %v4939
        %v4941 = vpop.f32.mrb[0].mxu0
        %v4942 = vadd.f32 %v4749, %v4941
        %4943 = vmatprep.mubr.bf16.mxu0 %v4439
        %4944 = vmatmul.mubr.bf16.gmra.mrb[0].mxu0 %v4438
        %v4945 = vpop.f32.mrb[0].mxu0
        %v4946 = vadd.f32 %v4753, %v4945
        %v4947 = vpop.f32.mrb[0].mxu0
        %v4948 = vadd.f32 %v4755, %v4947
        %v4949 = vpop.f32.mrb[0].mxu0
        %v4950 = vadd.f32 %v4757, %v4949
        %v4951 = vpop.f32.mrb[0].mxu0
        %v4952 = vadd.f32 %v4759, %v4951
        %4953 = vmatprep.mubr.bf16.mxu0 %v4441
        %4954 = vmatmul.mubr.bf16.gmra.mrb[0].mxu0 %v4440
        %v4955 = vpop.f32.mrb[0].mxu0
        %v4956 = vadd.f32 %v4763, %v4955
        %v4957 = vpop.f32.mrb[0].mxu0
        %v4958 = vadd.f32 %v4765, %v4957
        %v4959 = vpop.f32.mrb[0].mxu0
        %v4960 = vadd.f32 %v4767, %v4959
        %v4961 = vpop.f32.mrb[0].mxu0
        %v4962 = vadd.f32 %v4769, %v4961
        %4963 = vmatprep.mubr.bf16.mxu0 %v4443
        %4964 = vmatmul.mubr.bf16.gmra.mrb[0].mxu0 %v4442
        %v4965 = vpop.f32.mrb[0].mxu0
        %v4966 = vadd.f32 %v4773, %v4965
        %v4967 = vpop.f32.mrb[0].mxu0
        %v4968 = vadd.f32 %v4775, %v4967
        %v4969 = vpop.f32.mrb[0].mxu0
        %v4970 = vadd.f32 %v4777, %v4969
        %v4971 = vpop.f32.mrb[0].mxu0
        %v4972 = vadd.f32 %v4779, %v4971
        %4973 = vmatprep.mubr.bf16.mxu0 %v4445
        %4974 = vmatmul.mubr.bf16.gmra.mrb[0].mxu0 %v4444
        %v4975 = vpop.f32.mrb[0].mxu0
        %v4976 = vadd.f32 %v4783, %v4975
        %v4977 = vpop.f32.mrb[0].mxu0
        %v4978 = vadd.f32 %v4785, %v4977
        %v4979 = vpop.f32.mrb[0].mxu0
        %v4980 = vadd.f32 %v4787, %v4979
        %v4981 = vpop.f32.mrb[0].mxu0
        %v4982 = vadd.f32 %v4789, %v4981
        %4983 = vmatprep.mubr.bf16.mxu0 %v4447
        %4984 = vmatmul.mubr.bf16.gmra.mrb[0].mxu0 %v4446
        %v4985 = vpop.f32.mrb[0].mxu0
        %v4986 = vadd.f32 %v4793, %v4985
        %v4987 = vpop.f32.mrb[0].mxu0
        %v4988 = vadd.f32 %v4795, %v4987
        %v4989 = vpop.f32.mrb[0].mxu0
        %v4990 = vadd.f32 %v4797, %v4989
        %v4991 = vpop.f32.mrb[0].mxu0
        %v4992 = vadd.f32 %v4799, %v4991
        %4993 = vdwg.mxu0
        %4994 = vst [vmem:[%s922] sm:$0xff] %v3102
        %4995 = vst [vmem:[%s922 + $0x8] sm:$0xff] %v3106
        %4996 = vst [vmem:[%s922 + $0x10] sm:$0xff] %v3112
        %4997 = vst [vmem:[%s922 + $0x18] sm:$0xff] %v3116
        %4998 = vst [vmem:[%s922 + $0x20] sm:$0xff] %v3122
        %4999 = vst [vmem:[%s922 + $0x28] sm:$0xff] %v3126
        %5000 = vst [vmem:[%s922 + $0x30] sm:$0xff] %v3132
        %5001 = vst [vmem:[%s922 + $0x38] sm:$0xff] %v3136
        %5002 = vst [vmem:[%s922 + $0x40] sm:$0xff] %v3142
        %5003 = vst [vmem:[%s922 + $0x48] sm:$0xff] %v3146
        %5004 = vst [vmem:[%s922 + $0x50] sm:$0xff] %v3152
        %5005 = vst [vmem:[%s922 + $0x58] sm:$0xff] %v3156
        %5006 = vst [vmem:[%s922 + $0x60] sm:$0xff] %v3162
        %5007 = vst [vmem:[%s922 + $0x68] sm:$0xff] %v3166
        %5008 = vst [vmem:[%s922 + $0x70] sm:$0xff] %v3172
        %5009 = vst [vmem:[%s922 + $0x78] sm:$0xff] %v3176
        %5010 = vst [vmem:[%s922 + $0x80] sm:$0xff] %v3182
        %5011 = vst [vmem:[%s922 + $0x88] sm:$0xff] %v3186
        %5012 = vst [vmem:[%s922 + $0x90] sm:$0xff] %v3192
        %5013 = vst [vmem:[%s922 + $0x98] sm:$0xff] %v3196
        %5014 = vst [vmem:[%s922 + $0xa0] sm:$0xff] %v3202
        %5015 = vst [vmem:[%s922 + $0xa8] sm:$0xff] %v3206
        %5016 = vst [vmem:[%s922 + $0xb0] sm:$0xff] %v3212
        %5017 = vst [vmem:[%s922 + $0xb8] sm:$0xff] %v3216
        %5018 = vst [vmem:[%s922 + $0xc0] sm:$0xff] %v3222
        %5019 = vst [vmem:[%s922 + $0xc8] sm:$0xff] %v3226
        %5020 = vst [vmem:[%s922 + $0xd0] sm:$0xff] %v3232
        %5021 = vst [vmem:[%s922 + $0xd8] sm:$0xff] %v3236
        %5022 = vst [vmem:[%s922 + $0xe0] sm:$0xff] %v3242
        %5023 = vst [vmem:[%s922 + $0xe8] sm:$0xff] %v3246
        %5024 = vst [vmem:[%s922 + $0xf0] sm:$0xff] %v3252
        %5025 = vst [vmem:[%s922 + $0xf8] sm:$0xff] %v3256
        %5026 = vst [vmem:[%s928] sm:$0xff] %v4258
        %5027 = vst [vmem:[%s928 + $0x8] sm:$0xff] %v4262
        %5028 = vst [vmem:[%s928 + $0x10] sm:$0xff] %v4268
        %5029 = vst [vmem:[%s928 + $0x18] sm:$0xff] %v4272
        %5030 = vst [vmem:[%s928 + $0x20] sm:$0xff] %v4278
        %5031 = vst [vmem:[%s928 + $0x28] sm:$0xff] %v4282
        %5032 = vst [vmem:[%s928 + $0x30] sm:$0xff] %v4288
        %5033 = vst [vmem:[%s928 + $0x38] sm:$0xff] %v4292
        %5034 = vst [vmem:[%s928 + $0x40] sm:$0xff] %v4298
        %5035 = vst [vmem:[%s928 + $0x48] sm:$0xff] %v4302
        %5036 = vst [vmem:[%s928 + $0x50] sm:$0xff] %v4308
        %5037 = vst [vmem:[%s928 + $0x58] sm:$0xff] %v4312
        %5038 = vst [vmem:[%s928 + $0x60] sm:$0xff] %v4318
        %5039 = vst [vmem:[%s928 + $0x68] sm:$0xff] %v4322
        %5040 = vst [vmem:[%s928 + $0x70] sm:$0xff] %v4328
        %5041 = vst [vmem:[%s928 + $0x78] sm:$0xff] %v4332
        %5042 = vst [vmem:[%s928 + $0x80] sm:$0xff] %v4338
        %5043 = vst [vmem:[%s928 + $0x88] sm:$0xff] %v4342
        %5044 = vst [vmem:[%s928 + $0x90] sm:$0xff] %v4348
        %5045 = vst [vmem:[%s928 + $0x98] sm:$0xff] %v4352
        %5046 = vst [vmem:[%s928 + $0xa0] sm:$0xff] %v4358
        %5047 = vst [vmem:[%s928 + $0xa8] sm:$0xff] %v4362
        %5048 = vst [vmem:[%s928 + $0xb0] sm:$0xff] %v4368
        %5049 = vst [vmem:[%s928 + $0xb8] sm:$0xff] %v4372
        %5050 = vst [vmem:[%s928 + $0xc0] sm:$0xff] %v4378
        %5051 = vst [vmem:[%s928 + $0xc8] sm:$0xff] %v4382
        %5052 = vst [vmem:[%s928 + $0xd0] sm:$0xff] %v4388
        %5053 = vst [vmem:[%s928 + $0xd8] sm:$0xff] %v4392
        %5054 = vst [vmem:[%s928 + $0xe0] sm:$0xff] %v4398
        %5055 = vst [vmem:[%s928 + $0xe8] sm:$0xff] %v4402
        %5056 = vst [vmem:[%s928 + $0xf0] sm:$0xff] %v4408
        %5057 = vst [vmem:[%s928 + $0xf8] sm:$0xff] %v4412
        %v5058 = vld [vmem:[%s989] sm:$0xff]
        %v5059 = vmul.f32 %v3104, %v4260
        %v5060 = vmul.f32 %v3108, %v4264
        %v5061 = vmul.f32 %v3114, %v4270
        %v5062 = vmul.f32 %v3118, %v4274
        %v5063 = vmul.f32 %v3124, %v4280
        %v5064 = vmul.f32 %v3128, %v4284
        %v5065 = vmul.f32 %v3134, %v4290
        %v5066 = vmul.f32 %v3138, %v4294
        %v5067 = vmul.f32 %v3144, %v4300
        %v5068 = vmul.f32 %v3148, %v4304
        %v5069 = vmul.f32 %v3154, %v4310
        %v5070 = vmul.f32 %v3158, %v4314
        %v5071 = vmul.f32 %v3164, %v4320
        %v5072 = vmul.f32 %v3168, %v4324
        %v5073 = vmul.f32 %v3174, %v4330
        %v5074 = vmul.f32 %v3178, %v4334
        %v5075 = vmul.f32 %v3184, %v4340
        %v5076 = vmul.f32 %v3188, %v4344
        %v5077 = vmul.f32 %v3194, %v4350
        %v5078 = vmul.f32 %v3198, %v4354
        %v5079 = vmul.f32 %v3204, %v4360
        %v5080 = vmul.f32 %v3208, %v4364
        %v5081 = vmul.f32 %v3214, %v4370
        %v5082 = vmul.f32 %v3218, %v4374
        %v5083 = vmul.f32 %v3224, %v4380
        %v5084 = vmul.f32 %v3228, %v4384
        %v5085 = vmul.f32 %v3234, %v4390
        %v5086 = vmul.f32 %v3238, %v4394
        %v5087 = vmul.f32 %v3244, %v4400
        %v5088 = vmul.f32 %v3248, %v4404
        %v5089 = vmul.f32 %v3254, %v4410
        %v5090 = vmul.f32 %v3258, %v4414
        %v5091 = vmul.f32 %v3680, %v4836
        %v5092 = vmul.f32 %v3684, %v4840
        %v5093 = vmul.f32 %v3690, %v4846
        %v5094 = vmul.f32 %v3694, %v4850
        %v5095 = vmul.f32 %v3700, %v4856
        %v5096 = vmul.f32 %v3704, %v4860
        %v5097 = vmul.f32 %v3710, %v4866
        %v5098 = vmul.f32 %v3714, %v4870
        %v5099 = vmul.f32 %v3720, %v4876
        %v5100 = vmul.f32 %v3724, %v4880
        %v5101 = vmul.f32 %v3730, %v4886
        %v5102 = vmul.f32 %v3734, %v4890
        %v5103 = vmul.f32 %v3740, %v4896
        %v5104 = vmul.f32 %v3744, %v4900
        %v5105 = vmul.f32 %v3750, %v4906
        %v5106 = vmul.f32 %v3754, %v4910
        %v5107 = vmul.f32 %v3760, %v4916
        %v5108 = vmul.f32 %v3764, %v4920
        %v5109 = vmul.f32 %v3770, %v4926
        %v5110 = vmul.f32 %v3774, %v4930
        %v5111 = vmul.f32 %v3780, %v4936
        %v5112 = vmul.f32 %v3784, %v4940
        %v5113 = vmul.f32 %v3790, %v4946
        %v5114 = vmul.f32 %v3794, %v4950
        %v5115 = vmul.f32 %v3800, %v4956
        %v5116 = vmul.f32 %v3804, %v4960
        %v5117 = vmul.f32 %v3810, %v4966
        %v5118 = vmul.f32 %v3814, %v4970
        %v5119 = vmul.f32 %v3820, %v4976
        %v5120 = vmul.f32 %v3824, %v4980
        %v5121 = vmul.f32 %v3830, %v4986
        %v5122 = vmul.f32 %v3834, %v4990
        %v5123 = vadd.f32 %v5059, %v5091
        %v5124 = vadd.f32 %v5060, %v5092
        %v5125 = vadd.f32 %v5061, %v5093
        %v5126 = vadd.f32 %v5062, %v5094
        %v5127 = vadd.f32 %v5063, %v5095
        %v5128 = vadd.f32 %v5064, %v5096
        %v5129 = vadd.f32 %v5065, %v5097
        %v5130 = vadd.f32 %v5066, %v5098
        %v5131 = vadd.f32 %v5067, %v5099
        %v5132 = vadd.f32 %v5068, %v5100
        %v5133 = vadd.f32 %v5069, %v5101
        %v5134 = vadd.f32 %v5070, %v5102
        %v5135 = vadd.f32 %v5071, %v5103
        %v5136 = vadd.f32 %v5072, %v5104
        %v5137 = vadd.f32 %v5073, %v5105
        %v5138 = vadd.f32 %v5074, %v5106
        %v5139 = vadd.f32 %v5075, %v5107
        %v5140 = vadd.f32 %v5076, %v5108
        %v5141 = vadd.f32 %v5077, %v5109
        %v5142 = vadd.f32 %v5078, %v5110
        %v5143 = vadd.f32 %v5079, %v5111
        %v5144 = vadd.f32 %v5080, %v5112
        %v5145 = vadd.f32 %v5081, %v5113
        %v5146 = vadd.f32 %v5082, %v5114
        %v5147 = vadd.f32 %v5083, %v5115
        %v5148 = vadd.f32 %v5084, %v5116
        %v5149 = vadd.f32 %v5085, %v5117
        %v5150 = vadd.f32 %v5086, %v5118
        %v5151 = vadd.f32 %v5087, %v5119
        %v5152 = vadd.f32 %v5088, %v5120
        %v5153 = vadd.f32 %v5089, %v5121
        %v5154 = vadd.f32 %v5090, %v5122
        %v5155 = vadd.f32 %v5123, %v5131
        %v5156 = vadd.f32 %v5155, %v5139
        %v5157 = vadd.f32 %v5156, %v5147
        %v5158 = vadd.f32 %v5124, %v5132
        %v5159 = vadd.f32 %v5158, %v5140
        %v5160 = vadd.f32 %v5159, %v5148
        %v5161 = vadd.f32 %v5125, %v5133
        %v5162 = vadd.f32 %v5161, %v5141
        %v5163 = vadd.f32 %v5162, %v5149
        %v5164 = vadd.f32 %v5126, %v5134
        %v5165 = vadd.f32 %v5164, %v5142
        %v5166 = vadd.f32 %v5165, %v5150
        %v5167 = vadd.f32 %v5127, %v5135
        %v5168 = vadd.f32 %v5167, %v5143
        %v5169 = vadd.f32 %v5168, %v5151
        %v5170 = vadd.f32 %v5128, %v5136
        %v5171 = vadd.f32 %v5170, %v5144
        %v5172 = vadd.f32 %v5171, %v5152
        %v5173 = vadd.f32 %v5129, %v5137
        %v5174 = vadd.f32 %v5173, %v5145
        %v5175 = vadd.f32 %v5174, %v5153
        %v5176 = vadd.f32 %v5130, %v5138
        %v5177 = vadd.f32 %v5176, %v5146
        %v5178 = vadd.f32 %v5177, %v5154
        %v5179 = vmul.f32 %v3104, %v3104
        %v5180 = vmul.f32 %v3108, %v3108
        %v5181 = vmul.f32 %v3114, %v3114
        %v5182 = vmul.f32 %v3118, %v3118
        %v5183 = vmul.f32 %v3124, %v3124
        %v5184 = vmul.f32 %v3128, %v3128
        %v5185 = vmul.f32 %v3134, %v3134
        %v5186 = vmul.f32 %v3138, %v3138
        %v5187 = vmul.f32 %v3144, %v3144
        %v5188 = vmul.f32 %v3148, %v3148
        %v5189 = vmul.f32 %v3154, %v3154
        %v5190 = vmul.f32 %v3158, %v3158
        %v5191 = vmul.f32 %v3164, %v3164
        %v5192 = vmul.f32 %v3168, %v3168
        %v5193 = vmul.f32 %v3174, %v3174
        %v5194 = vmul.f32 %v3178, %v3178
        %v5195 = vmul.f32 %v3184, %v3184
        %v5196 = vmul.f32 %v3188, %v3188
        %v5197 = vmul.f32 %v3194, %v3194
        %v5198 = vmul.f32 %v3198, %v3198
        %v5199 = vmul.f32 %v3204, %v3204
        %v5200 = vmul.f32 %v3208, %v3208
        %v5201 = vmul.f32 %v3214, %v3214
        %v5202 = vmul.f32 %v3218, %v3218
        %v5203 = vmul.f32 %v3224, %v3224
        %v5204 = vmul.f32 %v3228, %v3228
        %v5205 = vmul.f32 %v3234, %v3234
        %v5206 = vmul.f32 %v3238, %v3238
        %v5207 = vmul.f32 %v3244, %v3244
        %v5208 = vmul.f32 %v3248, %v3248
        %v5209 = vmul.f32 %v3254, %v3254
        %v5210 = vmul.f32 %v3258, %v3258
        %v5211 = vmul.f32 %v3680, %v3680
        %v5212 = vmul.f32 %v3684, %v3684
        %v5213 = vmul.f32 %v3690, %v3690
        %v5214 = vmul.f32 %v3694, %v3694
        %v5215 = vmul.f32 %v3700, %v3700
        %v5216 = vmul.f32 %v3704, %v3704
        %v5217 = vmul.f32 %v3710, %v3710
        %v5218 = vmul.f32 %v3714, %v3714
        %v5219 = vmul.f32 %v3720, %v3720
        %v5220 = vmul.f32 %v3724, %v3724
        %v5221 = vmul.f32 %v3730, %v3730
        %v5222 = vmul.f32 %v3734, %v3734
        %v5223 = vmul.f32 %v3740, %v3740
        %v5224 = vmul.f32 %v3744, %v3744
        %v5225 = vmul.f32 %v3750, %v3750
        %v5226 = vmul.f32 %v3754, %v3754
        %v5227 = vmul.f32 %v3760, %v3760
        %v5228 = vmul.f32 %v3764, %v3764
        %v5229 = vmul.f32 %v3770, %v3770
        %v5230 = vmul.f32 %v3774, %v3774
        %v5231 = vmul.f32 %v3780, %v3780
        %v5232 = vmul.f32 %v3784, %v3784
        %v5233 = vmul.f32 %v3790, %v3790
        %v5234 = vmul.f32 %v3794, %v3794
        %v5235 = vmul.f32 %v3800, %v3800
        %v5236 = vmul.f32 %v3804, %v3804
        %v5237 = vmul.f32 %v3810, %v3810
        %v5238 = vmul.f32 %v3814, %v3814
        %v5239 = vmul.f32 %v3820, %v3820
        %v5240 = vmul.f32 %v3824, %v3824
        %v5241 = vmul.f32 %v3830, %v3830
        %v5242 = vmul.f32 %v3834, %v3834
        %v5243 = vadd.f32 %v5179, %v5211
        %v5244 = vadd.f32 %v5180, %v5212
        %v5245 = vadd.f32 %v5181, %v5213
        %v5246 = vadd.f32 %v5182, %v5214
        %v5247 = vadd.f32 %v5183, %v5215
        %v5248 = vadd.f32 %v5184, %v5216
        %v5249 = vadd.f32 %v5185, %v5217
        %v5250 = vadd.f32 %v5186, %v5218
        %v5251 = vadd.f32 %v5187, %v5219
        %v5252 = vadd.f32 %v5188, %v5220
        %v5253 = vadd.f32 %v5189, %v5221
        %v5254 = vadd.f32 %v5190, %v5222
        %v5255 = vadd.f32 %v5191, %v5223
        %v5256 = vadd.f32 %v5192, %v5224
        %v5257 = vadd.f32 %v5193, %v5225
        %v5258 = vadd.f32 %v5194, %v5226
        %v5259 = vadd.f32 %v5195, %v5227
        %v5260 = vadd.f32 %v5196, %v5228
        %v5261 = vadd.f32 %v5197, %v5229
        %v5262 = vadd.f32 %v5198, %v5230
        %v5263 = vadd.f32 %v5199, %v5231
        %v5264 = vadd.f32 %v5200, %v5232
        %v5265 = vadd.f32 %v5201, %v5233
        %v5266 = vadd.f32 %v5202, %v5234
        %v5267 = vadd.f32 %v5203, %v5235
        %v5268 = vadd.f32 %v5204, %v5236
        %v5269 = vadd.f32 %v5205, %v5237
        %v5270 = vadd.f32 %v5206, %v5238
        %v5271 = vadd.f32 %v5207, %v5239
        %v5272 = vadd.f32 %v5208, %v5240
        %v5273 = vadd.f32 %v5209, %v5241
        %v5274 = vadd.f32 %v5210, %v5242
        %v5275 = vadd.f32 %v5243, %v5251
        %v5276 = vadd.f32 %v5275, %v5259
        %v5277 = vadd.f32 %v5276, %v5267
        %v5278 = vadd.f32 %v5244, %v5252
        %v5279 = vadd.f32 %v5278, %v5260
        %v5280 = vadd.f32 %v5279, %v5268
        %v5281 = vadd.f32 %v5245, %v5253
        %v5282 = vadd.f32 %v5281, %v5261
        %v5283 = vadd.f32 %v5282, %v5269
        %v5284 = vadd.f32 %v5246, %v5254
        %v5285 = vadd.f32 %v5284, %v5262
        %v5286 = vadd.f32 %v5285, %v5270
        %v5287 = vadd.f32 %v5247, %v5255
        %v5288 = vadd.f32 %v5287, %v5263
        %v5289 = vadd.f32 %v5288, %v5271
        %v5290 = vadd.f32 %v5248, %v5256
        %v5291 = vadd.f32 %v5290, %v5264
        %v5292 = vadd.f32 %v5291, %v5272
        %v5293 = vadd.f32 %v5249, %v5257
        %v5294 = vadd.f32 %v5293, %v5265
        %v5295 = vadd.f32 %v5294, %v5273
        %v5296 = vadd.f32 %v5250, %v5258
        %v5297 = vadd.f32 %v5296, %v5266
        %v5298 = vadd.f32 %v5297, %v5274
        %v5299 = vmul.f32 %v4260, %v4260
        %v5300 = vmul.f32 %v4264, %v4264
        %v5301 = vmul.f32 %v4270, %v4270
        %v5302 = vmul.f32 %v4274, %v4274
        %v5303 = vmul.f32 %v4280, %v4280
        %v5304 = vmul.f32 %v4284, %v4284
        %v5305 = vmul.f32 %v4290, %v4290
        %v5306 = vmul.f32 %v4294, %v4294
        %v5307 = vmul.f32 %v4300, %v4300
        %v5308 = vmul.f32 %v4304, %v4304
        %v5309 = vmul.f32 %v4310, %v4310
        %v5310 = vmul.f32 %v4314, %v4314
        %v5311 = vmul.f32 %v4320, %v4320
        %v5312 = vmul.f32 %v4324, %v4324
        %v5313 = vmul.f32 %v4330, %v4330
        %v5314 = vmul.f32 %v4334, %v4334
        %v5315 = vmul.f32 %v4340, %v4340
        %v5316 = vmul.f32 %v4344, %v4344
        %v5317 = vmul.f32 %v4350, %v4350
        %v5318 = vmul.f32 %v4354, %v4354
        %v5319 = vmul.f32 %v4360, %v4360
        %v5320 = vmul.f32 %v4364, %v4364
        %v5321 = vmul.f32 %v4370, %v4370
        %v5322 = vmul.f32 %v4374, %v4374
        %v5323 = vmul.f32 %v4380, %v4380
        %v5324 = vmul.f32 %v4384, %v4384
        %v5325 = vmul.f32 %v4390, %v4390
        %v5326 = vmul.f32 %v4394, %v4394
        %v5327 = vmul.f32 %v4400, %v4400
        %v5328 = vmul.f32 %v4404, %v4404
        %v5329 = vmul.f32 %v4410, %v4410
        %v5330 = vmul.f32 %v4414, %v4414
        %v5331 = vmul.f32 %v4836, %v4836
        %v5332 = vmul.f32 %v4840, %v4840
        %v5333 = vmul.f32 %v4846, %v4846
        %v5334 = vmul.f32 %v4850, %v4850
        %v5335 = vmul.f32 %v4856, %v4856
        %v5336 = vmul.f32 %v4860, %v4860
        %v5337 = vmul.f32 %v4866, %v4866
        %v5338 = vmul.f32 %v4870, %v4870
        %v5339 = vmul.f32 %v4876, %v4876
        %v5340 = vmul.f32 %v4880, %v4880
        %v5341 = vmul.f32 %v4886, %v4886
        %v5342 = vmul.f32 %v4890, %v4890
        %v5343 = vmul.f32 %v4896, %v4896
        %v5344 = vmul.f32 %v4900, %v4900
        %v5345 = vmul.f32 %v4906, %v4906
        %v5346 = vmul.f32 %v4910, %v4910
        %v5347 = vmul.f32 %v4916, %v4916
        %v5348 = vmul.f32 %v4920, %v4920
        %v5349 = vmul.f32 %v4926, %v4926
        %v5350 = vmul.f32 %v4930, %v4930
        %v5351 = vmul.f32 %v4936, %v4936
        %v5352 = vmul.f32 %v4940, %v4940
        %v5353 = vmul.f32 %v4946, %v4946
        %v5354 = vmul.f32 %v4950, %v4950
        %v5355 = vmul.f32 %v4956, %v4956
        %v5356 = vmul.f32 %v4960, %v4960
        %v5357 = vmul.f32 %v4966, %v4966
        %v5358 = vmul.f32 %v4970, %v4970
        %v5359 = vmul.f32 %v4976, %v4976
        %v5360 = vmul.f32 %v4980, %v4980
        %v5361 = vmul.f32 %v4986, %v4986
        %v5362 = vmul.f32 %v4990, %v4990
        %v5363 = vadd.f32 %v5299, %v5331
        %v5364 = vadd.f32 %v5300, %v5332
        %v5365 = vadd.f32 %v5301, %v5333
        %v5366 = vadd.f32 %v5302, %v5334
        %v5367 = vadd.f32 %v5303, %v5335
        %v5368 = vadd.f32 %v5304, %v5336
        %v5369 = vadd.f32 %v5305, %v5337
        %v5370 = vadd.f32 %v5306, %v5338
        %v5371 = vadd.f32 %v5307, %v5339
        %v5372 = vadd.f32 %v5308, %v5340
        %v5373 = vadd.f32 %v5309, %v5341
        %v5374 = vadd.f32 %v5310, %v5342
        %v5375 = vadd.f32 %v5311, %v5343
        %v5376 = vadd.f32 %v5312, %v5344
        %v5377 = vadd.f32 %v5313, %v5345
        %v5378 = vadd.f32 %v5314, %v5346
        %v5379 = vadd.f32 %v5315, %v5347
        %v5380 = vadd.f32 %v5316, %v5348
        %v5381 = vadd.f32 %v5317, %v5349
        %v5382 = vadd.f32 %v5318, %v5350
        %v5383 = vadd.f32 %v5319, %v5351
        %v5384 = vadd.f32 %v5320, %v5352
        %v5385 = vadd.f32 %v5321, %v5353
        %v5386 = vadd.f32 %v5322, %v5354
        %v5387 = vadd.f32 %v5323, %v5355
        %v5388 = vadd.f32 %v5324, %v5356
        %v5389 = vadd.f32 %v5325, %v5357
        %v5390 = vadd.f32 %v5326, %v5358
        %v5391 = vadd.f32 %v5327, %v5359
        %v5392 = vadd.f32 %v5328, %v5360
        %v5393 = vadd.f32 %v5329, %v5361
        %v5394 = vadd.f32 %v5330, %v5362
        %v5395 = vadd.f32 %v5363, %v5371
        %v5396 = vadd.f32 %v5395, %v5379
        %v5397 = vadd.f32 %v5396, %v5387
        %v5398 = vadd.f32 %v5364, %v5372
        %v5399 = vadd.f32 %v5398, %v5380
        %v5400 = vadd.f32 %v5399, %v5388
        %v5401 = vadd.f32 %v5365, %v5373
        %v5402 = vadd.f32 %v5401, %v5381
        %v5403 = vadd.f32 %v5402, %v5389
        %v5404 = vadd.f32 %v5366, %v5374
        %v5405 = vadd.f32 %v5404, %v5382
        %v5406 = vadd.f32 %v5405, %v5390
        %v5407 = vadd.f32 %v5367, %v5375
        %v5408 = vadd.f32 %v5407, %v5383
        %v5409 = vadd.f32 %v5408, %v5391
        %v5410 = vadd.f32 %v5368, %v5376
        %v5411 = vadd.f32 %v5410, %v5384
        %v5412 = vadd.f32 %v5411, %v5392
        %v5413 = vadd.f32 %v5369, %v5377
        %v5414 = vadd.f32 %v5413, %v5385
        %v5415 = vadd.f32 %v5414, %v5393
        %v5416 = vadd.f32 %v5370, %v5378
        %v5417 = vadd.f32 %v5416, %v5386
        %v5418 = vadd.f32 %v5417, %v5394
        %v5419 = vmax.f32 %v5277, 1e-16
        %v5420 = vmax.f32 %v5280, 1e-16
        %v5421 = vmax.f32 %v5283, 1e-16
        %v5422 = vmax.f32 %v5286, 1e-16
        %v5423 = vmax.f32 %v5289, 1e-16
        %v5424 = vmax.f32 %v5292, 1e-16
        %v5425 = vmax.f32 %v5295, 1e-16
        %v5426 = vmax.f32 %v5298, 1e-16
        %v5427 = vrsqrt.pop %v5419
        %v5428 = vrsqrt.pop %v5420
        %v5429 = vrsqrt.pop %v5421
        %v5430 = vrsqrt.pop %v5422
        %v5431 = vrsqrt.pop %v5423
        %v5432 = vrsqrt.pop %v5424
        %v5433 = vrsqrt.pop %v5425
        %v5434 = vrsqrt.pop %v5426
        %v5435 = vmul.f32 %v5157, %v5427
        %v5436 = vmul.f32 %v5160, %v5428
        %v5437 = vmul.f32 %v5163, %v5429
        %v5438 = vmul.f32 %v5166, %v5430
        %v5439 = vmul.f32 %v5169, %v5431
        %v5440 = vmul.f32 %v5172, %v5432
        %v5441 = vmul.f32 %v5175, %v5433
        %v5442 = vmul.f32 %v5178, %v5434
        %v5443 = vmax.f32 %v5397, 1e-16
        %v5444 = vmax.f32 %v5400, 1e-16
        %v5445 = vmax.f32 %v5403, 1e-16
        %v5446 = vmax.f32 %v5406, 1e-16
        %v5447 = vmax.f32 %v5409, 1e-16
        %v5448 = vmax.f32 %v5412, 1e-16
        %v5449 = vmax.f32 %v5415, 1e-16
        %v5450 = vmax.f32 %v5418, 1e-16
        %v5451 = vrsqrt.pop %v5443
        %v5452 = vrsqrt.pop %v5444
        %v5453 = vrsqrt.pop %v5445
        %v5454 = vrsqrt.pop %v5446
        %v5455 = vrsqrt.pop %v5447
        %v5456 = vrsqrt.pop %v5448
        %v5457 = vrsqrt.pop %v5449
        %v5458 = vrsqrt.pop %v5450
        %v5459 = vmul.f32 %v5435, %v5451
        %v5460 = vmul.f32 %v5436, %v5452
        %v5461 = vmul.f32 %v5437, %v5453
        %v5462 = vmul.f32 %v5438, %v5454
        %v5463 = vmul.f32 %v5439, %v5455
        %v5464 = vmul.f32 %v5440, %v5456
        %v5465 = vmul.f32 %v5441, %v5457
        %v5466 = vmul.f32 %v5442, %v5458
        %v5467 = vsub.f32 1.0, %v5459
        %v5468 = vsub.f32 1.0, %v5460
        %v5469 = vsub.f32 1.0, %v5461
        %v5470 = vsub.f32 1.0, %v5462
        %v5471 = vsub.f32 1.0, %v5463
        %v5472 = vsub.f32 1.0, %v5464
        %v5473 = vsub.f32 1.0, %v5465
        %v5474 = vsub.f32 1.0, %v5466
        %v5475 = vand.u32 2147483647, %v5467
        %v5476 = vand.u32 2147483647, %v5468
        %v5477 = vand.u32 2147483647, %v5469
        %v5478 = vand.u32 2147483647, %v5470
        %v5479 = vand.u32 2147483647, %v5471
        %v5480 = vand.u32 2147483647, %v5472
        %v5481 = vand.u32 2147483647, %v5473
        %v5482 = vand.u32 2147483647, %v5474
        %v5483 = vadd.f32 %v5475, %v5476
        %v5484 = vadd.f32 %v5483, %v5477
        %v5485 = vadd.f32 %v5484, %v5478
        %v5486 = vadd.f32 %v5485, %v5479
        %v5487 = vadd.f32 %v5486, %v5480
        %v5488 = vadd.f32 %v5487, %v5481
        %v5489 = vadd.f32 %v5488, %v5482
        %5490 = vadd.xlane.f32.xlu0 %v5489
        %v5491 = vpop.xlane.xlu0 %5490
        %v5492 = vrot.slane %v5491, 4
        %v5493 = vadd.f32 %v5491, %v5492
        %v5494 = vrot.slane %v5493, 2
        %v5495 = vadd.f32 %v5493, %v5494
        %v5496 = vrot.slane %v5495, 1
        %v5497 = vadd.f32 %v5495, %v5496
        %s5498 = vtos %v5497
        %v5499 = vstv %s5498
        %v5500 = vadd.f32 %v5058, %v5499
        %5501 = vst [vmem:[%s989] sm:$0xff] %v5500
        %v5502 = vld [vmem:[%s997] sm:$0xff]
        %v5503 = vmul.f32 %v3682, %v4838
        %v5504 = vmul.f32 %v3686, %v4842
        %v5505 = vmul.f32 %v3692, %v4848
        %v5506 = vmul.f32 %v3696, %v4852
        %v5507 = vmul.f32 %v3702, %v4858
        %v5508 = vmul.f32 %v3706, %v4862
        %v5509 = vmul.f32 %v3712, %v4868
        %v5510 = vmul.f32 %v3716, %v4872
        %v5511 = vmul.f32 %v3722, %v4878
        %v5512 = vmul.f32 %v3726, %v4882
        %v5513 = vmul.f32 %v3732, %v4888
        %v5514 = vmul.f32 %v3736, %v4892
        %v5515 = vmul.f32 %v3742, %v4898
        %v5516 = vmul.f32 %v3746, %v4902
        %v5517 = vmul.f32 %v3752, %v4908
        %v5518 = vmul.f32 %v3756, %v4912
        %v5519 = vmul.f32 %v3762, %v4918
        %v5520 = vmul.f32 %v3766, %v4922
        %v5521 = vmul.f32 %v3772, %v4928
        %v5522 = vmul.f32 %v3776, %v4932
        %v5523 = vmul.f32 %v3782, %v4938
        %v5524 = vmul.f32 %v3786, %v4942
        %v5525 = vmul.f32 %v3792, %v4948
        %v5526 = vmul.f32 %v3796, %v4952
        %v5527 = vmul.f32 %v3802, %v4958
        %v5528 = vmul.f32 %v3806, %v4962
        %v5529 = vmul.f32 %v3812, %v4968
        %v5530 = vmul.f32 %v3816, %v4972
        %v5531 = vmul.f32 %v3822, %v4978
        %v5532 = vmul.f32 %v3826, %v4982
        %v5533 = vmul.f32 %v3832, %v4988
        %v5534 = vmul.f32 %v3836, %v4992
        %v5535 = vadd.f32 %v5503, %v5511
        %v5536 = vadd.f32 %v5535, %v5519
        %v5537 = vadd.f32 %v5536, %v5527
        %v5538 = vadd.f32 %v5504, %v5512
        %v5539 = vadd.f32 %v5538, %v5520
        %v5540 = vadd.f32 %v5539, %v5528
        %v5541 = vadd.f32 %v5505, %v5513
        %v5542 = vadd.f32 %v5541, %v5521
        %v5543 = vadd.f32 %v5542, %v5529
        %v5544 = vadd.f32 %v5506, %v5514
        %v5545 = vadd.f32 %v5544, %v5522
        %v5546 = vadd.f32 %v5545, %v5530
        %v5547 = vadd.f32 %v5507, %v5515
        %v5548 = vadd.f32 %v5547, %v5523
        %v5549 = vadd.f32 %v5548, %v5531
        %v5550 = vadd.f32 %v5508, %v5516
        %v5551 = vadd.f32 %v5550, %v5524
        %v5552 = vadd.f32 %v5551, %v5532
        %v5553 = vadd.f32 %v5509, %v5517
        %v5554 = vadd.f32 %v5553, %v5525
        %v5555 = vadd.f32 %v5554, %v5533
        %v5556 = vadd.f32 %v5510, %v5518
        %v5557 = vadd.f32 %v5556, %v5526
        %v5558 = vadd.f32 %v5557, %v5534
        %v5559 = vmul.f32 %v3682, %v3682
        %v5560 = vmul.f32 %v3686, %v3686
        %v5561 = vmul.f32 %v3692, %v3692
        %v5562 = vmul.f32 %v3696, %v3696
        %v5563 = vmul.f32 %v3702, %v3702
        %v5564 = vmul.f32 %v3706, %v3706
        %v5565 = vmul.f32 %v3712, %v3712
        %v5566 = vmul.f32 %v3716, %v3716
        %v5567 = vmul.f32 %v3722, %v3722
        %v5568 = vmul.f32 %v3726, %v3726
        %v5569 = vmul.f32 %v3732, %v3732
        %v5570 = vmul.f32 %v3736, %v3736
        %v5571 = vmul.f32 %v3742, %v3742
        %v5572 = vmul.f32 %v3746, %v3746
        %v5573 = vmul.f32 %v3752, %v3752
        %v5574 = vmul.f32 %v3756, %v3756
        %v5575 = vmul.f32 %v3762, %v3762
        %v5576 = vmul.f32 %v3766, %v3766
        %v5577 = vmul.f32 %v3772, %v3772
        %v5578 = vmul.f32 %v3776, %v3776
        %v5579 = vmul.f32 %v3782, %v3782
        %v5580 = vmul.f32 %v3786, %v3786
        %v5581 = vmul.f32 %v3792, %v3792
        %v5582 = vmul.f32 %v3796, %v3796
        %v5583 = vmul.f32 %v3802, %v3802
        %v5584 = vmul.f32 %v3806, %v3806
        %v5585 = vmul.f32 %v3812, %v3812
        %v5586 = vmul.f32 %v3816, %v3816
        %v5587 = vmul.f32 %v3822, %v3822
        %v5588 = vmul.f32 %v3826, %v3826
        %v5589 = vmul.f32 %v3832, %v3832
        %v5590 = vmul.f32 %v3836, %v3836
        %v5591 = vadd.f32 %v5559, %v5567
        %v5592 = vadd.f32 %v5591, %v5575
        %v5593 = vadd.f32 %v5592, %v5583
        %v5594 = vadd.f32 %v5560, %v5568
        %v5595 = vadd.f32 %v5594, %v5576
        %v5596 = vadd.f32 %v5595, %v5584
        %v5597 = vadd.f32 %v5561, %v5569
        %v5598 = vadd.f32 %v5597, %v5577
        %v5599 = vadd.f32 %v5598, %v5585
        %v5600 = vadd.f32 %v5562, %v5570
        %v5601 = vadd.f32 %v5600, %v5578
        %v5602 = vadd.f32 %v5601, %v5586
        %v5603 = vadd.f32 %v5563, %v5571
        %v5604 = vadd.f32 %v5603, %v5579
        %v5605 = vadd.f32 %v5604, %v5587
        %v5606 = vadd.f32 %v5564, %v5572
        %v5607 = vadd.f32 %v5606, %v5580
        %v5608 = vadd.f32 %v5607, %v5588
        %v5609 = vadd.f32 %v5565, %v5573
        %v5610 = vadd.f32 %v5609, %v5581
        %v5611 = vadd.f32 %v5610, %v5589
        %v5612 = vadd.f32 %v5566, %v5574
        %v5613 = vadd.f32 %v5612, %v5582
        %v5614 = vadd.f32 %v5613, %v5590
        %v5615 = vmul.f32 %v4838, %v4838
        %v5616 = vmul.f32 %v4842, %v4842
        %v5617 = vmul.f32 %v4848, %v4848
        %v5618 = vmul.f32 %v4852, %v4852
        %v5619 = vmul.f32 %v4858, %v4858
        %v5620 = vmul.f32 %v4862, %v4862
        %v5621 = vmul.f32 %v4868, %v4868
        %v5622 = vmul.f32 %v4872, %v4872
        %v5623 = vmul.f32 %v4878, %v4878
        %v5624 = vmul.f32 %v4882, %v4882
        %v5625 = vmul.f32 %v4888, %v4888
        %v5626 = vmul.f32 %v4892, %v4892
        %v5627 = vmul.f32 %v4898, %v4898
        %v5628 = vmul.f32 %v4902, %v4902
        %v5629 = vmul.f32 %v4908, %v4908
        %v5630 = vmul.f32 %v4912, %v4912
        %v5631 = vmul.f32 %v4918, %v4918
        %v5632 = vmul.f32 %v4922, %v4922
        %v5633 = vmul.f32 %v4928, %v4928
        %v5634 = vmul.f32 %v4932, %v4932
        %v5635 = vmul.f32 %v4938, %v4938
        %v5636 = vmul.f32 %v4942, %v4942
        %v5637 = vmul.f32 %v4948, %v4948
        %v5638 = vmul.f32 %v4952, %v4952
        %v5639 = vmul.f32 %v4958, %v4958
        %v5640 = vmul.f32 %v4962, %v4962
        %v5641 = vmul.f32 %v4968, %v4968
        %v5642 = vmul.f32 %v4972, %v4972
        %v5643 = vmul.f32 %v4978, %v4978
        %v5644 = vmul.f32 %v4982, %v4982
        %v5645 = vmul.f32 %v4988, %v4988
        %v5646 = vmul.f32 %v4992, %v4992
        %v5647 = vadd.f32 %v5615, %v5623
        %v5648 = vadd.f32 %v5647, %v5631
        %v5649 = vadd.f32 %v5648, %v5639
        %v5650 = vadd.f32 %v5616, %v5624
        %v5651 = vadd.f32 %v5650, %v5632
        %v5652 = vadd.f32 %v5651, %v5640
        %v5653 = vadd.f32 %v5617, %v5625
        %v5654 = vadd.f32 %v5653, %v5633
        %v5655 = vadd.f32 %v5654, %v5641
        %v5656 = vadd.f32 %v5618, %v5626
        %v5657 = vadd.f32 %v5656, %v5634
        %v5658 = vadd.f32 %v5657, %v5642
        %v5659 = vadd.f32 %v5619, %v5627
        %v5660 = vadd.f32 %v5659, %v5635
        %v5661 = vadd.f32 %v5660, %v5643
        %v5662 = vadd.f32 %v5620, %v5628
        %v5663 = vadd.f32 %v5662, %v5636
        %v5664 = vadd.f32 %v5663, %v5644
        %v5665 = vadd.f32 %v5621, %v5629
        %v5666 = vadd.f32 %v5665, %v5637
        %v5667 = vadd.f32 %v5666, %v5645
        %v5668 = vadd.f32 %v5622, %v5630
        %v5669 = vadd.f32 %v5668, %v5638
        %v5670 = vadd.f32 %v5669, %v5646
        %v5671 = vmax.f32 %v5593, 1e-16
        %v5672 = vmax.f32 %v5596, 1e-16
        %v5673 = vmax.f32 %v5599, 1e-16
        %v5674 = vmax.f32 %v5602, 1e-16
        %v5675 = vmax.f32 %v5605, 1e-16
        %v5676 = vmax.f32 %v5608, 1e-16
        %v5677 = vmax.f32 %v5611, 1e-16
        %v5678 = vmax.f32 %v5614, 1e-16
        %v5679 = vrsqrt.pop %v5671
        %v5680 = vrsqrt.pop %v5672
        %v5681 = vrsqrt.pop %v5673
        %v5682 = vrsqrt.pop %v5674
        %v5683 = vrsqrt.pop %v5675
        %v5684 = vrsqrt.pop %v5676
        %v5685 = vrsqrt.pop %v5677
        %v5686 = vrsqrt.pop %v5678
        %v5687 = vmul.f32 %v5537, %v5679
        %v5688 = vmul.f32 %v5540, %v5680
        %v5689 = vmul.f32 %v5543, %v5681
        %v5690 = vmul.f32 %v5546, %v5682
        %v5691 = vmul.f32 %v5549, %v5683
        %v5692 = vmul.f32 %v5552, %v5684
        %v5693 = vmul.f32 %v5555, %v5685
        %v5694 = vmul.f32 %v5558, %v5686
        %v5695 = vmax.f32 %v5649, 1e-16
        %v5696 = vmax.f32 %v5652, 1e-16
        %v5697 = vmax.f32 %v5655, 1e-16
        %v5698 = vmax.f32 %v5658, 1e-16
        %v5699 = vmax.f32 %v5661, 1e-16
        %v5700 = vmax.f32 %v5664, 1e-16
        %v5701 = vmax.f32 %v5667, 1e-16
        %v5702 = vmax.f32 %v5670, 1e-16
        %v5703 = vrsqrt.pop %v5695
        %v5704 = vrsqrt.pop %v5696
        %v5705 = vrsqrt.pop %v5697
        %v5706 = vrsqrt.pop %v5698
        %v5707 = vrsqrt.pop %v5699
        %v5708 = vrsqrt.pop %v5700
        %v5709 = vrsqrt.pop %v5701
        %v5710 = vrsqrt.pop %v5702
        %v5711 = vmul.f32 %v5687, %v5703
        %v5712 = vmul.f32 %v5688, %v5704
        %v5713 = vmul.f32 %v5689, %v5705
        %v5714 = vmul.f32 %v5690, %v5706
        %v5715 = vmul.f32 %v5691, %v5707
        %v5716 = vmul.f32 %v5692, %v5708
        %v5717 = vmul.f32 %v5693, %v5709
        %v5718 = vmul.f32 %v5694, %v5710
        %v5719 = vsub.f32 1.0, %v5711
        %v5720 = vsub.f32 1.0, %v5712
        %v5721 = vsub.f32 1.0, %v5713
        %v5722 = vsub.f32 1.0, %v5714
        %v5723 = vsub.f32 1.0, %v5715
        %v5724 = vsub.f32 1.0, %v5716
        %v5725 = vsub.f32 1.0, %v5717
        %v5726 = vsub.f32 1.0, %v5718
        %v5727 = vand.u32 2147483647, %v5719
        %v5728 = vand.u32 2147483647, %v5720
        %v5729 = vand.u32 2147483647, %v5721
        %v5730 = vand.u32 2147483647, %v5722
        %v5731 = vand.u32 2147483647, %v5723
        %v5732 = vand.u32 2147483647, %v5724
        %v5733 = vand.u32 2147483647, %v5725
        %v5734 = vand.u32 2147483647, %v5726
        %v5735 = vadd.f32 %v5727, %v5728
        %v5736 = vadd.f32 %v5735, %v5729
        %v5737 = vadd.f32 %v5736, %v5730
        %v5738 = vadd.f32 %v5737, %v5731
        %v5739 = vadd.f32 %v5738, %v5732
        %v5740 = vadd.f32 %v5739, %v5733
        %v5741 = vadd.f32 %v5740, %v5734
        %5742 = vadd.xlane.f32.xlu0 %v5741
        %v5743 = vpop.xlane.xlu0 %5742
        %v5744 = vrot.slane %v5743, 4
        %v5745 = vadd.f32 %v5743, %v5744
        %v5746 = vrot.slane %v5745, 2
        %v5747 = vadd.f32 %v5745, %v5746
        %v5748 = vrot.slane %v5747, 1
        %v5749 = vadd.f32 %v5747, %v5748
        %s5750 = vtos %v5749
        %v5751 = vstv %s5750
        %v5752 = vadd.f32 %v5502, %v5751
        %5753 = vst [vmem:[%s997] sm:$0xff] %v5752
        // Predicated region
        $region83: #{wnormal_forward.1} parent=69 // pred_check
          %p5754 = pneg %p998
        $region84: #{wnormal_forward.1} parent=69 // pred_check_branch
          %5756 = sbr.rel (%p5754) target = $region86
        $region85: #{wnormal_forward.1} parent=69 // pred_region
          %v5757 = vld [vmem:[%s981] sm:$0xff]
          %v5758 = vmul.f32 %v5757, 1.5258789e-05
          %5759 = vst [vmem:[%s981] sm:$0xff] %v5758
          %v5760 = vld [vmem:[%s989] sm:$0xff]
          %v5761 = vmul.f32 %v5760, 6.1035156e-05
          %5762 = vst [vmem:[%s989] sm:$0xff] %v5761
          %v5763 = vld [vmem:[%s997] sm:$0xff]
          %v5764 = vmul.f32 %v5763, 6.1035156e-05
          %5765 = vst [vmem:[%s997] sm:$0xff] %v5764
          %v5766 = vld [vmem:[%s965] sm:$0xff]
          %v5767 = vmul.f32 %v5766, 6.1035156e-05
          %5768 = vst [vmem:[%s965] sm:$0xff] %v5767
        $region86: #{wnormal_forward.1} parent=69 // pred_fallthru
          _
        %s5769 = sand.u32 %s135, 1
        %s5770 = sand.u32 %s135, 1
        %s5771 = smul.addr %s5770, 256
        %s5772 = scalar_lea.vmem [#allocation4], %s5771
        %s5773 = sand.u32 %s165, 1
        %s5774 = sand.u32 %s165, 1
        %s5775 = smul.addr %s5774, 256
        %s5776 = scalar_lea.vmem [#allocation5], %s5775
        %p5777 = scmp.lt.s32.totalorder %s28, 1
        %s5778 = scalar_select %p5777, %s28, 1
        %p5779 = scmp.lt.s32.totalorder %s29, 1
        %s5780 = scalar_select %p5779, %s29, 1
        %s5781 = smul.addr %s5778, 2
        %s5782 = sadd.s32 %s5780, %s5781
        %s5783 = smul.addr %s5782, 8
        %s5784 = scalar_lea.vmem %s5, %s5783
        %p5785 = scmp.lt.s32.totalorder %s28, 1
        %s5786 = scalar_select %p5785, %s28, 1
        %p5787 = scmp.lt.s32.totalorder %s29, 1
        %s5788 = scalar_select %p5787, %s29, 1
        %s5789 = smul.addr %s5786, 2
        %s5790 = sadd.s32 %s5788, %s5789
        %s5791 = smul.addr %s5790, 8
        %s5792 = scalar_lea.vmem %s6, %s5791
        %p5793 = scmp.lt.s32.totalorder %s28, 1
        %s5794 = scalar_select %p5793, %s28, 1
        %p5795 = scmp.lt.s32.totalorder %s29, 1
        %s5796 = scalar_select %p5795, %s29, 1
        %s5797 = smul.addr %s5794, 2
        %s5798 = sadd.s32 %s5796, %s5797
        %s5799 = smul.addr %s5798, 8
        %s5800 = scalar_lea.vmem %s7, %s5799
        %s5801 = sand.u32 %s277, 1
        %s5802 = scalar_lea.sflag [#allocation7], %s5801
        %s5803 = sand.u32 %s277, 1
        %s5804 = smul.addr %s5803, 8
        %s5805 = scalar_lea.vmem [#allocation6], %s5804
        // Predicated region
        $region87: #{wnormal_forward.1} parent=69 // pred_check
          %p5806 = pneg %p145
        $region88: #{wnormal_forward.1} parent=69 // pred_check_branch
          %5808 = sbr.rel (%p5806) target = $region90
        $region89: #{wnormal_forward.1} parent=69 // pred_region
          %s5809 = sadd.s32 %s29, %s30
          %s5810 = smul.u32 8, %s5809
          %s5811 = smul.addr %s28, 64
          %s5812 = sadd.s32 %s5810, %s5811
          %s5813 = smul.addr %s5812, 8
          %s5814 = scalar_lea.vmem %s3, %s5813
          // Predicated region
          $region91: #{wnormal_forward.1} parent=89 // pred_check
            _
          $region92: #{wnormal_forward.1} parent=89 // pred_check_branch
            %5816 = sbr.rel (0) target = $region94
          $region93: #{wnormal_forward.1} parent=89 // pred_region
            // Predicated region
            $region95: #{wnormal_forward.1} parent=93 // pred_check
              _
            $region96: #{wnormal_forward.1} parent=93 // pred_check_branch
              %5818 = sbr.rel (0) target = $region98
            $region97: #{wnormal_forward.1} parent=93 // pred_region
              // Predicated region
              $region110: #{wnormal_forward.1} parent=97 // pred_check
                _
              $region111: #{wnormal_forward.1} parent=97 // pred_check_branch
                %5895 = sbr.rel (0) target = $region113
              $region112: #{wnormal_forward.1} parent=97 // pred_region
                loop: start=0, step=1, limit=1
                $region114: #{wnormal_forward.1} parent=112 // loop_pre_header
                  _
                $region115: #{wnormal_forward.1} parent=112 // loop_header
                  %s5897 = sphi 0, %s5901
                  %p5898 = scmp.ge.s32.totalorder %s5897, 1
                  %s5902 = sphi %s5772, %s5772
                  %s5903 = sphi %s5814, %s5814
                $region116: #{wnormal_forward.1} parent=112 // loop_header_branch
                  %5900 = sbr.rel (%p5898) target = $region120
                $region117: #{wnormal_forward.1} parent=112 // loop_body
                  %v5904 = vld [vmem:[%s5902] sm:$0xff]
                  %5905 = vst [vmem:[%s5903] sm:$0xff] %v5904
                  %v5906 = vld [vmem:[%s5902 + $0x8] sm:$0xff]
                  %5907 = vst [vmem:[%s5903 + $0x8] sm:$0xff] %v5906
                  %v5908 = vld [vmem:[%s5902 + $0x10] sm:$0xff]
                  %5909 = vst [vmem:[%s5903 + $0x10] sm:$0xff] %v5908
                  %v5910 = vld [vmem:[%s5902 + $0x18] sm:$0xff]
                  %5911 = vst [vmem:[%s5903 + $0x18] sm:$0xff] %v5910
                  %v5912 = vld [vmem:[%s5902 + $0x20] sm:$0xff]
                  %5913 = vst [vmem:[%s5903 + $0x20] sm:$0xff] %v5912
                  %v5914 = vld [vmem:[%s5902 + $0x28] sm:$0xff]
                  %5915 = vst [vmem:[%s5903 + $0x28] sm:$0xff] %v5914
                  %v5916 = vld [vmem:[%s5902 + $0x30] sm:$0xff]
                  %5917 = vst [vmem:[%s5903 + $0x30] sm:$0xff] %v5916
                  %v5918 = vld [vmem:[%s5902 + $0x38] sm:$0xff]
                  %5919 = vst [vmem:[%s5903 + $0x38] sm:$0xff] %v5918
                  %v5920 = vld [vmem:[%s5902 + $0x40] sm:$0xff]
                  %5921 = vst [vmem:[%s5903 + $0x80] sm:$0xff] %v5920
                  %v5922 = vld [vmem:[%s5902 + $0x48] sm:$0xff]
                  %5923 = vst [vmem:[%s5903 + $0x88] sm:$0xff] %v5922
                  %v5924 = vld [vmem:[%s5902 + $0x50] sm:$0xff]
                  %5925 = vst [vmem:[%s5903 + $0x90] sm:$0xff] %v5924
                  %v5926 = vld [vmem:[%s5902 + $0x58] sm:$0xff]
                  %5927 = vst [vmem:[%s5903 + $0x98] sm:$0xff] %v5926
                  %v5928 = vld [vmem:[%s5902 + $0x60] sm:$0xff]
                  %5929 = vst [vmem:[%s5903 + $0xa0] sm:$0xff] %v5928
                  %v5930 = vld [vmem:[%s5902 + $0x68] sm:$0xff]
                  %5931 = vst [vmem:[%s5903 + $0xa8] sm:$0xff] %v5930
                  %v5932 = vld [vmem:[%s5902 + $0x70] sm:$0xff]
                  %5933 = vst [vmem:[%s5903 + $0xb0] sm:$0xff] %v5932
                  %v5934 = vld [vmem:[%s5902 + $0x78] sm:$0xff]
                  %5935 = vst [vmem:[%s5903 + $0xb8] sm:$0xff] %v5934
                  %v5936 = vld [vmem:[%s5902 + $0x80] sm:$0xff]
                  %5937 = vst [vmem:[%s5903 + $0x100] sm:$0xff] %v5936
                  %v5938 = vld [vmem:[%s5902 + $0x88] sm:$0xff]
                  %5939 = vst [vmem:[%s5903 + $0x108] sm:$0xff] %v5938
                  %v5940 = vld [vmem:[%s5902 + $0x90] sm:$0xff]
                  %5941 = vst [vmem:[%s5903 + $0x110] sm:$0xff] %v5940
                  %v5942 = vld [vmem:[%s5902 + $0x98] sm:$0xff]
                  %5943 = vst [vmem:[%s5903 + $0x118] sm:$0xff] %v5942
                  %v5944 = vld [vmem:[%s5902 + $0xa0] sm:$0xff]
                  %5945 = vst [vmem:[%s5903 + $0x120] sm:$0xff] %v5944
                  %v5946 = vld [vmem:[%s5902 + $0xa8] sm:$0xff]
                  %5947 = vst [vmem:[%s5903 + $0x128] sm:$0xff] %v5946
                  %v5948 = vld [vmem:[%s5902 + $0xb0] sm:$0xff]
                  %5949 = vst [vmem:[%s5903 + $0x130] sm:$0xff] %v5948
                  %v5950 = vld [vmem:[%s5902 + $0xb8] sm:$0xff]
                  %5951 = vst [vmem:[%s5903 + $0x138] sm:$0xff] %v5950
                  %v5952 = vld [vmem:[%s5902 + $0xc0] sm:$0xff]
                  %5953 = vst [vmem:[%s5903 + $0x180] sm:$0xff] %v5952
                  %v5954 = vld [vmem:[%s5902 + $0xc8] sm:$0xff]
                  %5955 = vst [vmem:[%s5903 + $0x188] sm:$0xff] %v5954
                  %v5956 = vld [vmem:[%s5902 + $0xd0] sm:$0xff]
                  %5957 = vst [vmem:[%s5903 + $0x190] sm:$0xff] %v5956
                  %v5958 = vld [vmem:[%s5902 + $0xd8] sm:$0xff]
                  %5959 = vst [vmem:[%s5903 + $0x198] sm:$0xff] %v5958
                  %v5960 = vld [vmem:[%s5902 + $0xe0] sm:$0xff]
                  %5961 = vst [vmem:[%s5903 + $0x1a0] sm:$0xff] %v5960
                  %v5962 = vld [vmem:[%s5902 + $0xe8] sm:$0xff]
                  %5963 = vst [vmem:[%s5903 + $0x1a8] sm:$0xff] %v5962
                  %v5964 = vld [vmem:[%s5902 + $0xf0] sm:$0xff]
                  %5965 = vst [vmem:[%s5903 + $0x1b0] sm:$0xff] %v5964
                  %v5966 = vld [vmem:[%s5902 + $0xf8] sm:$0xff]
                  %5967 = vst [vmem:[%s5903 + $0x1b8] sm:$0xff] %v5966
                $region118: #{wnormal_forward.1} parent=112 // loop_footer
                  %s5901 = sadd.s32 1, %s5897
                $region119: #{wnormal_forward.1} parent=112 // loop_footer_branch
                  %5896 = sbr.rel target = $region115
                $region120: #{wnormal_forward.1} parent=112 // loop_exit
                  _
              $region113: #{wnormal_forward.1} parent=97 // pred_fallthru
                _
              // Predicated region
              $region121: #{wnormal_forward.1} parent=97 // pred_check
                _
              $region122: #{wnormal_forward.1} parent=97 // pred_check_branch
                %5969 = sbr.rel target = $region124
              $region123: #{wnormal_forward.1} parent=97 // pred_region
                _
              $region124: #{wnormal_forward.1} parent=97 // pred_fallthru
                _
            $region98: #{wnormal_forward.1} parent=93 // pred_fallthru
              _
            // Predicated region
            $region99: #{wnormal_forward.1} parent=93 // pred_check
              _
            $region100: #{wnormal_forward.1} parent=93 // pred_check_branch
              %5820 = sbr.rel target = $region102
            $region101: #{wnormal_forward.1} parent=93 // pred_region
              loop: start=0, step=1, limit=1
              $region103: #{wnormal_forward.1} parent=101 // loop_pre_header
                _
              $region104: #{wnormal_forward.1} parent=101 // loop_header
                %s5823 = sphi 0, %s5827
                %p5824 = scmp.ge.s32.totalorder %s5823, 1
                %s5828 = sphi %s5772, %s5772
                %s5829 = sphi %s5814, %s5814
              $region105: #{wnormal_forward.1} parent=101 // loop_header_branch
                %5826 = sbr.rel (%p5824) target = $region109
              $region106: #{wnormal_forward.1} parent=101 // loop_body
                %v5830 = vld [vmem:[%s5828] sm:$0xff]
                %5831 = vst [vmem:[%s5829] sm:$0xff] %v5830
                %v5832 = vld [vmem:[%s5828 + $0x8] sm:$0xff]
                %5833 = vst [vmem:[%s5829 + $0x8] sm:$0xff] %v5832
                %v5834 = vld [vmem:[%s5828 + $0x10] sm:$0xff]
                %5835 = vst [vmem:[%s5829 + $0x10] sm:$0xff] %v5834
                %v5836 = vld [vmem:[%s5828 + $0x18] sm:$0xff]
                %5837 = vst [vmem:[%s5829 + $0x18] sm:$0xff] %v5836
                %v5838 = vld [vmem:[%s5828 + $0x20] sm:$0xff]
                %5839 = vst [vmem:[%s5829 + $0x20] sm:$0xff] %v5838
                %v5840 = vld [vmem:[%s5828 + $0x28] sm:$0xff]
                %5841 = vst [vmem:[%s5829 + $0x28] sm:$0xff] %v5840
                %v5842 = vld [vmem:[%s5828 + $0x30] sm:$0xff]
                %5843 = vst [vmem:[%s5829 + $0x30] sm:$0xff] %v5842
                %v5844 = vld [vmem:[%s5828 + $0x38] sm:$0xff]
                %5845 = vst [vmem:[%s5829 + $0x38] sm:$0xff] %v5844
                %v5846 = vld [vmem:[%s5828 + $0x40] sm:$0xff]
                %5847 = vst [vmem:[%s5829 + $0x80] sm:$0xff] %v5846
                %v5848 = vld [vmem:[%s5828 + $0x48] sm:$0xff]
                %5849 = vst [vmem:[%s5829 + $0x88] sm:$0xff] %v5848
                %v5850 = vld [vmem:[%s5828 + $0x50] sm:$0xff]
                %5851 = vst [vmem:[%s5829 + $0x90] sm:$0xff] %v5850
                %v5852 = vld [vmem:[%s5828 + $0x58] sm:$0xff]
                %5853 = vst [vmem:[%s5829 + $0x98] sm:$0xff] %v5852
                %v5854 = vld [vmem:[%s5828 + $0x60] sm:$0xff]
                %5855 = vst [vmem:[%s5829 + $0xa0] sm:$0xff] %v5854
                %v5856 = vld [vmem:[%s5828 + $0x68] sm:$0xff]
                %5857 = vst [vmem:[%s5829 + $0xa8] sm:$0xff] %v5856
                %v5858 = vld [vmem:[%s5828 + $0x70] sm:$0xff]
                %5859 = vst [vmem:[%s5829 + $0xb0] sm:$0xff] %v5858
                %v5860 = vld [vmem:[%s5828 + $0x78] sm:$0xff]
                %5861 = vst [vmem:[%s5829 + $0xb8] sm:$0xff] %v5860
                %v5862 = vld [vmem:[%s5828 + $0x80] sm:$0xff]
                %5863 = vst [vmem:[%s5829 + $0x100] sm:$0xff] %v5862
                %v5864 = vld [vmem:[%s5828 + $0x88] sm:$0xff]
                %5865 = vst [vmem:[%s5829 + $0x108] sm:$0xff] %v5864
                %v5866 = vld [vmem:[%s5828 + $0x90] sm:$0xff]
                %5867 = vst [vmem:[%s5829 + $0x110] sm:$0xff] %v5866
                %v5868 = vld [vmem:[%s5828 + $0x98] sm:$0xff]
                %5869 = vst [vmem:[%s5829 + $0x118] sm:$0xff] %v5868
                %v5870 = vld [vmem:[%s5828 + $0xa0] sm:$0xff]
                %5871 = vst [vmem:[%s5829 + $0x120] sm:$0xff] %v5870
                %v5872 = vld [vmem:[%s5828 + $0xa8] sm:$0xff]
                %5873 = vst [vmem:[%s5829 + $0x128] sm:$0xff] %v5872
                %v5874 = vld [vmem:[%s5828 + $0xb0] sm:$0xff]
                %5875 = vst [vmem:[%s5829 + $0x130] sm:$0xff] %v5874
                %v5876 = vld [vmem:[%s5828 + $0xb8] sm:$0xff]
                %5877 = vst [vmem:[%s5829 + $0x138] sm:$0xff] %v5876
                %v5878 = vld [vmem:[%s5828 + $0xc0] sm:$0xff]
                %5879 = vst [vmem:[%s5829 + $0x180] sm:$0xff] %v5878
                %v5880 = vld [vmem:[%s5828 + $0xc8] sm:$0xff]
                %5881 = vst [vmem:[%s5829 + $0x188] sm:$0xff] %v5880
                %v5882 = vld [vmem:[%s5828 + $0xd0] sm:$0xff]
                %5883 = vst [vmem:[%s5829 + $0x190] sm:$0xff] %v5882
                %v5884 = vld [vmem:[%s5828 + $0xd8] sm:$0xff]
                %5885 = vst [vmem:[%s5829 + $0x198] sm:$0xff] %v5884
                %v5886 = vld [vmem:[%s5828 + $0xe0] sm:$0xff]
                %5887 = vst [vmem:[%s5829 + $0x1a0] sm:$0xff] %v5886
                %v5888 = vld [vmem:[%s5828 + $0xe8] sm:$0xff]
                %5889 = vst [vmem:[%s5829 + $0x1a8] sm:$0xff] %v5888
                %v5890 = vld [vmem:[%s5828 + $0xf0] sm:$0xff]
                %5891 = vst [vmem:[%s5829 + $0x1b0] sm:$0xff] %v5890
                %v5892 = vld [vmem:[%s5828 + $0xf8] sm:$0xff]
                %5893 = vst [vmem:[%s5829 + $0x1b8] sm:$0xff] %v5892
              $region107: #{wnormal_forward.1} parent=101 // loop_footer
                %s5827 = sadd.s32 1, %s5823
              $region108: #{wnormal_forward.1} parent=101 // loop_footer_branch
                %5822 = sbr.rel target = $region104
              $region109: #{wnormal_forward.1} parent=101 // loop_exit
                _
            $region102: #{wnormal_forward.1} parent=93 // pred_fallthru
              _
          $region94: #{wnormal_forward.1} parent=89 // pred_fallthru
            _
          %5970 = vnop
        $region90: #{wnormal_forward.1} parent=69 // pred_fallthru
          _
        // Predicated region
        $region125: #{wnormal_forward.1} parent=69 // pred_check
          %p5971 = pneg %p175
        $region126: #{wnormal_forward.1} parent=69 // pred_check_branch
          %5973 = sbr.rel (%p5971) target = $region128
        $region127: #{wnormal_forward.1} parent=69 // pred_region
          %s5974 = sadd.s32 %s29, %s30
          %s5975 = smul.u32 8, %s5974
          %s5976 = smul.addr %s28, 64
          %s5977 = sadd.s32 %s5975, %s5976
          %s5978 = smul.addr %s5977, 8
          %s5979 = scalar_lea.vmem %s4, %s5978
          // Predicated region
          $region129: #{wnormal_forward.1} parent=127 // pred_check
            _
          $region130: #{wnormal_forward.1} parent=127 // pred_check_branch
            %5981 = sbr.rel (0) target = $region132
          $region131: #{wnormal_forward.1} parent=127 // pred_region
            // Predicated region
            $region133: #{wnormal_forward.1} parent=131 // pred_check
              _
            $region134: #{wnormal_forward.1} parent=131 // pred_check_branch
              %5983 = sbr.rel (0) target = $region136
            $region135: #{wnormal_forward.1} parent=131 // pred_region
              // Predicated region
              $region148: #{wnormal_forward.1} parent=135 // pred_check
                _
              $region149: #{wnormal_forward.1} parent=135 // pred_check_branch
                %6060 = sbr.rel (0) target = $region151
              $region150: #{wnormal_forward.1} parent=135 // pred_region
                loop: start=0, step=1, limit=1
                $region152: #{wnormal_forward.1} parent=150 // loop_pre_header
                  _
                $region153: #{wnormal_forward.1} parent=150 // loop_header
                  %s6062 = sphi 0, %s6066
                  %p6063 = scmp.ge.s32.totalorder %s6062, 1
                  %s6067 = sphi %s5776, %s5776
                  %s6068 = sphi %s5979, %s5979
                $region154: #{wnormal_forward.1} parent=150 // loop_header_branch
                  %6065 = sbr.rel (%p6063) target = $region158
                $region155: #{wnormal_forward.1} parent=150 // loop_body
                  %v6069 = vld [vmem:[%s6067] sm:$0xff]
                  %6070 = vst [vmem:[%s6068] sm:$0xff] %v6069
                  %v6071 = vld [vmem:[%s6067 + $0x8] sm:$0xff]
                  %6072 = vst [vmem:[%s6068 + $0x8] sm:$0xff] %v6071
                  %v6073 = vld [vmem:[%s6067 + $0x10] sm:$0xff]
                  %6074 = vst [vmem:[%s6068 + $0x10] sm:$0xff] %v6073
                  %v6075 = vld [vmem:[%s6067 + $0x18] sm:$0xff]
                  %6076 = vst [vmem:[%s6068 + $0x18] sm:$0xff] %v6075
                  %v6077 = vld [vmem:[%s6067 + $0x20] sm:$0xff]
                  %6078 = vst [vmem:[%s6068 + $0x20] sm:$0xff] %v6077
                  %v6079 = vld [vmem:[%s6067 + $0x28] sm:$0xff]
                  %6080 = vst [vmem:[%s6068 + $0x28] sm:$0xff] %v6079
                  %v6081 = vld [vmem:[%s6067 + $0x30] sm:$0xff]
                  %6082 = vst [vmem:[%s6068 + $0x30] sm:$0xff] %v6081
                  %v6083 = vld [vmem:[%s6067 + $0x38] sm:$0xff]
                  %6084 = vst [vmem:[%s6068 + $0x38] sm:$0xff] %v6083
                  %v6085 = vld [vmem:[%s6067 + $0x40] sm:$0xff]
                  %6086 = vst [vmem:[%s6068 + $0x80] sm:$0xff] %v6085
                  %v6087 = vld [vmem:[%s6067 + $0x48] sm:$0xff]
                  %6088 = vst [vmem:[%s6068 + $0x88] sm:$0xff] %v6087
                  %v6089 = vld [vmem:[%s6067 + $0x50] sm:$0xff]
                  %6090 = vst [vmem:[%s6068 + $0x90] sm:$0xff] %v6089
                  %v6091 = vld [vmem:[%s6067 + $0x58] sm:$0xff]
                  %6092 = vst [vmem:[%s6068 + $0x98] sm:$0xff] %v6091
                  %v6093 = vld [vmem:[%s6067 + $0x60] sm:$0xff]
                  %6094 = vst [vmem:[%s6068 + $0xa0] sm:$0xff] %v6093
                  %v6095 = vld [vmem:[%s6067 + $0x68] sm:$0xff]
                  %6096 = vst [vmem:[%s6068 + $0xa8] sm:$0xff] %v6095
                  %v6097 = vld [vmem:[%s6067 + $0x70] sm:$0xff]
                  %6098 = vst [vmem:[%s6068 + $0xb0] sm:$0xff] %v6097
                  %v6099 = vld [vmem:[%s6067 + $0x78] sm:$0xff]
                  %6100 = vst [vmem:[%s6068 + $0xb8] sm:$0xff] %v6099
                  %v6101 = vld [vmem:[%s6067 + $0x80] sm:$0xff]
                  %6102 = vst [vmem:[%s6068 + $0x100] sm:$0xff] %v6101
                  %v6103 = vld [vmem:[%s6067 + $0x88] sm:$0xff]
                  %6104 = vst [vmem:[%s6068 + $0x108] sm:$0xff] %v6103
                  %v6105 = vld [vmem:[%s6067 + $0x90] sm:$0xff]
                  %6106 = vst [vmem:[%s6068 + $0x110] sm:$0xff] %v6105
                  %v6107 = vld [vmem:[%s6067 + $0x98] sm:$0xff]
                  %6108 = vst [vmem:[%s6068 + $0x118] sm:$0xff] %v6107
                  %v6109 = vld [vmem:[%s6067 + $0xa0] sm:$0xff]
                  %6110 = vst [vmem:[%s6068 + $0x120] sm:$0xff] %v6109
                  %v6111 = vld [vmem:[%s6067 + $0xa8] sm:$0xff]
                  %6112 = vst [vmem:[%s6068 + $0x128] sm:$0xff] %v6111
                  %v6113 = vld [vmem:[%s6067 + $0xb0] sm:$0xff]
                  %6114 = vst [vmem:[%s6068 + $0x130] sm:$0xff] %v6113
                  %v6115 = vld [vmem:[%s6067 + $0xb8] sm:$0xff]
                  %6116 = vst [vmem:[%s6068 + $0x138] sm:$0xff] %v6115
                  %v6117 = vld [vmem:[%s6067 + $0xc0] sm:$0xff]
                  %6118 = vst [vmem:[%s6068 + $0x180] sm:$0xff] %v6117
                  %v6119 = vld [vmem:[%s6067 + $0xc8] sm:$0xff]
                  %6120 = vst [vmem:[%s6068 + $0x188] sm:$0xff] %v6119
                  %v6121 = vld [vmem:[%s6067 + $0xd0] sm:$0xff]
                  %6122 = vst [vmem:[%s6068 + $0x190] sm:$0xff] %v6121
                  %v6123 = vld [vmem:[%s6067 + $0xd8] sm:$0xff]
                  %6124 = vst [vmem:[%s6068 + $0x198] sm:$0xff] %v6123
                  %v6125 = vld [vmem:[%s6067 + $0xe0] sm:$0xff]
                  %6126 = vst [vmem:[%s6068 + $0x1a0] sm:$0xff] %v6125
                  %v6127 = vld [vmem:[%s6067 + $0xe8] sm:$0xff]
                  %6128 = vst [vmem:[%s6068 + $0x1a8] sm:$0xff] %v6127
                  %v6129 = vld [vmem:[%s6067 + $0xf0] sm:$0xff]
                  %6130 = vst [vmem:[%s6068 + $0x1b0] sm:$0xff] %v6129
                  %v6131 = vld [vmem:[%s6067 + $0xf8] sm:$0xff]
                  %6132 = vst [vmem:[%s6068 + $0x1b8] sm:$0xff] %v6131
                $region156: #{wnormal_forward.1} parent=150 // loop_footer
                  %s6066 = sadd.s32 1, %s6062
                $region157: #{wnormal_forward.1} parent=150 // loop_footer_branch
                  %6061 = sbr.rel target = $region153
                $region158: #{wnormal_forward.1} parent=150 // loop_exit
                  _
              $region151: #{wnormal_forward.1} parent=135 // pred_fallthru
                _
              // Predicated region
              $region159: #{wnormal_forward.1} parent=135 // pred_check
                _
              $region160: #{wnormal_forward.1} parent=135 // pred_check_branch
                %6134 = sbr.rel target = $region162
              $region161: #{wnormal_forward.1} parent=135 // pred_region
                _
              $region162: #{wnormal_forward.1} parent=135 // pred_fallthru
                _
            $region136: #{wnormal_forward.1} parent=131 // pred_fallthru
              _
            // Predicated region
            $region137: #{wnormal_forward.1} parent=131 // pred_check
              _
            $region138: #{wnormal_forward.1} parent=131 // pred_check_branch
              %5985 = sbr.rel target = $region140
            $region139: #{wnormal_forward.1} parent=131 // pred_region
              loop: start=0, step=1, limit=1
              $region141: #{wnormal_forward.1} parent=139 // loop_pre_header
                _
              $region142: #{wnormal_forward.1} parent=139 // loop_header
                %s5988 = sphi 0, %s5992
                %p5989 = scmp.ge.s32.totalorder %s5988, 1
                %s5993 = sphi %s5776, %s5776
                %s5994 = sphi %s5979, %s5979
              $region143: #{wnormal_forward.1} parent=139 // loop_header_branch
                %5991 = sbr.rel (%p5989) target = $region147
              $region144: #{wnormal_forward.1} parent=139 // loop_body
                %v5995 = vld [vmem:[%s5993] sm:$0xff]
                %5996 = vst [vmem:[%s5994] sm:$0xff] %v5995
                %v5997 = vld [vmem:[%s5993 + $0x8] sm:$0xff]
                %5998 = vst [vmem:[%s5994 + $0x8] sm:$0xff] %v5997
                %v5999 = vld [vmem:[%s5993 + $0x10] sm:$0xff]
                %6000 = vst [vmem:[%s5994 + $0x10] sm:$0xff] %v5999
                %v6001 = vld [vmem:[%s5993 + $0x18] sm:$0xff]
                %6002 = vst [vmem:[%s5994 + $0x18] sm:$0xff] %v6001
                %v6003 = vld [vmem:[%s5993 + $0x20] sm:$0xff]
                %6004 = vst [vmem:[%s5994 + $0x20] sm:$0xff] %v6003
                %v6005 = vld [vmem:[%s5993 + $0x28] sm:$0xff]
                %6006 = vst [vmem:[%s5994 + $0x28] sm:$0xff] %v6005
                %v6007 = vld [vmem:[%s5993 + $0x30] sm:$0xff]
                %6008 = vst [vmem:[%s5994 + $0x30] sm:$0xff] %v6007
                %v6009 = vld [vmem:[%s5993 + $0x38] sm:$0xff]
                %6010 = vst [vmem:[%s5994 + $0x38] sm:$0xff] %v6009
                %v6011 = vld [vmem:[%s5993 + $0x40] sm:$0xff]
                %6012 = vst [vmem:[%s5994 + $0x80] sm:$0xff] %v6011
                %v6013 = vld [vmem:[%s5993 + $0x48] sm:$0xff]
                %6014 = vst [vmem:[%s5994 + $0x88] sm:$0xff] %v6013
                %v6015 = vld [vmem:[%s5993 + $0x50] sm:$0xff]
                %6016 = vst [vmem:[%s5994 + $0x90] sm:$0xff] %v6015
                %v6017 = vld [vmem:[%s5993 + $0x58] sm:$0xff]
                %6018 = vst [vmem:[%s5994 + $0x98] sm:$0xff] %v6017
                %v6019 = vld [vmem:[%s5993 + $0x60] sm:$0xff]
                %6020 = vst [vmem:[%s5994 + $0xa0] sm:$0xff] %v6019
                %v6021 = vld [vmem:[%s5993 + $0x68] sm:$0xff]
                %6022 = vst [vmem:[%s5994 + $0xa8] sm:$0xff] %v6021
                %v6023 = vld [vmem:[%s5993 + $0x70] sm:$0xff]
                %6024 = vst [vmem:[%s5994 + $0xb0] sm:$0xff] %v6023
                %v6025 = vld [vmem:[%s5993 + $0x78] sm:$0xff]
                %6026 = vst [vmem:[%s5994 + $0xb8] sm:$0xff] %v6025
                %v6027 = vld [vmem:[%s5993 + $0x80] sm:$0xff]
                %6028 = vst [vmem:[%s5994 + $0x100] sm:$0xff] %v6027
                %v6029 = vld [vmem:[%s5993 + $0x88] sm:$0xff]
                %6030 = vst [vmem:[%s5994 + $0x108] sm:$0xff] %v6029
                %v6031 = vld [vmem:[%s5993 + $0x90] sm:$0xff]
                %6032 = vst [vmem:[%s5994 + $0x110] sm:$0xff] %v6031
                %v6033 = vld [vmem:[%s5993 + $0x98] sm:$0xff]
                %6034 = vst [vmem:[%s5994 + $0x118] sm:$0xff] %v6033
                %v6035 = vld [vmem:[%s5993 + $0xa0] sm:$0xff]
                %6036 = vst [vmem:[%s5994 + $0x120] sm:$0xff] %v6035
                %v6037 = vld [vmem:[%s5993 + $0xa8] sm:$0xff]
                %6038 = vst [vmem:[%s5994 + $0x128] sm:$0xff] %v6037
                %v6039 = vld [vmem:[%s5993 + $0xb0] sm:$0xff]
                %6040 = vst [vmem:[%s5994 + $0x130] sm:$0xff] %v6039
                %v6041 = vld [vmem:[%s5993 + $0xb8] sm:$0xff]
                %6042 = vst [vmem:[%s5994 + $0x138] sm:$0xff] %v6041
                %v6043 = vld [vmem:[%s5993 + $0xc0] sm:$0xff]
                %6044 = vst [vmem:[%s5994 + $0x180] sm:$0xff] %v6043
                %v6045 = vld [vmem:[%s5993 + $0xc8] sm:$0xff]
                %6046 = vst [vmem:[%s5994 + $0x188] sm:$0xff] %v6045
                %v6047 = vld [vmem:[%s5993 + $0xd0] sm:$0xff]
                %6048 = vst [vmem:[%s5994 + $0x190] sm:$0xff] %v6047
                %v6049 = vld [vmem:[%s5993 + $0xd8] sm:$0xff]
                %6050 = vst [vmem:[%s5994 + $0x198] sm:$0xff] %v6049
                %v6051 = vld [vmem:[%s5993 + $0xe0] sm:$0xff]
                %6052 = vst [vmem:[%s5994 + $0x1a0] sm:$0xff] %v6051
                %v6053 = vld [vmem:[%s5993 + $0xe8] sm:$0xff]
                %6054 = vst [vmem:[%s5994 + $0x1a8] sm:$0xff] %v6053
                %v6055 = vld [vmem:[%s5993 + $0xf0] sm:$0xff]
                %6056 = vst [vmem:[%s5994 + $0x1b0] sm:$0xff] %v6055
                %v6057 = vld [vmem:[%s5993 + $0xf8] sm:$0xff]
                %6058 = vst [vmem:[%s5994 + $0x1b8] sm:$0xff] %v6057
              $region145: #{wnormal_forward.1} parent=139 // loop_footer
                %s5992 = sadd.s32 1, %s5988
              $region146: #{wnormal_forward.1} parent=139 // loop_footer_branch
                %5987 = sbr.rel target = $region142
              $region147: #{wnormal_forward.1} parent=139 // loop_exit
                _
            $region140: #{wnormal_forward.1} parent=131 // pred_fallthru
              _
          $region132: #{wnormal_forward.1} parent=127 // pred_fallthru
            _
          %6135 = vnop
        $region128: #{wnormal_forward.1} parent=69 // pred_fallthru
          _
        // Predicated region
        $region163: #{wnormal_forward.1} parent=69 // pred_check
          %p6136 = pneg %p203
        $region164: #{wnormal_forward.1} parent=69 // pred_check_branch
          %6138 = sbr.rel (%p6136) target = $region166
        $region165: #{wnormal_forward.1} parent=69 // pred_region
          _
        $region166: #{wnormal_forward.1} parent=69 // pred_fallthru
          _
        // Predicated region
        $region167: #{wnormal_forward.1} parent=69 // pred_check
          %p6139 = pneg %p231
        $region168: #{wnormal_forward.1} parent=69 // pred_check_branch
          %6141 = sbr.rel (%p6139) target = $region170
        $region169: #{wnormal_forward.1} parent=69 // pred_region
          _
        $region170: #{wnormal_forward.1} parent=69 // pred_fallthru
          _
        // Predicated region
        $region171: #{wnormal_forward.1} parent=69 // pred_check
          %p6142 = pneg %p259
        $region172: #{wnormal_forward.1} parent=69 // pred_check_branch
          %6144 = sbr.rel (%p6142) target = $region174
        $region173: #{wnormal_forward.1} parent=69 // pred_region
          _
        $region174: #{wnormal_forward.1} parent=69 // pred_fallthru
          _
        // Predicated region
        $region175: #{wnormal_forward.1} parent=69 // pred_check
          %p6145 = pneg %p287
        $region176: #{wnormal_forward.1} parent=69 // pred_check_branch
          %6147 = sbr.rel (%p6145) target = $region178
        $region177: #{wnormal_forward.1} parent=69 // pred_region
          %s6149 = ssub.s32 128, 128
          %6150 = vsyncadd %s5802, %s6149
          %s6151 = smul.addr %s28, 2
          %s6152 = sadd.s32 %s29, %s6151
          %s6153 = smul.addr %s6152, 128
          %s6154 = scalar_lea.hbm %s8, %s6153
          %s6156 = sshll.u32 %s5805, 4
          %s6157 = int_to_ptr.vmem [resolvable:$true] %s6156
          %6159 = dma.vmem_to_hbm [thread:$0]  %s6157, 128, %s6154, %s5802
        $region178: #{wnormal_forward.1} parent=69 // pred_fallthru
          _
      $region70: #{wnormal_forward.1} parent=5 // pred_fallthru
        _
      %p6160 = scmp.le.s32.totalorder 2, %s18
      // Predicated region
      $region179: #{wnormal_forward.1} parent=5 // pred_check
        %p6161 = pneg %p6160
      $region180: #{wnormal_forward.1} parent=5 // pred_check_branch
        %6163 = sbr.rel (%p6161) target = $region182
      $region181: #{wnormal_forward.1} parent=5 // pred_region
        %s6164 = ssub.s32 %s18, 2
        // Predicated region
        $region183: #{wnormal_forward.1} parent=181 // pred_check
          %p6165 = pneg %p151
        $region184: #{wnormal_forward.1} parent=181 // pred_check_branch
          %6167 = sbr.rel (%p6165) target = $region186
        $region185: #{wnormal_forward.1} parent=181 // pred_region
          %s6168 = sand.u32 %s136, 1
          %s6169 = sand.u32 %s136, 1
          %s6170 = smul.addr %s6169, 256
          %s6171 = scalar_lea.vmem [#allocation4], %s6170
        $region186: #{wnormal_forward.1} parent=181 // pred_fallthru
          _
        // Predicated region
        $region187: #{wnormal_forward.1} parent=181 // pred_check
          %p6172 = pneg %p181
        $region188: #{wnormal_forward.1} parent=181 // pred_check_branch
          %6174 = sbr.rel (%p6172) target = $region190
        $region189: #{wnormal_forward.1} parent=181 // pred_region
          %s6175 = sand.u32 %s166, 1
          %s6176 = sand.u32 %s166, 1
          %s6177 = smul.addr %s6176, 256
          %s6178 = scalar_lea.vmem [#allocation5], %s6177
        $region190: #{wnormal_forward.1} parent=181 // pred_fallthru
          _
        // Predicated region
        $region191: #{wnormal_forward.1} parent=181 // pred_check
          %p6179 = pneg %p209
        $region192: #{wnormal_forward.1} parent=181 // pred_check_branch
          %6181 = sbr.rel (%p6179) target = $region194
        $region193: #{wnormal_forward.1} parent=181 // pred_region
          %p6182 = scmp.lt.s32.totalorder %s31, 1
          %s6183 = scalar_select %p6182, %s31, 1
          %p6184 = scmp.lt.s32.totalorder %s32, 1
          %s6185 = scalar_select %p6184, %s32, 1
          %s6186 = smul.addr %s6183, 2
          %s6187 = sadd.s32 %s6185, %s6186
          %s6188 = smul.addr %s6187, 8
          %s6189 = scalar_lea.vmem %s5, %s6188
        $region194: #{wnormal_forward.1} parent=181 // pred_fallthru
          _
        // Predicated region
        $region195: #{wnormal_forward.1} parent=181 // pred_check
          %p6190 = pneg %p237
        $region196: #{wnormal_forward.1} parent=181 // pred_check_branch
          %6192 = sbr.rel (%p6190) target = $region198
        $region197: #{wnormal_forward.1} parent=181 // pred_region
          %p6193 = scmp.lt.s32.totalorder %s31, 1
          %s6194 = scalar_select %p6193, %s31, 1
          %p6195 = scmp.lt.s32.totalorder %s32, 1
          %s6196 = scalar_select %p6195, %s32, 1
          %s6197 = smul.addr %s6194, 2
          %s6198 = sadd.s32 %s6196, %s6197
          %s6199 = smul.addr %s6198, 8
          %s6200 = scalar_lea.vmem %s6, %s6199
        $region198: #{wnormal_forward.1} parent=181 // pred_fallthru
          _
        // Predicated region
        $region199: #{wnormal_forward.1} parent=181 // pred_check
          %p6201 = pneg %p265
        $region200: #{wnormal_forward.1} parent=181 // pred_check_branch
          %6203 = sbr.rel (%p6201) target = $region202
        $region201: #{wnormal_forward.1} parent=181 // pred_region
          %p6204 = scmp.lt.s32.totalorder %s31, 1
          %s6205 = scalar_select %p6204, %s31, 1
          %p6206 = scmp.lt.s32.totalorder %s32, 1
          %s6207 = scalar_select %p6206, %s32, 1
          %s6208 = smul.addr %s6205, 2
          %s6209 = sadd.s32 %s6207, %s6208
          %s6210 = smul.addr %s6209, 8
          %s6211 = scalar_lea.vmem %s7, %s6210
        $region202: #{wnormal_forward.1} parent=181 // pred_fallthru
          _
        // Predicated region
        $region203: #{wnormal_forward.1} parent=181 // pred_check
          %p6212 = pneg %p293
        $region204: #{wnormal_forward.1} parent=181 // pred_check_branch
          %6214 = sbr.rel (%p6212) target = $region206
        $region205: #{wnormal_forward.1} parent=181 // pred_region
          %s6215 = sand.u32 %s278, 1
          %s6216 = scalar_lea.sflag [#allocation7], %s6215
          %s6217 = sand.u32 %s278, 1
          %s6218 = smul.addr %s6217, 8
          %s6219 = scalar_lea.vmem [#allocation6], %s6218
          %6220 = dma.done %s6216, 128
        $region206: #{wnormal_forward.1} parent=181 // pred_fallthru
          _
      $region182: #{wnormal_forward.1} parent=5 // pred_fallthru
        _
    $region6: #{wnormal_forward.1} parent=1 // loop_footer
      %s22 = sadd.s32 1, %s18
    $region7: #{wnormal_forward.1} parent=1 // loop_footer_branch
      %17 = sbr.rel target = $region3
    $region8: #{wnormal_forward.1} parent=1 // loop_exit
      _
    %6221 = vsyncpa [#allocation7], 1
    %s6222 = scalar_lea.sflag [#allocation7], 1
    %6223 = vsyncpa %s6222, 1

</llo_original>
